<compile_context>
chip_gen: v7x
topology: tpu7x:2x2x1
jax: 0.10.0
libtpu: 0.0.40
codegen_flags: <defaults>
</compile_context>

<pallas_src>
import jax
import jax.numpy as jnp
from jax.experimental import pallas as pl
from jax.experimental.pallas import tpu as pltpu

EPS = 1e-5
HEAD_WIDTH = 128  # layer3 output width == fused-head width (fixed by the module)


def _round_up(x, m):
    return ((x + m - 1) // m) * m


def _bn(x, gamma, beta, mean, var):
    # BatchNorm1d, eval mode (reference only — folded away in the kernel).
    return (x - mean) * jax.lax.rsqrt(var + EPS) * gamma + beta


# ----------------------------------------------------------------------------
# Kernel
# ----------------------------------------------------------------------------
def make_qnet_kernel(plan):
    """plan: static list of (has_downsample: bool, out_features: int)."""

    def kernel(*refs):
        x_ref = refs[0]
        bias_ref = refs[-2]          # [n_rows, 512] packed bias slab
        out_ref = refs[-1]           # [TB, 128] lane-dense output slab
        w_refs = refs[1:-2]

        wi = [0]
        bi = [0]

        def next_w():
            w = w_refs[wi[0]][...]
            wi[0] += 1
            return w

        def next_b(width):
            b = bias_ref[bi[0]:bi[0] + 1, 0:width]   # static slice -> (1, width)
            bi[0] += 1
            return b

        x = x_ref[...]               # (TB, K_pad) f32

        # --- residual stages (layer1 / layer2 / layer3), fully unrolled ---
        for has_ds, out_f in plan:
            W1 = next_w()
            W2 = next_w()
            b1 = next_b(out_f)
            b2 = next_b(out_f)
            if has_ds:
                Wd = next_w()
                bd = next_b(out_f)

            h = jnp.maximum(
                jnp.dot(x, W1, preferred_element_type=jnp.float32) + b1, 0.0)
            h = jnp.dot(h, W2, preferred_element_type=jnp.float32) + b2
            if has_ds:
                res = jnp.dot(x, Wd, preferred_element_type=jnp.float32) + bd
            else:
                res = x
            x = jnp.maximum(h + res, 0.0)

        # --- fused dueling heads: one 128-wide matmul, then block-diag matmul ---
        Wh1 = next_w()
        bh1 = next_b(HEAD_WIDTH)
        Wh2 = next_w()
        bh2 = next_b(HEAD_WIDTH)
        h = jnp.maximum(
            jnp.dot(x, Wh1, preferred_element_type=jnp.float32) + bh1, 0.0)
        # col 0 = value, cols 1..A = advantage, remaining cols = 0
        out_ref[...] = jnp.dot(h, Wh2, preferred_element_type=jnp.float32) + bh2

    return kernel


# ----------------------------------------------------------------------------
# Wrapper
# ----------------------------------------------------------------------------
def qnetwork_forward(state, weights, bias_slab, plan, action_size, k_pad, tb=128):
    B, S = state.shape
    tb_eff = min(tb, _round_up(max(B, 8), 8))
    B_pad = _round_up(B, tb_eff)

    x = state
    if B_pad != B or k_pad != S:
        x = jnp.pad(state, ((0, B_pad - B), (0, k_pad - S)))

    kernel = make_qnet_kernel(plan)

    in_specs = [pl.BlockSpec((tb_eff, k_pad), lambda i: (i, 0))]
    for w in weights:
        # Constant block index -> weights stay VMEM-resident across grid steps.
        in_specs.append(pl.BlockSpec(w.shape, lambda i: (0, 0)))
    in_specs.append(pl.BlockSpec(bias_slab.shape, lambda i: (0, 0)))

    out = pl.pallas_call(
        kernel,
        out_shape=jax.ShapeDtypeStruct((B_pad, HEAD_WIDTH), jnp.float32),
        grid=(B_pad // tb_eff,),
        in_specs=in_specs,
        out_specs=pl.BlockSpec((tb_eff, HEAD_WIDTH), lambda i: (i, 0)),
        compiler_params=pltpu.CompilerParams(
            dimension_semantics=("parallel",),
            vmem_limit_bytes=48 * 1024 * 1024,
        ),
    )(x, *weights, bias_slab)

    value = out[:B, 0:1]
    adv = out[:B, 1:1 + action_size]
    # PyTorch: `value + advantage - advantage.mean()` -> GLOBAL mean over all
    # elements of `advantage` (batch AND actions), matching torch semantics.
    return value + adv - jnp.mean(adv)


# ----------------------------------------------------------------------------
# Parameter construction (raw torch-style params + host-side fold/pack)
# ----------------------------------------------------------------------------
def init_raw_params(key, state_size, action_size, block_nums):
    keys = iter(jax.random.split(key, 256))

    def lin(inp, out):
        W = jax.random.normal(next(keys), (inp, out), jnp.float32) / jnp.sqrt(float(inp))
        b = 0.01 * jax.random.normal(next(keys), (1, out), jnp.float32)
        return W, b

    def bn(out):
        gamma = 1.0 + 0.1 * jax.random.normal(next(keys), (1, out), jnp.float32)
        beta = 0.1 * jax.random.normal(next(keys), (1, out), jnp.float32)
        mean = 0.1 * jax.random.normal(next(keys), (1, out), jnp.float32)
        var = 1.0 + 0.1 * jax.random.uniform(next(keys), (1, out), jnp.float32)
        return gamma, beta, mean, var

    params, plan = [], []
    in_units = state_size
    for outputs, nblocks in zip((512, 256, 128), block_nums):
        for b in range(nblocks):
            inp = in_units if b == 0 else outputs
            has_ds = (b == 0 and inp != outputs)
            W1, b1 = lin(inp, outputs)
            W2, b2 = lin(outputs, outputs)
            params += [W1, b1, *bn(outputs), W2, b2, *bn(outputs)]
            if has_ds:
                Wd, bd = lin(inp, outputs)
                params += [Wd, bd, *bn(outputs)]
            plan.append((has_ds, outputs))
        in_units = outputs

    Wv1, bv1 = lin(128, 64)
    Wv2, bv2 = lin(64, 1)
    Wa1, ba1 = lin(128, 64)
    Wa2, ba2 = lin(64, action_size)
    params += [Wv1, bv1, Wv2, bv2, Wa1, ba1, Wa2, ba2]
    return params, plan


def fold_and_pack(raw_params, plan, state_size, action_size):
    """Fold BN into Linears, pad first-layer K, fuse dueling heads, pack biases."""
    it = iter(raw_params)

    def take(n):
        return [next(it) for _ in range(n)]

    def fold(W, b, g, beta, m, v):
        s = g * jax.lax.rsqrt(v + EPS)                 # (1, out)
        return W * s, (b - m) * s + beta

    k_pad = _round_up(state_size, 128)
    weights, bias_rows = [], []

    for idx, (has_ds, _out_f) in enumerate(plan):
        W1, b1, g1, be1, m1, v1 = take(6)
        W2, b2, g2, be2, m2, v2 = take(6)
        W1f, b1f = fold(W1, b1, g1, be1, m1, v1)
        W2f, b2f = fold(W2, b2, g2, be2, m2, v2)
        if idx == 0 and k_pad != state_size:
            W1f = jnp.pad(W1f, ((0, k_pad - state_size), (0, 0)))
        weights += [W1f, W2f]
        bias_rows += [b1f, b2f]
        if has_ds:
            Wd, bd, gd, bed, md, vd = take(6)
            Wdf, bdf = fold(Wd, bd, gd, bed, md, vd)
            if idx == 0 and k_pad != state_size:
                Wdf = jnp.pad(Wdf, ((0, k_pad - state_size), (0, 0)))
            weights.append(Wdf)
            bias_rows.append(bdf)

    Wv1, bv1, Wv2, bv2, Wa1, ba1, Wa2, ba2 = take(8)
    # Fused first head layer: lane-dense [128, 128]
    Wh1 = jnp.concatenate([Wv1, Wa1], axis=1)
    bh1 = jnp.concatenate([bv1, ba1], axis=1)
    # Fused second head layer: block-diagonal into a lane-dense [128, 128] slab
    Wh2 = jnp.zeros((HEAD_WIDTH, HEAD_WIDTH), jnp.float32)
    Wh2 = Wh2.at[:64, 0:1].set(Wv2)
    Wh2 = Wh2.at[64:128, 1:1 + action_size].set(Wa2)
    bh2 = jnp.zeros((1, HEAD_WIDTH), jnp.float32)
    bh2 = bh2.at[:, 0:1].set(bv2)
    bh2 = bh2.at[:, 1:1 + action_size].set(ba2)
    weights += [Wh1, Wh2]
    bias_rows += [bh1, bh2]

    max_w = max(b.shape[1] for b in bias_rows)
    bias_slab = jnp.concatenate(
        [jnp.pad(b, ((0, 0), (0, max_w - b.shape[1]))) for b in bias_rows], axis=0)
    return weights, bias_slab, k_pad


# ----------------------------------------------------------------------------
# Pure-JAX reference (mirrors the PyTorch semantics, un-folded BN)
# ----------------------------------------------------------------------------
def ref_forward(state, raw_params, plan, action_size):
    it = iter(raw_params)

    def take(n):
        return [next(it) for _ in range(n)]

    x = state
    for has_ds, _ in plan:
        W1, b1, g1, be1, m1, v1 = take(6)
        W2, b2, g2, be2, m2, v2 = take(6)
        out = jnp.maximum(_bn(x @ W1 + b1, g1, be1, m1, v1), 0.0)
        out = _bn(out @ W2 + b2, g2, be2, m2, v2)
        residual = x
        if has_ds:
            Wd, bd, gd, bed, md, vd = take(6)
            residual = _bn(x @ Wd + bd, gd, bed, md, vd)
        x = jnp.maximum(out + residual, 0.0)
    Wv1, bv1, Wv2, bv2, Wa1, ba1, Wa2, ba2 = take(8)
    value = jnp.maximum(x @ Wv1 + bv1, 0.0) @ Wv2 + bv2
    adv = jnp.maximum(x @ Wa1 + ba1, 0.0) @ Wa2 + ba2
    return value + adv - jnp.mean(adv)


if __name__ == "__main__":
    key = jax.random.PRNGKey(0)
    batch, state_size, action_size = 128, 32, 4   # batch=128 -> MXU-row aligned
    block_nums = (2, 1, 1)                        # layer1: 2 resblocks; layer2/3: 1

    k_params, k_x = jax.random.split(key)
    raw_params, plan = init_raw_params(k_params, state_size, action_size, block_nums)
    weights, bias_slab, k_pad = fold_and_pack(raw_params, plan, state_size, action_size)
    x = jax.random.normal(k_x, (batch, state_size), jnp.float32)

    out = qnetwork_forward(x, weights, bias_slab, plan, action_size, k_pad)
    out = jax.block_until_ready(out)

    ref = ref_forward(x, raw_params, plan, action_size)
    assert out.shape == (batch, action_size), out.shape
    err = jnp.max(jnp.abs(out - ref))
    assert jnp.allclose(out, ref, atol=1e-3, rtol=1e-3), f"max abs err {err}"
    print("KERNEL_OK")
</pallas_src>

<mosaic_0001>
module attributes {stable_mosaic.version = 11 : i64} {
  func.func @kernel(%arg0: i32, %arg1: memref<128x128xf32, #tpu.memory_space<vmem>>, %arg2: memref<128x512xf32, #tpu.memory_space<vmem>>, %arg3: memref<512x512xf32, #tpu.memory_space<vmem>>, %arg4: memref<128x512xf32, #tpu.memory_space<vmem>>, %arg5: memref<512x512xf32, #tpu.memory_space<vmem>>, %arg6: memref<512x512xf32, #tpu.memory_space<vmem>>, %arg7: memref<512x256xf32, #tpu.memory_space<vmem>>, %arg8: memref<256x256xf32, #tpu.memory_space<vmem>>, %arg9: memref<512x256xf32, #tpu.memory_space<vmem>>, %arg10: memref<256x128xf32, #tpu.memory_space<vmem>>, %arg11: memref<128x128xf32, #tpu.memory_space<vmem>>, %arg12: memref<256x128xf32, #tpu.memory_space<vmem>>, %arg13: memref<128x128xf32, #tpu.memory_space<vmem>>, %arg14: memref<128x128xf32, #tpu.memory_space<vmem>>, %arg15: memref<13x512xf32, #tpu.memory_space<vmem>>, %arg16: memref<128x128xf32, #tpu.memory_space<vmem>>) attributes {dimension_semantics = [#tpu.dimension_semantics<parallel>], iteration_bounds = array<i64: 1>, scalar_prefetch = 0 : i64, scratch_operands = 0 : i64, tpu.core_type = #tpu.core_type<tc>, window_params = [{transform_indices = @transform_0, window_bounds = array<i64: 128, 128>}, {pipeline_mode = #tpu.pipeline_mode<synchronous>, transform_indices = @transform_1, window_bounds = array<i64: 128, 512>}, {pipeline_mode = #tpu.pipeline_mode<synchronous>, transform_indices = @transform_2, window_bounds = array<i64: 512, 512>}, {pipeline_mode = #tpu.pipeline_mode<synchronous>, transform_indices = @transform_3, window_bounds = array<i64: 128, 512>}, {pipeline_mode = #tpu.pipeline_mode<synchronous>, transform_indices = @transform_4, window_bounds = array<i64: 512, 512>}, {pipeline_mode = #tpu.pipeline_mode<synchronous>, transform_indices = @transform_5, window_bounds = array<i64: 512, 512>}, {pipeline_mode = #tpu.pipeline_mode<synchronous>, transform_indices = @transform_6, window_bounds = array<i64: 512, 256>}, {pipeline_mode = #tpu.pipeline_mode<synchronous>, transform_indices = @transform_7, window_bounds = array<i64: 256, 256>}, {pipeline_mode = #tpu.pipeline_mode<synchronous>, transform_indices = @transform_8, window_bounds = array<i64: 512, 256>}, {pipeline_mode = #tpu.pipeline_mode<synchronous>, transform_indices = @transform_9, window_bounds = array<i64: 256, 128>}, {pipeline_mode = #tpu.pipeline_mode<synchronous>, transform_indices = @transform_10, window_bounds = array<i64: 128, 128>}, {pipeline_mode = #tpu.pipeline_mode<synchronous>, transform_indices = @transform_11, window_bounds = array<i64: 256, 128>}, {pipeline_mode = #tpu.pipeline_mode<synchronous>, transform_indices = @transform_12, window_bounds = array<i64: 128, 128>}, {pipeline_mode = #tpu.pipeline_mode<synchronous>, transform_indices = @transform_13, window_bounds = array<i64: 128, 128>}, {pipeline_mode = #tpu.pipeline_mode<synchronous>, transform_indices = @transform_14, window_bounds = array<i64: 13, 512>}, {transform_indices = @transform_15, window_bounds = array<i64: 128, 128>}]} {
    %c0 = arith.constant 0 : index
    %c0_0 = arith.constant 0 : index
    %0 = vector.load %arg1[%c0, %c0_0] : memref<128x128xf32, #tpu.memory_space<vmem>>, vector<128x128xf32>
    %c0_1 = arith.constant 0 : index
    %c0_2 = arith.constant 0 : index
    %1 = vector.load %arg2[%c0_1, %c0_2] : memref<128x512xf32, #tpu.memory_space<vmem>>, vector<128x512xf32>
    %c0_3 = arith.constant 0 : index
    %c0_4 = arith.constant 0 : index
    %2 = vector.load %arg3[%c0_3, %c0_4] : memref<512x512xf32, #tpu.memory_space<vmem>>, vector<512x512xf32>
    %c0_5 = arith.constant 0 : index
    %c0_6 = arith.constant 0 : index
    %3 = vector.load %arg15[%c0_5, %c0_6] : memref<13x512xf32, #tpu.memory_space<vmem>>, vector<1x512xf32>
    %c1 = arith.constant 1 : index
    %c0_7 = arith.constant 0 : index
    %4 = vector.load %arg15[%c1, %c0_7] : memref<13x512xf32, #tpu.memory_space<vmem>>, vector<1x512xf32>
    %c0_8 = arith.constant 0 : index
    %c0_9 = arith.constant 0 : index
    %5 = vector.load %arg4[%c0_8, %c0_9] : memref<128x512xf32, #tpu.memory_space<vmem>>, vector<128x512xf32>
    %c2 = arith.constant 2 : index
    %c0_10 = arith.constant 0 : index
    %6 = vector.load %arg15[%c2, %c0_10] : memref<13x512xf32, #tpu.memory_space<vmem>>, vector<1x512xf32>
    %cst = arith.constant dense<0.000000e+00> : vector<128x512xf32>
    %7 = tpu.matmul %0, %1, %cst {dimension_numbers = #tpu.dot_dimension_numbers<[1], [0], [0], [1], [0, 0, 1, 1], [], []>} : vector<128x128xf32>, vector<128x512xf32>, vector<128x512xf32> -> vector<128x512xf32>
    %8 = vector.broadcast %3 : vector<1x512xf32> to vector<128x512xf32>
    %9 = arith.addf %7, %8 : vector<128x512xf32>
    %cst_11 = arith.constant 0.000000e+00 : f32
    %10 = vector.broadcast %cst_11 : f32 to vector<128x512xf32>
    %11 = arith.maximumf %9, %10 : vector<128x512xf32>
    %cst_12 = arith.constant dense<0.000000e+00> : vector<128x512xf32>
    %12 = tpu.matmul %11, %2, %cst_12 {dimension_numbers = #tpu.dot_dimension_numbers<[1], [0], [0], [1], [0, 0, 1, 1], [], []>} : vector<128x512xf32>, vector<512x512xf32>, vector<128x512xf32> -> vector<128x512xf32>
    %13 = vector.broadcast %4 : vector<1x512xf32> to vector<128x512xf32>
    %14 = arith.addf %12, %13 : vector<128x512xf32>
    %cst_13 = arith.constant dense<0.000000e+00> : vector<128x512xf32>
    %15 = tpu.matmul %0, %5, %cst_13 {dimension_numbers = #tpu.dot_dimension_numbers<[1], [0], [0], [1], [0, 0, 1, 1], [], []>} : vector<128x128xf32>, vector<128x512xf32>, vector<128x512xf32> -> vector<128x512xf32>
    %16 = vector.broadcast %6 : vector<1x512xf32> to vector<128x512xf32>
    %17 = arith.addf %15, %16 : vector<128x512xf32>
    %18 = arith.addf %14, %17 : vector<128x512xf32>
    %cst_14 = arith.constant 0.000000e+00 : f32
    %19 = vector.broadcast %cst_14 : f32 to vector<128x512xf32>
    %20 = arith.maximumf %18, %19 : vector<128x512xf32>
    %c0_15 = arith.constant 0 : index
    %c0_16 = arith.constant 0 : index
    %21 = vector.load %arg5[%c0_15, %c0_16] : memref<512x512xf32, #tpu.memory_space<vmem>>, vector<512x512xf32>
    %c0_17 = arith.constant 0 : index
    %c0_18 = arith.constant 0 : index
    %22 = vector.load %arg6[%c0_17, %c0_18] : memref<512x512xf32, #tpu.memory_space<vmem>>, vector<512x512xf32>
    %c3 = arith.constant 3 : index
    %c0_19 = arith.constant 0 : index
    %23 = vector.load %arg15[%c3, %c0_19] : memref<13x512xf32, #tpu.memory_space<vmem>>, vector<1x512xf32>
    %c4 = arith.constant 4 : index
    %c0_20 = arith.constant 0 : index
    %24 = vector.load %arg15[%c4, %c0_20] : memref<13x512xf32, #tpu.memory_space<vmem>>, vector<1x512xf32>
    %cst_21 = arith.constant dense<0.000000e+00> : vector<128x512xf32>
    %25 = tpu.matmul %20, %21, %cst_21 {dimension_numbers = #tpu.dot_dimension_numbers<[1], [0], [0], [1], [0, 0, 1, 1], [], []>} : vector<128x512xf32>, vector<512x512xf32>, vector<128x512xf32> -> vector<128x512xf32>
    %26 = vector.broadcast %23 : vector<1x512xf32> to vector<128x512xf32>
    %27 = arith.addf %25, %26 : vector<128x512xf32>
    %cst_22 = arith.constant 0.000000e+00 : f32
    %28 = vector.broadcast %cst_22 : f32 to vector<128x512xf32>
    %29 = arith.maximumf %27, %28 : vector<128x512xf32>
    %cst_23 = arith.constant dense<0.000000e+00> : vector<128x512xf32>
    %30 = tpu.matmul %29, %22, %cst_23 {dimension_numbers = #tpu.dot_dimension_numbers<[1], [0], [0], [1], [0, 0, 1, 1], [], []>} : vector<128x512xf32>, vector<512x512xf32>, vector<128x512xf32> -> vector<128x512xf32>
    %31 = vector.broadcast %24 : vector<1x512xf32> to vector<128x512xf32>
    %32 = arith.addf %30, %31 : vector<128x512xf32>
    %33 = arith.addf %32, %20 : vector<128x512xf32>
    %cst_24 = arith.constant 0.000000e+00 : f32
    %34 = vector.broadcast %cst_24 : f32 to vector<128x512xf32>
    %35 = arith.maximumf %33, %34 : vector<128x512xf32>
    %c0_25 = arith.constant 0 : index
    %c0_26 = arith.constant 0 : index
    %36 = vector.load %arg7[%c0_25, %c0_26] : memref<512x256xf32, #tpu.memory_space<vmem>>, vector<512x256xf32>
    %c0_27 = arith.constant 0 : index
    %c0_28 = arith.constant 0 : index
    %37 = vector.load %arg8[%c0_27, %c0_28] : memref<256x256xf32, #tpu.memory_space<vmem>>, vector<256x256xf32>
    %c5 = arith.constant 5 : index
    %c0_29 = arith.constant 0 : index
    %38 = vector.load %arg15[%c5, %c0_29] : memref<13x512xf32, #tpu.memory_space<vmem>>, vector<1x256xf32>
    %c6 = arith.constant 6 : index
    %c0_30 = arith.constant 0 : index
    %39 = vector.load %arg15[%c6, %c0_30] : memref<13x512xf32, #tpu.memory_space<vmem>>, vector<1x256xf32>
    %c0_31 = arith.constant 0 : index
    %c0_32 = arith.constant 0 : index
    %40 = vector.load %arg9[%c0_31, %c0_32] : memref<512x256xf32, #tpu.memory_space<vmem>>, vector<512x256xf32>
    %c7 = arith.constant 7 : index
    %c0_33 = arith.constant 0 : index
    %41 = vector.load %arg15[%c7, %c0_33] : memref<13x512xf32, #tpu.memory_space<vmem>>, vector<1x256xf32>
    %cst_34 = arith.constant dense<0.000000e+00> : vector<128x256xf32>
    %42 = tpu.matmul %35, %36, %cst_34 {dimension_numbers = #tpu.dot_dimension_numbers<[1], [0], [0], [1], [0, 0, 1, 1], [], []>} : vector<128x512xf32>, vector<512x256xf32>, vector<128x256xf32> -> vector<128x256xf32>
    %43 = vector.broadcast %38 : vector<1x256xf32> to vector<128x256xf32>
    %44 = arith.addf %42, %43 : vector<128x256xf32>
    %cst_35 = arith.constant 0.000000e+00 : f32
    %45 = vector.broadcast %cst_35 : f32 to vector<128x256xf32>
    %46 = arith.maximumf %44, %45 : vector<128x256xf32>
    %cst_36 = arith.constant dense<0.000000e+00> : vector<128x256xf32>
    %47 = tpu.matmul %46, %37, %cst_36 {dimension_numbers = #tpu.dot_dimension_numbers<[1], [0], [0], [1], [0, 0, 1, 1], [], []>} : vector<128x256xf32>, vector<256x256xf32>, vector<128x256xf32> -> vector<128x256xf32>
    %48 = vector.broadcast %39 : vector<1x256xf32> to vector<128x256xf32>
    %49 = arith.addf %47, %48 : vector<128x256xf32>
    %cst_37 = arith.constant dense<0.000000e+00> : vector<128x256xf32>
    %50 = tpu.matmul %35, %40, %cst_37 {dimension_numbers = #tpu.dot_dimension_numbers<[1], [0], [0], [1], [0, 0, 1, 1], [], []>} : vector<128x512xf32>, vector<512x256xf32>, vector<128x256xf32> -> vector<128x256xf32>
    %51 = vector.broadcast %41 : vector<1x256xf32> to vector<128x256xf32>
    %52 = arith.addf %50, %51 : vector<128x256xf32>
    %53 = arith.addf %49, %52 : vector<128x256xf32>
    %cst_38 = arith.constant 0.000000e+00 : f32
    %54 = vector.broadcast %cst_38 : f32 to vector<128x256xf32>
    %55 = arith.maximumf %53, %54 : vector<128x256xf32>
    %c0_39 = arith.constant 0 : index
    %c0_40 = arith.constant 0 : index
    %56 = vector.load %arg10[%c0_39, %c0_40] : memref<256x128xf32, #tpu.memory_space<vmem>>, vector<256x128xf32>
    %c0_41 = arith.constant 0 : index
    %c0_42 = arith.constant 0 : index
    %57 = vector.load %arg11[%c0_41, %c0_42] : memref<128x128xf32, #tpu.memory_space<vmem>>, vector<128x128xf32>
    %c8 = arith.constant 8 : index
    %c0_43 = arith.constant 0 : index
    %58 = vector.load %arg15[%c8, %c0_43] : memref<13x512xf32, #tpu.memory_space<vmem>>, vector<1x128xf32>
    %c9 = arith.constant 9 : index
    %c0_44 = arith.constant 0 : index
    %59 = vector.load %arg15[%c9, %c0_44] : memref<13x512xf32, #tpu.memory_space<vmem>>, vector<1x128xf32>
    %c0_45 = arith.constant 0 : index
    %c0_46 = arith.constant 0 : index
    %60 = vector.load %arg12[%c0_45, %c0_46] : memref<256x128xf32, #tpu.memory_space<vmem>>, vector<256x128xf32>
    %c10 = arith.constant 10 : index
    %c0_47 = arith.constant 0 : index
    %61 = vector.load %arg15[%c10, %c0_47] : memref<13x512xf32, #tpu.memory_space<vmem>>, vector<1x128xf32>
    %cst_48 = arith.constant dense<0.000000e+00> : vector<128x128xf32>
    %62 = tpu.matmul %55, %56, %cst_48 {dimension_numbers = #tpu.dot_dimension_numbers<[1], [0], [0], [1], [0, 0, 1, 1], [], []>} : vector<128x256xf32>, vector<256x128xf32>, vector<128x128xf32> -> vector<128x128xf32>
    %63 = vector.broadcast %58 : vector<1x128xf32> to vector<128x128xf32>
    %64 = arith.addf %62, %63 : vector<128x128xf32>
    %cst_49 = arith.constant 0.000000e+00 : f32
    %65 = vector.broadcast %cst_49 : f32 to vector<128x128xf32>
    %66 = arith.maximumf %64, %65 : vector<128x128xf32>
    %cst_50 = arith.constant dense<0.000000e+00> : vector<128x128xf32>
    %67 = tpu.matmul %66, %57, %cst_50 {dimension_numbers = #tpu.dot_dimension_numbers<[1], [0], [0], [1], [0, 0, 1, 1], [], []>} : vector<128x128xf32>, vector<128x128xf32>, vector<128x128xf32> -> vector<128x128xf32>
    %68 = vector.broadcast %59 : vector<1x128xf32> to vector<128x128xf32>
    %69 = arith.addf %67, %68 : vector<128x128xf32>
    %cst_51 = arith.constant dense<0.000000e+00> : vector<128x128xf32>
    %70 = tpu.matmul %55, %60, %cst_51 {dimension_numbers = #tpu.dot_dimension_numbers<[1], [0], [0], [1], [0, 0, 1, 1], [], []>} : vector<128x256xf32>, vector<256x128xf32>, vector<128x128xf32> -> vector<128x128xf32>
    %71 = vector.broadcast %61 : vector<1x128xf32> to vector<128x128xf32>
    %72 = arith.addf %70, %71 : vector<128x128xf32>
    %73 = arith.addf %69, %72 : vector<128x128xf32>
    %cst_52 = arith.constant 0.000000e+00 : f32
    %74 = vector.broadcast %cst_52 : f32 to vector<128x128xf32>
    %75 = arith.maximumf %73, %74 : vector<128x128xf32>
    %c0_53 = arith.constant 0 : index
    %c0_54 = arith.constant 0 : index
    %76 = vector.load %arg13[%c0_53, %c0_54] : memref<128x128xf32, #tpu.memory_space<vmem>>, vector<128x128xf32>
    %c11 = arith.constant 11 : index
    %c0_55 = arith.constant 0 : index
    %77 = vector.load %arg15[%c11, %c0_55] : memref<13x512xf32, #tpu.memory_space<vmem>>, vector<1x128xf32>
    %c0_56 = arith.constant 0 : index
    %c0_57 = arith.constant 0 : index
    %78 = vector.load %arg14[%c0_56, %c0_57] : memref<128x128xf32, #tpu.memory_space<vmem>>, vector<128x128xf32>
    %c12 = arith.constant 12 : index
    %c0_58 = arith.constant 0 : index
    %79 = vector.load %arg15[%c12, %c0_58] : memref<13x512xf32, #tpu.memory_space<vmem>>, vector<1x128xf32>
    %cst_59 = arith.constant dense<0.000000e+00> : vector<128x128xf32>
    %80 = tpu.matmul %75, %76, %cst_59 {dimension_numbers = #tpu.dot_dimension_numbers<[1], [0], [0], [1], [0, 0, 1, 1], [], []>} : vector<128x128xf32>, vector<128x128xf32>, vector<128x128xf32> -> vector<128x128xf32>
    %81 = vector.broadcast %77 : vector<1x128xf32> to vector<128x128xf32>
    %82 = arith.addf %80, %81 : vector<128x128xf32>
    %cst_60 = arith.constant 0.000000e+00 : f32
    %83 = vector.broadcast %cst_60 : f32 to vector<128x128xf32>
    %84 = arith.maximumf %82, %83 : vector<128x128xf32>
    %cst_61 = arith.constant dense<0.000000e+00> : vector<128x128xf32>
    %85 = tpu.matmul %84, %78, %cst_61 {dimension_numbers = #tpu.dot_dimension_numbers<[1], [0], [0], [1], [0, 0, 1, 1], [], []>} : vector<128x128xf32>, vector<128x128xf32>, vector<128x128xf32> -> vector<128x128xf32>
    %86 = vector.broadcast %79 : vector<1x128xf32> to vector<128x128xf32>
    %87 = arith.addf %85, %86 : vector<128x128xf32>
    %c0_62 = arith.constant 0 : index
    %c0_63 = arith.constant 0 : index
    %88 = vector.load %arg16[%c0_62, %c0_63] : memref<128x128xf32, #tpu.memory_space<vmem>>, vector<128x128xf32>
    tpu.vector_store %arg16[%c0_62, %c0_63], %87 {strides = array<i32>} : memref<128x128xf32, #tpu.memory_space<vmem>>, vector<128x128xf32>,
    return
  }
  func.func @transform_0(%arg0: i32) -> (i32, i32) {
    %c0_i32 = arith.constant 0 : i32
    %c0_i32_0 = arith.constant 0 : i32
    return %arg0, %c0_i32 : i32, i32
  }
  func.func @transform_1(%arg0: i32) -> (i32, i32) {
    %c0_i32 = arith.constant 0 : i32
    %c0_i32_0 = arith.constant 0 : i32
    %c0_i32_1 = arith.constant 0 : i32
    return %c0_i32, %c0_i32_0 : i32, i32
  }
  func.func @transform_2(%arg0: i32) -> (i32, i32) {
    %c0_i32 = arith.constant 0 : i32
    %c0_i32_0 = arith.constant 0 : i32
    %c0_i32_1 = arith.constant 0 : i32
    return %c0_i32, %c0_i32_0 : i32, i32
  }
  func.func @transform_3(%arg0: i32) -> (i32, i32) {
    %c0_i32 = arith.constant 0 : i32
    %c0_i32_0 = arith.constant 0 : i32
    %c0_i32_1 = arith.constant 0 : i32
    return %c0_i32, %c0_i32_0 : i32, i32
  }
  func.func @transform_4(%arg0: i32) -> (i32, i32) {
    %c0_i32 = arith.constant 0 : i32
    %c0_i32_0 = arith.constant 0 : i32
    %c0_i32_1 = arith.constant 0 : i32
    return %c0_i32, %c0_i32_0 : i32, i32
  }
  func.func @transform_5(%arg0: i32) -> (i32, i32) {
    %c0_i32 = arith.constant 0 : i32
    %c0_i32_0 = arith.constant 0 : i32
    %c0_i32_1 = arith.constant 0 : i32
    return %c0_i32, %c0_i32_0 : i32, i32
  }
  func.func @transform_6(%arg0: i32) -> (i32, i32) {
    %c0_i32 = arith.constant 0 : i32
    %c0_i32_0 = arith.constant 0 : i32
    %c0_i32_1 = arith.constant 0 : i32
    return %c0_i32, %c0_i32_0 : i32, i32
  }
  func.func @transform_7(%arg0: i32) -> (i32, i32) {
    %c0_i32 = arith.constant 0 : i32
    %c0_i32_0 = arith.constant 0 : i32
    %c0_i32_1 = arith.constant 0 : i32
    return %c0_i32, %c0_i32_0 : i32, i32
  }
  func.func @transform_8(%arg0: i32) -> (i32, i32) {
    %c0_i32 = arith.constant 0 : i32
    %c0_i32_0 = arith.constant 0 : i32
    %c0_i32_1 = arith.constant 0 : i32
    return %c0_i32, %c0_i32_0 : i32, i32
  }
  func.func @transform_9(%arg0: i32) -> (i32, i32) {
    %c0_i32 = arith.constant 0 : i32
    %c0_i32_0 = arith.constant 0 : i32
    %c0_i32_1 = arith.constant 0 : i32
    return %c0_i32, %c0_i32_0 : i32, i32
  }
  func.func @transform_10(%arg0: i32) -> (i32, i32) {
    %c0_i32 = arith.constant 0 : i32
    %c0_i32_0 = arith.constant 0 : i32
    %c0_i32_1 = arith.constant 0 : i32
    return %c0_i32, %c0_i32_0 : i32, i32
  }
  func.func @transform_11(%arg0: i32) -> (i32, i32) {
    %c0_i32 = arith.constant 0 : i32
    %c0_i32_0 = arith.constant 0 : i32
    %c0_i32_1 = arith.constant 0 : i32
    return %c0_i32, %c0_i32_0 : i32, i32
  }
  func.func @transform_12(%arg0: i32) -> (i32, i32) {
    %c0_i32 = arith.constant 0 : i32
    %c0_i32_0 = arith.constant 0 : i32
    %c0_i32_1 = arith.constant 0 : i32
    return %c0_i32, %c0_i32_0 : i32, i32
  }
  func.func @transform_13(%arg0: i32) -> (i32, i32) {
    %c0_i32 = arith.constant 0 : i32
    %c0_i32_0 = arith.constant 0 : i32
    %c0_i32_1 = arith.constant 0 : i32
    return %c0_i32, %c0_i32_0 : i32, i32
  }
  func.func @transform_14(%arg0: i32) -> (i32, i32) {
    %c0_i32 = arith.constant 0 : i32
    %c0_i32_0 = arith.constant 0 : i32
    %c0_i32_1 = arith.constant 0 : i32
    return %c0_i32, %c0_i32_0 : i32, i32
  }
  func.func @transform_15(%arg0: i32) -> (i32, i32) {
    %c0_i32 = arith.constant 0 : i32
    %c0_i32_0 = arith.constant 0 : i32
    return %arg0, %c0_i32 : i32, i32
  }
}

</mosaic_0001>

<llo_original>
// kernel: tpu_custom_call.1
$region0: #{tpu_custom_call.1}
  #allocation0 [shape = 'u32[]', space=smem, size = 0x4, offset = 0x4, fixed_abs, tag = 'smem constant byte address 0x4 - core index']
  #allocation1 [shape = 'u32[144,128]{1,0:T(1,128)}', space=vmem, size = 0x12000, scoped, tag = 'internal scratch']
  %s0 = inlined_call_operand.hbm [shape: f32[128,128], index: 0, kind: input, shape index: {}]
  %s1 = inlined_call_operand.hbm [shape: f32[128,512], index: 1, kind: input, shape index: {}]
  %s2 = inlined_call_operand.hbm [shape: f32[512,512], index: 2, kind: input, shape index: {}]
  %s3 = inlined_call_operand.hbm [shape: f32[128,512], index: 3, kind: input, shape index: {}]
  %s4 = inlined_call_operand.hbm [shape: f32[512,512], index: 4, kind: input, shape index: {}]
  %s5 = inlined_call_operand.hbm [shape: f32[512,512], index: 5, kind: input, shape index: {}]
  %s6 = inlined_call_operand.hbm [shape: f32[512,256], index: 6, kind: input, shape index: {}]
  %s7 = inlined_call_operand.hbm [shape: f32[256,256], index: 7, kind: input, shape index: {}]
  %s8 = inlined_call_operand.hbm [shape: f32[512,256], index: 8, kind: input, shape index: {}]
  %s9 = inlined_call_operand.hbm [shape: f32[256,128], index: 9, kind: input, shape index: {}]
  %s10 = inlined_call_operand.hbm [shape: f32[128,128], index: 10, kind: input, shape index: {}]
  %s11 = inlined_call_operand.hbm [shape: f32[256,128], index: 11, kind: input, shape index: {}]
  %s12 = inlined_call_operand.hbm [shape: f32[128,128], index: 12, kind: input, shape index: {}]
  %s13 = inlined_call_operand.hbm [shape: f32[128,128], index: 13, kind: input, shape index: {}]
  %s14 = inlined_call_operand.hbm [shape: f32[13,512], index: 14, kind: input, shape index: {}]
  %s15 = inlined_call_operand.hbm [shape: f32[128,128], index: 15, kind: output, shape index: {}]
  %s16 = sld [smem:[#allocation0]]
  $region130: #{tpu_custom_call.1} parent=0
    _
  %s18 = ssub.s32 1, %s16
  %s19 = scalar_select 0, %s18, %s16
  $region1: #{tpu_custom_call.1} parent=0
    #allocation2 [shape = 'u8[65536]{0}', space=vmem, size = 0x10000, scoped, tag = 'input window, operand 0, single buffered']
    #allocation3 [shape = 's32[1]{0}', space=sflag, size = 0x4, scoped, tag = 'scoped memory for tpu_custom_call.1']
    #allocation4 [shape = 's32[1]{0}', space=sflag, size = 0x4, scoped, tag = 'scoped memory for tpu_custom_call.1']
    #allocation5 [shape = 'u8[262144]{0}', space=vmem, size = 0x40000, scoped, tag = 'input window, operand 1, single buffered']
    #allocation6 [shape = 's32[1]{0}', space=sflag, size = 0x4, scoped, tag = 'scoped memory for tpu_custom_call.1']
    #allocation7 [shape = 'u8[1048576]{0}', space=vmem, size = 0x100000, scoped, tag = 'input window, operand 2, single buffered']
    #allocation8 [shape = 'u8[262144]{0}', space=vmem, size = 0x40000, scoped, tag = 'input window, operand 3, single buffered']
    #allocation9 [shape = 's32[1]{0}', space=sflag, size = 0x4, scoped, tag = 'scoped memory for tpu_custom_call.1']
    #allocation10 [shape = 'u8[1048576]{0}', space=vmem, size = 0x100000, scoped, tag = 'input window, operand 4, single buffered']
    #allocation11 [shape = 'u8[1048576]{0}', space=vmem, size = 0x100000, scoped, tag = 'input window, operand 5, single buffered']
    #allocation12 [shape = 's32[1]{0}', space=sflag, size = 0x4, scoped, tag = 'scoped memory for tpu_custom_call.1']
    #allocation13 [shape = 'u8[524288]{0}', space=vmem, size = 0x80000, scoped, tag = 'input window, operand 6, single buffered']
    #allocation14 [shape = 'u8[262144]{0}', space=vmem, size = 0x40000, scoped, tag = 'input window, operand 7, single buffered']
    #allocation15 [shape = 's32[1]{0}', space=sflag, size = 0x4, scoped, tag = 'scoped memory for tpu_custom_call.1']
    #allocation16 [shape = 'u8[524288]{0}', space=vmem, size = 0x80000, scoped, tag = 'input window, operand 8, single buffered']
    #allocation17 [shape = 'u8[131072]{0}', space=vmem, size = 0x20000, scoped, tag = 'input window, operand 9, single buffered']
    #allocation18 [shape = 's32[1]{0}', space=sflag, size = 0x4, scoped, tag = 'scoped memory for tpu_custom_call.1']
    #allocation19 [shape = 'u8[65536]{0}', space=vmem, size = 0x10000, scoped, tag = 'input window, operand 10, single buffered']
    #allocation20 [shape = 'u8[131072]{0}', space=vmem, size = 0x20000, scoped, tag = 'input window, operand 11, single buffered']
    #allocation21 [shape = 's32[1]{0}', space=sflag, size = 0x4, scoped, tag = 'scoped memory for tpu_custom_call.1']
    #allocation22 [shape = 'u8[65536]{0}', space=vmem, size = 0x10000, scoped, tag = 'input window, operand 12, single buffered']
    #allocation23 [shape = 'u8[65536]{0}', space=vmem, size = 0x10000, scoped, tag = 'input window, operand 13, single buffered']
    #allocation24 [shape = 's32[1]{0}', space=sflag, size = 0x4, scoped, tag = 'scoped memory for tpu_custom_call.1']
    #allocation25 [shape = 'u8[32768]{0}', space=vmem, size = 0x8000, scoped, tag = 'input window, operand 14, single buffered']
    #allocation26 [shape = 'u8[65536]{0}', space=vmem, size = 0x10000, scoped, tag = 'output window, operand 0, single buffered']
    %20 = vsyncpa [#allocation3], 0
    %21 = vsyncpa [#allocation6], 0
    %22 = vsyncpa [#allocation9], 0
    %23 = vsyncpa [#allocation12], 0
    %24 = vsyncpa [#allocation15], 0
    %25 = vsyncpa [#allocation18], 0
    %26 = vsyncpa [#allocation21], 0
    %27 = vsyncpa [#allocation24], 0
    %28 = vsyncpa [#allocation4], 0
    // Predicated region
    $region2: #{tpu_custom_call.1} parent=1 // pred_check
      _
    $region3: #{tpu_custom_call.1} parent=1 // pred_check_branch
      %30 = sbr.rel (0) target = $region5
    $region4: #{tpu_custom_call.1} parent=1 // pred_region
      %s32 = ssub.s32 2048, 2048
      %33 = vsyncadd [#allocation3], %s32
      %s34 = sshll.u32 [#allocation2], 4
      %s35 = int_to_ptr.vmem [resolvable:$true] %s34
      %40 = dma.hbm_to_vmem [thread:$0]  %s0, 2048, %s35, [#allocation3], 128, 128, 8
    $region5: #{tpu_custom_call.1} parent=1 // pred_fallthru
      _
    // Predicated region
    $region6: #{tpu_custom_call.1} parent=1 // pred_check
      _
    $region7: #{tpu_custom_call.1} parent=1 // pred_check_branch
      %42 = sbr.rel (0) target = $region9
    $region8: #{tpu_custom_call.1} parent=1 // pred_region
      %s44 = ssub.s32 8192, 8192
      %45 = vsyncadd [#allocation6], %s44
      %s46 = sshll.u32 [#allocation5], 4
      %s47 = int_to_ptr.vmem [resolvable:$true] %s46
      %52 = dma.hbm_to_vmem [thread:$0]  %s1, 8192, %s47, [#allocation6], 512, 512, 32
    $region9: #{tpu_custom_call.1} parent=1 // pred_fallthru
      _
    // Predicated region
    $region10: #{tpu_custom_call.1} parent=1 // pred_check
      _
    $region11: #{tpu_custom_call.1} parent=1 // pred_check_branch
      %54 = sbr.rel (0) target = $region13
    $region12: #{tpu_custom_call.1} parent=1 // pred_region
      %s56 = ssub.s32 32768, 32768
      %57 = vsyncadd [#allocation6], %s56
      %s58 = sshll.u32 [#allocation7], 4
      %s59 = int_to_ptr.vmem [resolvable:$true] %s58
      %64 = dma.hbm_to_vmem [thread:$0]  %s2, 32768, %s59, [#allocation6], 512, 512, 32
    $region13: #{tpu_custom_call.1} parent=1 // pred_fallthru
      _
    // Predicated region
    $region14: #{tpu_custom_call.1} parent=1 // pred_check
      _
    $region15: #{tpu_custom_call.1} parent=1 // pred_check_branch
      %66 = sbr.rel (0) target = $region17
    $region16: #{tpu_custom_call.1} parent=1 // pred_region
      %s68 = ssub.s32 8192, 8192
      %69 = vsyncadd [#allocation9], %s68
      %s70 = sshll.u32 [#allocation8], 4
      %s71 = int_to_ptr.vmem [resolvable:$true] %s70
      %76 = dma.hbm_to_vmem [thread:$0]  %s3, 8192, %s71, [#allocation9], 512, 512, 32
    $region17: #{tpu_custom_call.1} parent=1 // pred_fallthru
      _
    // Predicated region
    $region18: #{tpu_custom_call.1} parent=1 // pred_check
      _
    $region19: #{tpu_custom_call.1} parent=1 // pred_check_branch
      %78 = sbr.rel (0) target = $region21
    $region20: #{tpu_custom_call.1} parent=1 // pred_region
      %s80 = ssub.s32 32768, 32768
      %81 = vsyncadd [#allocation9], %s80
      %s82 = sshll.u32 [#allocation10], 4
      %s83 = int_to_ptr.vmem [resolvable:$true] %s82
      %88 = dma.hbm_to_vmem [thread:$0]  %s4, 32768, %s83, [#allocation9], 512, 512, 32
    $region21: #{tpu_custom_call.1} parent=1 // pred_fallthru
      _
    // Predicated region
    $region22: #{tpu_custom_call.1} parent=1 // pred_check
      _
    $region23: #{tpu_custom_call.1} parent=1 // pred_check_branch
      %90 = sbr.rel (0) target = $region25
    $region24: #{tpu_custom_call.1} parent=1 // pred_region
      %s92 = ssub.s32 32768, 32768
      %93 = vsyncadd [#allocation12], %s92
      %s94 = sshll.u32 [#allocation11], 4
      %s95 = int_to_ptr.vmem [resolvable:$true] %s94
      %100 = dma.hbm_to_vmem [thread:$0]  %s5, 32768, %s95, [#allocation12], 512, 512, 32
    $region25: #{tpu_custom_call.1} parent=1 // pred_fallthru
      _
    // Predicated region
    $region26: #{tpu_custom_call.1} parent=1 // pred_check
      _
    $region27: #{tpu_custom_call.1} parent=1 // pred_check_branch
      %102 = sbr.rel (0) target = $region29
    $region28: #{tpu_custom_call.1} parent=1 // pred_region
      %s104 = ssub.s32 16384, 16384
      %105 = vsyncadd [#allocation12], %s104
      %s106 = sshll.u32 [#allocation13], 4
      %s107 = int_to_ptr.vmem [resolvable:$true] %s106
      %112 = dma.hbm_to_vmem [thread:$0]  %s6, 16384, %s107, [#allocation12], 256, 256, 16
    $region29: #{tpu_custom_call.1} parent=1 // pred_fallthru
      _
    // Predicated region
    $region30: #{tpu_custom_call.1} parent=1 // pred_check
      _
    $region31: #{tpu_custom_call.1} parent=1 // pred_check_branch
      %114 = sbr.rel (0) target = $region33
    $region32: #{tpu_custom_call.1} parent=1 // pred_region
      %s116 = ssub.s32 8192, 8192
      %117 = vsyncadd [#allocation15], %s116
      %s118 = sshll.u32 [#allocation14], 4
      %s119 = int_to_ptr.vmem [resolvable:$true] %s118
      %124 = dma.hbm_to_vmem [thread:$0]  %s7, 8192, %s119, [#allocation15], 256, 256, 16
    $region33: #{tpu_custom_call.1} parent=1 // pred_fallthru
      _
    // Predicated region
    $region34: #{tpu_custom_call.1} parent=1 // pred_check
      _
    $region35: #{tpu_custom_call.1} parent=1 // pred_check_branch
      %126 = sbr.rel (0) target = $region37
    $region36: #{tpu_custom_call.1} parent=1 // pred_region
      %s128 = ssub.s32 16384, 16384
      %129 = vsyncadd [#allocation15], %s128
      %s130 = sshll.u32 [#allocation16], 4
      %s131 = int_to_ptr.vmem [resolvable:$true] %s130
      %136 = dma.hbm_to_vmem [thread:$0]  %s8, 16384, %s131, [#allocation15], 256, 256, 16
    $region37: #{tpu_custom_call.1} parent=1 // pred_fallthru
      _
    // Predicated region
    $region38: #{tpu_custom_call.1} parent=1 // pred_check
      _
    $region39: #{tpu_custom_call.1} parent=1 // pred_check_branch
      %138 = sbr.rel (0) target = $region41
    $region40: #{tpu_custom_call.1} parent=1 // pred_region
      %s140 = ssub.s32 4096, 4096
      %141 = vsyncadd [#allocation18], %s140
      %s142 = sshll.u32 [#allocation17], 4
      %s143 = int_to_ptr.vmem [resolvable:$true] %s142
      %148 = dma.hbm_to_vmem [thread:$0]  %s9, 4096, %s143, [#allocation18], 128, 128, 8
    $region41: #{tpu_custom_call.1} parent=1 // pred_fallthru
      _
    // Predicated region
    $region42: #{tpu_custom_call.1} parent=1 // pred_check
      _
    $region43: #{tpu_custom_call.1} parent=1 // pred_check_branch
      %150 = sbr.rel (0) target = $region45
    $region44: #{tpu_custom_call.1} parent=1 // pred_region
      %s152 = ssub.s32 2048, 2048
      %153 = vsyncadd [#allocation18], %s152
      %s154 = sshll.u32 [#allocation19], 4
      %s155 = int_to_ptr.vmem [resolvable:$true] %s154
      %160 = dma.hbm_to_vmem [thread:$0]  %s10, 2048, %s155, [#allocation18], 128, 128, 8
    $region45: #{tpu_custom_call.1} parent=1 // pred_fallthru
      _
    // Predicated region
    $region46: #{tpu_custom_call.1} parent=1 // pred_check
      _
    $region47: #{tpu_custom_call.1} parent=1 // pred_check_branch
      %162 = sbr.rel (0) target = $region49
    $region48: #{tpu_custom_call.1} parent=1 // pred_region
      %s164 = ssub.s32 4096, 4096
      %165 = vsyncadd [#allocation21], %s164
      %s166 = sshll.u32 [#allocation20], 4
      %s167 = int_to_ptr.vmem [resolvable:$true] %s166
      %172 = dma.hbm_to_vmem [thread:$0]  %s11, 4096, %s167, [#allocation21], 128, 128, 8
    $region49: #{tpu_custom_call.1} parent=1 // pred_fallthru
      _
    // Predicated region
    $region50: #{tpu_custom_call.1} parent=1 // pred_check
      _
    $region51: #{tpu_custom_call.1} parent=1 // pred_check_branch
      %174 = sbr.rel (0) target = $region53
    $region52: #{tpu_custom_call.1} parent=1 // pred_region
      %s176 = ssub.s32 2048, 2048
      %177 = vsyncadd [#allocation21], %s176
      %s178 = sshll.u32 [#allocation22], 4
      %s179 = int_to_ptr.vmem [resolvable:$true] %s178
      %184 = dma.hbm_to_vmem [thread:$0]  %s12, 2048, %s179, [#allocation21], 128, 128, 8
    $region53: #{tpu_custom_call.1} parent=1 // pred_fallthru
      _
    // Predicated region
    $region54: #{tpu_custom_call.1} parent=1 // pred_check
      _
    $region55: #{tpu_custom_call.1} parent=1 // pred_check_branch
      %186 = sbr.rel (0) target = $region57
    $region56: #{tpu_custom_call.1} parent=1 // pred_region
      %s188 = ssub.s32 2048, 2048
      %189 = vsyncadd [#allocation24], %s188
      %s190 = sshll.u32 [#allocation23], 4
      %s191 = int_to_ptr.vmem [resolvable:$true] %s190
      %196 = dma.hbm_to_vmem [thread:$0]  %s13, 2048, %s191, [#allocation24], 128, 128, 8
    $region57: #{tpu_custom_call.1} parent=1 // pred_fallthru
      _
    // Predicated region
    $region58: #{tpu_custom_call.1} parent=1 // pred_check
      _
    $region59: #{tpu_custom_call.1} parent=1 // pred_check_branch
      %198 = sbr.rel (0) target = $region61
    $region60: #{tpu_custom_call.1} parent=1 // pred_region
      %s200 = ssub.s32 1024, 1024
      %201 = vsyncadd [#allocation24], %s200
      %s202 = sshll.u32 [#allocation25], 4
      %s203 = int_to_ptr.vmem [resolvable:$true] %s202
      %208 = dma.hbm_to_vmem [thread:$0]  %s14, 1024, %s203, [#allocation24], 512, 512, 32
    $region61: #{tpu_custom_call.1} parent=1 // pred_fallthru
      _
    // Predicated region
    $region62: #{tpu_custom_call.1} parent=1 // pred_check
      _
    $region63: #{tpu_custom_call.1} parent=1 // pred_check_branch
      %210 = sbr.rel (0) target = $region65
    $region64: #{tpu_custom_call.1} parent=1 // pred_region
      %211 = dma.done [#allocation3], 2048
    $region65: #{tpu_custom_call.1} parent=1 // pred_fallthru
      _
    // Predicated region
    $region66: #{tpu_custom_call.1} parent=1 // pred_check
      _
    $region67: #{tpu_custom_call.1} parent=1 // pred_check_branch
      %213 = sbr.rel (0) target = $region69
    $region68: #{tpu_custom_call.1} parent=1 // pred_region
      %214 = dma.done [#allocation6], 8192
    $region69: #{tpu_custom_call.1} parent=1 // pred_fallthru
      _
    // Predicated region
    $region70: #{tpu_custom_call.1} parent=1 // pred_check
      _
    $region71: #{tpu_custom_call.1} parent=1 // pred_check_branch
      %216 = sbr.rel (0) target = $region73
    $region72: #{tpu_custom_call.1} parent=1 // pred_region
      %217 = dma.done [#allocation6], 32768
    $region73: #{tpu_custom_call.1} parent=1 // pred_fallthru
      _
    // Predicated region
    $region74: #{tpu_custom_call.1} parent=1 // pred_check
      _
    $region75: #{tpu_custom_call.1} parent=1 // pred_check_branch
      %219 = sbr.rel (0) target = $region77
    $region76: #{tpu_custom_call.1} parent=1 // pred_region
      %220 = dma.done [#allocation9], 8192
    $region77: #{tpu_custom_call.1} parent=1 // pred_fallthru
      _
    // Predicated region
    $region78: #{tpu_custom_call.1} parent=1 // pred_check
      _
    $region79: #{tpu_custom_call.1} parent=1 // pred_check_branch
      %222 = sbr.rel (0) target = $region81
    $region80: #{tpu_custom_call.1} parent=1 // pred_region
      %223 = dma.done [#allocation9], 32768
    $region81: #{tpu_custom_call.1} parent=1 // pred_fallthru
      _
    // Predicated region
    $region82: #{tpu_custom_call.1} parent=1 // pred_check
      _
    $region83: #{tpu_custom_call.1} parent=1 // pred_check_branch
      %225 = sbr.rel (0) target = $region85
    $region84: #{tpu_custom_call.1} parent=1 // pred_region
      %226 = dma.done [#allocation12], 32768
    $region85: #{tpu_custom_call.1} parent=1 // pred_fallthru
      _
    // Predicated region
    $region86: #{tpu_custom_call.1} parent=1 // pred_check
      _
    $region87: #{tpu_custom_call.1} parent=1 // pred_check_branch
      %228 = sbr.rel (0) target = $region89
    $region88: #{tpu_custom_call.1} parent=1 // pred_region
      %229 = dma.done [#allocation12], 16384
    $region89: #{tpu_custom_call.1} parent=1 // pred_fallthru
      _
    // Predicated region
    $region90: #{tpu_custom_call.1} parent=1 // pred_check
      _
    $region91: #{tpu_custom_call.1} parent=1 // pred_check_branch
      %231 = sbr.rel (0) target = $region93
    $region92: #{tpu_custom_call.1} parent=1 // pred_region
      %232 = dma.done [#allocation15], 8192
    $region93: #{tpu_custom_call.1} parent=1 // pred_fallthru
      _
    // Predicated region
    $region94: #{tpu_custom_call.1} parent=1 // pred_check
      _
    $region95: #{tpu_custom_call.1} parent=1 // pred_check_branch
      %234 = sbr.rel (0) target = $region97
    $region96: #{tpu_custom_call.1} parent=1 // pred_region
      %235 = dma.done [#allocation15], 16384
    $region97: #{tpu_custom_call.1} parent=1 // pred_fallthru
      _
    // Predicated region
    $region98: #{tpu_custom_call.1} parent=1 // pred_check
      _
    $region99: #{tpu_custom_call.1} parent=1 // pred_check_branch
      %237 = sbr.rel (0) target = $region101
    $region100: #{tpu_custom_call.1} parent=1 // pred_region
      %238 = dma.done [#allocation18], 4096
    $region101: #{tpu_custom_call.1} parent=1 // pred_fallthru
      _
    // Predicated region
    $region102: #{tpu_custom_call.1} parent=1 // pred_check
      _
    $region103: #{tpu_custom_call.1} parent=1 // pred_check_branch
      %240 = sbr.rel (0) target = $region105
    $region104: #{tpu_custom_call.1} parent=1 // pred_region
      %241 = dma.done [#allocation18], 2048
    $region105: #{tpu_custom_call.1} parent=1 // pred_fallthru
      _
    // Predicated region
    $region106: #{tpu_custom_call.1} parent=1 // pred_check
      _
    $region107: #{tpu_custom_call.1} parent=1 // pred_check_branch
      %243 = sbr.rel (0) target = $region109
    $region108: #{tpu_custom_call.1} parent=1 // pred_region
      %244 = dma.done [#allocation21], 4096
    $region109: #{tpu_custom_call.1} parent=1 // pred_fallthru
      _
    // Predicated region
    $region110: #{tpu_custom_call.1} parent=1 // pred_check
      _
    $region111: #{tpu_custom_call.1} parent=1 // pred_check_branch
      %246 = sbr.rel (0) target = $region113
    $region112: #{tpu_custom_call.1} parent=1 // pred_region
      %247 = dma.done [#allocation21], 2048
    $region113: #{tpu_custom_call.1} parent=1 // pred_fallthru
      _
    // Predicated region
    $region114: #{tpu_custom_call.1} parent=1 // pred_check
      _
    $region115: #{tpu_custom_call.1} parent=1 // pred_check_branch
      %249 = sbr.rel (0) target = $region117
    $region116: #{tpu_custom_call.1} parent=1 // pred_region
      %250 = dma.done [#allocation24], 2048
    $region117: #{tpu_custom_call.1} parent=1 // pred_fallthru
      _
    // Predicated region
    $region118: #{tpu_custom_call.1} parent=1 // pred_check
      _
    $region119: #{tpu_custom_call.1} parent=1 // pred_check_branch
      %252 = sbr.rel (0) target = $region121
    $region120: #{tpu_custom_call.1} parent=1 // pred_region
      %253 = dma.done [#allocation24], 1024
    $region121: #{tpu_custom_call.1} parent=1 // pred_fallthru
      _
    %v254 = vld [vmem:[#allocation2] sm:$0xff]
    %v255 = vld [vmem:[#allocation2 + $0x8] sm:$0xff]
    %v256 = vld [vmem:[#allocation2 + $0x10] sm:$0xff]
    %v257 = vld [vmem:[#allocation2 + $0x18] sm:$0xff]
    %v258 = vld [vmem:[#allocation2 + $0x20] sm:$0xff]
    %v259 = vld [vmem:[#allocation2 + $0x28] sm:$0xff]
    %v260 = vld [vmem:[#allocation2 + $0x30] sm:$0xff]
    %v261 = vld [vmem:[#allocation2 + $0x38] sm:$0xff]
    %v262 = vld [vmem:[#allocation2 + $0x40] sm:$0xff]
    %v263 = vld [vmem:[#allocation2 + $0x48] sm:$0xff]
    %v264 = vld [vmem:[#allocation2 + $0x50] sm:$0xff]
    %v265 = vld [vmem:[#allocation2 + $0x58] sm:$0xff]
    %v266 = vld [vmem:[#allocation2 + $0x60] sm:$0xff]
    %v267 = vld [vmem:[#allocation2 + $0x68] sm:$0xff]
    %v268 = vld [vmem:[#allocation2 + $0x70] sm:$0xff]
    %v269 = vld [vmem:[#allocation2 + $0x78] sm:$0xff]
    %v270 = vld [vmem:[#allocation5] sm:$0xff]
    %v271 = vld [vmem:[#allocation5 + $0x8] sm:$0xff]
    %v272 = vld [vmem:[#allocation5 + $0x10] sm:$0xff]
    %v273 = vld [vmem:[#allocation5 + $0x18] sm:$0xff]
    %v274 = vld [vmem:[#allocation5 + $0x20] sm:$0xff]
    %v275 = vld [vmem:[#allocation5 + $0x28] sm:$0xff]
    %v276 = vld [vmem:[#allocation5 + $0x30] sm:$0xff]
    %v277 = vld [vmem:[#allocation5 + $0x38] sm:$0xff]
    %v278 = vld [vmem:[#allocation5 + $0x40] sm:$0xff]
    %v279 = vld [vmem:[#allocation5 + $0x48] sm:$0xff]
    %v280 = vld [vmem:[#allocation5 + $0x50] sm:$0xff]
    %v281 = vld [vmem:[#allocation5 + $0x58] sm:$0xff]
    %v282 = vld [vmem:[#allocation5 + $0x60] sm:$0xff]
    %v283 = vld [vmem:[#allocation5 + $0x68] sm:$0xff]
    %v284 = vld [vmem:[#allocation5 + $0x70] sm:$0xff]
    %v285 = vld [vmem:[#allocation5 + $0x78] sm:$0xff]
    %v286 = vld [vmem:[#allocation5 + $0x80] sm:$0xff]
    %v287 = vld [vmem:[#allocation5 + $0x88] sm:$0xff]
    %v288 = vld [vmem:[#allocation5 + $0x90] sm:$0xff]
    %v289 = vld [vmem:[#allocation5 + $0x98] sm:$0xff]
    %v290 = vld [vmem:[#allocation5 + $0xa0] sm:$0xff]
    %v291 = vld [vmem:[#allocation5 + $0xa8] sm:$0xff]
    %v292 = vld [vmem:[#allocation5 + $0xb0] sm:$0xff]
    %v293 = vld [vmem:[#allocation5 + $0xb8] sm:$0xff]
    %v294 = vld [vmem:[#allocation5 + $0xc0] sm:$0xff]
    %v295 = vld [vmem:[#allocation5 + $0xc8] sm:$0xff]
    %v296 = vld [vmem:[#allocation5 + $0xd0] sm:$0xff]
    %v297 = vld [vmem:[#allocation5 + $0xd8] sm:$0xff]
    %v298 = vld [vmem:[#allocation5 + $0xe0] sm:$0xff]
    %v299 = vld [vmem:[#allocation5 + $0xe8] sm:$0xff]
    %v300 = vld [vmem:[#allocation5 + $0xf0] sm:$0xff]
    %v301 = vld [vmem:[#allocation5 + $0xf8] sm:$0xff]
    %v302 = vld [vmem:[#allocation5 + $0x100] sm:$0xff]
    %v303 = vld [vmem:[#allocation5 + $0x108] sm:$0xff]
    %v304 = vld [vmem:[#allocation5 + $0x110] sm:$0xff]
    %v305 = vld [vmem:[#allocation5 + $0x118] sm:$0xff]
    %v306 = vld [vmem:[#allocation5 + $0x120] sm:$0xff]
    %v307 = vld [vmem:[#allocation5 + $0x128] sm:$0xff]
    %v308 = vld [vmem:[#allocation5 + $0x130] sm:$0xff]
    %v309 = vld [vmem:[#allocation5 + $0x138] sm:$0xff]
    %v310 = vld [vmem:[#allocation5 + $0x140] sm:$0xff]
    %v311 = vld [vmem:[#allocation5 + $0x148] sm:$0xff]
    %v312 = vld [vmem:[#allocation5 + $0x150] sm:$0xff]
    %v313 = vld [vmem:[#allocation5 + $0x158] sm:$0xff]
    %v314 = vld [vmem:[#allocation5 + $0x160] sm:$0xff]
    %v315 = vld [vmem:[#allocation5 + $0x168] sm:$0xff]
    %v316 = vld [vmem:[#allocation5 + $0x170] sm:$0xff]
    %v317 = vld [vmem:[#allocation5 + $0x178] sm:$0xff]
    %v318 = vld [vmem:[#allocation5 + $0x180] sm:$0xff]
    %v319 = vld [vmem:[#allocation5 + $0x188] sm:$0xff]
    %v320 = vld [vmem:[#allocation5 + $0x190] sm:$0xff]
    %v321 = vld [vmem:[#allocation5 + $0x198] sm:$0xff]
    %v322 = vld [vmem:[#allocation5 + $0x1a0] sm:$0xff]
    %v323 = vld [vmem:[#allocation5 + $0x1a8] sm:$0xff]
    %v324 = vld [vmem:[#allocation5 + $0x1b0] sm:$0xff]
    %v325 = vld [vmem:[#allocation5 + $0x1b8] sm:$0xff]
    %v326 = vld [vmem:[#allocation5 + $0x1c0] sm:$0xff]
    %v327 = vld [vmem:[#allocation5 + $0x1c8] sm:$0xff]
    %v328 = vld [vmem:[#allocation5 + $0x1d0] sm:$0xff]
    %v329 = vld [vmem:[#allocation5 + $0x1d8] sm:$0xff]
    %v330 = vld [vmem:[#allocation5 + $0x1e0] sm:$0xff]
    %v331 = vld [vmem:[#allocation5 + $0x1e8] sm:$0xff]
    %v332 = vld [vmem:[#allocation5 + $0x1f0] sm:$0xff]
    %v333 = vld [vmem:[#allocation5 + $0x1f8] sm:$0xff]
    %v334 = vld [vmem:[#allocation7] sm:$0xff]
    %v335 = vld [vmem:[#allocation7 + $0x8] sm:$0xff]
    %v336 = vld [vmem:[#allocation7 + $0x10] sm:$0xff]
    %v337 = vld [vmem:[#allocation7 + $0x18] sm:$0xff]
    %v338 = vld [vmem:[#allocation7 + $0x20] sm:$0xff]
    %v339 = vld [vmem:[#allocation7 + $0x28] sm:$0xff]
    %v340 = vld [vmem:[#allocation7 + $0x30] sm:$0xff]
    %v341 = vld [vmem:[#allocation7 + $0x38] sm:$0xff]
    %v342 = vld [vmem:[#allocation7 + $0x40] sm:$0xff]
    %v343 = vld [vmem:[#allocation7 + $0x48] sm:$0xff]
    %v344 = vld [vmem:[#allocation7 + $0x50] sm:$0xff]
    %v345 = vld [vmem:[#allocation7 + $0x58] sm:$0xff]
    %v346 = vld [vmem:[#allocation7 + $0x60] sm:$0xff]
    %v347 = vld [vmem:[#allocation7 + $0x68] sm:$0xff]
    %v348 = vld [vmem:[#allocation7 + $0x70] sm:$0xff]
    %v349 = vld [vmem:[#allocation7 + $0x78] sm:$0xff]
    %v350 = vld [vmem:[#allocation7 + $0x80] sm:$0xff]
    %v351 = vld [vmem:[#allocation7 + $0x88] sm:$0xff]
    %v352 = vld [vmem:[#allocation7 + $0x90] sm:$0xff]
    %v353 = vld [vmem:[#allocation7 + $0x98] sm:$0xff]
    %v354 = vld [vmem:[#allocation7 + $0xa0] sm:$0xff]
    %v355 = vld [vmem:[#allocation7 + $0xa8] sm:$0xff]
    %v356 = vld [vmem:[#allocation7 + $0xb0] sm:$0xff]
    %v357 = vld [vmem:[#allocation7 + $0xb8] sm:$0xff]
    %v358 = vld [vmem:[#allocation7 + $0xc0] sm:$0xff]
    %v359 = vld [vmem:[#allocation7 + $0xc8] sm:$0xff]
    %v360 = vld [vmem:[#allocation7 + $0xd0] sm:$0xff]
    %v361 = vld [vmem:[#allocation7 + $0xd8] sm:$0xff]
    %v362 = vld [vmem:[#allocation7 + $0xe0] sm:$0xff]
    %v363 = vld [vmem:[#allocation7 + $0xe8] sm:$0xff]
    %v364 = vld [vmem:[#allocation7 + $0xf0] sm:$0xff]
    %v365 = vld [vmem:[#allocation7 + $0xf8] sm:$0xff]
    %v366 = vld [vmem:[#allocation7 + $0x100] sm:$0xff]
    %v367 = vld [vmem:[#allocation7 + $0x108] sm:$0xff]
    %v368 = vld [vmem:[#allocation7 + $0x110] sm:$0xff]
    %v369 = vld [vmem:[#allocation7 + $0x118] sm:$0xff]
    %v370 = vld [vmem:[#allocation7 + $0x120] sm:$0xff]
    %v371 = vld [vmem:[#allocation7 + $0x128] sm:$0xff]
    %v372 = vld [vmem:[#allocation7 + $0x130] sm:$0xff]
    %v373 = vld [vmem:[#allocation7 + $0x138] sm:$0xff]
    %v374 = vld [vmem:[#allocation7 + $0x140] sm:$0xff]
    %v375 = vld [vmem:[#allocation7 + $0x148] sm:$0xff]
    %v376 = vld [vmem:[#allocation7 + $0x150] sm:$0xff]
    %v377 = vld [vmem:[#allocation7 + $0x158] sm:$0xff]
    %v378 = vld [vmem:[#allocation7 + $0x160] sm:$0xff]
    %v379 = vld [vmem:[#allocation7 + $0x168] sm:$0xff]
    %v380 = vld [vmem:[#allocation7 + $0x170] sm:$0xff]
    %v381 = vld [vmem:[#allocation7 + $0x178] sm:$0xff]
    %v382 = vld [vmem:[#allocation7 + $0x180] sm:$0xff]
    %v383 = vld [vmem:[#allocation7 + $0x188] sm:$0xff]
    %v384 = vld [vmem:[#allocation7 + $0x190] sm:$0xff]
    %v385 = vld [vmem:[#allocation7 + $0x198] sm:$0xff]
    %v386 = vld [vmem:[#allocation7 + $0x1a0] sm:$0xff]
    %v387 = vld [vmem:[#allocation7 + $0x1a8] sm:$0xff]
    %v388 = vld [vmem:[#allocation7 + $0x1b0] sm:$0xff]
    %v389 = vld [vmem:[#allocation7 + $0x1b8] sm:$0xff]
    %v390 = vld [vmem:[#allocation7 + $0x1c0] sm:$0xff]
    %v391 = vld [vmem:[#allocation7 + $0x1c8] sm:$0xff]
    %v392 = vld [vmem:[#allocation7 + $0x1d0] sm:$0xff]
    %v393 = vld [vmem:[#allocation7 + $0x1d8] sm:$0xff]
    %v394 = vld [vmem:[#allocation7 + $0x1e0] sm:$0xff]
    %v395 = vld [vmem:[#allocation7 + $0x1e8] sm:$0xff]
    %v396 = vld [vmem:[#allocation7 + $0x1f0] sm:$0xff]
    %v397 = vld [vmem:[#allocation7 + $0x1f8] sm:$0xff]
    %v398 = vld [vmem:[#allocation7 + $0x200] sm:$0xff]
    %v399 = vld [vmem:[#allocation7 + $0x208] sm:$0xff]
    %v400 = vld [vmem:[#allocation7 + $0x210] sm:$0xff]
    %v401 = vld [vmem:[#allocation7 + $0x218] sm:$0xff]
    %v402 = vld [vmem:[#allocation7 + $0x220] sm:$0xff]
    %v403 = vld [vmem:[#allocation7 + $0x228] sm:$0xff]
    %v404 = vld [vmem:[#allocation7 + $0x230] sm:$0xff]
    %v405 = vld [vmem:[#allocation7 + $0x238] sm:$0xff]
    %v406 = vld [vmem:[#allocation7 + $0x240] sm:$0xff]
    %v407 = vld [vmem:[#allocation7 + $0x248] sm:$0xff]
    %v408 = vld [vmem:[#allocation7 + $0x250] sm:$0xff]
    %v409 = vld [vmem:[#allocation7 + $0x258] sm:$0xff]
    %v410 = vld [vmem:[#allocation7 + $0x260] sm:$0xff]
    %v411 = vld [vmem:[#allocation7 + $0x268] sm:$0xff]
    %v412 = vld [vmem:[#allocation7 + $0x270] sm:$0xff]
    %v413 = vld [vmem:[#allocation7 + $0x278] sm:$0xff]
    %v414 = vld [vmem:[#allocation7 + $0x280] sm:$0xff]
    %v415 = vld [vmem:[#allocation7 + $0x288] sm:$0xff]
    %v416 = vld [vmem:[#allocation7 + $0x290] sm:$0xff]
    %v417 = vld [vmem:[#allocation7 + $0x298] sm:$0xff]
    %v418 = vld [vmem:[#allocation7 + $0x2a0] sm:$0xff]
    %v419 = vld [vmem:[#allocation7 + $0x2a8] sm:$0xff]
    %v420 = vld [vmem:[#allocation7 + $0x2b0] sm:$0xff]
    %v421 = vld [vmem:[#allocation7 + $0x2b8] sm:$0xff]
    %v422 = vld [vmem:[#allocation7 + $0x2c0] sm:$0xff]
    %v423 = vld [vmem:[#allocation7 + $0x2c8] sm:$0xff]
    %v424 = vld [vmem:[#allocation7 + $0x2d0] sm:$0xff]
    %v425 = vld [vmem:[#allocation7 + $0x2d8] sm:$0xff]
    %v426 = vld [vmem:[#allocation7 + $0x2e0] sm:$0xff]
    %v427 = vld [vmem:[#allocation7 + $0x2e8] sm:$0xff]
    %v428 = vld [vmem:[#allocation7 + $0x2f0] sm:$0xff]
    %v429 = vld [vmem:[#allocation7 + $0x2f8] sm:$0xff]
    %v430 = vld [vmem:[#allocation7 + $0x300] sm:$0xff]
    %v431 = vld [vmem:[#allocation7 + $0x308] sm:$0xff]
    %v432 = vld [vmem:[#allocation7 + $0x310] sm:$0xff]
    %v433 = vld [vmem:[#allocation7 + $0x318] sm:$0xff]
    %v434 = vld [vmem:[#allocation7 + $0x320] sm:$0xff]
    %v435 = vld [vmem:[#allocation7 + $0x328] sm:$0xff]
    %v436 = vld [vmem:[#allocation7 + $0x330] sm:$0xff]
    %v437 = vld [vmem:[#allocation7 + $0x338] sm:$0xff]
    %v438 = vld [vmem:[#allocation7 + $0x340] sm:$0xff]
    %v439 = vld [vmem:[#allocation7 + $0x348] sm:$0xff]
    %v440 = vld [vmem:[#allocation7 + $0x350] sm:$0xff]
    %v441 = vld [vmem:[#allocation7 + $0x358] sm:$0xff]
    %v442 = vld [vmem:[#allocation7 + $0x360] sm:$0xff]
    %v443 = vld [vmem:[#allocation7 + $0x368] sm:$0xff]
    %v444 = vld [vmem:[#allocation7 + $0x370] sm:$0xff]
    %v445 = vld [vmem:[#allocation7 + $0x378] sm:$0xff]
    %v446 = vld [vmem:[#allocation7 + $0x380] sm:$0xff]
    %v447 = vld [vmem:[#allocation7 + $0x388] sm:$0xff]
    %v448 = vld [vmem:[#allocation7 + $0x390] sm:$0xff]
    %v449 = vld [vmem:[#allocation7 + $0x398] sm:$0xff]
    %v450 = vld [vmem:[#allocation7 + $0x3a0] sm:$0xff]
    %v451 = vld [vmem:[#allocation7 + $0x3a8] sm:$0xff]
    %v452 = vld [vmem:[#allocation7 + $0x3b0] sm:$0xff]
    %v453 = vld [vmem:[#allocation7 + $0x3b8] sm:$0xff]
    %v454 = vld [vmem:[#allocation7 + $0x3c0] sm:$0xff]
    %v455 = vld [vmem:[#allocation7 + $0x3c8] sm:$0xff]
    %v456 = vld [vmem:[#allocation7 + $0x3d0] sm:$0xff]
    %v457 = vld [vmem:[#allocation7 + $0x3d8] sm:$0xff]
    %v458 = vld [vmem:[#allocation7 + $0x3e0] sm:$0xff]
    %v459 = vld [vmem:[#allocation7 + $0x3e8] sm:$0xff]
    %v460 = vld [vmem:[#allocation7 + $0x3f0] sm:$0xff]
    %v461 = vld [vmem:[#allocation7 + $0x3f8] sm:$0xff]
    %v462 = vld [vmem:[#allocation7 + $0x400] sm:$0xff]
    %v463 = vld [vmem:[#allocation7 + $0x408] sm:$0xff]
    %v464 = vld [vmem:[#allocation7 + $0x410] sm:$0xff]
    %v465 = vld [vmem:[#allocation7 + $0x418] sm:$0xff]
    %v466 = vld [vmem:[#allocation7 + $0x420] sm:$0xff]
    %v467 = vld [vmem:[#allocation7 + $0x428] sm:$0xff]
    %v468 = vld [vmem:[#allocation7 + $0x430] sm:$0xff]
    %v469 = vld [vmem:[#allocation7 + $0x438] sm:$0xff]
    %v470 = vld [vmem:[#allocation7 + $0x440] sm:$0xff]
    %v471 = vld [vmem:[#allocation7 + $0x448] sm:$0xff]
    %v472 = vld [vmem:[#allocation7 + $0x450] sm:$0xff]
    %v473 = vld [vmem:[#allocation7 + $0x458] sm:$0xff]
    %v474 = vld [vmem:[#allocation7 + $0x460] sm:$0xff]
    %v475 = vld [vmem:[#allocation7 + $0x468] sm:$0xff]
    %v476 = vld [vmem:[#allocation7 + $0x470] sm:$0xff]
    %v477 = vld [vmem:[#allocation7 + $0x478] sm:$0xff]
    %v478 = vld [vmem:[#allocation7 + $0x480] sm:$0xff]
    %v479 = vld [vmem:[#allocation7 + $0x488] sm:$0xff]
    %v480 = vld [vmem:[#allocation7 + $0x490] sm:$0xff]
    %v481 = vld [vmem:[#allocation7 + $0x498] sm:$0xff]
    %v482 = vld [vmem:[#allocation7 + $0x4a0] sm:$0xff]
    %v483 = vld [vmem:[#allocation7 + $0x4a8] sm:$0xff]
    %v484 = vld [vmem:[#allocation7 + $0x4b0] sm:$0xff]
    %v485 = vld [vmem:[#allocation7 + $0x4b8] sm:$0xff]
    %v486 = vld [vmem:[#allocation7 + $0x4c0] sm:$0xff]
    %v487 = vld [vmem:[#allocation7 + $0x4c8] sm:$0xff]
    %v488 = vld [vmem:[#allocation7 + $0x4d0] sm:$0xff]
    %v489 = vld [vmem:[#allocation7 + $0x4d8] sm:$0xff]
    %v490 = vld [vmem:[#allocation7 + $0x4e0] sm:$0xff]
    %v491 = vld [vmem:[#allocation7 + $0x4e8] sm:$0xff]
    %v492 = vld [vmem:[#allocation7 + $0x4f0] sm:$0xff]
    %v493 = vld [vmem:[#allocation7 + $0x4f8] sm:$0xff]
    %v494 = vld [vmem:[#allocation7 + $0x500] sm:$0xff]
    %v495 = vld [vmem:[#allocation7 + $0x508] sm:$0xff]
    %v496 = vld [vmem:[#allocation7 + $0x510] sm:$0xff]
    %v497 = vld [vmem:[#allocation7 + $0x518] sm:$0xff]
    %v498 = vld [vmem:[#allocation7 + $0x520] sm:$0xff]
    %v499 = vld [vmem:[#allocation7 + $0x528] sm:$0xff]
    %v500 = vld [vmem:[#allocation7 + $0x530] sm:$0xff]
    %v501 = vld [vmem:[#allocation7 + $0x538] sm:$0xff]
    %v502 = vld [vmem:[#allocation7 + $0x540] sm:$0xff]
    %v503 = vld [vmem:[#allocation7 + $0x548] sm:$0xff]
    %v504 = vld [vmem:[#allocation7 + $0x550] sm:$0xff]
    %v505 = vld [vmem:[#allocation7 + $0x558] sm:$0xff]
    %v506 = vld [vmem:[#allocation7 + $0x560] sm:$0xff]
    %v507 = vld [vmem:[#allocation7 + $0x568] sm:$0xff]
    %v508 = vld [vmem:[#allocation7 + $0x570] sm:$0xff]
    %v509 = vld [vmem:[#allocation7 + $0x578] sm:$0xff]
    %v510 = vld [vmem:[#allocation7 + $0x580] sm:$0xff]
    %v511 = vld [vmem:[#allocation7 + $0x588] sm:$0xff]
    %v512 = vld [vmem:[#allocation7 + $0x590] sm:$0xff]
    %v513 = vld [vmem:[#allocation7 + $0x598] sm:$0xff]
    %v514 = vld [vmem:[#allocation7 + $0x5a0] sm:$0xff]
    %v515 = vld [vmem:[#allocation7 + $0x5a8] sm:$0xff]
    %v516 = vld [vmem:[#allocation7 + $0x5b0] sm:$0xff]
    %v517 = vld [vmem:[#allocation7 + $0x5b8] sm:$0xff]
    %v518 = vld [vmem:[#allocation7 + $0x5c0] sm:$0xff]
    %v519 = vld [vmem:[#allocation7 + $0x5c8] sm:$0xff]
    %v520 = vld [vmem:[#allocation7 + $0x5d0] sm:$0xff]
    %v521 = vld [vmem:[#allocation7 + $0x5d8] sm:$0xff]
    %v522 = vld [vmem:[#allocation7 + $0x5e0] sm:$0xff]
    %v523 = vld [vmem:[#allocation7 + $0x5e8] sm:$0xff]
    %v524 = vld [vmem:[#allocation7 + $0x5f0] sm:$0xff]
    %v525 = vld [vmem:[#allocation7 + $0x5f8] sm:$0xff]
    %v526 = vld [vmem:[#allocation7 + $0x600] sm:$0xff]
    %v527 = vld [vmem:[#allocation7 + $0x608] sm:$0xff]
    %v528 = vld [vmem:[#allocation7 + $0x610] sm:$0xff]
    %v529 = vld [vmem:[#allocation7 + $0x618] sm:$0xff]
    %v530 = vld [vmem:[#allocation7 + $0x620] sm:$0xff]
    %v531 = vld [vmem:[#allocation7 + $0x628] sm:$0xff]
    %v532 = vld [vmem:[#allocation7 + $0x630] sm:$0xff]
    %v533 = vld [vmem:[#allocation7 + $0x638] sm:$0xff]
    %v534 = vld [vmem:[#allocation7 + $0x640] sm:$0xff]
    %v535 = vld [vmem:[#allocation7 + $0x648] sm:$0xff]
    %v536 = vld [vmem:[#allocation7 + $0x650] sm:$0xff]
    %v537 = vld [vmem:[#allocation7 + $0x658] sm:$0xff]
    %v538 = vld [vmem:[#allocation7 + $0x660] sm:$0xff]
    %v539 = vld [vmem:[#allocation7 + $0x668] sm:$0xff]
    %v540 = vld [vmem:[#allocation7 + $0x670] sm:$0xff]
    %v541 = vld [vmem:[#allocation7 + $0x678] sm:$0xff]
    %v542 = vld [vmem:[#allocation7 + $0x680] sm:$0xff]
    %v543 = vld [vmem:[#allocation7 + $0x688] sm:$0xff]
    %v544 = vld [vmem:[#allocation7 + $0x690] sm:$0xff]
    %v545 = vld [vmem:[#allocation7 + $0x698] sm:$0xff]
    %v546 = vld [vmem:[#allocation7 + $0x6a0] sm:$0xff]
    %v547 = vld [vmem:[#allocation7 + $0x6a8] sm:$0xff]
    %v548 = vld [vmem:[#allocation7 + $0x6b0] sm:$0xff]
    %v549 = vld [vmem:[#allocation7 + $0x6b8] sm:$0xff]
    %v550 = vld [vmem:[#allocation7 + $0x6c0] sm:$0xff]
    %v551 = vld [vmem:[#allocation7 + $0x6c8] sm:$0xff]
    %v552 = vld [vmem:[#allocation7 + $0x6d0] sm:$0xff]
    %v553 = vld [vmem:[#allocation7 + $0x6d8] sm:$0xff]
    %v554 = vld [vmem:[#allocation7 + $0x6e0] sm:$0xff]
    %v555 = vld [vmem:[#allocation7 + $0x6e8] sm:$0xff]
    %v556 = vld [vmem:[#allocation7 + $0x6f0] sm:$0xff]
    %v557 = vld [vmem:[#allocation7 + $0x6f8] sm:$0xff]
    %v558 = vld [vmem:[#allocation7 + $0x700] sm:$0xff]
    %v559 = vld [vmem:[#allocation7 + $0x708] sm:$0xff]
    %v560 = vld [vmem:[#allocation7 + $0x710] sm:$0xff]
    %v561 = vld [vmem:[#allocation7 + $0x718] sm:$0xff]
    %v562 = vld [vmem:[#allocation7 + $0x720] sm:$0xff]
    %v563 = vld [vmem:[#allocation7 + $0x728] sm:$0xff]
    %v564 = vld [vmem:[#allocation7 + $0x730] sm:$0xff]
    %v565 = vld [vmem:[#allocation7 + $0x738] sm:$0xff]
    %v566 = vld [vmem:[#allocation7 + $0x740] sm:$0xff]
    %v567 = vld [vmem:[#allocation7 + $0x748] sm:$0xff]
    %v568 = vld [vmem:[#allocation7 + $0x750] sm:$0xff]
    %v569 = vld [vmem:[#allocation7 + $0x758] sm:$0xff]
    %v570 = vld [vmem:[#allocation7 + $0x760] sm:$0xff]
    %v571 = vld [vmem:[#allocation7 + $0x768] sm:$0xff]
    %v572 = vld [vmem:[#allocation7 + $0x770] sm:$0xff]
    %v573 = vld [vmem:[#allocation7 + $0x778] sm:$0xff]
    %v574 = vld [vmem:[#allocation7 + $0x780] sm:$0xff]
    %v575 = vld [vmem:[#allocation7 + $0x788] sm:$0xff]
    %v576 = vld [vmem:[#allocation7 + $0x790] sm:$0xff]
    %v577 = vld [vmem:[#allocation7 + $0x798] sm:$0xff]
    %v578 = vld [vmem:[#allocation7 + $0x7a0] sm:$0xff]
    %v579 = vld [vmem:[#allocation7 + $0x7a8] sm:$0xff]
    %v580 = vld [vmem:[#allocation7 + $0x7b0] sm:$0xff]
    %v581 = vld [vmem:[#allocation7 + $0x7b8] sm:$0xff]
    %v582 = vld [vmem:[#allocation7 + $0x7c0] sm:$0xff]
    %v583 = vld [vmem:[#allocation7 + $0x7c8] sm:$0xff]
    %v584 = vld [vmem:[#allocation7 + $0x7d0] sm:$0xff]
    %v585 = vld [vmem:[#allocation7 + $0x7d8] sm:$0xff]
    %v586 = vld [vmem:[#allocation7 + $0x7e0] sm:$0xff]
    %v587 = vld [vmem:[#allocation7 + $0x7e8] sm:$0xff]
    %v588 = vld [vmem:[#allocation7 + $0x7f0] sm:$0xff]
    %v589 = vld [vmem:[#allocation7 + $0x7f8] sm:$0xff]
    %v590 = vld [vmem:[#allocation25] ss:$8 sm:$0xf]
    %s591 = scalar_lea.vmem [#allocation25], 1
    %v592 = vld [vmem:[%s591] ss:$8 sm:$0xf]
    %v593 = vld [vmem:[#allocation8] sm:$0xff]
    %v594 = vld [vmem:[#allocation8 + $0x8] sm:$0xff]
    %v595 = vld [vmem:[#allocation8 + $0x10] sm:$0xff]
    %v596 = vld [vmem:[#allocation8 + $0x18] sm:$0xff]
    %v597 = vld [vmem:[#allocation8 + $0x20] sm:$0xff]
    %v598 = vld [vmem:[#allocation8 + $0x28] sm:$0xff]
    %v599 = vld [vmem:[#allocation8 + $0x30] sm:$0xff]
    %v600 = vld [vmem:[#allocation8 + $0x38] sm:$0xff]
    %v601 = vld [vmem:[#allocation8 + $0x40] sm:$0xff]
    %v602 = vld [vmem:[#allocation8 + $0x48] sm:$0xff]
    %v603 = vld [vmem:[#allocation8 + $0x50] sm:$0xff]
    %v604 = vld [vmem:[#allocation8 + $0x58] sm:$0xff]
    %v605 = vld [vmem:[#allocation8 + $0x60] sm:$0xff]
    %v606 = vld [vmem:[#allocation8 + $0x68] sm:$0xff]
    %v607 = vld [vmem:[#allocation8 + $0x70] sm:$0xff]
    %v608 = vld [vmem:[#allocation8 + $0x78] sm:$0xff]
    %v609 = vld [vmem:[#allocation8 + $0x80] sm:$0xff]
    %v610 = vld [vmem:[#allocation8 + $0x88] sm:$0xff]
    %v611 = vld [vmem:[#allocation8 + $0x90] sm:$0xff]
    %v612 = vld [vmem:[#allocation8 + $0x98] sm:$0xff]
    %v613 = vld [vmem:[#allocation8 + $0xa0] sm:$0xff]
    %v614 = vld [vmem:[#allocation8 + $0xa8] sm:$0xff]
    %v615 = vld [vmem:[#allocation8 + $0xb0] sm:$0xff]
    %v616 = vld [vmem:[#allocation8 + $0xb8] sm:$0xff]
    %v617 = vld [vmem:[#allocation8 + $0xc0] sm:$0xff]
    %v618 = vld [vmem:[#allocation8 + $0xc8] sm:$0xff]
    %v619 = vld [vmem:[#allocation8 + $0xd0] sm:$0xff]
    %v620 = vld [vmem:[#allocation8 + $0xd8] sm:$0xff]
    %v621 = vld [vmem:[#allocation8 + $0xe0] sm:$0xff]
    %v622 = vld [vmem:[#allocation8 + $0xe8] sm:$0xff]
    %v623 = vld [vmem:[#allocation8 + $0xf0] sm:$0xff]
    %v624 = vld [vmem:[#allocation8 + $0xf8] sm:$0xff]
    %v625 = vld [vmem:[#allocation8 + $0x100] sm:$0xff]
    %v626 = vld [vmem:[#allocation8 + $0x108] sm:$0xff]
    %v627 = vld [vmem:[#allocation8 + $0x110] sm:$0xff]
    %v628 = vld [vmem:[#allocation8 + $0x118] sm:$0xff]
    %v629 = vld [vmem:[#allocation8 + $0x120] sm:$0xff]
    %v630 = vld [vmem:[#allocation8 + $0x128] sm:$0xff]
    %v631 = vld [vmem:[#allocation8 + $0x130] sm:$0xff]
    %v632 = vld [vmem:[#allocation8 + $0x138] sm:$0xff]
    %v633 = vld [vmem:[#allocation8 + $0x140] sm:$0xff]
    %v634 = vld [vmem:[#allocation8 + $0x148] sm:$0xff]
    %v635 = vld [vmem:[#allocation8 + $0x150] sm:$0xff]
    %v636 = vld [vmem:[#allocation8 + $0x158] sm:$0xff]
    %v637 = vld [vmem:[#allocation8 + $0x160] sm:$0xff]
    %v638 = vld [vmem:[#allocation8 + $0x168] sm:$0xff]
    %v639 = vld [vmem:[#allocation8 + $0x170] sm:$0xff]
    %v640 = vld [vmem:[#allocation8 + $0x178] sm:$0xff]
    %v641 = vld [vmem:[#allocation8 + $0x180] sm:$0xff]
    %v642 = vld [vmem:[#allocation8 + $0x188] sm:$0xff]
    %v643 = vld [vmem:[#allocation8 + $0x190] sm:$0xff]
    %v644 = vld [vmem:[#allocation8 + $0x198] sm:$0xff]
    %v645 = vld [vmem:[#allocation8 + $0x1a0] sm:$0xff]
    %v646 = vld [vmem:[#allocation8 + $0x1a8] sm:$0xff]
    %v647 = vld [vmem:[#allocation8 + $0x1b0] sm:$0xff]
    %v648 = vld [vmem:[#allocation8 + $0x1b8] sm:$0xff]
    %v649 = vld [vmem:[#allocation8 + $0x1c0] sm:$0xff]
    %v650 = vld [vmem:[#allocation8 + $0x1c8] sm:$0xff]
    %v651 = vld [vmem:[#allocation8 + $0x1d0] sm:$0xff]
    %v652 = vld [vmem:[#allocation8 + $0x1d8] sm:$0xff]
    %v653 = vld [vmem:[#allocation8 + $0x1e0] sm:$0xff]
    %v654 = vld [vmem:[#allocation8 + $0x1e8] sm:$0xff]
    %v655 = vld [vmem:[#allocation8 + $0x1f0] sm:$0xff]
    %v656 = vld [vmem:[#allocation8 + $0x1f8] sm:$0xff]
    %s657 = scalar_lea.vmem [#allocation25], 2
    %v658 = vld [vmem:[%s657] ss:$8 sm:$0xf]
    %v660 = vlaneseq
    %v661 = vshrl.u32 %v660, 7
    %v662 = vsub.s32 0, %v661
    %v663 = vrot.slane %v590, %v662
    %v664 = vlaneseq
    %v665 = vshrl.u32 %v664, 7
    %v666 = vsub.s32 1, %v665
    %v667 = vrot.slane %v590, %v666
    %v668 = vlaneseq
    %v669 = vshrl.u32 %v668, 7
    %v670 = vsub.s32 2, %v669
    %v671 = vrot.slane %v590, %v670
    %v672 = vlaneseq
    %v673 = vshrl.u32 %v672, 7
    %v674 = vsub.s32 3, %v673
    %v675 = vrot.slane %v590, %v674
    %680 = vmatprep.subr.mxu0 %v271
    %681 = vmatpush1.msra.mxu0 %v270
    %682 = vmatprep.subr.mxu0 %v275
    %683 = vmatpush1.msra.mxu0 %v274
    %684 = vmatprep.subr.mxu0 %v279
    %685 = vmatpush1.msra.mxu0 %v278
    %686 = vmatprep.subr.mxu0 %v283
    %687 = vmatpush1.msra.mxu0 %v282
    %688 = vmatprep.subr.mxu0 %v287
    %689 = vmatpush1.msra.mxu0 %v286
    %690 = vmatprep.subr.mxu0 %v291
    %691 = vmatpush1.msra.mxu0 %v290
    %692 = vmatprep.subr.mxu0 %v295
    %693 = vmatpush1.msra.mxu0 %v294
    %694 = vmatprep.subr.mxu0 %v299
    %695 = vmatpush1.msra.mxu0 %v298
    %696 = vmatprep.subr.mxu0 %v303
    %697 = vmatpush1.msra.mxu0 %v302
    %698 = vmatprep.subr.mxu0 %v307
    %699 = vmatpush1.msra.mxu0 %v306
    %700 = vmatprep.subr.mxu0 %v311
    %701 = vmatpush1.msra.mxu0 %v310
    %702 = vmatprep.subr.mxu0 %v315
    %703 = vmatpush1.msra.mxu0 %v314
    %704 = vmatprep.subr.mxu0 %v319
    %705 = vmatpush1.msra.mxu0 %v318
    %706 = vmatprep.subr.mxu0 %v323
    %707 = vmatpush1.msra.mxu0 %v322
    %708 = vmatprep.subr.mxu0 %v327
    %709 = vmatpush1.msra.mxu0 %v326
    %710 = vmatprep.subr.mxu0 %v331
    %711 = vmatpush1.msra.mxu0 %v330
    %712 = vmatprep.subr.mxu0 0.0
    %713 = vmatpush1.msra.mxu0 0.0
    %714 = vmatprep.subr.mxu0 0.0
    %715 = vmatpush1.msra.mxu0 0.0
    %716 = vmatprep.subr.mxu0 0.0
    %717 = vmatpush1.msra.mxu0 0.0
    %718 = vmatprep.subr.mxu0 0.0
    %719 = vmatpush1.msra.mxu0 0.0
    %720 = vmatprep.subr.mxu0 0.0
    %721 = vmatpush1.msra.mxu0 0.0
    %722 = vmatprep.subr.mxu0 0.0
    %723 = vmatpush1.msra.mxu0 0.0
    %724 = vmatprep.subr.mxu0 0.0
    %725 = vmatpush1.msra.mxu0 0.0
    %726 = vmatprep.subr.mxu0 0.0
    %727 = vmatpush1.msra.mxu0 0.0
    %728 = vmatprep.subr.mxu0 0.0
    %729 = vmatpush1.msra.mxu0 0.0
    %730 = vmatprep.subr.mxu0 0.0
    %731 = vmatpush1.msra.mxu0 0.0
    %732 = vmatprep.subr.mxu0 0.0
    %733 = vmatpush1.msra.mxu0 0.0
    %734 = vmatprep.subr.mxu0 0.0
    %735 = vmatpush1.msra.mxu0 0.0
    %736 = vmatprep.subr.mxu0 0.0
    %737 = vmatpush1.msra.mxu0 0.0
    %738 = vmatprep.subr.mxu0 0.0
    %739 = vmatpush1.msra.mxu0 0.0
    %740 = vmatprep.subr.mxu0 0.0
    %741 = vmatpush1.msra.mxu0 0.0
    %742 = vmatprep.subr.mxu0 0.0
    %743 = vmatpush1.msra.mxu0 0.0
    %744 = vmatprep.mubr.f32.mxu0 0.0
    %745 = vmatmul.mubr.f32.gmra.mrb[0].mxu0 %v254
    %v746 = vpop.f32.mrb[0].mxu0
    %v747 = vadd.f32 %v663, %v746
    %v748 = vpop.f32.mrb[0].mxu0
    %v749 = vadd.f32 %v667, %v748
    %750 = vmatprep.mubr.f32.mxu0 0.0
    %751 = vmatmul.mubr.f32.gmra.mrb[0].mxu0 %v255
    %v752 = vpop.f32.mrb[0].mxu0
    %v753 = vadd.f32 %v663, %v752
    %v754 = vpop.f32.mrb[0].mxu0
    %v755 = vadd.f32 %v667, %v754
    %756 = vmatprep.mubr.f32.mxu0 0.0
    %757 = vmatmul.mubr.f32.gmra.mrb[0].mxu0 %v256
    %v758 = vpop.f32.mrb[0].mxu0
    %v759 = vadd.f32 %v663, %v758
    %v760 = vpop.f32.mrb[0].mxu0
    %v761 = vadd.f32 %v667, %v760
    %762 = vmatprep.mubr.f32.mxu0 0.0
    %763 = vmatmul.mubr.f32.gmra.mrb[0].mxu0 %v257
    %v764 = vpop.f32.mrb[0].mxu0
    %v765 = vadd.f32 %v663, %v764
    %v766 = vpop.f32.mrb[0].mxu0
    %v767 = vadd.f32 %v667, %v766
    %768 = vmatprep.mubr.f32.mxu0 0.0
    %769 = vmatmul.mubr.f32.gmra.mrb[0].mxu0 %v258
    %v770 = vpop.f32.mrb[0].mxu0
    %v771 = vadd.f32 %v663, %v770
    %v772 = vpop.f32.mrb[0].mxu0
    %v773 = vadd.f32 %v667, %v772
    %774 = vmatprep.mubr.f32.mxu0 0.0
    %775 = vmatmul.mubr.f32.gmra.mrb[0].mxu0 %v259
    %v776 = vpop.f32.mrb[0].mxu0
    %v777 = vadd.f32 %v663, %v776
    %v778 = vpop.f32.mrb[0].mxu0
    %v779 = vadd.f32 %v667, %v778
    %780 = vmatprep.mubr.f32.mxu0 0.0
    %781 = vmatmul.mubr.f32.gmra.mrb[0].mxu0 %v260
    %v782 = vpop.f32.mrb[0].mxu0
    %v783 = vadd.f32 %v663, %v782
    %v784 = vpop.f32.mrb[0].mxu0
    %v785 = vadd.f32 %v667, %v784
    %786 = vmatprep.mubr.f32.mxu0 0.0
    %787 = vmatmul.mubr.f32.gmra.mrb[0].mxu0 %v261
    %v788 = vpop.f32.mrb[0].mxu0
    %v789 = vadd.f32 %v663, %v788
    %v790 = vpop.f32.mrb[0].mxu0
    %v791 = vadd.f32 %v667, %v790
    %792 = vmatprep.mubr.f32.mxu0 0.0
    %793 = vmatmul.mubr.f32.gmra.mrb[0].mxu0 %v262
    %v794 = vpop.f32.mrb[0].mxu0
    %v795 = vadd.f32 %v663, %v794
    %v796 = vpop.f32.mrb[0].mxu0
    %v797 = vadd.f32 %v667, %v796
    %798 = vmatprep.mubr.f32.mxu0 0.0
    %799 = vmatmul.mubr.f32.gmra.mrb[0].mxu0 %v263
    %v800 = vpop.f32.mrb[0].mxu0
    %v801 = vadd.f32 %v663, %v800
    %v802 = vpop.f32.mrb[0].mxu0
    %v803 = vadd.f32 %v667, %v802
    %804 = vmatprep.mubr.f32.mxu0 0.0
    %805 = vmatmul.mubr.f32.gmra.mrb[0].mxu0 %v264
    %v806 = vpop.f32.mrb[0].mxu0
    %v807 = vadd.f32 %v663, %v806
    %v808 = vpop.f32.mrb[0].mxu0
    %v809 = vadd.f32 %v667, %v808
    %810 = vmatprep.mubr.f32.mxu0 0.0
    %811 = vmatmul.mubr.f32.gmra.mrb[0].mxu0 %v265
    %v812 = vpop.f32.mrb[0].mxu0
    %v813 = vadd.f32 %v663, %v812
    %v814 = vpop.f32.mrb[0].mxu0
    %v815 = vadd.f32 %v667, %v814
    %816 = vmatprep.mubr.f32.mxu0 0.0
    %817 = vmatmul.mubr.f32.gmra.mrb[0].mxu0 %v266
    %v818 = vpop.f32.mrb[0].mxu0
    %v819 = vadd.f32 %v663, %v818
    %v820 = vpop.f32.mrb[0].mxu0
    %v821 = vadd.f32 %v667, %v820
    %822 = vmatprep.mubr.f32.mxu0 0.0
    %823 = vmatmul.mubr.f32.gmra.mrb[0].mxu0 %v267
    %v824 = vpop.f32.mrb[0].mxu0
    %v825 = vadd.f32 %v663, %v824
    %v826 = vpop.f32.mrb[0].mxu0
    %v827 = vadd.f32 %v667, %v826
    %828 = vmatprep.mubr.f32.mxu0 0.0
    %829 = vmatmul.mubr.f32.gmra.mrb[0].mxu0 %v268
    %v830 = vpop.f32.mrb[0].mxu0
    %v831 = vadd.f32 %v663, %v830
    %v832 = vpop.f32.mrb[0].mxu0
    %v833 = vadd.f32 %v667, %v832
    %834 = vmatprep.mubr.f32.mxu0 0.0
    %835 = vmatmul.mubr.f32.gmra.mrb[0].mxu0 %v269
    %v836 = vpop.f32.mrb[0].mxu0
    %v837 = vadd.f32 %v663, %v836
    %v838 = vpop.f32.mrb[0].mxu0
    %v839 = vadd.f32 %v667, %v838
    %840 = vdwg.mxu0
    %841 = vmatprep.subr.mxu0 %v273
    %842 = vmatpush1.msra.mxu0 %v272
    %843 = vmatprep.subr.mxu0 %v277
    %844 = vmatpush1.msra.mxu0 %v276
    %845 = vmatprep.subr.mxu0 %v281
    %846 = vmatpush1.msra.mxu0 %v280
    %847 = vmatprep.subr.mxu0 %v285
    %848 = vmatpush1.msra.mxu0 %v284
    %849 = vmatprep.subr.mxu0 %v289
    %850 = vmatpush1.msra.mxu0 %v288
    %851 = vmatprep.subr.mxu0 %v293
    %852 = vmatpush1.msra.mxu0 %v292
    %853 = vmatprep.subr.mxu0 %v297
    %854 = vmatpush1.msra.mxu0 %v296
    %855 = vmatprep.subr.mxu0 %v301
    %856 = vmatpush1.msra.mxu0 %v300
    %857 = vmatprep.subr.mxu0 %v305
    %858 = vmatpush1.msra.mxu0 %v304
    %859 = vmatprep.subr.mxu0 %v309
    %860 = vmatpush1.msra.mxu0 %v308
    %861 = vmatprep.subr.mxu0 %v313
    %862 = vmatpush1.msra.mxu0 %v312
    %863 = vmatprep.subr.mxu0 %v317
    %864 = vmatpush1.msra.mxu0 %v316
    %865 = vmatprep.subr.mxu0 %v321
    %866 = vmatpush1.msra.mxu0 %v320
    %867 = vmatprep.subr.mxu0 %v325
    %868 = vmatpush1.msra.mxu0 %v324
    %869 = vmatprep.subr.mxu0 %v329
    %870 = vmatpush1.msra.mxu0 %v328
    %871 = vmatprep.subr.mxu0 %v333
    %872 = vmatpush1.msra.mxu0 %v332
    %873 = vmatprep.subr.mxu0 0.0
    %874 = vmatpush1.msra.mxu0 0.0
    %875 = vmatprep.subr.mxu0 0.0
    %876 = vmatpush1.msra.mxu0 0.0
    %877 = vmatprep.subr.mxu0 0.0
    %878 = vmatpush1.msra.mxu0 0.0
    %879 = vmatprep.subr.mxu0 0.0
    %880 = vmatpush1.msra.mxu0 0.0
    %881 = vmatprep.subr.mxu0 0.0
    %882 = vmatpush1.msra.mxu0 0.0
    %883 = vmatprep.subr.mxu0 0.0
    %884 = vmatpush1.msra.mxu0 0.0
    %885 = vmatprep.subr.mxu0 0.0
    %886 = vmatpush1.msra.mxu0 0.0
    %887 = vmatprep.subr.mxu0 0.0
    %888 = vmatpush1.msra.mxu0 0.0
    %889 = vmatprep.subr.mxu0 0.0
    %890 = vmatpush1.msra.mxu0 0.0
    %891 = vmatprep.subr.mxu0 0.0
    %892 = vmatpush1.msra.mxu0 0.0
    %893 = vmatprep.subr.mxu0 0.0
    %894 = vmatpush1.msra.mxu0 0.0
    %895 = vmatprep.subr.mxu0 0.0
    %896 = vmatpush1.msra.mxu0 0.0
    %897 = vmatprep.subr.mxu0 0.0
    %898 = vmatpush1.msra.mxu0 0.0
    %899 = vmatprep.subr.mxu0 0.0
    %900 = vmatpush1.msra.mxu0 0.0
    %901 = vmatprep.subr.mxu0 0.0
    %902 = vmatpush1.msra.mxu0 0.0
    %903 = vmatprep.subr.mxu0 0.0
    %904 = vmatpush1.msra.mxu0 0.0
    %905 = vmatprep.mubr.f32.mxu0 0.0
    %906 = vmatmul.mubr.f32.gmra.mrb[0].mxu0 %v254
    %v907 = vpop.f32.mrb[0].mxu0
    %v908 = vadd.f32 %v671, %v907
    %v909 = vpop.f32.mrb[0].mxu0
    %v910 = vadd.f32 %v675, %v909
    %911 = vmatprep.mubr.f32.mxu0 0.0
    %912 = vmatmul.mubr.f32.gmra.mrb[0].mxu0 %v255
    %v913 = vpop.f32.mrb[0].mxu0
    %v914 = vadd.f32 %v671, %v913
    %v915 = vpop.f32.mrb[0].mxu0
    %v916 = vadd.f32 %v675, %v915
    %917 = vmatprep.mubr.f32.mxu0 0.0
    %918 = vmatmul.mubr.f32.gmra.mrb[0].mxu0 %v256
    %v919 = vpop.f32.mrb[0].mxu0
    %v920 = vadd.f32 %v671, %v919
    %v921 = vpop.f32.mrb[0].mxu0
    %v922 = vadd.f32 %v675, %v921
    %923 = vmatprep.mubr.f32.mxu0 0.0
    %924 = vmatmul.mubr.f32.gmra.mrb[0].mxu0 %v257
    %v925 = vpop.f32.mrb[0].mxu0
    %v926 = vadd.f32 %v671, %v925
    %v927 = vpop.f32.mrb[0].mxu0
    %v928 = vadd.f32 %v675, %v927
    %929 = vmatprep.mubr.f32.mxu0 0.0
    %930 = vmatmul.mubr.f32.gmra.mrb[0].mxu0 %v258
    %v931 = vpop.f32.mrb[0].mxu0
    %v932 = vadd.f32 %v671, %v931
    %v933 = vpop.f32.mrb[0].mxu0
    %v934 = vadd.f32 %v675, %v933
    %935 = vmatprep.mubr.f32.mxu0 0.0
    %936 = vmatmul.mubr.f32.gmra.mrb[0].mxu0 %v259
    %v937 = vpop.f32.mrb[0].mxu0
    %v938 = vadd.f32 %v671, %v937
    %v939 = vpop.f32.mrb[0].mxu0
    %v940 = vadd.f32 %v675, %v939
    %941 = vmatprep.mubr.f32.mxu0 0.0
    %942 = vmatmul.mubr.f32.gmra.mrb[0].mxu0 %v260
    %v943 = vpop.f32.mrb[0].mxu0
    %v944 = vadd.f32 %v671, %v943
    %v945 = vpop.f32.mrb[0].mxu0
    %v946 = vadd.f32 %v675, %v945
    %947 = vmatprep.mubr.f32.mxu0 0.0
    %948 = vmatmul.mubr.f32.gmra.mrb[0].mxu0 %v261
    %v949 = vpop.f32.mrb[0].mxu0
    %v950 = vadd.f32 %v671, %v949
    %v951 = vpop.f32.mrb[0].mxu0
    %v952 = vadd.f32 %v675, %v951
    %953 = vmatprep.mubr.f32.mxu0 0.0
    %954 = vmatmul.mubr.f32.gmra.mrb[0].mxu0 %v262
    %v955 = vpop.f32.mrb[0].mxu0
    %v956 = vadd.f32 %v671, %v955
    %v957 = vpop.f32.mrb[0].mxu0
    %v958 = vadd.f32 %v675, %v957
    %959 = vmatprep.mubr.f32.mxu0 0.0
    %960 = vmatmul.mubr.f32.gmra.mrb[0].mxu0 %v263
    %v961 = vpop.f32.mrb[0].mxu0
    %v962 = vadd.f32 %v671, %v961
    %v963 = vpop.f32.mrb[0].mxu0
    %v964 = vadd.f32 %v675, %v963
    %965 = vmatprep.mubr.f32.mxu0 0.0
    %966 = vmatmul.mubr.f32.gmra.mrb[0].mxu0 %v264
    %v967 = vpop.f32.mrb[0].mxu0
    %v968 = vadd.f32 %v671, %v967
    %v969 = vpop.f32.mrb[0].mxu0
    %v970 = vadd.f32 %v675, %v969
    %971 = vmatprep.mubr.f32.mxu0 0.0
    %972 = vmatmul.mubr.f32.gmra.mrb[0].mxu0 %v265
    %v973 = vpop.f32.mrb[0].mxu0
    %v974 = vadd.f32 %v671, %v973
    %v975 = vpop.f32.mrb[0].mxu0
    %v976 = vadd.f32 %v675, %v975
    %977 = vmatprep.mubr.f32.mxu0 0.0
    %978 = vmatmul.mubr.f32.gmra.mrb[0].mxu0 %v266
    %v979 = vpop.f32.mrb[0].mxu0
    %v980 = vadd.f32 %v671, %v979
    %v981 = vpop.f32.mrb[0].mxu0
    %v982 = vadd.f32 %v675, %v981
    %983 = vmatprep.mubr.f32.mxu0 0.0
    %984 = vmatmul.mubr.f32.gmra.mrb[0].mxu0 %v267
    %v985 = vpop.f32.mrb[0].mxu0
    %v986 = vadd.f32 %v671, %v985
    %v987 = vpop.f32.mrb[0].mxu0
    %v988 = vadd.f32 %v675, %v987
    %989 = vmatprep.mubr.f32.mxu0 0.0
    %990 = vmatmul.mubr.f32.gmra.mrb[0].mxu0 %v268
    %v991 = vpop.f32.mrb[0].mxu0
    %v992 = vadd.f32 %v671, %v991
    %v993 = vpop.f32.mrb[0].mxu0
    %v994 = vadd.f32 %v675, %v993
    %995 = vmatprep.mubr.f32.mxu0 0.0
    %996 = vmatmul.mubr.f32.gmra.mrb[0].mxu0 %v269
    %v997 = vpop.f32.mrb[0].mxu0
    %v998 = vadd.f32 %v671, %v997
    %v999 = vpop.f32.mrb[0].mxu0
    %v1000 = vadd.f32 %v675, %v999
    %1001 = vdwg.mxu0
    %v1002 = vmax.f32 %v747, 0.0
    %v1003 = vmax.f32 %v749, 0.0
    %v1004 = vmax.f32 %v908, 0.0
    %v1005 = vmax.f32 %v910, 0.0
    %v1006 = vmax.f32 %v753, 0.0
    %v1007 = vmax.f32 %v755, 0.0
    %v1008 = vmax.f32 %v914, 0.0
    %v1009 = vmax.f32 %v916, 0.0
    %v1010 = vmax.f32 %v759, 0.0
    %v1011 = vmax.f32 %v761, 0.0
    %v1012 = vmax.f32 %v920, 0.0
    %v1013 = vmax.f32 %v922, 0.0
    %v1014 = vmax.f32 %v765, 0.0
    %v1015 = vmax.f32 %v767, 0.0
    %v1016 = vmax.f32 %v926, 0.0
    %v1017 = vmax.f32 %v928, 0.0
    %v1018 = vmax.f32 %v771, 0.0
    %v1019 = vmax.f32 %v773, 0.0
    %v1020 = vmax.f32 %v932, 0.0
    %v1021 = vmax.f32 %v934, 0.0
    %v1022 = vmax.f32 %v777, 0.0
    %v1023 = vmax.f32 %v779, 0.0
    %v1024 = vmax.f32 %v938, 0.0
    %v1025 = vmax.f32 %v940, 0.0
    %v1026 = vmax.f32 %v783, 0.0
    %v1027 = vmax.f32 %v785, 0.0
    %v1028 = vmax.f32 %v944, 0.0
    %v1029 = vmax.f32 %v946, 0.0
    %v1030 = vmax.f32 %v789, 0.0
    %v1031 = vmax.f32 %v791, 0.0
    %v1032 = vmax.f32 %v950, 0.0
    %v1033 = vmax.f32 %v952, 0.0
    %v1034 = vmax.f32 %v795, 0.0
    %v1035 = vmax.f32 %v797, 0.0
    %v1036 = vmax.f32 %v956, 0.0
    %v1037 = vmax.f32 %v958, 0.0
    %v1038 = vmax.f32 %v801, 0.0
    %v1039 = vmax.f32 %v803, 0.0
    %v1040 = vmax.f32 %v962, 0.0
    %v1041 = vmax.f32 %v964, 0.0
    %v1042 = vmax.f32 %v807, 0.0
    %v1043 = vmax.f32 %v809, 0.0
    %v1044 = vmax.f32 %v968, 0.0
    %v1045 = vmax.f32 %v970, 0.0
    %v1046 = vmax.f32 %v813, 0.0
    %v1047 = vmax.f32 %v815, 0.0
    %v1048 = vmax.f32 %v974, 0.0
    %v1049 = vmax.f32 %v976, 0.0
    %v1050 = vmax.f32 %v819, 0.0
    %v1051 = vmax.f32 %v821, 0.0
    %v1052 = vmax.f32 %v980, 0.0
    %v1053 = vmax.f32 %v982, 0.0
    %v1054 = vmax.f32 %v825, 0.0
    %v1055 = vmax.f32 %v827, 0.0
    %v1056 = vmax.f32 %v986, 0.0
    %v1057 = vmax.f32 %v988, 0.0
    %v1058 = vmax.f32 %v831, 0.0
    %v1059 = vmax.f32 %v833, 0.0
    %v1060 = vmax.f32 %v992, 0.0
    %v1061 = vmax.f32 %v994, 0.0
    %v1062 = vmax.f32 %v837, 0.0
    %v1063 = vmax.f32 %v839, 0.0
    %v1064 = vmax.f32 %v998, 0.0
    %v1065 = vmax.f32 %v1000, 0.0
    %v1067 = vlaneseq
    %v1068 = vshrl.u32 %v1067, 7
    %v1069 = vsub.s32 0, %v1068
    %v1070 = vrot.slane %v592, %v1069
    %v1071 = vlaneseq
    %v1072 = vshrl.u32 %v1071, 7
    %v1073 = vsub.s32 1, %v1072
    %v1074 = vrot.slane %v592, %v1073
    %v1075 = vlaneseq
    %v1076 = vshrl.u32 %v1075, 7
    %v1077 = vsub.s32 2, %v1076
    %v1078 = vrot.slane %v592, %v1077
    %v1079 = vlaneseq
    %v1080 = vshrl.u32 %v1079, 7
    %v1081 = vsub.s32 3, %v1080
    %v1082 = vrot.slane %v592, %v1081
    %1087 = vmatprep.subr.mxu0 %v335
    %1088 = vmatpush1.msra.mxu0 %v334
    %1089 = vmatprep.subr.mxu0 %v339
    %1090 = vmatpush1.msra.mxu0 %v338
    %1091 = vmatprep.subr.mxu0 %v343
    %1092 = vmatpush1.msra.mxu0 %v342
    %1093 = vmatprep.subr.mxu0 %v347
    %1094 = vmatpush1.msra.mxu0 %v346
    %1095 = vmatprep.subr.mxu0 %v351
    %1096 = vmatpush1.msra.mxu0 %v350
    %1097 = vmatprep.subr.mxu0 %v355
    %1098 = vmatpush1.msra.mxu0 %v354
    %1099 = vmatprep.subr.mxu0 %v359
    %1100 = vmatpush1.msra.mxu0 %v358
    %1101 = vmatprep.subr.mxu0 %v363
    %1102 = vmatpush1.msra.mxu0 %v362
    %1103 = vmatprep.subr.mxu0 %v367
    %1104 = vmatpush1.msra.mxu0 %v366
    %1105 = vmatprep.subr.mxu0 %v371
    %1106 = vmatpush1.msra.mxu0 %v370
    %1107 = vmatprep.subr.mxu0 %v375
    %1108 = vmatpush1.msra.mxu0 %v374
    %1109 = vmatprep.subr.mxu0 %v379
    %1110 = vmatpush1.msra.mxu0 %v378
    %1111 = vmatprep.subr.mxu0 %v383
    %1112 = vmatpush1.msra.mxu0 %v382
    %1113 = vmatprep.subr.mxu0 %v387
    %1114 = vmatpush1.msra.mxu0 %v386
    %1115 = vmatprep.subr.mxu0 %v391
    %1116 = vmatpush1.msra.mxu0 %v390
    %1117 = vmatprep.subr.mxu0 %v395
    %1118 = vmatpush1.msra.mxu0 %v394
    %1119 = vmatprep.subr.mxu0 %v399
    %1120 = vmatpush1.msra.mxu0 %v398
    %1121 = vmatprep.subr.mxu0 %v403
    %1122 = vmatpush1.msra.mxu0 %v402
    %1123 = vmatprep.subr.mxu0 %v407
    %1124 = vmatpush1.msra.mxu0 %v406
    %1125 = vmatprep.subr.mxu0 %v411
    %1126 = vmatpush1.msra.mxu0 %v410
    %1127 = vmatprep.subr.mxu0 %v415
    %1128 = vmatpush1.msra.mxu0 %v414
    %1129 = vmatprep.subr.mxu0 %v419
    %1130 = vmatpush1.msra.mxu0 %v418
    %1131 = vmatprep.subr.mxu0 %v423
    %1132 = vmatpush1.msra.mxu0 %v422
    %1133 = vmatprep.subr.mxu0 %v427
    %1134 = vmatpush1.msra.mxu0 %v426
    %1135 = vmatprep.subr.mxu0 %v431
    %1136 = vmatpush1.msra.mxu0 %v430
    %1137 = vmatprep.subr.mxu0 %v435
    %1138 = vmatpush1.msra.mxu0 %v434
    %1139 = vmatprep.subr.mxu0 %v439
    %1140 = vmatpush1.msra.mxu0 %v438
    %1141 = vmatprep.subr.mxu0 %v443
    %1142 = vmatpush1.msra.mxu0 %v442
    %1143 = vmatprep.subr.mxu0 %v447
    %1144 = vmatpush1.msra.mxu0 %v446
    %1145 = vmatprep.subr.mxu0 %v451
    %1146 = vmatpush1.msra.mxu0 %v450
    %1147 = vmatprep.subr.mxu0 %v455
    %1148 = vmatpush1.msra.mxu0 %v454
    %1149 = vmatprep.subr.mxu0 %v459
    %1150 = vmatpush1.msra.mxu0 %v458
    %1151 = vmatprep.mubr.f32.mxu0 %v1003
    %1152 = vmatmul.mubr.f32.gmra.mrb[0].mxu0 %v1002
    %v1153 = vpop.f32.mrb[0].mxu0
    %v1154 = vadd.f32 %v1070, %v1153
    %v1155 = vpop.f32.mrb[0].mxu0
    %v1156 = vadd.f32 %v1074, %v1155
    %1157 = vmatprep.mubr.f32.mxu0 %v1007
    %1158 = vmatmul.mubr.f32.gmra.mrb[0].mxu0 %v1006
    %v1159 = vpop.f32.mrb[0].mxu0
    %v1160 = vadd.f32 %v1070, %v1159
    %v1161 = vpop.f32.mrb[0].mxu0
    %v1162 = vadd.f32 %v1074, %v1161
    %1163 = vmatprep.mubr.f32.mxu0 %v1011
    %1164 = vmatmul.mubr.f32.gmra.mrb[0].mxu0 %v1010
    %v1165 = vpop.f32.mrb[0].mxu0
    %v1166 = vadd.f32 %v1070, %v1165
    %v1167 = vpop.f32.mrb[0].mxu0
    %v1168 = vadd.f32 %v1074, %v1167
    %1169 = vmatprep.mubr.f32.mxu0 %v1015
    %1170 = vmatmul.mubr.f32.gmra.mrb[0].mxu0 %v1014
    %v1171 = vpop.f32.mrb[0].mxu0
    %v1172 = vadd.f32 %v1070, %v1171
    %v1173 = vpop.f32.mrb[0].mxu0
    %v1174 = vadd.f32 %v1074, %v1173
    %1175 = vmatprep.mubr.f32.mxu0 %v1019
    %1176 = vmatmul.mubr.f32.gmra.mrb[0].mxu0 %v1018
    %v1177 = vpop.f32.mrb[0].mxu0
    %v1178 = vadd.f32 %v1070, %v1177
    %v1179 = vpop.f32.mrb[0].mxu0
    %v1180 = vadd.f32 %v1074, %v1179
    %1181 = vmatprep.mubr.f32.mxu0 %v1023
    %1182 = vmatmul.mubr.f32.gmra.mrb[0].mxu0 %v1022
    %v1183 = vpop.f32.mrb[0].mxu0
    %v1184 = vadd.f32 %v1070, %v1183
    %v1185 = vpop.f32.mrb[0].mxu0
    %v1186 = vadd.f32 %v1074, %v1185
    %1187 = vmatprep.mubr.f32.mxu0 %v1027
    %1188 = vmatmul.mubr.f32.gmra.mrb[0].mxu0 %v1026
    %v1189 = vpop.f32.mrb[0].mxu0
    %v1190 = vadd.f32 %v1070, %v1189
    %v1191 = vpop.f32.mrb[0].mxu0
    %v1192 = vadd.f32 %v1074, %v1191
    %1193 = vmatprep.mubr.f32.mxu0 %v1031
    %1194 = vmatmul.mubr.f32.gmra.mrb[0].mxu0 %v1030
    %v1195 = vpop.f32.mrb[0].mxu0
    %v1196 = vadd.f32 %v1070, %v1195
    %v1197 = vpop.f32.mrb[0].mxu0
    %v1198 = vadd.f32 %v1074, %v1197
    %1199 = vmatprep.mubr.f32.mxu0 %v1035
    %1200 = vmatmul.mubr.f32.gmra.mrb[0].mxu0 %v1034
    %v1201 = vpop.f32.mrb[0].mxu0
    %v1202 = vadd.f32 %v1070, %v1201
    %v1203 = vpop.f32.mrb[0].mxu0
    %v1204 = vadd.f32 %v1074, %v1203
    %1205 = vmatprep.mubr.f32.mxu0 %v1039
    %1206 = vmatmul.mubr.f32.gmra.mrb[0].mxu0 %v1038
    %v1207 = vpop.f32.mrb[0].mxu0
    %v1208 = vadd.f32 %v1070, %v1207
    %v1209 = vpop.f32.mrb[0].mxu0
    %v1210 = vadd.f32 %v1074, %v1209
    %1211 = vmatprep.mubr.f32.mxu0 %v1043
    %1212 = vmatmul.mubr.f32.gmra.mrb[0].mxu0 %v1042
    %v1213 = vpop.f32.mrb[0].mxu0
    %v1214 = vadd.f32 %v1070, %v1213
    %v1215 = vpop.f32.mrb[0].mxu0
    %v1216 = vadd.f32 %v1074, %v1215
    %1217 = vmatprep.mubr.f32.mxu0 %v1047
    %1218 = vmatmul.mubr.f32.gmra.mrb[0].mxu0 %v1046
    %v1219 = vpop.f32.mrb[0].mxu0
    %v1220 = vadd.f32 %v1070, %v1219
    %v1221 = vpop.f32.mrb[0].mxu0
    %v1222 = vadd.f32 %v1074, %v1221
    %1223 = vmatprep.mubr.f32.mxu0 %v1051
    %1224 = vmatmul.mubr.f32.gmra.mrb[0].mxu0 %v1050
    %v1225 = vpop.f32.mrb[0].mxu0
    %v1226 = vadd.f32 %v1070, %v1225
    %v1227 = vpop.f32.mrb[0].mxu0
    %v1228 = vadd.f32 %v1074, %v1227
    %1229 = vmatprep.mubr.f32.mxu0 %v1055
    %1230 = vmatmul.mubr.f32.gmra.mrb[0].mxu0 %v1054
    %v1231 = vpop.f32.mrb[0].mxu0
    %v1232 = vadd.f32 %v1070, %v1231
    %v1233 = vpop.f32.mrb[0].mxu0
    %v1234 = vadd.f32 %v1074, %v1233
    %1235 = vmatprep.mubr.f32.mxu0 %v1059
    %1236 = vmatmul.mubr.f32.gmra.mrb[0].mxu0 %v1058
    %v1237 = vpop.f32.mrb[0].mxu0
    %v1238 = vadd.f32 %v1070, %v1237
    %v1239 = vpop.f32.mrb[0].mxu0
    %v1240 = vadd.f32 %v1074, %v1239
    %1241 = vmatprep.mubr.f32.mxu0 %v1063
    %1242 = vmatmul.mubr.f32.gmra.mrb[0].mxu0 %v1062
    %v1243 = vpop.f32.mrb[0].mxu0
    %v1244 = vadd.f32 %v1070, %v1243
    %v1245 = vpop.f32.mrb[0].mxu0
    %v1246 = vadd.f32 %v1074, %v1245
    %1247 = vdwg.mxu0
    %1248 = vmatprep.subr.mxu0 %v463
    %1249 = vmatpush1.msra.mxu0 %v462
    %1250 = vmatprep.subr.mxu0 %v467
    %1251 = vmatpush1.msra.mxu0 %v466
    %1252 = vmatprep.subr.mxu0 %v471
    %1253 = vmatpush1.msra.mxu0 %v470
    %1254 = vmatprep.subr.mxu0 %v475
    %1255 = vmatpush1.msra.mxu0 %v474
    %1256 = vmatprep.subr.mxu0 %v479
    %1257 = vmatpush1.msra.mxu0 %v478
    %1258 = vmatprep.subr.mxu0 %v483
    %1259 = vmatpush1.msra.mxu0 %v482
    %1260 = vmatprep.subr.mxu0 %v487
    %1261 = vmatpush1.msra.mxu0 %v486
    %1262 = vmatprep.subr.mxu0 %v491
    %1263 = vmatpush1.msra.mxu0 %v490
    %1264 = vmatprep.subr.mxu0 %v495
    %1265 = vmatpush1.msra.mxu0 %v494
    %1266 = vmatprep.subr.mxu0 %v499
    %1267 = vmatpush1.msra.mxu0 %v498
    %1268 = vmatprep.subr.mxu0 %v503
    %1269 = vmatpush1.msra.mxu0 %v502
    %1270 = vmatprep.subr.mxu0 %v507
    %1271 = vmatpush1.msra.mxu0 %v506
    %1272 = vmatprep.subr.mxu0 %v511
    %1273 = vmatpush1.msra.mxu0 %v510
    %1274 = vmatprep.subr.mxu0 %v515
    %1275 = vmatpush1.msra.mxu0 %v514
    %1276 = vmatprep.subr.mxu0 %v519
    %1277 = vmatpush1.msra.mxu0 %v518
    %1278 = vmatprep.subr.mxu0 %v523
    %1279 = vmatpush1.msra.mxu0 %v522
    %1280 = vmatprep.subr.mxu0 %v527
    %1281 = vmatpush1.msra.mxu0 %v526
    %1282 = vmatprep.subr.mxu0 %v531
    %1283 = vmatpush1.msra.mxu0 %v530
    %1284 = vmatprep.subr.mxu0 %v535
    %1285 = vmatpush1.msra.mxu0 %v534
    %1286 = vmatprep.subr.mxu0 %v539
    %1287 = vmatpush1.msra.mxu0 %v538
    %1288 = vmatprep.subr.mxu0 %v543
    %1289 = vmatpush1.msra.mxu0 %v542
    %1290 = vmatprep.subr.mxu0 %v547
    %1291 = vmatpush1.msra.mxu0 %v546
    %1292 = vmatprep.subr.mxu0 %v551
    %1293 = vmatpush1.msra.mxu0 %v550
    %1294 = vmatprep.subr.mxu0 %v555
    %1295 = vmatpush1.msra.mxu0 %v554
    %1296 = vmatprep.subr.mxu0 %v559
    %1297 = vmatpush1.msra.mxu0 %v558
    %1298 = vmatprep.subr.mxu0 %v563
    %1299 = vmatpush1.msra.mxu0 %v562
    %1300 = vmatprep.subr.mxu0 %v567
    %1301 = vmatpush1.msra.mxu0 %v566
    %1302 = vmatprep.subr.mxu0 %v571
    %1303 = vmatpush1.msra.mxu0 %v570
    %1304 = vmatprep.subr.mxu0 %v575
    %1305 = vmatpush1.msra.mxu0 %v574
    %1306 = vmatprep.subr.mxu0 %v579
    %1307 = vmatpush1.msra.mxu0 %v578
    %1308 = vmatprep.subr.mxu0 %v583
    %1309 = vmatpush1.msra.mxu0 %v582
    %1310 = vmatprep.subr.mxu0 %v587
    %1311 = vmatpush1.msra.mxu0 %v586
    %1312 = vmatprep.mubr.f32.mxu0 %v1005
    %1313 = vmatmul.mubr.f32.gmra.mrb[0].mxu0 %v1004
    %v1314 = vpop.f32.mrb[0].mxu0
    %v1315 = vadd.f32 %v1154, %v1314
    %v1316 = vpop.f32.mrb[0].mxu0
    %v1317 = vadd.f32 %v1156, %v1316
    %1318 = vmatprep.mubr.f32.mxu0 %v1009
    %1319 = vmatmul.mubr.f32.gmra.mrb[0].mxu0 %v1008
    %v1320 = vpop.f32.mrb[0].mxu0
    %v1321 = vadd.f32 %v1160, %v1320
    %v1322 = vpop.f32.mrb[0].mxu0
    %v1323 = vadd.f32 %v1162, %v1322
    %1324 = vmatprep.mubr.f32.mxu0 %v1013
    %1325 = vmatmul.mubr.f32.gmra.mrb[0].mxu0 %v1012
    %v1326 = vpop.f32.mrb[0].mxu0
    %v1327 = vadd.f32 %v1166, %v1326
    %v1328 = vpop.f32.mrb[0].mxu0
    %v1329 = vadd.f32 %v1168, %v1328
    %1330 = vmatprep.mubr.f32.mxu0 %v1017
    %1331 = vmatmul.mubr.f32.gmra.mrb[0].mxu0 %v1016
    %v1332 = vpop.f32.mrb[0].mxu0
    %v1333 = vadd.f32 %v1172, %v1332
    %v1334 = vpop.f32.mrb[0].mxu0
    %v1335 = vadd.f32 %v1174, %v1334
    %1336 = vmatprep.mubr.f32.mxu0 %v1021
    %1337 = vmatmul.mubr.f32.gmra.mrb[0].mxu0 %v1020
    %v1338 = vpop.f32.mrb[0].mxu0
    %v1339 = vadd.f32 %v1178, %v1338
    %v1340 = vpop.f32.mrb[0].mxu0
    %v1341 = vadd.f32 %v1180, %v1340
    %1342 = vmatprep.mubr.f32.mxu0 %v1025
    %1343 = vmatmul.mubr.f32.gmra.mrb[0].mxu0 %v1024
    %v1344 = vpop.f32.mrb[0].mxu0
    %v1345 = vadd.f32 %v1184, %v1344
    %v1346 = vpop.f32.mrb[0].mxu0
    %v1347 = vadd.f32 %v1186, %v1346
    %1348 = vmatprep.mubr.f32.mxu0 %v1029
    %1349 = vmatmul.mubr.f32.gmra.mrb[0].mxu0 %v1028
    %v1350 = vpop.f32.mrb[0].mxu0
    %v1351 = vadd.f32 %v1190, %v1350
    %v1352 = vpop.f32.mrb[0].mxu0
    %v1353 = vadd.f32 %v1192, %v1352
    %1354 = vmatprep.mubr.f32.mxu0 %v1033
    %1355 = vmatmul.mubr.f32.gmra.mrb[0].mxu0 %v1032
    %v1356 = vpop.f32.mrb[0].mxu0
    %v1357 = vadd.f32 %v1196, %v1356
    %v1358 = vpop.f32.mrb[0].mxu0
    %v1359 = vadd.f32 %v1198, %v1358
    %1360 = vmatprep.mubr.f32.mxu0 %v1037
    %1361 = vmatmul.mubr.f32.gmra.mrb[0].mxu0 %v1036
    %v1362 = vpop.f32.mrb[0].mxu0
    %v1363 = vadd.f32 %v1202, %v1362
    %v1364 = vpop.f32.mrb[0].mxu0
    %v1365 = vadd.f32 %v1204, %v1364
    %1366 = vmatprep.mubr.f32.mxu0 %v1041
    %1367 = vmatmul.mubr.f32.gmra.mrb[0].mxu0 %v1040
    %v1368 = vpop.f32.mrb[0].mxu0
    %v1369 = vadd.f32 %v1208, %v1368
    %v1370 = vpop.f32.mrb[0].mxu0
    %v1371 = vadd.f32 %v1210, %v1370
    %1372 = vmatprep.mubr.f32.mxu0 %v1045
    %1373 = vmatmul.mubr.f32.gmra.mrb[0].mxu0 %v1044
    %v1374 = vpop.f32.mrb[0].mxu0
    %v1375 = vadd.f32 %v1214, %v1374
    %v1376 = vpop.f32.mrb[0].mxu0
    %v1377 = vadd.f32 %v1216, %v1376
    %1378 = vmatprep.mubr.f32.mxu0 %v1049
    %1379 = vmatmul.mubr.f32.gmra.mrb[0].mxu0 %v1048
    %v1380 = vpop.f32.mrb[0].mxu0
    %v1381 = vadd.f32 %v1220, %v1380
    %v1382 = vpop.f32.mrb[0].mxu0
    %v1383 = vadd.f32 %v1222, %v1382
    %1384 = vmatprep.mubr.f32.mxu0 %v1053
    %1385 = vmatmul.mubr.f32.gmra.mrb[0].mxu0 %v1052
    %v1386 = vpop.f32.mrb[0].mxu0
    %v1387 = vadd.f32 %v1226, %v1386
    %v1388 = vpop.f32.mrb[0].mxu0
    %v1389 = vadd.f32 %v1228, %v1388
    %1390 = vmatprep.mubr.f32.mxu0 %v1057
    %1391 = vmatmul.mubr.f32.gmra.mrb[0].mxu0 %v1056
    %v1392 = vpop.f32.mrb[0].mxu0
    %v1393 = vadd.f32 %v1232, %v1392
    %v1394 = vpop.f32.mrb[0].mxu0
    %v1395 = vadd.f32 %v1234, %v1394
    %1396 = vmatprep.mubr.f32.mxu0 %v1061
    %1397 = vmatmul.mubr.f32.gmra.mrb[0].mxu0 %v1060
    %v1398 = vpop.f32.mrb[0].mxu0
    %v1399 = vadd.f32 %v1238, %v1398
    %v1400 = vpop.f32.mrb[0].mxu0
    %v1401 = vadd.f32 %v1240, %v1400
    %1402 = vmatprep.mubr.f32.mxu0 %v1065
    %1403 = vmatmul.mubr.f32.gmra.mrb[0].mxu0 %v1064
    %v1404 = vpop.f32.mrb[0].mxu0
    %v1405 = vadd.f32 %v1244, %v1404
    %v1406 = vpop.f32.mrb[0].mxu0
    %v1407 = vadd.f32 %v1246, %v1406
    %1408 = vdwg.mxu0
    %1409 = vmatprep.subr.mxu0 %v337
    %1410 = vmatpush1.msra.mxu0 %v336
    %1411 = vmatprep.subr.mxu0 %v341
    %1412 = vmatpush1.msra.mxu0 %v340
    %1413 = vmatprep.subr.mxu0 %v345
    %1414 = vmatpush1.msra.mxu0 %v344
    %1415 = vmatprep.subr.mxu0 %v349
    %1416 = vmatpush1.msra.mxu0 %v348
    %1417 = vmatprep.subr.mxu0 %v353
    %1418 = vmatpush1.msra.mxu0 %v352
    %1419 = vmatprep.subr.mxu0 %v357
    %1420 = vmatpush1.msra.mxu0 %v356
    %1421 = vmatprep.subr.mxu0 %v361
    %1422 = vmatpush1.msra.mxu0 %v360
    %1423 = vmatprep.subr.mxu0 %v365
    %1424 = vmatpush1.msra.mxu0 %v364
    %1425 = vmatprep.subr.mxu0 %v369
    %1426 = vmatpush1.msra.mxu0 %v368
    %1427 = vmatprep.subr.mxu0 %v373
    %1428 = vmatpush1.msra.mxu0 %v372
    %1429 = vmatprep.subr.mxu0 %v377
    %1430 = vmatpush1.msra.mxu0 %v376
    %1431 = vmatprep.subr.mxu0 %v381
    %1432 = vmatpush1.msra.mxu0 %v380
    %1433 = vmatprep.subr.mxu0 %v385
    %1434 = vmatpush1.msra.mxu0 %v384
    %1435 = vmatprep.subr.mxu0 %v389
    %1436 = vmatpush1.msra.mxu0 %v388
    %1437 = vmatprep.subr.mxu0 %v393
    %1438 = vmatpush1.msra.mxu0 %v392
    %1439 = vmatprep.subr.mxu0 %v397
    %1440 = vmatpush1.msra.mxu0 %v396
    %1441 = vmatprep.subr.mxu0 %v401
    %1442 = vmatpush1.msra.mxu0 %v400
    %1443 = vmatprep.subr.mxu0 %v405
    %1444 = vmatpush1.msra.mxu0 %v404
    %1445 = vmatprep.subr.mxu0 %v409
    %1446 = vmatpush1.msra.mxu0 %v408
    %1447 = vmatprep.subr.mxu0 %v413
    %1448 = vmatpush1.msra.mxu0 %v412
    %1449 = vmatprep.subr.mxu0 %v417
    %1450 = vmatpush1.msra.mxu0 %v416
    %1451 = vmatprep.subr.mxu0 %v421
    %1452 = vmatpush1.msra.mxu0 %v420
    %1453 = vmatprep.subr.mxu0 %v425
    %1454 = vmatpush1.msra.mxu0 %v424
    %1455 = vmatprep.subr.mxu0 %v429
    %1456 = vmatpush1.msra.mxu0 %v428
    %1457 = vmatprep.subr.mxu0 %v433
    %1458 = vmatpush1.msra.mxu0 %v432
    %1459 = vmatprep.subr.mxu0 %v437
    %1460 = vmatpush1.msra.mxu0 %v436
    %1461 = vmatprep.subr.mxu0 %v441
    %1462 = vmatpush1.msra.mxu0 %v440
    %1463 = vmatprep.subr.mxu0 %v445
    %1464 = vmatpush1.msra.mxu0 %v444
    %1465 = vmatprep.subr.mxu0 %v449
    %1466 = vmatpush1.msra.mxu0 %v448
    %1467 = vmatprep.subr.mxu0 %v453
    %1468 = vmatpush1.msra.mxu0 %v452
    %1469 = vmatprep.subr.mxu0 %v457
    %1470 = vmatpush1.msra.mxu0 %v456
    %1471 = vmatprep.subr.mxu0 %v461
    %1472 = vmatpush1.msra.mxu0 %v460
    %1473 = vmatprep.mubr.f32.mxu0 %v1003
    %1474 = vmatmul.mubr.f32.gmra.mrb[0].mxu0 %v1002
    %v1475 = vpop.f32.mrb[0].mxu0
    %v1476 = vadd.f32 %v1078, %v1475
    %v1477 = vpop.f32.mrb[0].mxu0
    %v1478 = vadd.f32 %v1082, %v1477
    %1479 = vmatprep.mubr.f32.mxu0 %v1007
    %1480 = vmatmul.mubr.f32.gmra.mrb[0].mxu0 %v1006
    %v1481 = vpop.f32.mrb[0].mxu0
    %v1482 = vadd.f32 %v1078, %v1481
    %v1483 = vpop.f32.mrb[0].mxu0
    %v1484 = vadd.f32 %v1082, %v1483
    %1485 = vmatprep.mubr.f32.mxu0 %v1011
    %1486 = vmatmul.mubr.f32.gmra.mrb[0].mxu0 %v1010
    %v1487 = vpop.f32.mrb[0].mxu0
    %v1488 = vadd.f32 %v1078, %v1487
    %v1489 = vpop.f32.mrb[0].mxu0
    %v1490 = vadd.f32 %v1082, %v1489
    %1491 = vmatprep.mubr.f32.mxu0 %v1015
    %1492 = vmatmul.mubr.f32.gmra.mrb[0].mxu0 %v1014
    %v1493 = vpop.f32.mrb[0].mxu0
    %v1494 = vadd.f32 %v1078, %v1493
    %v1495 = vpop.f32.mrb[0].mxu0
    %v1496 = vadd.f32 %v1082, %v1495
    %1497 = vmatprep.mubr.f32.mxu0 %v1019
    %1498 = vmatmul.mubr.f32.gmra.mrb[0].mxu0 %v1018
    %v1499 = vpop.f32.mrb[0].mxu0
    %v1500 = vadd.f32 %v1078, %v1499
    %v1501 = vpop.f32.mrb[0].mxu0
    %v1502 = vadd.f32 %v1082, %v1501
    %1503 = vmatprep.mubr.f32.mxu0 %v1023
    %1504 = vmatmul.mubr.f32.gmra.mrb[0].mxu0 %v1022
    %v1505 = vpop.f32.mrb[0].mxu0
    %v1506 = vadd.f32 %v1078, %v1505
    %v1507 = vpop.f32.mrb[0].mxu0
    %v1508 = vadd.f32 %v1082, %v1507
    %1509 = vmatprep.mubr.f32.mxu0 %v1027
    %1510 = vmatmul.mubr.f32.gmra.mrb[0].mxu0 %v1026
    %v1511 = vpop.f32.mrb[0].mxu0
    %v1512 = vadd.f32 %v1078, %v1511
    %v1513 = vpop.f32.mrb[0].mxu0
    %v1514 = vadd.f32 %v1082, %v1513
    %1515 = vmatprep.mubr.f32.mxu0 %v1031
    %1516 = vmatmul.mubr.f32.gmra.mrb[0].mxu0 %v1030
    %v1517 = vpop.f32.mrb[0].mxu0
    %v1518 = vadd.f32 %v1078, %v1517
    %v1519 = vpop.f32.mrb[0].mxu0
    %v1520 = vadd.f32 %v1082, %v1519
    %1521 = vmatprep.mubr.f32.mxu0 %v1035
    %1522 = vmatmul.mubr.f32.gmra.mrb[0].mxu0 %v1034
    %v1523 = vpop.f32.mrb[0].mxu0
    %v1524 = vadd.f32 %v1078, %v1523
    %v1525 = vpop.f32.mrb[0].mxu0
    %v1526 = vadd.f32 %v1082, %v1525
    %1527 = vmatprep.mubr.f32.mxu0 %v1039
    %1528 = vmatmul.mubr.f32.gmra.mrb[0].mxu0 %v1038
    %v1529 = vpop.f32.mrb[0].mxu0
    %v1530 = vadd.f32 %v1078, %v1529
    %v1531 = vpop.f32.mrb[0].mxu0
    %v1532 = vadd.f32 %v1082, %v1531
    %1533 = vmatprep.mubr.f32.mxu0 %v1043
    %1534 = vmatmul.mubr.f32.gmra.mrb[0].mxu0 %v1042
    %v1535 = vpop.f32.mrb[0].mxu0
    %v1536 = vadd.f32 %v1078, %v1535
    %v1537 = vpop.f32.mrb[0].mxu0
    %v1538 = vadd.f32 %v1082, %v1537
    %1539 = vmatprep.mubr.f32.mxu0 %v1047
    %1540 = vmatmul.mubr.f32.gmra.mrb[0].mxu0 %v1046
    %v1541 = vpop.f32.mrb[0].mxu0
    %v1542 = vadd.f32 %v1078, %v1541
    %v1543 = vpop.f32.mrb[0].mxu0
    %v1544 = vadd.f32 %v1082, %v1543
    %1545 = vmatprep.mubr.f32.mxu0 %v1051
    %1546 = vmatmul.mubr.f32.gmra.mrb[0].mxu0 %v1050
    %v1547 = vpop.f32.mrb[0].mxu0
    %v1548 = vadd.f32 %v1078, %v1547
    %v1549 = vpop.f32.mrb[0].mxu0
    %v1550 = vadd.f32 %v1082, %v1549
    %1551 = vmatprep.mubr.f32.mxu0 %v1055
    %1552 = vmatmul.mubr.f32.gmra.mrb[0].mxu0 %v1054
    %v1553 = vpop.f32.mrb[0].mxu0
    %v1554 = vadd.f32 %v1078, %v1553
    %v1555 = vpop.f32.mrb[0].mxu0
    %v1556 = vadd.f32 %v1082, %v1555
    %1557 = vmatprep.mubr.f32.mxu0 %v1059
    %1558 = vmatmul.mubr.f32.gmra.mrb[0].mxu0 %v1058
    %v1559 = vpop.f32.mrb[0].mxu0
    %v1560 = vadd.f32 %v1078, %v1559
    %v1561 = vpop.f32.mrb[0].mxu0
    %v1562 = vadd.f32 %v1082, %v1561
    %1563 = vmatprep.mubr.f32.mxu0 %v1063
    %1564 = vmatmul.mubr.f32.gmra.mrb[0].mxu0 %v1062
    %v1565 = vpop.f32.mrb[0].mxu0
    %v1566 = vadd.f32 %v1078, %v1565
    %v1567 = vpop.f32.mrb[0].mxu0
    %v1568 = vadd.f32 %v1082, %v1567
    %1569 = vdwg.mxu0
    %1570 = vmatprep.subr.mxu0 %v465
    %1571 = vmatpush1.msra.mxu0 %v464
    %1572 = vmatprep.subr.mxu0 %v469
    %1573 = vmatpush1.msra.mxu0 %v468
    %1574 = vmatprep.subr.mxu0 %v473
    %1575 = vmatpush1.msra.mxu0 %v472
    %1576 = vmatprep.subr.mxu0 %v477
    %1577 = vmatpush1.msra.mxu0 %v476
    %1578 = vmatprep.subr.mxu0 %v481
    %1579 = vmatpush1.msra.mxu0 %v480
    %1580 = vmatprep.subr.mxu0 %v485
    %1581 = vmatpush1.msra.mxu0 %v484
    %1582 = vmatprep.subr.mxu0 %v489
    %1583 = vmatpush1.msra.mxu0 %v488
    %1584 = vmatprep.subr.mxu0 %v493
    %1585 = vmatpush1.msra.mxu0 %v492
    %1586 = vmatprep.subr.mxu0 %v497
    %1587 = vmatpush1.msra.mxu0 %v496
    %1588 = vmatprep.subr.mxu0 %v501
    %1589 = vmatpush1.msra.mxu0 %v500
    %1590 = vmatprep.subr.mxu0 %v505
    %1591 = vmatpush1.msra.mxu0 %v504
    %1592 = vmatprep.subr.mxu0 %v509
    %1593 = vmatpush1.msra.mxu0 %v508
    %1594 = vmatprep.subr.mxu0 %v513
    %1595 = vmatpush1.msra.mxu0 %v512
    %1596 = vmatprep.subr.mxu0 %v517
    %1597 = vmatpush1.msra.mxu0 %v516
    %1598 = vmatprep.subr.mxu0 %v521
    %1599 = vmatpush1.msra.mxu0 %v520
    %1600 = vmatprep.subr.mxu0 %v525
    %1601 = vmatpush1.msra.mxu0 %v524
    %1602 = vmatprep.subr.mxu0 %v529
    %1603 = vmatpush1.msra.mxu0 %v528
    %1604 = vmatprep.subr.mxu0 %v533
    %1605 = vmatpush1.msra.mxu0 %v532
    %1606 = vmatprep.subr.mxu0 %v537
    %1607 = vmatpush1.msra.mxu0 %v536
    %1608 = vmatprep.subr.mxu0 %v541
    %1609 = vmatpush1.msra.mxu0 %v540
    %1610 = vmatprep.subr.mxu0 %v545
    %1611 = vmatpush1.msra.mxu0 %v544
    %1612 = vmatprep.subr.mxu0 %v549
    %1613 = vmatpush1.msra.mxu0 %v548
    %1614 = vmatprep.subr.mxu0 %v553
    %1615 = vmatpush1.msra.mxu0 %v552
    %1616 = vmatprep.subr.mxu0 %v557
    %1617 = vmatpush1.msra.mxu0 %v556
    %1618 = vmatprep.subr.mxu0 %v561
    %1619 = vmatpush1.msra.mxu0 %v560
    %1620 = vmatprep.subr.mxu0 %v565
    %1621 = vmatpush1.msra.mxu0 %v564
    %1622 = vmatprep.subr.mxu0 %v569
    %1623 = vmatpush1.msra.mxu0 %v568
    %1624 = vmatprep.subr.mxu0 %v573
    %1625 = vmatpush1.msra.mxu0 %v572
    %1626 = vmatprep.subr.mxu0 %v577
    %1627 = vmatpush1.msra.mxu0 %v576
    %1628 = vmatprep.subr.mxu0 %v581
    %1629 = vmatpush1.msra.mxu0 %v580
    %1630 = vmatprep.subr.mxu0 %v585
    %1631 = vmatpush1.msra.mxu0 %v584
    %1632 = vmatprep.subr.mxu0 %v589
    %1633 = vmatpush1.msra.mxu0 %v588
    %1634 = vmatprep.mubr.f32.mxu0 %v1005
    %1635 = vmatmul.mubr.f32.gmra.mrb[0].mxu0 %v1004
    %v1636 = vpop.f32.mrb[0].mxu0
    %v1637 = vadd.f32 %v1476, %v1636
    %v1638 = vpop.f32.mrb[0].mxu0
    %v1639 = vadd.f32 %v1478, %v1638
    %1640 = vmatprep.mubr.f32.mxu0 %v1009
    %1641 = vmatmul.mubr.f32.gmra.mrb[0].mxu0 %v1008
    %v1642 = vpop.f32.mrb[0].mxu0
    %v1643 = vadd.f32 %v1482, %v1642
    %v1644 = vpop.f32.mrb[0].mxu0
    %v1645 = vadd.f32 %v1484, %v1644
    %1646 = vmatprep.mubr.f32.mxu0 %v1013
    %1647 = vmatmul.mubr.f32.gmra.mrb[0].mxu0 %v1012
    %v1648 = vpop.f32.mrb[0].mxu0
    %v1649 = vadd.f32 %v1488, %v1648
    %v1650 = vpop.f32.mrb[0].mxu0
    %v1651 = vadd.f32 %v1490, %v1650
    %1652 = vmatprep.mubr.f32.mxu0 %v1017
    %1653 = vmatmul.mubr.f32.gmra.mrb[0].mxu0 %v1016
    %v1654 = vpop.f32.mrb[0].mxu0
    %v1655 = vadd.f32 %v1494, %v1654
    %v1656 = vpop.f32.mrb[0].mxu0
    %v1657 = vadd.f32 %v1496, %v1656
    %1658 = vmatprep.mubr.f32.mxu0 %v1021
    %1659 = vmatmul.mubr.f32.gmra.mrb[0].mxu0 %v1020
    %v1660 = vpop.f32.mrb[0].mxu0
    %v1661 = vadd.f32 %v1500, %v1660
    %v1662 = vpop.f32.mrb[0].mxu0
    %v1663 = vadd.f32 %v1502, %v1662
    %1664 = vmatprep.mubr.f32.mxu0 %v1025
    %1665 = vmatmul.mubr.f32.gmra.mrb[0].mxu0 %v1024
    %v1666 = vpop.f32.mrb[0].mxu0
    %v1667 = vadd.f32 %v1506, %v1666
    %v1668 = vpop.f32.mrb[0].mxu0
    %v1669 = vadd.f32 %v1508, %v1668
    %1670 = vmatprep.mubr.f32.mxu0 %v1029
    %1671 = vmatmul.mubr.f32.gmra.mrb[0].mxu0 %v1028
    %v1672 = vpop.f32.mrb[0].mxu0
    %v1673 = vadd.f32 %v1512, %v1672
    %v1674 = vpop.f32.mrb[0].mxu0
    %v1675 = vadd.f32 %v1514, %v1674
    %1676 = vmatprep.mubr.f32.mxu0 %v1033
    %1677 = vmatmul.mubr.f32.gmra.mrb[0].mxu0 %v1032
    %v1678 = vpop.f32.mrb[0].mxu0
    %v1679 = vadd.f32 %v1518, %v1678
    %v1680 = vpop.f32.mrb[0].mxu0
    %v1681 = vadd.f32 %v1520, %v1680
    %1682 = vmatprep.mubr.f32.mxu0 %v1037
    %1683 = vmatmul.mubr.f32.gmra.mrb[0].mxu0 %v1036
    %v1684 = vpop.f32.mrb[0].mxu0
    %v1685 = vadd.f32 %v1524, %v1684
    %v1686 = vpop.f32.mrb[0].mxu0
    %v1687 = vadd.f32 %v1526, %v1686
    %1688 = vmatprep.mubr.f32.mxu0 %v1041
    %1689 = vmatmul.mubr.f32.gmra.mrb[0].mxu0 %v1040
    %v1690 = vpop.f32.mrb[0].mxu0
    %v1691 = vadd.f32 %v1530, %v1690
    %v1692 = vpop.f32.mrb[0].mxu0
    %v1693 = vadd.f32 %v1532, %v1692
    %1694 = vmatprep.mubr.f32.mxu0 %v1045
    %1695 = vmatmul.mubr.f32.gmra.mrb[0].mxu0 %v1044
    %v1696 = vpop.f32.mrb[0].mxu0
    %v1697 = vadd.f32 %v1536, %v1696
    %v1698 = vpop.f32.mrb[0].mxu0
    %v1699 = vadd.f32 %v1538, %v1698
    %1700 = vmatprep.mubr.f32.mxu0 %v1049
    %1701 = vmatmul.mubr.f32.gmra.mrb[0].mxu0 %v1048
    %v1702 = vpop.f32.mrb[0].mxu0
    %v1703 = vadd.f32 %v1542, %v1702
    %v1704 = vpop.f32.mrb[0].mxu0
    %v1705 = vadd.f32 %v1544, %v1704
    %1706 = vmatprep.mubr.f32.mxu0 %v1053
    %1707 = vmatmul.mubr.f32.gmra.mrb[0].mxu0 %v1052
    %v1708 = vpop.f32.mrb[0].mxu0
    %v1709 = vadd.f32 %v1548, %v1708
    %v1710 = vpop.f32.mrb[0].mxu0
    %v1711 = vadd.f32 %v1550, %v1710
    %1712 = vmatprep.mubr.f32.mxu0 %v1057
    %1713 = vmatmul.mubr.f32.gmra.mrb[0].mxu0 %v1056
    %v1714 = vpop.f32.mrb[0].mxu0
    %v1715 = vadd.f32 %v1554, %v1714
    %v1716 = vpop.f32.mrb[0].mxu0
    %v1717 = vadd.f32 %v1556, %v1716
    %1718 = vmatprep.mubr.f32.mxu0 %v1061
    %1719 = vmatmul.mubr.f32.gmra.mrb[0].mxu0 %v1060
    %v1720 = vpop.f32.mrb[0].mxu0
    %v1721 = vadd.f32 %v1560, %v1720
    %v1722 = vpop.f32.mrb[0].mxu0
    %v1723 = vadd.f32 %v1562, %v1722
    %1724 = vmatprep.mubr.f32.mxu0 %v1065
    %1725 = vmatmul.mubr.f32.gmra.mrb[0].mxu0 %v1064
    %v1726 = vpop.f32.mrb[0].mxu0
    %v1727 = vadd.f32 %v1566, %v1726
    %v1728 = vpop.f32.mrb[0].mxu0
    %v1729 = vadd.f32 %v1568, %v1728
    %1730 = vdwg.mxu0
    %v1732 = vlaneseq
    %v1733 = vshrl.u32 %v1732, 7
    %v1734 = vsub.s32 0, %v1733
    %v1735 = vrot.slane %v658, %v1734
    %v1736 = vlaneseq
    %v1737 = vshrl.u32 %v1736, 7
    %v1738 = vsub.s32 1, %v1737
    %v1739 = vrot.slane %v658, %v1738
    %v1740 = vlaneseq
    %v1741 = vshrl.u32 %v1740, 7
    %v1742 = vsub.s32 2, %v1741
    %v1743 = vrot.slane %v658, %v1742
    %v1744 = vlaneseq
    %v1745 = vshrl.u32 %v1744, 7
    %v1746 = vsub.s32 3, %v1745
    %v1747 = vrot.slane %v658, %v1746
    %1752 = vmatprep.subr.mxu0 %v594
    %1753 = vmatpush1.msra.mxu0 %v593
    %1754 = vmatprep.subr.mxu0 %v598
    %1755 = vmatpush1.msra.mxu0 %v597
    %1756 = vmatprep.subr.mxu0 %v602
    %1757 = vmatpush1.msra.mxu0 %v601
    %1758 = vmatprep.subr.mxu0 %v606
    %1759 = vmatpush1.msra.mxu0 %v605
    %1760 = vmatprep.subr.mxu0 %v610
    %1761 = vmatpush1.msra.mxu0 %v609
    %1762 = vmatprep.subr.mxu0 %v614
    %1763 = vmatpush1.msra.mxu0 %v613
    %1764 = vmatprep.subr.mxu0 %v618
    %1765 = vmatpush1.msra.mxu0 %v617
    %1766 = vmatprep.subr.mxu0 %v622
    %1767 = vmatpush1.msra.mxu0 %v621
    %1768 = vmatprep.subr.mxu0 %v626
    %1769 = vmatpush1.msra.mxu0 %v625
    %1770 = vmatprep.subr.mxu0 %v630
    %1771 = vmatpush1.msra.mxu0 %v629
    %1772 = vmatprep.subr.mxu0 %v634
    %1773 = vmatpush1.msra.mxu0 %v633
    %1774 = vmatprep.subr.mxu0 %v638
    %1775 = vmatpush1.msra.mxu0 %v637
    %1776 = vmatprep.subr.mxu0 %v642
    %1777 = vmatpush1.msra.mxu0 %v641
    %1778 = vmatprep.subr.mxu0 %v646
    %1779 = vmatpush1.msra.mxu0 %v645
    %1780 = vmatprep.subr.mxu0 %v650
    %1781 = vmatpush1.msra.mxu0 %v649
    %1782 = vmatprep.subr.mxu0 %v654
    %1783 = vmatpush1.msra.mxu0 %v653
    %1784 = vmatprep.subr.mxu0 0.0
    %1785 = vmatpush1.msra.mxu0 0.0
    %1786 = vmatprep.subr.mxu0 0.0
    %1787 = vmatpush1.msra.mxu0 0.0
    %1788 = vmatprep.subr.mxu0 0.0
    %1789 = vmatpush1.msra.mxu0 0.0
    %1790 = vmatprep.subr.mxu0 0.0
    %1791 = vmatpush1.msra.mxu0 0.0
    %1792 = vmatprep.subr.mxu0 0.0
    %1793 = vmatpush1.msra.mxu0 0.0
    %1794 = vmatprep.subr.mxu0 0.0
    %1795 = vmatpush1.msra.mxu0 0.0
    %1796 = vmatprep.subr.mxu0 0.0
    %1797 = vmatpush1.msra.mxu0 0.0
    %1798 = vmatprep.subr.mxu0 0.0
    %1799 = vmatpush1.msra.mxu0 0.0
    %1800 = vmatprep.subr.mxu0 0.0
    %1801 = vmatpush1.msra.mxu0 0.0
    %1802 = vmatprep.subr.mxu0 0.0
    %1803 = vmatpush1.msra.mxu0 0.0
    %1804 = vmatprep.subr.mxu0 0.0
    %1805 = vmatpush1.msra.mxu0 0.0
    %1806 = vmatprep.subr.mxu0 0.0
    %1807 = vmatpush1.msra.mxu0 0.0
    %1808 = vmatprep.subr.mxu0 0.0
    %1809 = vmatpush1.msra.mxu0 0.0
    %1810 = vmatprep.subr.mxu0 0.0
    %1811 = vmatpush1.msra.mxu0 0.0
    %1812 = vmatprep.subr.mxu0 0.0
    %1813 = vmatpush1.msra.mxu0 0.0
    %1814 = vmatprep.subr.mxu0 0.0
    %1815 = vmatpush1.msra.mxu0 0.0
    %1816 = vmatprep.mubr.f32.mxu0 0.0
    %1817 = vmatmul.mubr.f32.gmra.mrb[0].mxu0 %v254
    %v1818 = vpop.f32.mrb[0].mxu0
    %v1819 = vadd.f32 %v1735, %v1818
    %v1820 = vpop.f32.mrb[0].mxu0
    %v1821 = vadd.f32 %v1739, %v1820
    %1822 = vmatprep.mubr.f32.mxu0 0.0
    %1823 = vmatmul.mubr.f32.gmra.mrb[0].mxu0 %v255
    %v1824 = vpop.f32.mrb[0].mxu0
    %v1825 = vadd.f32 %v1735, %v1824
    %v1826 = vpop.f32.mrb[0].mxu0
    %v1827 = vadd.f32 %v1739, %v1826
    %1828 = vmatprep.mubr.f32.mxu0 0.0
    %1829 = vmatmul.mubr.f32.gmra.mrb[0].mxu0 %v256
    %v1830 = vpop.f32.mrb[0].mxu0
    %v1831 = vadd.f32 %v1735, %v1830
    %v1832 = vpop.f32.mrb[0].mxu0
    %v1833 = vadd.f32 %v1739, %v1832
    %1834 = vmatprep.mubr.f32.mxu0 0.0
    %1835 = vmatmul.mubr.f32.gmra.mrb[0].mxu0 %v257
    %v1836 = vpop.f32.mrb[0].mxu0
    %v1837 = vadd.f32 %v1735, %v1836
    %v1838 = vpop.f32.mrb[0].mxu0
    %v1839 = vadd.f32 %v1739, %v1838
    %1840 = vmatprep.mubr.f32.mxu0 0.0
    %1841 = vmatmul.mubr.f32.gmra.mrb[0].mxu0 %v258
    %v1842 = vpop.f32.mrb[0].mxu0
    %v1843 = vadd.f32 %v1735, %v1842
    %v1844 = vpop.f32.mrb[0].mxu0
    %v1845 = vadd.f32 %v1739, %v1844
    %1846 = vmatprep.mubr.f32.mxu0 0.0
    %1847 = vmatmul.mubr.f32.gmra.mrb[0].mxu0 %v259
    %v1848 = vpop.f32.mrb[0].mxu0
    %v1849 = vadd.f32 %v1735, %v1848
    %v1850 = vpop.f32.mrb[0].mxu0
    %v1851 = vadd.f32 %v1739, %v1850
    %1852 = vmatprep.mubr.f32.mxu0 0.0
    %1853 = vmatmul.mubr.f32.gmra.mrb[0].mxu0 %v260
    %v1854 = vpop.f32.mrb[0].mxu0
    %v1855 = vadd.f32 %v1735, %v1854
    %v1856 = vpop.f32.mrb[0].mxu0
    %v1857 = vadd.f32 %v1739, %v1856
    %1858 = vmatprep.mubr.f32.mxu0 0.0
    %1859 = vmatmul.mubr.f32.gmra.mrb[0].mxu0 %v261
    %v1860 = vpop.f32.mrb[0].mxu0
    %v1861 = vadd.f32 %v1735, %v1860
    %v1862 = vpop.f32.mrb[0].mxu0
    %v1863 = vadd.f32 %v1739, %v1862
    %1864 = vmatprep.mubr.f32.mxu0 0.0
    %1865 = vmatmul.mubr.f32.gmra.mrb[0].mxu0 %v262
    %v1866 = vpop.f32.mrb[0].mxu0
    %v1867 = vadd.f32 %v1735, %v1866
    %v1868 = vpop.f32.mrb[0].mxu0
    %v1869 = vadd.f32 %v1739, %v1868
    %1870 = vmatprep.mubr.f32.mxu0 0.0
    %1871 = vmatmul.mubr.f32.gmra.mrb[0].mxu0 %v263
    %v1872 = vpop.f32.mrb[0].mxu0
    %v1873 = vadd.f32 %v1735, %v1872
    %v1874 = vpop.f32.mrb[0].mxu0
    %v1875 = vadd.f32 %v1739, %v1874
    %1876 = vmatprep.mubr.f32.mxu0 0.0
    %1877 = vmatmul.mubr.f32.gmra.mrb[0].mxu0 %v264
    %v1878 = vpop.f32.mrb[0].mxu0
    %v1879 = vadd.f32 %v1735, %v1878
    %v1880 = vpop.f32.mrb[0].mxu0
    %v1881 = vadd.f32 %v1739, %v1880
    %1882 = vmatprep.mubr.f32.mxu0 0.0
    %1883 = vmatmul.mubr.f32.gmra.mrb[0].mxu0 %v265
    %v1884 = vpop.f32.mrb[0].mxu0
    %v1885 = vadd.f32 %v1735, %v1884
    %v1886 = vpop.f32.mrb[0].mxu0
    %v1887 = vadd.f32 %v1739, %v1886
    %1888 = vmatprep.mubr.f32.mxu0 0.0
    %1889 = vmatmul.mubr.f32.gmra.mrb[0].mxu0 %v266
    %v1890 = vpop.f32.mrb[0].mxu0
    %v1891 = vadd.f32 %v1735, %v1890
    %v1892 = vpop.f32.mrb[0].mxu0
    %v1893 = vadd.f32 %v1739, %v1892
    %1894 = vmatprep.mubr.f32.mxu0 0.0
    %1895 = vmatmul.mubr.f32.gmra.mrb[0].mxu0 %v267
    %v1896 = vpop.f32.mrb[0].mxu0
    %v1897 = vadd.f32 %v1735, %v1896
    %v1898 = vpop.f32.mrb[0].mxu0
    %v1899 = vadd.f32 %v1739, %v1898
    %1900 = vmatprep.mubr.f32.mxu0 0.0
    %1901 = vmatmul.mubr.f32.gmra.mrb[0].mxu0 %v268
    %v1902 = vpop.f32.mrb[0].mxu0
    %v1903 = vadd.f32 %v1735, %v1902
    %v1904 = vpop.f32.mrb[0].mxu0
    %v1905 = vadd.f32 %v1739, %v1904
    %1906 = vmatprep.mubr.f32.mxu0 0.0
    %1907 = vmatmul.mubr.f32.gmra.mrb[0].mxu0 %v269
    %v1908 = vpop.f32.mrb[0].mxu0
    %v1909 = vadd.f32 %v1735, %v1908
    %v1910 = vpop.f32.mrb[0].mxu0
    %v1911 = vadd.f32 %v1739, %v1910
    %1912 = vdwg.mxu0
    %1913 = vmatprep.subr.mxu0 %v596
    %1914 = vmatpush1.msra.mxu0 %v595
    %1915 = vmatprep.subr.mxu0 %v600
    %1916 = vmatpush1.msra.mxu0 %v599
    %1917 = vmatprep.subr.mxu0 %v604
    %1918 = vmatpush1.msra.mxu0 %v603
    %1919 = vmatprep.subr.mxu0 %v608
    %1920 = vmatpush1.msra.mxu0 %v607
    %1921 = vmatprep.subr.mxu0 %v612
    %1922 = vmatpush1.msra.mxu0 %v611
    %1923 = vmatprep.subr.mxu0 %v616
    %1924 = vmatpush1.msra.mxu0 %v615
    %1925 = vmatprep.subr.mxu0 %v620
    %1926 = vmatpush1.msra.mxu0 %v619
    %1927 = vmatprep.subr.mxu0 %v624
    %1928 = vmatpush1.msra.mxu0 %v623
    %1929 = vmatprep.subr.mxu0 %v628
    %1930 = vmatpush1.msra.mxu0 %v627
    %1931 = vmatprep.subr.mxu0 %v632
    %1932 = vmatpush1.msra.mxu0 %v631
    %1933 = vmatprep.subr.mxu0 %v636
    %1934 = vmatpush1.msra.mxu0 %v635
    %1935 = vmatprep.subr.mxu0 %v640
    %1936 = vmatpush1.msra.mxu0 %v639
    %1937 = vmatprep.subr.mxu0 %v644
    %1938 = vmatpush1.msra.mxu0 %v643
    %1939 = vmatprep.subr.mxu0 %v648
    %1940 = vmatpush1.msra.mxu0 %v647
    %1941 = vmatprep.subr.mxu0 %v652
    %1942 = vmatpush1.msra.mxu0 %v651
    %1943 = vmatprep.subr.mxu0 %v656
    %1944 = vmatpush1.msra.mxu0 %v655
    %1945 = vmatprep.subr.mxu0 0.0
    %1946 = vmatpush1.msra.mxu0 0.0
    %1947 = vmatprep.subr.mxu0 0.0
    %1948 = vmatpush1.msra.mxu0 0.0
    %1949 = vmatprep.subr.mxu0 0.0
    %1950 = vmatpush1.msra.mxu0 0.0
    %1951 = vmatprep.subr.mxu0 0.0
    %1952 = vmatpush1.msra.mxu0 0.0
    %1953 = vmatprep.subr.mxu0 0.0
    %1954 = vmatpush1.msra.mxu0 0.0
    %1955 = vmatprep.subr.mxu0 0.0
    %1956 = vmatpush1.msra.mxu0 0.0
    %1957 = vmatprep.subr.mxu0 0.0
    %1958 = vmatpush1.msra.mxu0 0.0
    %1959 = vmatprep.subr.mxu0 0.0
    %1960 = vmatpush1.msra.mxu0 0.0
    %1961 = vmatprep.subr.mxu0 0.0
    %1962 = vmatpush1.msra.mxu0 0.0
    %1963 = vmatprep.subr.mxu0 0.0
    %1964 = vmatpush1.msra.mxu0 0.0
    %1965 = vmatprep.subr.mxu0 0.0
    %1966 = vmatpush1.msra.mxu0 0.0
    %1967 = vmatprep.subr.mxu0 0.0
    %1968 = vmatpush1.msra.mxu0 0.0
    %1969 = vmatprep.subr.mxu0 0.0
    %1970 = vmatpush1.msra.mxu0 0.0
    %1971 = vmatprep.subr.mxu0 0.0
    %1972 = vmatpush1.msra.mxu0 0.0
    %1973 = vmatprep.subr.mxu0 0.0
    %1974 = vmatpush1.msra.mxu0 0.0
    %1975 = vmatprep.subr.mxu0 0.0
    %1976 = vmatpush1.msra.mxu0 0.0
    %1977 = vmatprep.mubr.f32.mxu0 0.0
    %1978 = vmatmul.mubr.f32.gmra.mrb[0].mxu0 %v254
    %v1979 = vpop.f32.mrb[0].mxu0
    %v1980 = vadd.f32 %v1743, %v1979
    %v1981 = vpop.f32.mrb[0].mxu0
    %v1982 = vadd.f32 %v1747, %v1981
    %1983 = vmatprep.mubr.f32.mxu0 0.0
    %1984 = vmatmul.mubr.f32.gmra.mrb[0].mxu0 %v255
    %v1985 = vpop.f32.mrb[0].mxu0
    %v1986 = vadd.f32 %v1743, %v1985
    %v1987 = vpop.f32.mrb[0].mxu0
    %v1988 = vadd.f32 %v1747, %v1987
    %1989 = vmatprep.mubr.f32.mxu0 0.0
    %1990 = vmatmul.mubr.f32.gmra.mrb[0].mxu0 %v256
    %v1991 = vpop.f32.mrb[0].mxu0
    %v1992 = vadd.f32 %v1743, %v1991
    %v1993 = vpop.f32.mrb[0].mxu0
    %v1994 = vadd.f32 %v1747, %v1993
    %1995 = vmatprep.mubr.f32.mxu0 0.0
    %1996 = vmatmul.mubr.f32.gmra.mrb[0].mxu0 %v257
    %v1997 = vpop.f32.mrb[0].mxu0
    %v1998 = vadd.f32 %v1743, %v1997
    %v1999 = vpop.f32.mrb[0].mxu0
    %v2000 = vadd.f32 %v1747, %v1999
    %2001 = vmatprep.mubr.f32.mxu0 0.0
    %2002 = vmatmul.mubr.f32.gmra.mrb[0].mxu0 %v258
    %v2003 = vpop.f32.mrb[0].mxu0
    %v2004 = vadd.f32 %v1743, %v2003
    %v2005 = vpop.f32.mrb[0].mxu0
    %v2006 = vadd.f32 %v1747, %v2005
    %2007 = vmatprep.mubr.f32.mxu0 0.0
    %2008 = vmatmul.mubr.f32.gmra.mrb[0].mxu0 %v259
    %v2009 = vpop.f32.mrb[0].mxu0
    %v2010 = vadd.f32 %v1743, %v2009
    %v2011 = vpop.f32.mrb[0].mxu0
    %v2012 = vadd.f32 %v1747, %v2011
    %2013 = vmatprep.mubr.f32.mxu0 0.0
    %2014 = vmatmul.mubr.f32.gmra.mrb[0].mxu0 %v260
    %v2015 = vpop.f32.mrb[0].mxu0
    %v2016 = vadd.f32 %v1743, %v2015
    %v2017 = vpop.f32.mrb[0].mxu0
    %v2018 = vadd.f32 %v1747, %v2017
    %2019 = vmatprep.mubr.f32.mxu0 0.0
    %2020 = vmatmul.mubr.f32.gmra.mrb[0].mxu0 %v261
    %v2021 = vpop.f32.mrb[0].mxu0
    %v2022 = vadd.f32 %v1743, %v2021
    %v2023 = vpop.f32.mrb[0].mxu0
    %v2024 = vadd.f32 %v1747, %v2023
    %2025 = vmatprep.mubr.f32.mxu0 0.0
    %2026 = vmatmul.mubr.f32.gmra.mrb[0].mxu0 %v262
    %v2027 = vpop.f32.mrb[0].mxu0
    %v2028 = vadd.f32 %v1743, %v2027
    %v2029 = vpop.f32.mrb[0].mxu0
    %v2030 = vadd.f32 %v1747, %v2029
    %2031 = vmatprep.mubr.f32.mxu0 0.0
    %2032 = vmatmul.mubr.f32.gmra.mrb[0].mxu0 %v263
    %v2033 = vpop.f32.mrb[0].mxu0
    %v2034 = vadd.f32 %v1743, %v2033
    %v2035 = vpop.f32.mrb[0].mxu0
    %v2036 = vadd.f32 %v1747, %v2035
    %2037 = vmatprep.mubr.f32.mxu0 0.0
    %2038 = vmatmul.mubr.f32.gmra.mrb[0].mxu0 %v264
    %v2039 = vpop.f32.mrb[0].mxu0
    %v2040 = vadd.f32 %v1743, %v2039
    %v2041 = vpop.f32.mrb[0].mxu0
    %v2042 = vadd.f32 %v1747, %v2041
    %2043 = vmatprep.mubr.f32.mxu0 0.0
    %2044 = vmatmul.mubr.f32.gmra.mrb[0].mxu0 %v265
    %v2045 = vpop.f32.mrb[0].mxu0
    %v2046 = vadd.f32 %v1743, %v2045
    %v2047 = vpop.f32.mrb[0].mxu0
    %v2048 = vadd.f32 %v1747, %v2047
    %2049 = vmatprep.mubr.f32.mxu0 0.0
    %2050 = vmatmul.mubr.f32.gmra.mrb[0].mxu0 %v266
    %v2051 = vpop.f32.mrb[0].mxu0
    %v2052 = vadd.f32 %v1743, %v2051
    %v2053 = vpop.f32.mrb[0].mxu0
    %v2054 = vadd.f32 %v1747, %v2053
    %2055 = vmatprep.mubr.f32.mxu0 0.0
    %2056 = vmatmul.mubr.f32.gmra.mrb[0].mxu0 %v267
    %v2057 = vpop.f32.mrb[0].mxu0
    %v2058 = vadd.f32 %v1743, %v2057
    %v2059 = vpop.f32.mrb[0].mxu0
    %v2060 = vadd.f32 %v1747, %v2059
    %2061 = vmatprep.mubr.f32.mxu0 0.0
    %2062 = vmatmul.mubr.f32.gmra.mrb[0].mxu0 %v268
    %v2063 = vpop.f32.mrb[0].mxu0
    %v2064 = vadd.f32 %v1743, %v2063
    %v2065 = vpop.f32.mrb[0].mxu0
    %v2066 = vadd.f32 %v1747, %v2065
    %2067 = vmatprep.mubr.f32.mxu0 0.0
    %2068 = vmatmul.mubr.f32.gmra.mrb[0].mxu0 %v269
    %v2069 = vpop.f32.mrb[0].mxu0
    %v2070 = vadd.f32 %v1743, %v2069
    %v2071 = vpop.f32.mrb[0].mxu0
    %v2072 = vadd.f32 %v1747, %v2071
    %2073 = vdwg.mxu0
    %v2074 = vadd.f32 %v1315, %v1819
    %v2075 = vadd.f32 %v1317, %v1821
    %v2076 = vadd.f32 %v1637, %v1980
    %v2077 = vadd.f32 %v1639, %v1982
    %v2078 = vadd.f32 %v1321, %v1825
    %v2079 = vadd.f32 %v1323, %v1827
    %v2080 = vadd.f32 %v1643, %v1986
    %v2081 = vadd.f32 %v1645, %v1988
    %v2082 = vadd.f32 %v1327, %v1831
    %v2083 = vadd.f32 %v1329, %v1833
    %v2084 = vadd.f32 %v1649, %v1992
    %v2085 = vadd.f32 %v1651, %v1994
    %v2086 = vadd.f32 %v1333, %v1837
    %v2087 = vadd.f32 %v1335, %v1839
    %v2088 = vadd.f32 %v1655, %v1998
    %v2089 = vadd.f32 %v1657, %v2000
    %v2090 = vadd.f32 %v1339, %v1843
    %v2091 = vadd.f32 %v1341, %v1845
    %v2092 = vadd.f32 %v1661, %v2004
    %v2093 = vadd.f32 %v1663, %v2006
    %v2094 = vadd.f32 %v1345, %v1849
    %v2095 = vadd.f32 %v1347, %v1851
    %v2096 = vadd.f32 %v1667, %v2010
    %v2097 = vadd.f32 %v1669, %v2012
    %v2098 = vadd.f32 %v1351, %v1855
    %v2099 = vadd.f32 %v1353, %v1857
    %v2100 = vadd.f32 %v1673, %v2016
    %v2101 = vadd.f32 %v1675, %v2018
    %v2102 = vadd.f32 %v1357, %v1861
    %v2103 = vadd.f32 %v1359, %v1863
    %v2104 = vadd.f32 %v1679, %v2022
    %v2105 = vadd.f32 %v1681, %v2024
    %v2106 = vadd.f32 %v1363, %v1867
    %v2107 = vadd.f32 %v1365, %v1869
    %v2108 = vadd.f32 %v1685, %v2028
    %v2109 = vadd.f32 %v1687, %v2030
    %v2110 = vadd.f32 %v1369, %v1873
    %v2111 = vadd.f32 %v1371, %v1875
    %v2112 = vadd.f32 %v1691, %v2034
    %v2113 = vadd.f32 %v1693, %v2036
    %v2114 = vadd.f32 %v1375, %v1879
    %v2115 = vadd.f32 %v1377, %v1881
    %v2116 = vadd.f32 %v1697, %v2040
    %v2117 = vadd.f32 %v1699, %v2042
    %v2118 = vadd.f32 %v1381, %v1885
    %v2119 = vadd.f32 %v1383, %v1887
    %v2120 = vadd.f32 %v1703, %v2046
    %v2121 = vadd.f32 %v1705, %v2048
    %v2122 = vadd.f32 %v1387, %v1891
    %v2123 = vadd.f32 %v1389, %v1893
    %v2124 = vadd.f32 %v1709, %v2052
    %v2125 = vadd.f32 %v1711, %v2054
    %v2126 = vadd.f32 %v1393, %v1897
    %v2127 = vadd.f32 %v1395, %v1899
    %v2128 = vadd.f32 %v1715, %v2058
    %v2129 = vadd.f32 %v1717, %v2060
    %v2130 = vadd.f32 %v1399, %v1903
    %v2131 = vadd.f32 %v1401, %v1905
    %v2132 = vadd.f32 %v1721, %v2064
    %v2133 = vadd.f32 %v1723, %v2066
    %v2134 = vadd.f32 %v1405, %v1909
    %v2135 = vadd.f32 %v1407, %v1911
    %v2136 = vadd.f32 %v1727, %v2070
    %v2137 = vadd.f32 %v1729, %v2072
    %v2138 = vmax.f32 %v2074, 0.0
    %v2139 = vmax.f32 %v2075, 0.0
    %v2140 = vmax.f32 %v2076, 0.0
    %v2141 = vmax.f32 %v2077, 0.0
    %v2142 = vmax.f32 %v2078, 0.0
    %v2143 = vmax.f32 %v2079, 0.0
    %v2144 = vmax.f32 %v2080, 0.0
    %v2145 = vmax.f32 %v2081, 0.0
    %v2146 = vmax.f32 %v2082, 0.0
    %v2147 = vmax.f32 %v2083, 0.0
    %v2148 = vmax.f32 %v2084, 0.0
    %v2149 = vmax.f32 %v2085, 0.0
    %v2150 = vmax.f32 %v2086, 0.0
    %v2151 = vmax.f32 %v2087, 0.0
    %v2152 = vmax.f32 %v2088, 0.0
    %v2153 = vmax.f32 %v2089, 0.0
    %v2154 = vmax.f32 %v2090, 0.0
    %v2155 = vmax.f32 %v2091, 0.0
    %v2156 = vmax.f32 %v2092, 0.0
    %v2157 = vmax.f32 %v2093, 0.0
    %v2158 = vmax.f32 %v2094, 0.0
    %v2159 = vmax.f32 %v2095, 0.0
    %v2160 = vmax.f32 %v2096, 0.0
    %v2161 = vmax.f32 %v2097, 0.0
    %v2162 = vmax.f32 %v2098, 0.0
    %v2163 = vmax.f32 %v2099, 0.0
    %v2164 = vmax.f32 %v2100, 0.0
    %v2165 = vmax.f32 %v2101, 0.0
    %v2166 = vmax.f32 %v2102, 0.0
    %v2167 = vmax.f32 %v2103, 0.0
    %v2168 = vmax.f32 %v2104, 0.0
    %v2169 = vmax.f32 %v2105, 0.0
    %v2170 = vmax.f32 %v2106, 0.0
    %v2171 = vmax.f32 %v2107, 0.0
    %v2172 = vmax.f32 %v2108, 0.0
    %v2173 = vmax.f32 %v2109, 0.0
    %v2174 = vmax.f32 %v2110, 0.0
    %v2175 = vmax.f32 %v2111, 0.0
    %v2176 = vmax.f32 %v2112, 0.0
    %v2177 = vmax.f32 %v2113, 0.0
    %v2178 = vmax.f32 %v2114, 0.0
    %v2179 = vmax.f32 %v2115, 0.0
    %v2180 = vmax.f32 %v2116, 0.0
    %v2181 = vmax.f32 %v2117, 0.0
    %v2182 = vmax.f32 %v2118, 0.0
    %v2183 = vmax.f32 %v2119, 0.0
    %v2184 = vmax.f32 %v2120, 0.0
    %v2185 = vmax.f32 %v2121, 0.0
    %v2186 = vmax.f32 %v2122, 0.0
    %v2187 = vmax.f32 %v2123, 0.0
    %v2188 = vmax.f32 %v2124, 0.0
    %v2189 = vmax.f32 %v2125, 0.0
    %v2190 = vmax.f32 %v2126, 0.0
    %v2191 = vmax.f32 %v2127, 0.0
    %v2192 = vmax.f32 %v2128, 0.0
    %v2193 = vmax.f32 %v2129, 0.0
    %v2194 = vmax.f32 %v2130, 0.0
    %v2195 = vmax.f32 %v2131, 0.0
    %v2196 = vmax.f32 %v2132, 0.0
    %v2197 = vmax.f32 %v2133, 0.0
    %v2198 = vmax.f32 %v2134, 0.0
    %v2199 = vmax.f32 %v2135, 0.0
    %v2200 = vmax.f32 %v2136, 0.0
    %v2201 = vmax.f32 %v2137, 0.0
    %v2202 = vld [vmem:[#allocation10] sm:$0xff]
    %v2203 = vld [vmem:[#allocation10 + $0x8] sm:$0xff]
    %v2204 = vld [vmem:[#allocation10 + $0x10] sm:$0xff]
    %v2205 = vld [vmem:[#allocation10 + $0x18] sm:$0xff]
    %v2206 = vld [vmem:[#allocation10 + $0x20] sm:$0xff]
    %v2207 = vld [vmem:[#allocation10 + $0x28] sm:$0xff]
    %v2208 = vld [vmem:[#allocation10 + $0x30] sm:$0xff]
    %v2209 = vld [vmem:[#allocation10 + $0x38] sm:$0xff]
    %v2210 = vld [vmem:[#allocation10 + $0x40] sm:$0xff]
    %v2211 = vld [vmem:[#allocation10 + $0x48] sm:$0xff]
    %v2212 = vld [vmem:[#allocation10 + $0x50] sm:$0xff]
    %v2213 = vld [vmem:[#allocation10 + $0x58] sm:$0xff]
    %v2214 = vld [vmem:[#allocation10 + $0x60] sm:$0xff]
    %v2215 = vld [vmem:[#allocation10 + $0x68] sm:$0xff]
    %v2216 = vld [vmem:[#allocation10 + $0x70] sm:$0xff]
    %v2217 = vld [vmem:[#allocation10 + $0x78] sm:$0xff]
    %v2218 = vld [vmem:[#allocation10 + $0x80] sm:$0xff]
    %v2219 = vld [vmem:[#allocation10 + $0x88] sm:$0xff]
    %v2220 = vld [vmem:[#allocation10 + $0x90] sm:$0xff]
    %v2221 = vld [vmem:[#allocation10 + $0x98] sm:$0xff]
    %v2222 = vld [vmem:[#allocation10 + $0xa0] sm:$0xff]
    %v2223 = vld [vmem:[#allocation10 + $0xa8] sm:$0xff]
    %v2224 = vld [vmem:[#allocation10 + $0xb0] sm:$0xff]
    %v2225 = vld [vmem:[#allocation10 + $0xb8] sm:$0xff]
    %v2226 = vld [vmem:[#allocation10 + $0xc0] sm:$0xff]
    %v2227 = vld [vmem:[#allocation10 + $0xc8] sm:$0xff]
    %v2228 = vld [vmem:[#allocation10 + $0xd0] sm:$0xff]
    %v2229 = vld [vmem:[#allocation10 + $0xd8] sm:$0xff]
    %v2230 = vld [vmem:[#allocation10 + $0xe0] sm:$0xff]
    %v2231 = vld [vmem:[#allocation10 + $0xe8] sm:$0xff]
    %v2232 = vld [vmem:[#allocation10 + $0xf0] sm:$0xff]
    %v2233 = vld [vmem:[#allocation10 + $0xf8] sm:$0xff]
    %v2234 = vld [vmem:[#allocation10 + $0x100] sm:$0xff]
    %v2235 = vld [vmem:[#allocation10 + $0x108] sm:$0xff]
    %v2236 = vld [vmem:[#allocation10 + $0x110] sm:$0xff]
    %v2237 = vld [vmem:[#allocation10 + $0x118] sm:$0xff]
    %v2238 = vld [vmem:[#allocation10 + $0x120] sm:$0xff]
    %v2239 = vld [vmem:[#allocation10 + $0x128] sm:$0xff]
    %v2240 = vld [vmem:[#allocation10 + $0x130] sm:$0xff]
    %v2241 = vld [vmem:[#allocation10 + $0x138] sm:$0xff]
    %v2242 = vld [vmem:[#allocation10 + $0x140] sm:$0xff]
    %v2243 = vld [vmem:[#allocation10 + $0x148] sm:$0xff]
    %v2244 = vld [vmem:[#allocation10 + $0x150] sm:$0xff]
    %v2245 = vld [vmem:[#allocation10 + $0x158] sm:$0xff]
    %v2246 = vld [vmem:[#allocation10 + $0x160] sm:$0xff]
    %v2247 = vld [vmem:[#allocation10 + $0x168] sm:$0xff]
    %v2248 = vld [vmem:[#allocation10 + $0x170] sm:$0xff]
    %v2249 = vld [vmem:[#allocation10 + $0x178] sm:$0xff]
    %v2250 = vld [vmem:[#allocation10 + $0x180] sm:$0xff]
    %v2251 = vld [vmem:[#allocation10 + $0x188] sm:$0xff]
    %v2252 = vld [vmem:[#allocation10 + $0x190] sm:$0xff]
    %v2253 = vld [vmem:[#allocation10 + $0x198] sm:$0xff]
    %v2254 = vld [vmem:[#allocation10 + $0x1a0] sm:$0xff]
    %v2255 = vld [vmem:[#allocation10 + $0x1a8] sm:$0xff]
    %v2256 = vld [vmem:[#allocation10 + $0x1b0] sm:$0xff]
    %v2257 = vld [vmem:[#allocation10 + $0x1b8] sm:$0xff]
    %v2258 = vld [vmem:[#allocation10 + $0x1c0] sm:$0xff]
    %v2259 = vld [vmem:[#allocation10 + $0x1c8] sm:$0xff]
    %v2260 = vld [vmem:[#allocation10 + $0x1d0] sm:$0xff]
    %v2261 = vld [vmem:[#allocation10 + $0x1d8] sm:$0xff]
    %v2262 = vld [vmem:[#allocation10 + $0x1e0] sm:$0xff]
    %v2263 = vld [vmem:[#allocation10 + $0x1e8] sm:$0xff]
    %v2264 = vld [vmem:[#allocation10 + $0x1f0] sm:$0xff]
    %v2265 = vld [vmem:[#allocation10 + $0x1f8] sm:$0xff]
    %v2266 = vld [vmem:[#allocation10 + $0x200] sm:$0xff]
    %v2267 = vld [vmem:[#allocation10 + $0x208] sm:$0xff]
    %v2268 = vld [vmem:[#allocation10 + $0x210] sm:$0xff]
    %v2269 = vld [vmem:[#allocation10 + $0x218] sm:$0xff]
    %v2270 = vld [vmem:[#allocation10 + $0x220] sm:$0xff]
    %v2271 = vld [vmem:[#allocation10 + $0x228] sm:$0xff]
    %v2272 = vld [vmem:[#allocation10 + $0x230] sm:$0xff]
    %v2273 = vld [vmem:[#allocation10 + $0x238] sm:$0xff]
    %v2274 = vld [vmem:[#allocation10 + $0x240] sm:$0xff]
    %v2275 = vld [vmem:[#allocation10 + $0x248] sm:$0xff]
    %v2276 = vld [vmem:[#allocation10 + $0x250] sm:$0xff]
    %v2277 = vld [vmem:[#allocation10 + $0x258] sm:$0xff]
    %v2278 = vld [vmem:[#allocation10 + $0x260] sm:$0xff]
    %v2279 = vld [vmem:[#allocation10 + $0x268] sm:$0xff]
    %v2280 = vld [vmem:[#allocation10 + $0x270] sm:$0xff]
    %v2281 = vld [vmem:[#allocation10 + $0x278] sm:$0xff]
    %v2282 = vld [vmem:[#allocation10 + $0x280] sm:$0xff]
    %v2283 = vld [vmem:[#allocation10 + $0x288] sm:$0xff]
    %v2284 = vld [vmem:[#allocation10 + $0x290] sm:$0xff]
    %v2285 = vld [vmem:[#allocation10 + $0x298] sm:$0xff]
    %v2286 = vld [vmem:[#allocation10 + $0x2a0] sm:$0xff]
    %v2287 = vld [vmem:[#allocation10 + $0x2a8] sm:$0xff]
    %v2288 = vld [vmem:[#allocation10 + $0x2b0] sm:$0xff]
    %v2289 = vld [vmem:[#allocation10 + $0x2b8] sm:$0xff]
    %v2290 = vld [vmem:[#allocation10 + $0x2c0] sm:$0xff]
    %v2291 = vld [vmem:[#allocation10 + $0x2c8] sm:$0xff]
    %v2292 = vld [vmem:[#allocation10 + $0x2d0] sm:$0xff]
    %v2293 = vld [vmem:[#allocation10 + $0x2d8] sm:$0xff]
    %v2294 = vld [vmem:[#allocation10 + $0x2e0] sm:$0xff]
    %v2295 = vld [vmem:[#allocation10 + $0x2e8] sm:$0xff]
    %v2296 = vld [vmem:[#allocation10 + $0x2f0] sm:$0xff]
    %v2297 = vld [vmem:[#allocation10 + $0x2f8] sm:$0xff]
    %v2298 = vld [vmem:[#allocation10 + $0x300] sm:$0xff]
    %v2299 = vld [vmem:[#allocation10 + $0x308] sm:$0xff]
    %v2300 = vld [vmem:[#allocation10 + $0x310] sm:$0xff]
    %v2301 = vld [vmem:[#allocation10 + $0x318] sm:$0xff]
    %v2302 = vld [vmem:[#allocation10 + $0x320] sm:$0xff]
    %v2303 = vld [vmem:[#allocation10 + $0x328] sm:$0xff]
    %v2304 = vld [vmem:[#allocation10 + $0x330] sm:$0xff]
    %v2305 = vld [vmem:[#allocation10 + $0x338] sm:$0xff]
    %v2306 = vld [vmem:[#allocation10 + $0x340] sm:$0xff]
    %v2307 = vld [vmem:[#allocation10 + $0x348] sm:$0xff]
    %v2308 = vld [vmem:[#allocation10 + $0x350] sm:$0xff]
    %v2309 = vld [vmem:[#allocation10 + $0x358] sm:$0xff]
    %v2310 = vld [vmem:[#allocation10 + $0x360] sm:$0xff]
    %v2311 = vld [vmem:[#allocation10 + $0x368] sm:$0xff]
    %v2312 = vld [vmem:[#allocation10 + $0x370] sm:$0xff]
    %v2313 = vld [vmem:[#allocation10 + $0x378] sm:$0xff]
    %v2314 = vld [vmem:[#allocation10 + $0x380] sm:$0xff]
    %v2315 = vld [vmem:[#allocation10 + $0x388] sm:$0xff]
    %v2316 = vld [vmem:[#allocation10 + $0x390] sm:$0xff]
    %v2317 = vld [vmem:[#allocation10 + $0x398] sm:$0xff]
    %v2318 = vld [vmem:[#allocation10 + $0x3a0] sm:$0xff]
    %v2319 = vld [vmem:[#allocation10 + $0x3a8] sm:$0xff]
    %v2320 = vld [vmem:[#allocation10 + $0x3b0] sm:$0xff]
    %v2321 = vld [vmem:[#allocation10 + $0x3b8] sm:$0xff]
    %v2322 = vld [vmem:[#allocation10 + $0x3c0] sm:$0xff]
    %v2323 = vld [vmem:[#allocation10 + $0x3c8] sm:$0xff]
    %v2324 = vld [vmem:[#allocation10 + $0x3d0] sm:$0xff]
    %v2325 = vld [vmem:[#allocation10 + $0x3d8] sm:$0xff]
    %v2326 = vld [vmem:[#allocation10 + $0x3e0] sm:$0xff]
    %v2327 = vld [vmem:[#allocation10 + $0x3e8] sm:$0xff]
    %v2328 = vld [vmem:[#allocation10 + $0x3f0] sm:$0xff]
    %v2329 = vld [vmem:[#allocation10 + $0x3f8] sm:$0xff]
    %v2330 = vld [vmem:[#allocation10 + $0x400] sm:$0xff]
    %v2331 = vld [vmem:[#allocation10 + $0x408] sm:$0xff]
    %v2332 = vld [vmem:[#allocation10 + $0x410] sm:$0xff]
    %v2333 = vld [vmem:[#allocation10 + $0x418] sm:$0xff]
    %v2334 = vld [vmem:[#allocation10 + $0x420] sm:$0xff]
    %v2335 = vld [vmem:[#allocation10 + $0x428] sm:$0xff]
    %v2336 = vld [vmem:[#allocation10 + $0x430] sm:$0xff]
    %v2337 = vld [vmem:[#allocation10 + $0x438] sm:$0xff]
    %v2338 = vld [vmem:[#allocation10 + $0x440] sm:$0xff]
    %v2339 = vld [vmem:[#allocation10 + $0x448] sm:$0xff]
    %v2340 = vld [vmem:[#allocation10 + $0x450] sm:$0xff]
    %v2341 = vld [vmem:[#allocation10 + $0x458] sm:$0xff]
    %v2342 = vld [vmem:[#allocation10 + $0x460] sm:$0xff]
    %v2343 = vld [vmem:[#allocation10 + $0x468] sm:$0xff]
    %v2344 = vld [vmem:[#allocation10 + $0x470] sm:$0xff]
    %v2345 = vld [vmem:[#allocation10 + $0x478] sm:$0xff]
    %v2346 = vld [vmem:[#allocation10 + $0x480] sm:$0xff]
    %v2347 = vld [vmem:[#allocation10 + $0x488] sm:$0xff]
    %v2348 = vld [vmem:[#allocation10 + $0x490] sm:$0xff]
    %v2349 = vld [vmem:[#allocation10 + $0x498] sm:$0xff]
    %v2350 = vld [vmem:[#allocation10 + $0x4a0] sm:$0xff]
    %v2351 = vld [vmem:[#allocation10 + $0x4a8] sm:$0xff]
    %v2352 = vld [vmem:[#allocation10 + $0x4b0] sm:$0xff]
    %v2353 = vld [vmem:[#allocation10 + $0x4b8] sm:$0xff]
    %v2354 = vld [vmem:[#allocation10 + $0x4c0] sm:$0xff]
    %v2355 = vld [vmem:[#allocation10 + $0x4c8] sm:$0xff]
    %v2356 = vld [vmem:[#allocation10 + $0x4d0] sm:$0xff]
    %v2357 = vld [vmem:[#allocation10 + $0x4d8] sm:$0xff]
    %v2358 = vld [vmem:[#allocation10 + $0x4e0] sm:$0xff]
    %v2359 = vld [vmem:[#allocation10 + $0x4e8] sm:$0xff]
    %v2360 = vld [vmem:[#allocation10 + $0x4f0] sm:$0xff]
    %v2361 = vld [vmem:[#allocation10 + $0x4f8] sm:$0xff]
    %v2362 = vld [vmem:[#allocation10 + $0x500] sm:$0xff]
    %v2363 = vld [vmem:[#allocation10 + $0x508] sm:$0xff]
    %v2364 = vld [vmem:[#allocation10 + $0x510] sm:$0xff]
    %v2365 = vld [vmem:[#allocation10 + $0x518] sm:$0xff]
    %v2366 = vld [vmem:[#allocation10 + $0x520] sm:$0xff]
    %v2367 = vld [vmem:[#allocation10 + $0x528] sm:$0xff]
    %v2368 = vld [vmem:[#allocation10 + $0x530] sm:$0xff]
    %v2369 = vld [vmem:[#allocation10 + $0x538] sm:$0xff]
    %v2370 = vld [vmem:[#allocation10 + $0x540] sm:$0xff]
    %v2371 = vld [vmem:[#allocation10 + $0x548] sm:$0xff]
    %v2372 = vld [vmem:[#allocation10 + $0x550] sm:$0xff]
    %v2373 = vld [vmem:[#allocation10 + $0x558] sm:$0xff]
    %v2374 = vld [vmem:[#allocation10 + $0x560] sm:$0xff]
    %v2375 = vld [vmem:[#allocation10 + $0x568] sm:$0xff]
    %v2376 = vld [vmem:[#allocation10 + $0x570] sm:$0xff]
    %v2377 = vld [vmem:[#allocation10 + $0x578] sm:$0xff]
    %v2378 = vld [vmem:[#allocation10 + $0x580] sm:$0xff]
    %v2379 = vld [vmem:[#allocation10 + $0x588] sm:$0xff]
    %v2380 = vld [vmem:[#allocation10 + $0x590] sm:$0xff]
    %v2381 = vld [vmem:[#allocation10 + $0x598] sm:$0xff]
    %v2382 = vld [vmem:[#allocation10 + $0x5a0] sm:$0xff]
    %v2383 = vld [vmem:[#allocation10 + $0x5a8] sm:$0xff]
    %v2384 = vld [vmem:[#allocation10 + $0x5b0] sm:$0xff]
    %v2385 = vld [vmem:[#allocation10 + $0x5b8] sm:$0xff]
    %v2386 = vld [vmem:[#allocation10 + $0x5c0] sm:$0xff]
    %v2387 = vld [vmem:[#allocation10 + $0x5c8] sm:$0xff]
    %v2388 = vld [vmem:[#allocation10 + $0x5d0] sm:$0xff]
    %v2389 = vld [vmem:[#allocation10 + $0x5d8] sm:$0xff]
    %v2390 = vld [vmem:[#allocation10 + $0x5e0] sm:$0xff]
    %v2391 = vld [vmem:[#allocation10 + $0x5e8] sm:$0xff]
    %v2392 = vld [vmem:[#allocation10 + $0x5f0] sm:$0xff]
    %v2393 = vld [vmem:[#allocation10 + $0x5f8] sm:$0xff]
    %v2394 = vld [vmem:[#allocation10 + $0x600] sm:$0xff]
    %v2395 = vld [vmem:[#allocation10 + $0x608] sm:$0xff]
    %v2396 = vld [vmem:[#allocation10 + $0x610] sm:$0xff]
    %v2397 = vld [vmem:[#allocation10 + $0x618] sm:$0xff]
    %v2398 = vld [vmem:[#allocation10 + $0x620] sm:$0xff]
    %v2399 = vld [vmem:[#allocation10 + $0x628] sm:$0xff]
    %v2400 = vld [vmem:[#allocation10 + $0x630] sm:$0xff]
    %v2401 = vld [vmem:[#allocation10 + $0x638] sm:$0xff]
    %v2402 = vld [vmem:[#allocation10 + $0x640] sm:$0xff]
    %v2403 = vld [vmem:[#allocation10 + $0x648] sm:$0xff]
    %v2404 = vld [vmem:[#allocation10 + $0x650] sm:$0xff]
    %v2405 = vld [vmem:[#allocation10 + $0x658] sm:$0xff]
    %v2406 = vld [vmem:[#allocation10 + $0x660] sm:$0xff]
    %v2407 = vld [vmem:[#allocation10 + $0x668] sm:$0xff]
    %v2408 = vld [vmem:[#allocation10 + $0x670] sm:$0xff]
    %v2409 = vld [vmem:[#allocation10 + $0x678] sm:$0xff]
    %v2410 = vld [vmem:[#allocation10 + $0x680] sm:$0xff]
    %v2411 = vld [vmem:[#allocation10 + $0x688] sm:$0xff]
    %v2412 = vld [vmem:[#allocation10 + $0x690] sm:$0xff]
    %v2413 = vld [vmem:[#allocation10 + $0x698] sm:$0xff]
    %v2414 = vld [vmem:[#allocation10 + $0x6a0] sm:$0xff]
    %v2415 = vld [vmem:[#allocation10 + $0x6a8] sm:$0xff]
    %v2416 = vld [vmem:[#allocation10 + $0x6b0] sm:$0xff]
    %v2417 = vld [vmem:[#allocation10 + $0x6b8] sm:$0xff]
    %v2418 = vld [vmem:[#allocation10 + $0x6c0] sm:$0xff]
    %v2419 = vld [vmem:[#allocation10 + $0x6c8] sm:$0xff]
    %v2420 = vld [vmem:[#allocation10 + $0x6d0] sm:$0xff]
    %v2421 = vld [vmem:[#allocation10 + $0x6d8] sm:$0xff]
    %v2422 = vld [vmem:[#allocation10 + $0x6e0] sm:$0xff]
    %v2423 = vld [vmem:[#allocation10 + $0x6e8] sm:$0xff]
    %v2424 = vld [vmem:[#allocation10 + $0x6f0] sm:$0xff]
    %v2425 = vld [vmem:[#allocation10 + $0x6f8] sm:$0xff]
    %v2426 = vld [vmem:[#allocation10 + $0x700] sm:$0xff]
    %v2427 = vld [vmem:[#allocation10 + $0x708] sm:$0xff]
    %v2428 = vld [vmem:[#allocation10 + $0x710] sm:$0xff]
    %v2429 = vld [vmem:[#allocation10 + $0x718] sm:$0xff]
    %v2430 = vld [vmem:[#allocation10 + $0x720] sm:$0xff]
    %v2431 = vld [vmem:[#allocation10 + $0x728] sm:$0xff]
    %v2432 = vld [vmem:[#allocation10 + $0x730] sm:$0xff]
    %v2433 = vld [vmem:[#allocation10 + $0x738] sm:$0xff]
    %v2434 = vld [vmem:[#allocation10 + $0x740] sm:$0xff]
    %v2435 = vld [vmem:[#allocation10 + $0x748] sm:$0xff]
    %v2436 = vld [vmem:[#allocation10 + $0x750] sm:$0xff]
    %v2437 = vld [vmem:[#allocation10 + $0x758] sm:$0xff]
    %v2438 = vld [vmem:[#allocation10 + $0x760] sm:$0xff]
    %v2439 = vld [vmem:[#allocation10 + $0x768] sm:$0xff]
    %v2440 = vld [vmem:[#allocation10 + $0x770] sm:$0xff]
    %v2441 = vld [vmem:[#allocation10 + $0x778] sm:$0xff]
    %v2442 = vld [vmem:[#allocation10 + $0x780] sm:$0xff]
    %v2443 = vld [vmem:[#allocation10 + $0x788] sm:$0xff]
    %v2444 = vld [vmem:[#allocation10 + $0x790] sm:$0xff]
    %v2445 = vld [vmem:[#allocation10 + $0x798] sm:$0xff]
    %v2446 = vld [vmem:[#allocation10 + $0x7a0] sm:$0xff]
    %v2447 = vld [vmem:[#allocation10 + $0x7a8] sm:$0xff]
    %v2448 = vld [vmem:[#allocation10 + $0x7b0] sm:$0xff]
    %v2449 = vld [vmem:[#allocation10 + $0x7b8] sm:$0xff]
    %v2450 = vld [vmem:[#allocation10 + $0x7c0] sm:$0xff]
    %v2451 = vld [vmem:[#allocation10 + $0x7c8] sm:$0xff]
    %v2452 = vld [vmem:[#allocation10 + $0x7d0] sm:$0xff]
    %v2453 = vld [vmem:[#allocation10 + $0x7d8] sm:$0xff]
    %v2454 = vld [vmem:[#allocation10 + $0x7e0] sm:$0xff]
    %v2455 = vld [vmem:[#allocation10 + $0x7e8] sm:$0xff]
    %v2456 = vld [vmem:[#allocation10 + $0x7f0] sm:$0xff]
    %v2457 = vld [vmem:[#allocation10 + $0x7f8] sm:$0xff]
    %v2458 = vld [vmem:[#allocation11] sm:$0xff]
    %v2459 = vld [vmem:[#allocation11 + $0x8] sm:$0xff]
    %v2460 = vld [vmem:[#allocation11 + $0x10] sm:$0xff]
    %v2461 = vld [vmem:[#allocation11 + $0x18] sm:$0xff]
    %v2462 = vld [vmem:[#allocation11 + $0x20] sm:$0xff]
    %v2463 = vld [vmem:[#allocation11 + $0x28] sm:$0xff]
    %v2464 = vld [vmem:[#allocation11 + $0x30] sm:$0xff]
    %v2465 = vld [vmem:[#allocation11 + $0x38] sm:$0xff]
    %v2466 = vld [vmem:[#allocation11 + $0x40] sm:$0xff]
    %v2467 = vld [vmem:[#allocation11 + $0x48] sm:$0xff]
    %v2468 = vld [vmem:[#allocation11 + $0x50] sm:$0xff]
    %v2469 = vld [vmem:[#allocation11 + $0x58] sm:$0xff]
    %v2470 = vld [vmem:[#allocation11 + $0x60] sm:$0xff]
    %v2471 = vld [vmem:[#allocation11 + $0x68] sm:$0xff]
    %v2472 = vld [vmem:[#allocation11 + $0x70] sm:$0xff]
    %v2473 = vld [vmem:[#allocation11 + $0x78] sm:$0xff]
    %v2474 = vld [vmem:[#allocation11 + $0x80] sm:$0xff]
    %v2475 = vld [vmem:[#allocation11 + $0x88] sm:$0xff]
    %v2476 = vld [vmem:[#allocation11 + $0x90] sm:$0xff]
    %v2477 = vld [vmem:[#allocation11 + $0x98] sm:$0xff]
    %v2478 = vld [vmem:[#allocation11 + $0xa0] sm:$0xff]
    %v2479 = vld [vmem:[#allocation11 + $0xa8] sm:$0xff]
    %v2480 = vld [vmem:[#allocation11 + $0xb0] sm:$0xff]
    %v2481 = vld [vmem:[#allocation11 + $0xb8] sm:$0xff]
    %v2482 = vld [vmem:[#allocation11 + $0xc0] sm:$0xff]
    %v2483 = vld [vmem:[#allocation11 + $0xc8] sm:$0xff]
    %v2484 = vld [vmem:[#allocation11 + $0xd0] sm:$0xff]
    %v2485 = vld [vmem:[#allocation11 + $0xd8] sm:$0xff]
    %v2486 = vld [vmem:[#allocation11 + $0xe0] sm:$0xff]
    %v2487 = vld [vmem:[#allocation11 + $0xe8] sm:$0xff]
    %v2488 = vld [vmem:[#allocation11 + $0xf0] sm:$0xff]
    %v2489 = vld [vmem:[#allocation11 + $0xf8] sm:$0xff]
    %v2490 = vld [vmem:[#allocation11 + $0x100] sm:$0xff]
    %v2491 = vld [vmem:[#allocation11 + $0x108] sm:$0xff]
    %v2492 = vld [vmem:[#allocation11 + $0x110] sm:$0xff]
    %v2493 = vld [vmem:[#allocation11 + $0x118] sm:$0xff]
    %v2494 = vld [vmem:[#allocation11 + $0x120] sm:$0xff]
    %v2495 = vld [vmem:[#allocation11 + $0x128] sm:$0xff]
    %v2496 = vld [vmem:[#allocation11 + $0x130] sm:$0xff]
    %v2497 = vld [vmem:[#allocation11 + $0x138] sm:$0xff]
    %v2498 = vld [vmem:[#allocation11 + $0x140] sm:$0xff]
    %v2499 = vld [vmem:[#allocation11 + $0x148] sm:$0xff]
    %v2500 = vld [vmem:[#allocation11 + $0x150] sm:$0xff]
    %v2501 = vld [vmem:[#allocation11 + $0x158] sm:$0xff]
    %v2502 = vld [vmem:[#allocation11 + $0x160] sm:$0xff]
    %v2503 = vld [vmem:[#allocation11 + $0x168] sm:$0xff]
    %v2504 = vld [vmem:[#allocation11 + $0x170] sm:$0xff]
    %v2505 = vld [vmem:[#allocation11 + $0x178] sm:$0xff]
    %v2506 = vld [vmem:[#allocation11 + $0x180] sm:$0xff]
    %v2507 = vld [vmem:[#allocation11 + $0x188] sm:$0xff]
    %v2508 = vld [vmem:[#allocation11 + $0x190] sm:$0xff]
    %v2509 = vld [vmem:[#allocation11 + $0x198] sm:$0xff]
    %v2510 = vld [vmem:[#allocation11 + $0x1a0] sm:$0xff]
    %v2511 = vld [vmem:[#allocation11 + $0x1a8] sm:$0xff]
    %v2512 = vld [vmem:[#allocation11 + $0x1b0] sm:$0xff]
    %v2513 = vld [vmem:[#allocation11 + $0x1b8] sm:$0xff]
    %v2514 = vld [vmem:[#allocation11 + $0x1c0] sm:$0xff]
    %v2515 = vld [vmem:[#allocation11 + $0x1c8] sm:$0xff]
    %v2516 = vld [vmem:[#allocation11 + $0x1d0] sm:$0xff]
    %v2517 = vld [vmem:[#allocation11 + $0x1d8] sm:$0xff]
    %v2518 = vld [vmem:[#allocation11 + $0x1e0] sm:$0xff]
    %v2519 = vld [vmem:[#allocation11 + $0x1e8] sm:$0xff]
    %v2520 = vld [vmem:[#allocation11 + $0x1f0] sm:$0xff]
    %v2521 = vld [vmem:[#allocation11 + $0x1f8] sm:$0xff]
    %v2522 = vld [vmem:[#allocation11 + $0x200] sm:$0xff]
    %v2523 = vld [vmem:[#allocation11 + $0x208] sm:$0xff]
    %v2524 = vld [vmem:[#allocation11 + $0x210] sm:$0xff]
    %v2525 = vld [vmem:[#allocation11 + $0x218] sm:$0xff]
    %v2526 = vld [vmem:[#allocation11 + $0x220] sm:$0xff]
    %v2527 = vld [vmem:[#allocation11 + $0x228] sm:$0xff]
    %v2528 = vld [vmem:[#allocation11 + $0x230] sm:$0xff]
    %v2529 = vld [vmem:[#allocation11 + $0x238] sm:$0xff]
    %v2530 = vld [vmem:[#allocation11 + $0x240] sm:$0xff]
    %v2531 = vld [vmem:[#allocation11 + $0x248] sm:$0xff]
    %v2532 = vld [vmem:[#allocation11 + $0x250] sm:$0xff]
    %v2533 = vld [vmem:[#allocation11 + $0x258] sm:$0xff]
    %v2534 = vld [vmem:[#allocation11 + $0x260] sm:$0xff]
    %v2535 = vld [vmem:[#allocation11 + $0x268] sm:$0xff]
    %v2536 = vld [vmem:[#allocation11 + $0x270] sm:$0xff]
    %v2537 = vld [vmem:[#allocation11 + $0x278] sm:$0xff]
    %v2538 = vld [vmem:[#allocation11 + $0x280] sm:$0xff]
    %v2539 = vld [vmem:[#allocation11 + $0x288] sm:$0xff]
    %v2540 = vld [vmem:[#allocation11 + $0x290] sm:$0xff]
    %v2541 = vld [vmem:[#allocation11 + $0x298] sm:$0xff]
    %v2542 = vld [vmem:[#allocation11 + $0x2a0] sm:$0xff]
    %v2543 = vld [vmem:[#allocation11 + $0x2a8] sm:$0xff]
    %v2544 = vld [vmem:[#allocation11 + $0x2b0] sm:$0xff]
    %v2545 = vld [vmem:[#allocation11 + $0x2b8] sm:$0xff]
    %v2546 = vld [vmem:[#allocation11 + $0x2c0] sm:$0xff]
    %v2547 = vld [vmem:[#allocation11 + $0x2c8] sm:$0xff]
    %v2548 = vld [vmem:[#allocation11 + $0x2d0] sm:$0xff]
    %v2549 = vld [vmem:[#allocation11 + $0x2d8] sm:$0xff]
    %v2550 = vld [vmem:[#allocation11 + $0x2e0] sm:$0xff]
    %v2551 = vld [vmem:[#allocation11 + $0x2e8] sm:$0xff]
    %v2552 = vld [vmem:[#allocation11 + $0x2f0] sm:$0xff]
    %v2553 = vld [vmem:[#allocation11 + $0x2f8] sm:$0xff]
    %v2554 = vld [vmem:[#allocation11 + $0x300] sm:$0xff]
    %v2555 = vld [vmem:[#allocation11 + $0x308] sm:$0xff]
    %v2556 = vld [vmem:[#allocation11 + $0x310] sm:$0xff]
    %v2557 = vld [vmem:[#allocation11 + $0x318] sm:$0xff]
    %v2558 = vld [vmem:[#allocation11 + $0x320] sm:$0xff]
    %v2559 = vld [vmem:[#allocation11 + $0x328] sm:$0xff]
    %v2560 = vld [vmem:[#allocation11 + $0x330] sm:$0xff]
    %v2561 = vld [vmem:[#allocation11 + $0x338] sm:$0xff]
    %v2562 = vld [vmem:[#allocation11 + $0x340] sm:$0xff]
    %v2563 = vld [vmem:[#allocation11 + $0x348] sm:$0xff]
    %v2564 = vld [vmem:[#allocation11 + $0x350] sm:$0xff]
    %v2565 = vld [vmem:[#allocation11 + $0x358] sm:$0xff]
    %v2566 = vld [vmem:[#allocation11 + $0x360] sm:$0xff]
    %v2567 = vld [vmem:[#allocation11 + $0x368] sm:$0xff]
    %v2568 = vld [vmem:[#allocation11 + $0x370] sm:$0xff]
    %v2569 = vld [vmem:[#allocation11 + $0x378] sm:$0xff]
    %v2570 = vld [vmem:[#allocation11 + $0x380] sm:$0xff]
    %v2571 = vld [vmem:[#allocation11 + $0x388] sm:$0xff]
    %v2572 = vld [vmem:[#allocation11 + $0x390] sm:$0xff]
    %v2573 = vld [vmem:[#allocation11 + $0x398] sm:$0xff]
    %v2574 = vld [vmem:[#allocation11 + $0x3a0] sm:$0xff]
    %v2575 = vld [vmem:[#allocation11 + $0x3a8] sm:$0xff]
    %v2576 = vld [vmem:[#allocation11 + $0x3b0] sm:$0xff]
    %v2577 = vld [vmem:[#allocation11 + $0x3b8] sm:$0xff]
    %v2578 = vld [vmem:[#allocation11 + $0x3c0] sm:$0xff]
    %v2579 = vld [vmem:[#allocation11 + $0x3c8] sm:$0xff]
    %v2580 = vld [vmem:[#allocation11 + $0x3d0] sm:$0xff]
    %v2581 = vld [vmem:[#allocation11 + $0x3d8] sm:$0xff]
    %v2582 = vld [vmem:[#allocation11 + $0x3e0] sm:$0xff]
    %v2583 = vld [vmem:[#allocation11 + $0x3e8] sm:$0xff]
    %v2584 = vld [vmem:[#allocation11 + $0x3f0] sm:$0xff]
    %v2585 = vld [vmem:[#allocation11 + $0x3f8] sm:$0xff]
    %v2586 = vld [vmem:[#allocation11 + $0x400] sm:$0xff]
    %v2587 = vld [vmem:[#allocation11 + $0x408] sm:$0xff]
    %v2588 = vld [vmem:[#allocation11 + $0x410] sm:$0xff]
    %v2589 = vld [vmem:[#allocation11 + $0x418] sm:$0xff]
    %v2590 = vld [vmem:[#allocation11 + $0x420] sm:$0xff]
    %v2591 = vld [vmem:[#allocation11 + $0x428] sm:$0xff]
    %v2592 = vld [vmem:[#allocation11 + $0x430] sm:$0xff]
    %v2593 = vld [vmem:[#allocation11 + $0x438] sm:$0xff]
    %v2594 = vld [vmem:[#allocation11 + $0x440] sm:$0xff]
    %v2595 = vld [vmem:[#allocation11 + $0x448] sm:$0xff]
    %v2596 = vld [vmem:[#allocation11 + $0x450] sm:$0xff]
    %v2597 = vld [vmem:[#allocation11 + $0x458] sm:$0xff]
    %v2598 = vld [vmem:[#allocation11 + $0x460] sm:$0xff]
    %v2599 = vld [vmem:[#allocation11 + $0x468] sm:$0xff]
    %v2600 = vld [vmem:[#allocation11 + $0x470] sm:$0xff]
    %v2601 = vld [vmem:[#allocation11 + $0x478] sm:$0xff]
    %v2602 = vld [vmem:[#allocation11 + $0x480] sm:$0xff]
    %v2603 = vld [vmem:[#allocation11 + $0x488] sm:$0xff]
    %v2604 = vld [vmem:[#allocation11 + $0x490] sm:$0xff]
    %v2605 = vld [vmem:[#allocation11 + $0x498] sm:$0xff]
    %v2606 = vld [vmem:[#allocation11 + $0x4a0] sm:$0xff]
    %v2607 = vld [vmem:[#allocation11 + $0x4a8] sm:$0xff]
    %v2608 = vld [vmem:[#allocation11 + $0x4b0] sm:$0xff]
    %v2609 = vld [vmem:[#allocation11 + $0x4b8] sm:$0xff]
    %v2610 = vld [vmem:[#allocation11 + $0x4c0] sm:$0xff]
    %v2611 = vld [vmem:[#allocation11 + $0x4c8] sm:$0xff]
    %v2612 = vld [vmem:[#allocation11 + $0x4d0] sm:$0xff]
    %v2613 = vld [vmem:[#allocation11 + $0x4d8] sm:$0xff]
    %v2614 = vld [vmem:[#allocation11 + $0x4e0] sm:$0xff]
    %v2615 = vld [vmem:[#allocation11 + $0x4e8] sm:$0xff]
    %v2616 = vld [vmem:[#allocation11 + $0x4f0] sm:$0xff]
    %v2617 = vld [vmem:[#allocation11 + $0x4f8] sm:$0xff]
    %v2618 = vld [vmem:[#allocation11 + $0x500] sm:$0xff]
    %v2619 = vld [vmem:[#allocation11 + $0x508] sm:$0xff]
    %v2620 = vld [vmem:[#allocation11 + $0x510] sm:$0xff]
    %v2621 = vld [vmem:[#allocation11 + $0x518] sm:$0xff]
    %v2622 = vld [vmem:[#allocation11 + $0x520] sm:$0xff]
    %v2623 = vld [vmem:[#allocation11 + $0x528] sm:$0xff]
    %v2624 = vld [vmem:[#allocation11 + $0x530] sm:$0xff]
    %v2625 = vld [vmem:[#allocation11 + $0x538] sm:$0xff]
    %v2626 = vld [vmem:[#allocation11 + $0x540] sm:$0xff]
    %v2627 = vld [vmem:[#allocation11 + $0x548] sm:$0xff]
    %v2628 = vld [vmem:[#allocation11 + $0x550] sm:$0xff]
    %v2629 = vld [vmem:[#allocation11 + $0x558] sm:$0xff]
    %v2630 = vld [vmem:[#allocation11 + $0x560] sm:$0xff]
    %v2631 = vld [vmem:[#allocation11 + $0x568] sm:$0xff]
    %v2632 = vld [vmem:[#allocation11 + $0x570] sm:$0xff]
    %v2633 = vld [vmem:[#allocation11 + $0x578] sm:$0xff]
    %v2634 = vld [vmem:[#allocation11 + $0x580] sm:$0xff]
    %v2635 = vld [vmem:[#allocation11 + $0x588] sm:$0xff]
    %v2636 = vld [vmem:[#allocation11 + $0x590] sm:$0xff]
    %v2637 = vld [vmem:[#allocation11 + $0x598] sm:$0xff]
    %v2638 = vld [vmem:[#allocation11 + $0x5a0] sm:$0xff]
    %v2639 = vld [vmem:[#allocation11 + $0x5a8] sm:$0xff]
    %v2640 = vld [vmem:[#allocation11 + $0x5b0] sm:$0xff]
    %v2641 = vld [vmem:[#allocation11 + $0x5b8] sm:$0xff]
    %v2642 = vld [vmem:[#allocation11 + $0x5c0] sm:$0xff]
    %v2643 = vld [vmem:[#allocation11 + $0x5c8] sm:$0xff]
    %v2644 = vld [vmem:[#allocation11 + $0x5d0] sm:$0xff]
    %v2645 = vld [vmem:[#allocation11 + $0x5d8] sm:$0xff]
    %v2646 = vld [vmem:[#allocation11 + $0x5e0] sm:$0xff]
    %v2647 = vld [vmem:[#allocation11 + $0x5e8] sm:$0xff]
    %v2648 = vld [vmem:[#allocation11 + $0x5f0] sm:$0xff]
    %v2649 = vld [vmem:[#allocation11 + $0x5f8] sm:$0xff]
    %v2650 = vld [vmem:[#allocation11 + $0x600] sm:$0xff]
    %v2651 = vld [vmem:[#allocation11 + $0x608] sm:$0xff]
    %v2652 = vld [vmem:[#allocation11 + $0x610] sm:$0xff]
    %v2653 = vld [vmem:[#allocation11 + $0x618] sm:$0xff]
    %v2654 = vld [vmem:[#allocation11 + $0x620] sm:$0xff]
    %v2655 = vld [vmem:[#allocation11 + $0x628] sm:$0xff]
    %v2656 = vld [vmem:[#allocation11 + $0x630] sm:$0xff]
    %v2657 = vld [vmem:[#allocation11 + $0x638] sm:$0xff]
    %v2658 = vld [vmem:[#allocation11 + $0x640] sm:$0xff]
    %v2659 = vld [vmem:[#allocation11 + $0x648] sm:$0xff]
    %v2660 = vld [vmem:[#allocation11 + $0x650] sm:$0xff]
    %v2661 = vld [vmem:[#allocation11 + $0x658] sm:$0xff]
    %v2662 = vld [vmem:[#allocation11 + $0x660] sm:$0xff]
    %v2663 = vld [vmem:[#allocation11 + $0x668] sm:$0xff]
    %v2664 = vld [vmem:[#allocation11 + $0x670] sm:$0xff]
    %v2665 = vld [vmem:[#allocation11 + $0x678] sm:$0xff]
    %v2666 = vld [vmem:[#allocation11 + $0x680] sm:$0xff]
    %v2667 = vld [vmem:[#allocation11 + $0x688] sm:$0xff]
    %v2668 = vld [vmem:[#allocation11 + $0x690] sm:$0xff]
    %v2669 = vld [vmem:[#allocation11 + $0x698] sm:$0xff]
    %v2670 = vld [vmem:[#allocation11 + $0x6a0] sm:$0xff]
    %v2671 = vld [vmem:[#allocation11 + $0x6a8] sm:$0xff]
    %v2672 = vld [vmem:[#allocation11 + $0x6b0] sm:$0xff]
    %v2673 = vld [vmem:[#allocation11 + $0x6b8] sm:$0xff]
    %v2674 = vld [vmem:[#allocation11 + $0x6c0] sm:$0xff]
    %v2675 = vld [vmem:[#allocation11 + $0x6c8] sm:$0xff]
    %v2676 = vld [vmem:[#allocation11 + $0x6d0] sm:$0xff]
    %v2677 = vld [vmem:[#allocation11 + $0x6d8] sm:$0xff]
    %v2678 = vld [vmem:[#allocation11 + $0x6e0] sm:$0xff]
    %v2679 = vld [vmem:[#allocation11 + $0x6e8] sm:$0xff]
    %v2680 = vld [vmem:[#allocation11 + $0x6f0] sm:$0xff]
    %v2681 = vld [vmem:[#allocation11 + $0x6f8] sm:$0xff]
    %v2682 = vld [vmem:[#allocation11 + $0x700] sm:$0xff]
    %v2683 = vld [vmem:[#allocation11 + $0x708] sm:$0xff]
    %v2684 = vld [vmem:[#allocation11 + $0x710] sm:$0xff]
    %v2685 = vld [vmem:[#allocation11 + $0x718] sm:$0xff]
    %v2686 = vld [vmem:[#allocation11 + $0x720] sm:$0xff]
    %v2687 = vld [vmem:[#allocation11 + $0x728] sm:$0xff]
    %v2688 = vld [vmem:[#allocation11 + $0x730] sm:$0xff]
    %v2689 = vld [vmem:[#allocation11 + $0x738] sm:$0xff]
    %v2690 = vld [vmem:[#allocation11 + $0x740] sm:$0xff]
    %v2691 = vld [vmem:[#allocation11 + $0x748] sm:$0xff]
    %v2692 = vld [vmem:[#allocation11 + $0x750] sm:$0xff]
    %v2693 = vld [vmem:[#allocation11 + $0x758] sm:$0xff]
    %v2694 = vld [vmem:[#allocation11 + $0x760] sm:$0xff]
    %v2695 = vld [vmem:[#allocation11 + $0x768] sm:$0xff]
    %v2696 = vld [vmem:[#allocation11 + $0x770] sm:$0xff]
    %v2697 = vld [vmem:[#allocation11 + $0x778] sm:$0xff]
    %v2698 = vld [vmem:[#allocation11 + $0x780] sm:$0xff]
    %v2699 = vld [vmem:[#allocation11 + $0x788] sm:$0xff]
    %v2700 = vld [vmem:[#allocation11 + $0x790] sm:$0xff]
    %v2701 = vld [vmem:[#allocation11 + $0x798] sm:$0xff]
    %v2702 = vld [vmem:[#allocation11 + $0x7a0] sm:$0xff]
    %v2703 = vld [vmem:[#allocation11 + $0x7a8] sm:$0xff]
    %v2704 = vld [vmem:[#allocation11 + $0x7b0] sm:$0xff]
    %v2705 = vld [vmem:[#allocation11 + $0x7b8] sm:$0xff]
    %v2706 = vld [vmem:[#allocation11 + $0x7c0] sm:$0xff]
    %v2707 = vld [vmem:[#allocation11 + $0x7c8] sm:$0xff]
    %v2708 = vld [vmem:[#allocation11 + $0x7d0] sm:$0xff]
    %v2709 = vld [vmem:[#allocation11 + $0x7d8] sm:$0xff]
    %v2710 = vld [vmem:[#allocation11 + $0x7e0] sm:$0xff]
    %v2711 = vld [vmem:[#allocation11 + $0x7e8] sm:$0xff]
    %v2712 = vld [vmem:[#allocation11 + $0x7f0] sm:$0xff]
    %v2713 = vld [vmem:[#allocation11 + $0x7f8] sm:$0xff]
    %s2714 = scalar_lea.vmem [#allocation25], 3
    %v2715 = vld [vmem:[%s2714] ss:$8 sm:$0xf]
    %s2716 = scalar_lea.vmem [#allocation25], 4
    %v2717 = vld [vmem:[%s2716] ss:$8 sm:$0xf]
    %v2719 = vlaneseq
    %v2720 = vshrl.u32 %v2719, 7
    %v2721 = vsub.s32 0, %v2720
    %v2722 = vrot.slane %v2715, %v2721
    %v2723 = vlaneseq
    %v2724 = vshrl.u32 %v2723, 7
    %v2725 = vsub.s32 1, %v2724
    %v2726 = vrot.slane %v2715, %v2725
    %v2727 = vlaneseq
    %v2728 = vshrl.u32 %v2727, 7
    %v2729 = vsub.s32 2, %v2728
    %v2730 = vrot.slane %v2715, %v2729
    %v2731 = vlaneseq
    %v2732 = vshrl.u32 %v2731, 7
    %v2733 = vsub.s32 3, %v2732
    %v2734 = vrot.slane %v2715, %v2733
    %2739 = vmatprep.subr.mxu0 %v2203
    %2740 = vmatpush1.msra.mxu0 %v2202
    %2741 = vmatprep.subr.mxu0 %v2207
    %2742 = vmatpush1.msra.mxu0 %v2206
    %2743 = vmatprep.subr.mxu0 %v2211
    %2744 = vmatpush1.msra.mxu0 %v2210
    %2745 = vmatprep.subr.mxu0 %v2215
    %2746 = vmatpush1.msra.mxu0 %v2214
    %2747 = vmatprep.subr.mxu0 %v2219
    %2748 = vmatpush1.msra.mxu0 %v2218
    %2749 = vmatprep.subr.mxu0 %v2223
    %2750 = vmatpush1.msra.mxu0 %v2222
    %2751 = vmatprep.subr.mxu0 %v2227
    %2752 = vmatpush1.msra.mxu0 %v2226
    %2753 = vmatprep.subr.mxu0 %v2231
    %2754 = vmatpush1.msra.mxu0 %v2230
    %2755 = vmatprep.subr.mxu0 %v2235
    %2756 = vmatpush1.msra.mxu0 %v2234
    %2757 = vmatprep.subr.mxu0 %v2239
    %2758 = vmatpush1.msra.mxu0 %v2238
    %2759 = vmatprep.subr.mxu0 %v2243
    %2760 = vmatpush1.msra.mxu0 %v2242
    %2761 = vmatprep.subr.mxu0 %v2247
    %2762 = vmatpush1.msra.mxu0 %v2246
    %2763 = vmatprep.subr.mxu0 %v2251
    %2764 = vmatpush1.msra.mxu0 %v2250
    %2765 = vmatprep.subr.mxu0 %v2255
    %2766 = vmatpush1.msra.mxu0 %v2254
    %2767 = vmatprep.subr.mxu0 %v2259
    %2768 = vmatpush1.msra.mxu0 %v2258
    %2769 = vmatprep.subr.mxu0 %v2263
    %2770 = vmatpush1.msra.mxu0 %v2262
    %2771 = vmatprep.subr.mxu0 %v2267
    %2772 = vmatpush1.msra.mxu0 %v2266
    %2773 = vmatprep.subr.mxu0 %v2271
    %2774 = vmatpush1.msra.mxu0 %v2270
    %2775 = vmatprep.subr.mxu0 %v2275
    %2776 = vmatpush1.msra.mxu0 %v2274
    %2777 = vmatprep.subr.mxu0 %v2279
    %2778 = vmatpush1.msra.mxu0 %v2278
    %2779 = vmatprep.subr.mxu0 %v2283
    %2780 = vmatpush1.msra.mxu0 %v2282
    %2781 = vmatprep.subr.mxu0 %v2287
    %2782 = vmatpush1.msra.mxu0 %v2286
    %2783 = vmatprep.subr.mxu0 %v2291
    %2784 = vmatpush1.msra.mxu0 %v2290
    %2785 = vmatprep.subr.mxu0 %v2295
    %2786 = vmatpush1.msra.mxu0 %v2294
    %2787 = vmatprep.subr.mxu0 %v2299
    %2788 = vmatpush1.msra.mxu0 %v2298
    %2789 = vmatprep.subr.mxu0 %v2303
    %2790 = vmatpush1.msra.mxu0 %v2302
    %2791 = vmatprep.subr.mxu0 %v2307
    %2792 = vmatpush1.msra.mxu0 %v2306
    %2793 = vmatprep.subr.mxu0 %v2311
    %2794 = vmatpush1.msra.mxu0 %v2310
    %2795 = vmatprep.subr.mxu0 %v2315
    %2796 = vmatpush1.msra.mxu0 %v2314
    %2797 = vmatprep.subr.mxu0 %v2319
    %2798 = vmatpush1.msra.mxu0 %v2318
    %2799 = vmatprep.subr.mxu0 %v2323
    %2800 = vmatpush1.msra.mxu0 %v2322
    %2801 = vmatprep.subr.mxu0 %v2327
    %2802 = vmatpush1.msra.mxu0 %v2326
    %2803 = vmatprep.mubr.f32.mxu0 %v2139
    %2804 = vmatmul.mubr.f32.gmra.mrb[0].mxu0 %v2138
    %v2805 = vpop.f32.mrb[0].mxu0
    %v2806 = vadd.f32 %v2722, %v2805
    %v2807 = vpop.f32.mrb[0].mxu0
    %v2808 = vadd.f32 %v2726, %v2807
    %2809 = vmatprep.mubr.f32.mxu0 %v2143
    %2810 = vmatmul.mubr.f32.gmra.mrb[0].mxu0 %v2142
    %v2811 = vpop.f32.mrb[0].mxu0
    %v2812 = vadd.f32 %v2722, %v2811
    %v2813 = vpop.f32.mrb[0].mxu0
    %v2814 = vadd.f32 %v2726, %v2813
    %2815 = vmatprep.mubr.f32.mxu0 %v2147
    %2816 = vmatmul.mubr.f32.gmra.mrb[0].mxu0 %v2146
    %v2817 = vpop.f32.mrb[0].mxu0
    %v2818 = vadd.f32 %v2722, %v2817
    %v2819 = vpop.f32.mrb[0].mxu0
    %v2820 = vadd.f32 %v2726, %v2819
    %2821 = vmatprep.mubr.f32.mxu0 %v2151
    %2822 = vmatmul.mubr.f32.gmra.mrb[0].mxu0 %v2150
    %v2823 = vpop.f32.mrb[0].mxu0
    %v2824 = vadd.f32 %v2722, %v2823
    %v2825 = vpop.f32.mrb[0].mxu0
    %v2826 = vadd.f32 %v2726, %v2825
    %2827 = vmatprep.mubr.f32.mxu0 %v2155
    %2828 = vmatmul.mubr.f32.gmra.mrb[0].mxu0 %v2154
    %v2829 = vpop.f32.mrb[0].mxu0
    %v2830 = vadd.f32 %v2722, %v2829
    %v2831 = vpop.f32.mrb[0].mxu0
    %v2832 = vadd.f32 %v2726, %v2831
    %2833 = vmatprep.mubr.f32.mxu0 %v2159
    %2834 = vmatmul.mubr.f32.gmra.mrb[0].mxu0 %v2158
    %v2835 = vpop.f32.mrb[0].mxu0
    %v2836 = vadd.f32 %v2722, %v2835
    %v2837 = vpop.f32.mrb[0].mxu0
    %v2838 = vadd.f32 %v2726, %v2837
    %2839 = vmatprep.mubr.f32.mxu0 %v2163
    %2840 = vmatmul.mubr.f32.gmra.mrb[0].mxu0 %v2162
    %v2841 = vpop.f32.mrb[0].mxu0
    %v2842 = vadd.f32 %v2722, %v2841
    %v2843 = vpop.f32.mrb[0].mxu0
    %v2844 = vadd.f32 %v2726, %v2843
    %2845 = vmatprep.mubr.f32.mxu0 %v2167
    %2846 = vmatmul.mubr.f32.gmra.mrb[0].mxu0 %v2166
    %v2847 = vpop.f32.mrb[0].mxu0
    %v2848 = vadd.f32 %v2722, %v2847
    %v2849 = vpop.f32.mrb[0].mxu0
    %v2850 = vadd.f32 %v2726, %v2849
    %2851 = vmatprep.mubr.f32.mxu0 %v2171
    %2852 = vmatmul.mubr.f32.gmra.mrb[0].mxu0 %v2170
    %v2853 = vpop.f32.mrb[0].mxu0
    %v2854 = vadd.f32 %v2722, %v2853
    %v2855 = vpop.f32.mrb[0].mxu0
    %v2856 = vadd.f32 %v2726, %v2855
    %2857 = vmatprep.mubr.f32.mxu0 %v2175
    %2858 = vmatmul.mubr.f32.gmra.mrb[0].mxu0 %v2174
    %v2859 = vpop.f32.mrb[0].mxu0
    %v2860 = vadd.f32 %v2722, %v2859
    %v2861 = vpop.f32.mrb[0].mxu0
    %v2862 = vadd.f32 %v2726, %v2861
    %2863 = vmatprep.mubr.f32.mxu0 %v2179
    %2864 = vmatmul.mubr.f32.gmra.mrb[0].mxu0 %v2178
    %v2865 = vpop.f32.mrb[0].mxu0
    %v2866 = vadd.f32 %v2722, %v2865
    %v2867 = vpop.f32.mrb[0].mxu0
    %v2868 = vadd.f32 %v2726, %v2867
    %2869 = vmatprep.mubr.f32.mxu0 %v2183
    %2870 = vmatmul.mubr.f32.gmra.mrb[0].mxu0 %v2182
    %v2871 = vpop.f32.mrb[0].mxu0
    %v2872 = vadd.f32 %v2722, %v2871
    %v2873 = vpop.f32.mrb[0].mxu0
    %v2874 = vadd.f32 %v2726, %v2873
    %2875 = vmatprep.mubr.f32.mxu0 %v2187
    %2876 = vmatmul.mubr.f32.gmra.mrb[0].mxu0 %v2186
    %v2877 = vpop.f32.mrb[0].mxu0
    %v2878 = vadd.f32 %v2722, %v2877
    %v2879 = vpop.f32.mrb[0].mxu0
    %v2880 = vadd.f32 %v2726, %v2879
    %2881 = vmatprep.mubr.f32.mxu0 %v2191
    %2882 = vmatmul.mubr.f32.gmra.mrb[0].mxu0 %v2190
    %v2883 = vpop.f32.mrb[0].mxu0
    %v2884 = vadd.f32 %v2722, %v2883
    %v2885 = vpop.f32.mrb[0].mxu0
    %v2886 = vadd.f32 %v2726, %v2885
    %2887 = vmatprep.mubr.f32.mxu0 %v2195
    %2888 = vmatmul.mubr.f32.gmra.mrb[0].mxu0 %v2194
    %v2889 = vpop.f32.mrb[0].mxu0
    %v2890 = vadd.f32 %v2722, %v2889
    %v2891 = vpop.f32.mrb[0].mxu0
    %v2892 = vadd.f32 %v2726, %v2891
    %2893 = vmatprep.mubr.f32.mxu0 %v2199
    %2894 = vmatmul.mubr.f32.gmra.mrb[0].mxu0 %v2198
    %v2895 = vpop.f32.mrb[0].mxu0
    %v2896 = vadd.f32 %v2722, %v2895
    %v2897 = vpop.f32.mrb[0].mxu0
    %v2898 = vadd.f32 %v2726, %v2897
    %2899 = vdwg.mxu0
    %2900 = vmatprep.subr.mxu0 %v2331
    %2901 = vmatpush1.msra.mxu0 %v2330
    %2902 = vmatprep.subr.mxu0 %v2335
    %2903 = vmatpush1.msra.mxu0 %v2334
    %2904 = vmatprep.subr.mxu0 %v2339
    %2905 = vmatpush1.msra.mxu0 %v2338
    %2906 = vmatprep.subr.mxu0 %v2343
    %2907 = vmatpush1.msra.mxu0 %v2342
    %2908 = vmatprep.subr.mxu0 %v2347
    %2909 = vmatpush1.msra.mxu0 %v2346
    %2910 = vmatprep.subr.mxu0 %v2351
    %2911 = vmatpush1.msra.mxu0 %v2350
    %2912 = vmatprep.subr.mxu0 %v2355
    %2913 = vmatpush1.msra.mxu0 %v2354
    %2914 = vmatprep.subr.mxu0 %v2359
    %2915 = vmatpush1.msra.mxu0 %v2358
    %2916 = vmatprep.subr.mxu0 %v2363
    %2917 = vmatpush1.msra.mxu0 %v2362
    %2918 = vmatprep.subr.mxu0 %v2367
    %2919 = vmatpush1.msra.mxu0 %v2366
    %2920 = vmatprep.subr.mxu0 %v2371
    %2921 = vmatpush1.msra.mxu0 %v2370
    %2922 = vmatprep.subr.mxu0 %v2375
    %2923 = vmatpush1.msra.mxu0 %v2374
    %2924 = vmatprep.subr.mxu0 %v2379
    %2925 = vmatpush1.msra.mxu0 %v2378
    %2926 = vmatprep.subr.mxu0 %v2383
    %2927 = vmatpush1.msra.mxu0 %v2382
    %2928 = vmatprep.subr.mxu0 %v2387
    %2929 = vmatpush1.msra.mxu0 %v2386
    %2930 = vmatprep.subr.mxu0 %v2391
    %2931 = vmatpush1.msra.mxu0 %v2390
    %2932 = vmatprep.subr.mxu0 %v2395
    %2933 = vmatpush1.msra.mxu0 %v2394
    %2934 = vmatprep.subr.mxu0 %v2399
    %2935 = vmatpush1.msra.mxu0 %v2398
    %2936 = vmatprep.subr.mxu0 %v2403
    %2937 = vmatpush1.msra.mxu0 %v2402
    %2938 = vmatprep.subr.mxu0 %v2407
    %2939 = vmatpush1.msra.mxu0 %v2406
    %2940 = vmatprep.subr.mxu0 %v2411
    %2941 = vmatpush1.msra.mxu0 %v2410
    %2942 = vmatprep.subr.mxu0 %v2415
    %2943 = vmatpush1.msra.mxu0 %v2414
    %2944 = vmatprep.subr.mxu0 %v2419
    %2945 = vmatpush1.msra.mxu0 %v2418
    %2946 = vmatprep.subr.mxu0 %v2423
    %2947 = vmatpush1.msra.mxu0 %v2422
    %2948 = vmatprep.subr.mxu0 %v2427
    %2949 = vmatpush1.msra.mxu0 %v2426
    %2950 = vmatprep.subr.mxu0 %v2431
    %2951 = vmatpush1.msra.mxu0 %v2430
    %2952 = vmatprep.subr.mxu0 %v2435
    %2953 = vmatpush1.msra.mxu0 %v2434
    %2954 = vmatprep.subr.mxu0 %v2439
    %2955 = vmatpush1.msra.mxu0 %v2438
    %2956 = vmatprep.subr.mxu0 %v2443
    %2957 = vmatpush1.msra.mxu0 %v2442
    %2958 = vmatprep.subr.mxu0 %v2447
    %2959 = vmatpush1.msra.mxu0 %v2446
    %2960 = vmatprep.subr.mxu0 %v2451
    %2961 = vmatpush1.msra.mxu0 %v2450
    %2962 = vmatprep.subr.mxu0 %v2455
    %2963 = vmatpush1.msra.mxu0 %v2454
    %2964 = vmatprep.mubr.f32.mxu0 %v2141
    %2965 = vmatmul.mubr.f32.gmra.mrb[0].mxu0 %v2140
    %v2966 = vpop.f32.mrb[0].mxu0
    %v2967 = vadd.f32 %v2806, %v2966
    %v2968 = vpop.f32.mrb[0].mxu0
    %v2969 = vadd.f32 %v2808, %v2968
    %2970 = vmatprep.mubr.f32.mxu0 %v2145
    %2971 = vmatmul.mubr.f32.gmra.mrb[0].mxu0 %v2144
    %v2972 = vpop.f32.mrb[0].mxu0
    %v2973 = vadd.f32 %v2812, %v2972
    %v2974 = vpop.f32.mrb[0].mxu0
    %v2975 = vadd.f32 %v2814, %v2974
    %2976 = vmatprep.mubr.f32.mxu0 %v2149
    %2977 = vmatmul.mubr.f32.gmra.mrb[0].mxu0 %v2148
    %v2978 = vpop.f32.mrb[0].mxu0
    %v2979 = vadd.f32 %v2818, %v2978
    %v2980 = vpop.f32.mrb[0].mxu0
    %v2981 = vadd.f32 %v2820, %v2980
    %2982 = vmatprep.mubr.f32.mxu0 %v2153
    %2983 = vmatmul.mubr.f32.gmra.mrb[0].mxu0 %v2152
    %v2984 = vpop.f32.mrb[0].mxu0
    %v2985 = vadd.f32 %v2824, %v2984
    %v2986 = vpop.f32.mrb[0].mxu0
    %v2987 = vadd.f32 %v2826, %v2986
    %2988 = vmatprep.mubr.f32.mxu0 %v2157
    %2989 = vmatmul.mubr.f32.gmra.mrb[0].mxu0 %v2156
    %v2990 = vpop.f32.mrb[0].mxu0
    %v2991 = vadd.f32 %v2830, %v2990
    %v2992 = vpop.f32.mrb[0].mxu0
    %v2993 = vadd.f32 %v2832, %v2992
    %2994 = vmatprep.mubr.f32.mxu0 %v2161
    %2995 = vmatmul.mubr.f32.gmra.mrb[0].mxu0 %v2160
    %v2996 = vpop.f32.mrb[0].mxu0
    %v2997 = vadd.f32 %v2836, %v2996
    %v2998 = vpop.f32.mrb[0].mxu0
    %v2999 = vadd.f32 %v2838, %v2998
    %3000 = vmatprep.mubr.f32.mxu0 %v2165
    %3001 = vmatmul.mubr.f32.gmra.mrb[0].mxu0 %v2164
    %v3002 = vpop.f32.mrb[0].mxu0
    %v3003 = vadd.f32 %v2842, %v3002
    %v3004 = vpop.f32.mrb[0].mxu0
    %v3005 = vadd.f32 %v2844, %v3004
    %3006 = vmatprep.mubr.f32.mxu0 %v2169
    %3007 = vmatmul.mubr.f32.gmra.mrb[0].mxu0 %v2168
    %v3008 = vpop.f32.mrb[0].mxu0
    %v3009 = vadd.f32 %v2848, %v3008
    %v3010 = vpop.f32.mrb[0].mxu0
    %v3011 = vadd.f32 %v2850, %v3010
    %3012 = vmatprep.mubr.f32.mxu0 %v2173
    %3013 = vmatmul.mubr.f32.gmra.mrb[0].mxu0 %v2172
    %v3014 = vpop.f32.mrb[0].mxu0
    %v3015 = vadd.f32 %v2854, %v3014
    %v3016 = vpop.f32.mrb[0].mxu0
    %v3017 = vadd.f32 %v2856, %v3016
    %3018 = vmatprep.mubr.f32.mxu0 %v2177
    %3019 = vmatmul.mubr.f32.gmra.mrb[0].mxu0 %v2176
    %v3020 = vpop.f32.mrb[0].mxu0
    %v3021 = vadd.f32 %v2860, %v3020
    %v3022 = vpop.f32.mrb[0].mxu0
    %v3023 = vadd.f32 %v2862, %v3022
    %3024 = vmatprep.mubr.f32.mxu0 %v2181
    %3025 = vmatmul.mubr.f32.gmra.mrb[0].mxu0 %v2180
    %v3026 = vpop.f32.mrb[0].mxu0
    %v3027 = vadd.f32 %v2866, %v3026
    %v3028 = vpop.f32.mrb[0].mxu0
    %v3029 = vadd.f32 %v2868, %v3028
    %3030 = vmatprep.mubr.f32.mxu0 %v2185
    %3031 = vmatmul.mubr.f32.gmra.mrb[0].mxu0 %v2184
    %v3032 = vpop.f32.mrb[0].mxu0
    %v3033 = vadd.f32 %v2872, %v3032
    %v3034 = vpop.f32.mrb[0].mxu0
    %v3035 = vadd.f32 %v2874, %v3034
    %3036 = vmatprep.mubr.f32.mxu0 %v2189
    %3037 = vmatmul.mubr.f32.gmra.mrb[0].mxu0 %v2188
    %v3038 = vpop.f32.mrb[0].mxu0
    %v3039 = vadd.f32 %v2878, %v3038
    %v3040 = vpop.f32.mrb[0].mxu0
    %v3041 = vadd.f32 %v2880, %v3040
    %3042 = vmatprep.mubr.f32.mxu0 %v2193
    %3043 = vmatmul.mubr.f32.gmra.mrb[0].mxu0 %v2192
    %v3044 = vpop.f32.mrb[0].mxu0
    %v3045 = vadd.f32 %v2884, %v3044
    %v3046 = vpop.f32.mrb[0].mxu0
    %v3047 = vadd.f32 %v2886, %v3046
    %3048 = vmatprep.mubr.f32.mxu0 %v2197
    %3049 = vmatmul.mubr.f32.gmra.mrb[0].mxu0 %v2196
    %v3050 = vpop.f32.mrb[0].mxu0
    %v3051 = vadd.f32 %v2890, %v3050
    %v3052 = vpop.f32.mrb[0].mxu0
    %v3053 = vadd.f32 %v2892, %v3052
    %3054 = vmatprep.mubr.f32.mxu0 %v2201
    %3055 = vmatmul.mubr.f32.gmra.mrb[0].mxu0 %v2200
    %v3056 = vpop.f32.mrb[0].mxu0
    %v3057 = vadd.f32 %v2896, %v3056
    %v3058 = vpop.f32.mrb[0].mxu0
    %v3059 = vadd.f32 %v2898, %v3058
    %3060 = vdwg.mxu0
    %3061 = vmatprep.subr.mxu0 %v2205
    %3062 = vmatpush1.msra.mxu0 %v2204
    %3063 = vmatprep.subr.mxu0 %v2209
    %3064 = vmatpush1.msra.mxu0 %v2208
    %3065 = vmatprep.subr.mxu0 %v2213
    %3066 = vmatpush1.msra.mxu0 %v2212
    %3067 = vmatprep.subr.mxu0 %v2217
    %3068 = vmatpush1.msra.mxu0 %v2216
    %3069 = vmatprep.subr.mxu0 %v2221
    %3070 = vmatpush1.msra.mxu0 %v2220
    %3071 = vmatprep.subr.mxu0 %v2225
    %3072 = vmatpush1.msra.mxu0 %v2224
    %3073 = vmatprep.subr.mxu0 %v2229
    %3074 = vmatpush1.msra.mxu0 %v2228
    %3075 = vmatprep.subr.mxu0 %v2233
    %3076 = vmatpush1.msra.mxu0 %v2232
    %3077 = vmatprep.subr.mxu0 %v2237
    %3078 = vmatpush1.msra.mxu0 %v2236
    %3079 = vmatprep.subr.mxu0 %v2241
    %3080 = vmatpush1.msra.mxu0 %v2240
    %3081 = vmatprep.subr.mxu0 %v2245
    %3082 = vmatpush1.msra.mxu0 %v2244
    %3083 = vmatprep.subr.mxu0 %v2249
    %3084 = vmatpush1.msra.mxu0 %v2248
    %3085 = vmatprep.subr.mxu0 %v2253
    %3086 = vmatpush1.msra.mxu0 %v2252
    %3087 = vmatprep.subr.mxu0 %v2257
    %3088 = vmatpush1.msra.mxu0 %v2256
    %3089 = vmatprep.subr.mxu0 %v2261
    %3090 = vmatpush1.msra.mxu0 %v2260
    %3091 = vmatprep.subr.mxu0 %v2265
    %3092 = vmatpush1.msra.mxu0 %v2264
    %3093 = vmatprep.subr.mxu0 %v2269
    %3094 = vmatpush1.msra.mxu0 %v2268
    %3095 = vmatprep.subr.mxu0 %v2273
    %3096 = vmatpush1.msra.mxu0 %v2272
    %3097 = vmatprep.subr.mxu0 %v2277
    %3098 = vmatpush1.msra.mxu0 %v2276
    %3099 = vmatprep.subr.mxu0 %v2281
    %3100 = vmatpush1.msra.mxu0 %v2280
    %3101 = vmatprep.subr.mxu0 %v2285
    %3102 = vmatpush1.msra.mxu0 %v2284
    %3103 = vmatprep.subr.mxu0 %v2289
    %3104 = vmatpush1.msra.mxu0 %v2288
    %3105 = vmatprep.subr.mxu0 %v2293
    %3106 = vmatpush1.msra.mxu0 %v2292
    %3107 = vmatprep.subr.mxu0 %v2297
    %3108 = vmatpush1.msra.mxu0 %v2296
    %3109 = vmatprep.subr.mxu0 %v2301
    %3110 = vmatpush1.msra.mxu0 %v2300
    %3111 = vmatprep.subr.mxu0 %v2305
    %3112 = vmatpush1.msra.mxu0 %v2304
    %3113 = vmatprep.subr.mxu0 %v2309
    %3114 = vmatpush1.msra.mxu0 %v2308
    %3115 = vmatprep.subr.mxu0 %v2313
    %3116 = vmatpush1.msra.mxu0 %v2312
    %3117 = vmatprep.subr.mxu0 %v2317
    %3118 = vmatpush1.msra.mxu0 %v2316
    %3119 = vmatprep.subr.mxu0 %v2321
    %3120 = vmatpush1.msra.mxu0 %v2320
    %3121 = vmatprep.subr.mxu0 %v2325
    %3122 = vmatpush1.msra.mxu0 %v2324
    %3123 = vmatprep.subr.mxu0 %v2329
    %3124 = vmatpush1.msra.mxu0 %v2328
    %3125 = vmatprep.mubr.f32.mxu0 %v2139
    %3126 = vmatmul.mubr.f32.gmra.mrb[0].mxu0 %v2138
    %v3127 = vpop.f32.mrb[0].mxu0
    %v3128 = vadd.f32 %v2730, %v3127
    %v3129 = vpop.f32.mrb[0].mxu0
    %v3130 = vadd.f32 %v2734, %v3129
    %3131 = vmatprep.mubr.f32.mxu0 %v2143
    %3132 = vmatmul.mubr.f32.gmra.mrb[0].mxu0 %v2142
    %v3133 = vpop.f32.mrb[0].mxu0
    %v3134 = vadd.f32 %v2730, %v3133
    %v3135 = vpop.f32.mrb[0].mxu0
    %v3136 = vadd.f32 %v2734, %v3135
    %3137 = vmatprep.mubr.f32.mxu0 %v2147
    %3138 = vmatmul.mubr.f32.gmra.mrb[0].mxu0 %v2146
    %v3139 = vpop.f32.mrb[0].mxu0
    %v3140 = vadd.f32 %v2730, %v3139
    %v3141 = vpop.f32.mrb[0].mxu0
    %v3142 = vadd.f32 %v2734, %v3141
    %3143 = vmatprep.mubr.f32.mxu0 %v2151
    %3144 = vmatmul.mubr.f32.gmra.mrb[0].mxu0 %v2150
    %v3145 = vpop.f32.mrb[0].mxu0
    %v3146 = vadd.f32 %v2730, %v3145
    %v3147 = vpop.f32.mrb[0].mxu0
    %v3148 = vadd.f32 %v2734, %v3147
    %3149 = vmatprep.mubr.f32.mxu0 %v2155
    %3150 = vmatmul.mubr.f32.gmra.mrb[0].mxu0 %v2154
    %v3151 = vpop.f32.mrb[0].mxu0
    %v3152 = vadd.f32 %v2730, %v3151
    %v3153 = vpop.f32.mrb[0].mxu0
    %v3154 = vadd.f32 %v2734, %v3153
    %3155 = vmatprep.mubr.f32.mxu0 %v2159
    %3156 = vmatmul.mubr.f32.gmra.mrb[0].mxu0 %v2158
    %v3157 = vpop.f32.mrb[0].mxu0
    %v3158 = vadd.f32 %v2730, %v3157
    %v3159 = vpop.f32.mrb[0].mxu0
    %v3160 = vadd.f32 %v2734, %v3159
    %3161 = vmatprep.mubr.f32.mxu0 %v2163
    %3162 = vmatmul.mubr.f32.gmra.mrb[0].mxu0 %v2162
    %v3163 = vpop.f32.mrb[0].mxu0
    %v3164 = vadd.f32 %v2730, %v3163
    %v3165 = vpop.f32.mrb[0].mxu0
    %v3166 = vadd.f32 %v2734, %v3165
    %3167 = vmatprep.mubr.f32.mxu0 %v2167
    %3168 = vmatmul.mubr.f32.gmra.mrb[0].mxu0 %v2166
    %v3169 = vpop.f32.mrb[0].mxu0
    %v3170 = vadd.f32 %v2730, %v3169
    %v3171 = vpop.f32.mrb[0].mxu0
    %v3172 = vadd.f32 %v2734, %v3171
    %3173 = vmatprep.mubr.f32.mxu0 %v2171
    %3174 = vmatmul.mubr.f32.gmra.mrb[0].mxu0 %v2170
    %v3175 = vpop.f32.mrb[0].mxu0
    %v3176 = vadd.f32 %v2730, %v3175
    %v3177 = vpop.f32.mrb[0].mxu0
    %v3178 = vadd.f32 %v2734, %v3177
    %3179 = vmatprep.mubr.f32.mxu0 %v2175
    %3180 = vmatmul.mubr.f32.gmra.mrb[0].mxu0 %v2174
    %v3181 = vpop.f32.mrb[0].mxu0
    %v3182 = vadd.f32 %v2730, %v3181
    %v3183 = vpop.f32.mrb[0].mxu0
    %v3184 = vadd.f32 %v2734, %v3183
    %3185 = vmatprep.mubr.f32.mxu0 %v2179
    %3186 = vmatmul.mubr.f32.gmra.mrb[0].mxu0 %v2178
    %v3187 = vpop.f32.mrb[0].mxu0
    %v3188 = vadd.f32 %v2730, %v3187
    %v3189 = vpop.f32.mrb[0].mxu0
    %v3190 = vadd.f32 %v2734, %v3189
    %3191 = vmatprep.mubr.f32.mxu0 %v2183
    %3192 = vmatmul.mubr.f32.gmra.mrb[0].mxu0 %v2182
    %v3193 = vpop.f32.mrb[0].mxu0
    %v3194 = vadd.f32 %v2730, %v3193
    %v3195 = vpop.f32.mrb[0].mxu0
    %v3196 = vadd.f32 %v2734, %v3195
    %3197 = vmatprep.mubr.f32.mxu0 %v2187
    %3198 = vmatmul.mubr.f32.gmra.mrb[0].mxu0 %v2186
    %v3199 = vpop.f32.mrb[0].mxu0
    %v3200 = vadd.f32 %v2730, %v3199
    %v3201 = vpop.f32.mrb[0].mxu0
    %v3202 = vadd.f32 %v2734, %v3201
    %3203 = vmatprep.mubr.f32.mxu0 %v2191
    %3204 = vmatmul.mubr.f32.gmra.mrb[0].mxu0 %v2190
    %v3205 = vpop.f32.mrb[0].mxu0
    %v3206 = vadd.f32 %v2730, %v3205
    %v3207 = vpop.f32.mrb[0].mxu0
    %v3208 = vadd.f32 %v2734, %v3207
    %3209 = vmatprep.mubr.f32.mxu0 %v2195
    %3210 = vmatmul.mubr.f32.gmra.mrb[0].mxu0 %v2194
    %v3211 = vpop.f32.mrb[0].mxu0
    %v3212 = vadd.f32 %v2730, %v3211
    %v3213 = vpop.f32.mrb[0].mxu0
    %v3214 = vadd.f32 %v2734, %v3213
    %3215 = vmatprep.mubr.f32.mxu0 %v2199
    %3216 = vmatmul.mubr.f32.gmra.mrb[0].mxu0 %v2198
    %v3217 = vpop.f32.mrb[0].mxu0
    %v3218 = vadd.f32 %v2730, %v3217
    %v3219 = vpop.f32.mrb[0].mxu0
    %v3220 = vadd.f32 %v2734, %v3219
    %3221 = vdwg.mxu0
    %3222 = vmatprep.subr.mxu0 %v2333
    %3223 = vmatpush1.msra.mxu0 %v2332
    %3224 = vmatprep.subr.mxu0 %v2337
    %3225 = vmatpush1.msra.mxu0 %v2336
    %3226 = vmatprep.subr.mxu0 %v2341
    %3227 = vmatpush1.msra.mxu0 %v2340
    %3228 = vmatprep.subr.mxu0 %v2345
    %3229 = vmatpush1.msra.mxu0 %v2344
    %3230 = vmatprep.subr.mxu0 %v2349
    %3231 = vmatpush1.msra.mxu0 %v2348
    %3232 = vmatprep.subr.mxu0 %v2353
    %3233 = vmatpush1.msra.mxu0 %v2352
    %3234 = vmatprep.subr.mxu0 %v2357
    %3235 = vmatpush1.msra.mxu0 %v2356
    %3236 = vmatprep.subr.mxu0 %v2361
    %3237 = vmatpush1.msra.mxu0 %v2360
    %3238 = vmatprep.subr.mxu0 %v2365
    %3239 = vmatpush1.msra.mxu0 %v2364
    %3240 = vmatprep.subr.mxu0 %v2369
    %3241 = vmatpush1.msra.mxu0 %v2368
    %3242 = vmatprep.subr.mxu0 %v2373
    %3243 = vmatpush1.msra.mxu0 %v2372
    %3244 = vmatprep.subr.mxu0 %v2377
    %3245 = vmatpush1.msra.mxu0 %v2376
    %3246 = vmatprep.subr.mxu0 %v2381
    %3247 = vmatpush1.msra.mxu0 %v2380
    %3248 = vmatprep.subr.mxu0 %v2385
    %3249 = vmatpush1.msra.mxu0 %v2384
    %3250 = vmatprep.subr.mxu0 %v2389
    %3251 = vmatpush1.msra.mxu0 %v2388
    %3252 = vmatprep.subr.mxu0 %v2393
    %3253 = vmatpush1.msra.mxu0 %v2392
    %3254 = vmatprep.subr.mxu0 %v2397
    %3255 = vmatpush1.msra.mxu0 %v2396
    %3256 = vmatprep.subr.mxu0 %v2401
    %3257 = vmatpush1.msra.mxu0 %v2400
    %3258 = vmatprep.subr.mxu0 %v2405
    %3259 = vmatpush1.msra.mxu0 %v2404
    %3260 = vmatprep.subr.mxu0 %v2409
    %3261 = vmatpush1.msra.mxu0 %v2408
    %3262 = vmatprep.subr.mxu0 %v2413
    %3263 = vmatpush1.msra.mxu0 %v2412
    %3264 = vmatprep.subr.mxu0 %v2417
    %3265 = vmatpush1.msra.mxu0 %v2416
    %3266 = vmatprep.subr.mxu0 %v2421
    %3267 = vmatpush1.msra.mxu0 %v2420
    %3268 = vmatprep.subr.mxu0 %v2425
    %3269 = vmatpush1.msra.mxu0 %v2424
    %3270 = vmatprep.subr.mxu0 %v2429
    %3271 = vmatpush1.msra.mxu0 %v2428
    %3272 = vmatprep.subr.mxu0 %v2433
    %3273 = vmatpush1.msra.mxu0 %v2432
    %3274 = vmatprep.subr.mxu0 %v2437
    %3275 = vmatpush1.msra.mxu0 %v2436
    %3276 = vmatprep.subr.mxu0 %v2441
    %3277 = vmatpush1.msra.mxu0 %v2440
    %3278 = vmatprep.subr.mxu0 %v2445
    %3279 = vmatpush1.msra.mxu0 %v2444
    %3280 = vmatprep.subr.mxu0 %v2449
    %3281 = vmatpush1.msra.mxu0 %v2448
    %3282 = vmatprep.subr.mxu0 %v2453
    %3283 = vmatpush1.msra.mxu0 %v2452
    %3284 = vmatprep.subr.mxu0 %v2457
    %3285 = vmatpush1.msra.mxu0 %v2456
    %3286 = vmatprep.mubr.f32.mxu0 %v2141
    %3287 = vmatmul.mubr.f32.gmra.mrb[0].mxu0 %v2140
    %v3288 = vpop.f32.mrb[0].mxu0
    %v3289 = vadd.f32 %v3128, %v3288
    %v3290 = vpop.f32.mrb[0].mxu0
    %v3291 = vadd.f32 %v3130, %v3290
    %3292 = vmatprep.mubr.f32.mxu0 %v2145
    %3293 = vmatmul.mubr.f32.gmra.mrb[0].mxu0 %v2144
    %v3294 = vpop.f32.mrb[0].mxu0
    %v3295 = vadd.f32 %v3134, %v3294
    %v3296 = vpop.f32.mrb[0].mxu0
    %v3297 = vadd.f32 %v3136, %v3296
    %3298 = vmatprep.mubr.f32.mxu0 %v2149
    %3299 = vmatmul.mubr.f32.gmra.mrb[0].mxu0 %v2148
    %v3300 = vpop.f32.mrb[0].mxu0
    %v3301 = vadd.f32 %v3140, %v3300
    %v3302 = vpop.f32.mrb[0].mxu0
    %v3303 = vadd.f32 %v3142, %v3302
    %3304 = vmatprep.mubr.f32.mxu0 %v2153
    %3305 = vmatmul.mubr.f32.gmra.mrb[0].mxu0 %v2152
    %v3306 = vpop.f32.mrb[0].mxu0
    %v3307 = vadd.f32 %v3146, %v3306
    %v3308 = vpop.f32.mrb[0].mxu0
    %v3309 = vadd.f32 %v3148, %v3308
    %3310 = vmatprep.mubr.f32.mxu0 %v2157
    %3311 = vmatmul.mubr.f32.gmra.mrb[0].mxu0 %v2156
    %v3312 = vpop.f32.mrb[0].mxu0
    %v3313 = vadd.f32 %v3152, %v3312
    %v3314 = vpop.f32.mrb[0].mxu0
    %v3315 = vadd.f32 %v3154, %v3314
    %3316 = vmatprep.mubr.f32.mxu0 %v2161
    %3317 = vmatmul.mubr.f32.gmra.mrb[0].mxu0 %v2160
    %v3318 = vpop.f32.mrb[0].mxu0
    %v3319 = vadd.f32 %v3158, %v3318
    %v3320 = vpop.f32.mrb[0].mxu0
    %v3321 = vadd.f32 %v3160, %v3320
    %3322 = vmatprep.mubr.f32.mxu0 %v2165
    %3323 = vmatmul.mubr.f32.gmra.mrb[0].mxu0 %v2164
    %v3324 = vpop.f32.mrb[0].mxu0
    %v3325 = vadd.f32 %v3164, %v3324
    %v3326 = vpop.f32.mrb[0].mxu0
    %v3327 = vadd.f32 %v3166, %v3326
    %3328 = vmatprep.mubr.f32.mxu0 %v2169
    %3329 = vmatmul.mubr.f32.gmra.mrb[0].mxu0 %v2168
    %v3330 = vpop.f32.mrb[0].mxu0
    %v3331 = vadd.f32 %v3170, %v3330
    %v3332 = vpop.f32.mrb[0].mxu0
    %v3333 = vadd.f32 %v3172, %v3332
    %3334 = vmatprep.mubr.f32.mxu0 %v2173
    %3335 = vmatmul.mubr.f32.gmra.mrb[0].mxu0 %v2172
    %v3336 = vpop.f32.mrb[0].mxu0
    %v3337 = vadd.f32 %v3176, %v3336
    %v3338 = vpop.f32.mrb[0].mxu0
    %v3339 = vadd.f32 %v3178, %v3338
    %3340 = vmatprep.mubr.f32.mxu0 %v2177
    %3341 = vmatmul.mubr.f32.gmra.mrb[0].mxu0 %v2176
    %v3342 = vpop.f32.mrb[0].mxu0
    %v3343 = vadd.f32 %v3182, %v3342
    %v3344 = vpop.f32.mrb[0].mxu0
    %v3345 = vadd.f32 %v3184, %v3344
    %3346 = vmatprep.mubr.f32.mxu0 %v2181
    %3347 = vmatmul.mubr.f32.gmra.mrb[0].mxu0 %v2180
    %v3348 = vpop.f32.mrb[0].mxu0
    %v3349 = vadd.f32 %v3188, %v3348
    %v3350 = vpop.f32.mrb[0].mxu0
    %v3351 = vadd.f32 %v3190, %v3350
    %3352 = vmatprep.mubr.f32.mxu0 %v2185
    %3353 = vmatmul.mubr.f32.gmra.mrb[0].mxu0 %v2184
    %v3354 = vpop.f32.mrb[0].mxu0
    %v3355 = vadd.f32 %v3194, %v3354
    %v3356 = vpop.f32.mrb[0].mxu0
    %v3357 = vadd.f32 %v3196, %v3356
    %3358 = vmatprep.mubr.f32.mxu0 %v2189
    %3359 = vmatmul.mubr.f32.gmra.mrb[0].mxu0 %v2188
    %v3360 = vpop.f32.mrb[0].mxu0
    %v3361 = vadd.f32 %v3200, %v3360
    %v3362 = vpop.f32.mrb[0].mxu0
    %v3363 = vadd.f32 %v3202, %v3362
    %3364 = vmatprep.mubr.f32.mxu0 %v2193
    %3365 = vmatmul.mubr.f32.gmra.mrb[0].mxu0 %v2192
    %v3366 = vpop.f32.mrb[0].mxu0
    %v3367 = vadd.f32 %v3206, %v3366
    %v3368 = vpop.f32.mrb[0].mxu0
    %v3369 = vadd.f32 %v3208, %v3368
    %3370 = vmatprep.mubr.f32.mxu0 %v2197
    %3371 = vmatmul.mubr.f32.gmra.mrb[0].mxu0 %v2196
    %v3372 = vpop.f32.mrb[0].mxu0
    %v3373 = vadd.f32 %v3212, %v3372
    %v3374 = vpop.f32.mrb[0].mxu0
    %v3375 = vadd.f32 %v3214, %v3374
    %3376 = vmatprep.mubr.f32.mxu0 %v2201
    %3377 = vmatmul.mubr.f32.gmra.mrb[0].mxu0 %v2200
    %v3378 = vpop.f32.mrb[0].mxu0
    %v3379 = vadd.f32 %v3218, %v3378
    %v3380 = vpop.f32.mrb[0].mxu0
    %v3381 = vadd.f32 %v3220, %v3380
    %3382 = vdwg.mxu0
    %v3383 = vmax.f32 %v2967, 0.0
    %v3384 = vmax.f32 %v2969, 0.0
    %v3385 = vmax.f32 %v3289, 0.0
    %v3386 = vmax.f32 %v3291, 0.0
    %v3387 = vmax.f32 %v2973, 0.0
    %v3388 = vmax.f32 %v2975, 0.0
    %v3389 = vmax.f32 %v3295, 0.0
    %v3390 = vmax.f32 %v3297, 0.0
    %v3391 = vmax.f32 %v2979, 0.0
    %v3392 = vmax.f32 %v2981, 0.0
    %v3393 = vmax.f32 %v3301, 0.0
    %v3394 = vmax.f32 %v3303, 0.0
    %v3395 = vmax.f32 %v2985, 0.0
    %v3396 = vmax.f32 %v2987, 0.0
    %v3397 = vmax.f32 %v3307, 0.0
    %v3398 = vmax.f32 %v3309, 0.0
    %v3399 = vmax.f32 %v2991, 0.0
    %v3400 = vmax.f32 %v2993, 0.0
    %v3401 = vmax.f32 %v3313, 0.0
    %v3402 = vmax.f32 %v3315, 0.0
    %v3403 = vmax.f32 %v2997, 0.0
    %v3404 = vmax.f32 %v2999, 0.0
    %v3405 = vmax.f32 %v3319, 0.0
    %v3406 = vmax.f32 %v3321, 0.0
    %v3407 = vmax.f32 %v3003, 0.0
    %v3408 = vmax.f32 %v3005, 0.0
    %v3409 = vmax.f32 %v3325, 0.0
    %v3410 = vmax.f32 %v3327, 0.0
    %v3411 = vmax.f32 %v3009, 0.0
    %v3412 = vmax.f32 %v3011, 0.0
    %v3413 = vmax.f32 %v3331, 0.0
    %v3414 = vmax.f32 %v3333, 0.0
    %v3415 = vmax.f32 %v3015, 0.0
    %v3416 = vmax.f32 %v3017, 0.0
    %v3417 = vmax.f32 %v3337, 0.0
    %v3418 = vmax.f32 %v3339, 0.0
    %v3419 = vmax.f32 %v3021, 0.0
    %v3420 = vmax.f32 %v3023, 0.0
    %v3421 = vmax.f32 %v3343, 0.0
    %v3422 = vmax.f32 %v3345, 0.0
    %v3423 = vmax.f32 %v3027, 0.0
    %v3424 = vmax.f32 %v3029, 0.0
    %v3425 = vmax.f32 %v3349, 0.0
    %v3426 = vmax.f32 %v3351, 0.0
    %v3427 = vmax.f32 %v3033, 0.0
    %v3428 = vmax.f32 %v3035, 0.0
    %v3429 = vmax.f32 %v3355, 0.0
    %v3430 = vmax.f32 %v3357, 0.0
    %v3431 = vmax.f32 %v3039, 0.0
    %v3432 = vmax.f32 %v3041, 0.0
    %v3433 = vmax.f32 %v3361, 0.0
    %v3434 = vmax.f32 %v3363, 0.0
    %v3435 = vmax.f32 %v3045, 0.0
    %v3436 = vmax.f32 %v3047, 0.0
    %v3437 = vmax.f32 %v3367, 0.0
    %v3438 = vmax.f32 %v3369, 0.0
    %v3439 = vmax.f32 %v3051, 0.0
    %v3440 = vmax.f32 %v3053, 0.0
    %v3441 = vmax.f32 %v3373, 0.0
    %v3442 = vmax.f32 %v3375, 0.0
    %v3443 = vmax.f32 %v3057, 0.0
    %v3444 = vmax.f32 %v3059, 0.0
    %v3445 = vmax.f32 %v3379, 0.0
    %v3446 = vmax.f32 %v3381, 0.0
    %v3448 = vlaneseq
    %v3449 = vshrl.u32 %v3448, 7
    %v3450 = vsub.s32 0, %v3449
    %v3451 = vrot.slane %v2717, %v3450
    %v3452 = vlaneseq
    %v3453 = vshrl.u32 %v3452, 7
    %v3454 = vsub.s32 1, %v3453
    %v3455 = vrot.slane %v2717, %v3454
    %v3456 = vlaneseq
    %v3457 = vshrl.u32 %v3456, 7
    %v3458 = vsub.s32 2, %v3457
    %v3459 = vrot.slane %v2717, %v3458
    %v3460 = vlaneseq
    %v3461 = vshrl.u32 %v3460, 7
    %v3462 = vsub.s32 3, %v3461
    %v3463 = vrot.slane %v2717, %v3462
    %3468 = vmatprep.subr.mxu0 %v2459
    %3469 = vmatpush1.msra.mxu0 %v2458
    %3470 = vmatprep.subr.mxu0 %v2463
    %3471 = vmatpush1.msra.mxu0 %v2462
    %3472 = vmatprep.subr.mxu0 %v2467
    %3473 = vmatpush1.msra.mxu0 %v2466
    %3474 = vmatprep.subr.mxu0 %v2471
    %3475 = vmatpush1.msra.mxu0 %v2470
    %3476 = vmatprep.subr.mxu0 %v2475
    %3477 = vmatpush1.msra.mxu0 %v2474
    %3478 = vmatprep.subr.mxu0 %v2479
    %3479 = vmatpush1.msra.mxu0 %v2478
    %3480 = vmatprep.subr.mxu0 %v2483
    %3481 = vmatpush1.msra.mxu0 %v2482
    %3482 = vmatprep.subr.mxu0 %v2487
    %3483 = vmatpush1.msra.mxu0 %v2486
    %3484 = vmatprep.subr.mxu0 %v2491
    %3485 = vmatpush1.msra.mxu0 %v2490
    %3486 = vmatprep.subr.mxu0 %v2495
    %3487 = vmatpush1.msra.mxu0 %v2494
    %3488 = vmatprep.subr.mxu0 %v2499
    %3489 = vmatpush1.msra.mxu0 %v2498
    %3490 = vmatprep.subr.mxu0 %v2503
    %3491 = vmatpush1.msra.mxu0 %v2502
    %3492 = vmatprep.subr.mxu0 %v2507
    %3493 = vmatpush1.msra.mxu0 %v2506
    %3494 = vmatprep.subr.mxu0 %v2511
    %3495 = vmatpush1.msra.mxu0 %v2510
    %3496 = vmatprep.subr.mxu0 %v2515
    %3497 = vmatpush1.msra.mxu0 %v2514
    %3498 = vmatprep.subr.mxu0 %v2519
    %3499 = vmatpush1.msra.mxu0 %v2518
    %3500 = vmatprep.subr.mxu0 %v2523
    %3501 = vmatpush1.msra.mxu0 %v2522
    %3502 = vmatprep.subr.mxu0 %v2527
    %3503 = vmatpush1.msra.mxu0 %v2526
    %3504 = vmatprep.subr.mxu0 %v2531
    %3505 = vmatpush1.msra.mxu0 %v2530
    %3506 = vmatprep.subr.mxu0 %v2535
    %3507 = vmatpush1.msra.mxu0 %v2534
    %3508 = vmatprep.subr.mxu0 %v2539
    %3509 = vmatpush1.msra.mxu0 %v2538
    %3510 = vmatprep.subr.mxu0 %v2543
    %3511 = vmatpush1.msra.mxu0 %v2542
    %3512 = vmatprep.subr.mxu0 %v2547
    %3513 = vmatpush1.msra.mxu0 %v2546
    %3514 = vmatprep.subr.mxu0 %v2551
    %3515 = vmatpush1.msra.mxu0 %v2550
    %3516 = vmatprep.subr.mxu0 %v2555
    %3517 = vmatpush1.msra.mxu0 %v2554
    %3518 = vmatprep.subr.mxu0 %v2559
    %3519 = vmatpush1.msra.mxu0 %v2558
    %3520 = vmatprep.subr.mxu0 %v2563
    %3521 = vmatpush1.msra.mxu0 %v2562
    %3522 = vmatprep.subr.mxu0 %v2567
    %3523 = vmatpush1.msra.mxu0 %v2566
    %3524 = vmatprep.subr.mxu0 %v2571
    %3525 = vmatpush1.msra.mxu0 %v2570
    %3526 = vmatprep.subr.mxu0 %v2575
    %3527 = vmatpush1.msra.mxu0 %v2574
    %3528 = vmatprep.subr.mxu0 %v2579
    %3529 = vmatpush1.msra.mxu0 %v2578
    %3530 = vmatprep.subr.mxu0 %v2583
    %3531 = vmatpush1.msra.mxu0 %v2582
    %3532 = vmatprep.mubr.f32.mxu0 %v3384
    %3533 = vmatmul.mubr.f32.gmra.mrb[0].mxu0 %v3383
    %v3534 = vpop.f32.mrb[0].mxu0
    %v3535 = vadd.f32 %v3451, %v3534
    %v3536 = vpop.f32.mrb[0].mxu0
    %v3537 = vadd.f32 %v3455, %v3536
    %3538 = vmatprep.mubr.f32.mxu0 %v3388
    %3539 = vmatmul.mubr.f32.gmra.mrb[0].mxu0 %v3387
    %v3540 = vpop.f32.mrb[0].mxu0
    %v3541 = vadd.f32 %v3451, %v3540
    %v3542 = vpop.f32.mrb[0].mxu0
    %v3543 = vadd.f32 %v3455, %v3542
    %3544 = vmatprep.mubr.f32.mxu0 %v3392
    %3545 = vmatmul.mubr.f32.gmra.mrb[0].mxu0 %v3391
    %v3546 = vpop.f32.mrb[0].mxu0
    %v3547 = vadd.f32 %v3451, %v3546
    %v3548 = vpop.f32.mrb[0].mxu0
    %v3549 = vadd.f32 %v3455, %v3548
    %3550 = vmatprep.mubr.f32.mxu0 %v3396
    %3551 = vmatmul.mubr.f32.gmra.mrb[0].mxu0 %v3395
    %v3552 = vpop.f32.mrb[0].mxu0
    %v3553 = vadd.f32 %v3451, %v3552
    %v3554 = vpop.f32.mrb[0].mxu0
    %v3555 = vadd.f32 %v3455, %v3554
    %3556 = vmatprep.mubr.f32.mxu0 %v3400
    %3557 = vmatmul.mubr.f32.gmra.mrb[0].mxu0 %v3399
    %v3558 = vpop.f32.mrb[0].mxu0
    %v3559 = vadd.f32 %v3451, %v3558
    %v3560 = vpop.f32.mrb[0].mxu0
    %v3561 = vadd.f32 %v3455, %v3560
    %3562 = vmatprep.mubr.f32.mxu0 %v3404
    %3563 = vmatmul.mubr.f32.gmra.mrb[0].mxu0 %v3403
    %v3564 = vpop.f32.mrb[0].mxu0
    %v3565 = vadd.f32 %v3451, %v3564
    %v3566 = vpop.f32.mrb[0].mxu0
    %v3567 = vadd.f32 %v3455, %v3566
    %3568 = vmatprep.mubr.f32.mxu0 %v3408
    %3569 = vmatmul.mubr.f32.gmra.mrb[0].mxu0 %v3407
    %v3570 = vpop.f32.mrb[0].mxu0
    %v3571 = vadd.f32 %v3451, %v3570
    %v3572 = vpop.f32.mrb[0].mxu0
    %v3573 = vadd.f32 %v3455, %v3572
    %3574 = vmatprep.mubr.f32.mxu0 %v3412
    %3575 = vmatmul.mubr.f32.gmra.mrb[0].mxu0 %v3411
    %v3576 = vpop.f32.mrb[0].mxu0
    %v3577 = vadd.f32 %v3451, %v3576
    %v3578 = vpop.f32.mrb[0].mxu0
    %v3579 = vadd.f32 %v3455, %v3578
    %3580 = vmatprep.mubr.f32.mxu0 %v3416
    %3581 = vmatmul.mubr.f32.gmra.mrb[0].mxu0 %v3415
    %v3582 = vpop.f32.mrb[0].mxu0
    %v3583 = vadd.f32 %v3451, %v3582
    %v3584 = vpop.f32.mrb[0].mxu0
    %v3585 = vadd.f32 %v3455, %v3584
    %3586 = vmatprep.mubr.f32.mxu0 %v3420
    %3587 = vmatmul.mubr.f32.gmra.mrb[0].mxu0 %v3419
    %v3588 = vpop.f32.mrb[0].mxu0
    %v3589 = vadd.f32 %v3451, %v3588
    %v3590 = vpop.f32.mrb[0].mxu0
    %v3591 = vadd.f32 %v3455, %v3590
    %3592 = vmatprep.mubr.f32.mxu0 %v3424
    %3593 = vmatmul.mubr.f32.gmra.mrb[0].mxu0 %v3423
    %v3594 = vpop.f32.mrb[0].mxu0
    %v3595 = vadd.f32 %v3451, %v3594
    %v3596 = vpop.f32.mrb[0].mxu0
    %v3597 = vadd.f32 %v3455, %v3596
    %3598 = vmatprep.mubr.f32.mxu0 %v3428
    %3599 = vmatmul.mubr.f32.gmra.mrb[0].mxu0 %v3427
    %v3600 = vpop.f32.mrb[0].mxu0
    %v3601 = vadd.f32 %v3451, %v3600
    %v3602 = vpop.f32.mrb[0].mxu0
    %v3603 = vadd.f32 %v3455, %v3602
    %3604 = vmatprep.mubr.f32.mxu0 %v3432
    %3605 = vmatmul.mubr.f32.gmra.mrb[0].mxu0 %v3431
    %v3606 = vpop.f32.mrb[0].mxu0
    %v3607 = vadd.f32 %v3451, %v3606
    %v3608 = vpop.f32.mrb[0].mxu0
    %v3609 = vadd.f32 %v3455, %v3608
    %3610 = vmatprep.mubr.f32.mxu0 %v3436
    %3611 = vmatmul.mubr.f32.gmra.mrb[0].mxu0 %v3435
    %v3612 = vpop.f32.mrb[0].mxu0
    %v3613 = vadd.f32 %v3451, %v3612
    %v3614 = vpop.f32.mrb[0].mxu0
    %v3615 = vadd.f32 %v3455, %v3614
    %3616 = vmatprep.mubr.f32.mxu0 %v3440
    %3617 = vmatmul.mubr.f32.gmra.mrb[0].mxu0 %v3439
    %v3618 = vpop.f32.mrb[0].mxu0
    %v3619 = vadd.f32 %v3451, %v3618
    %v3620 = vpop.f32.mrb[0].mxu0
    %v3621 = vadd.f32 %v3455, %v3620
    %3622 = vmatprep.mubr.f32.mxu0 %v3444
    %3623 = vmatmul.mubr.f32.gmra.mrb[0].mxu0 %v3443
    %v3624 = vpop.f32.mrb[0].mxu0
    %v3625 = vadd.f32 %v3451, %v3624
    %v3626 = vpop.f32.mrb[0].mxu0
    %v3627 = vadd.f32 %v3455, %v3626
    %3628 = vdwg.mxu0
    %3629 = vmatprep.subr.mxu0 %v2587
    %3630 = vmatpush1.msra.mxu0 %v2586
    %3631 = vmatprep.subr.mxu0 %v2591
    %3632 = vmatpush1.msra.mxu0 %v2590
    %3633 = vmatprep.subr.mxu0 %v2595
    %3634 = vmatpush1.msra.mxu0 %v2594
    %3635 = vmatprep.subr.mxu0 %v2599
    %3636 = vmatpush1.msra.mxu0 %v2598
    %3637 = vmatprep.subr.mxu0 %v2603
    %3638 = vmatpush1.msra.mxu0 %v2602
    %3639 = vmatprep.subr.mxu0 %v2607
    %3640 = vmatpush1.msra.mxu0 %v2606
    %3641 = vmatprep.subr.mxu0 %v2611
    %3642 = vmatpush1.msra.mxu0 %v2610
    %3643 = vmatprep.subr.mxu0 %v2615
    %3644 = vmatpush1.msra.mxu0 %v2614
    %3645 = vmatprep.subr.mxu0 %v2619
    %3646 = vmatpush1.msra.mxu0 %v2618
    %3647 = vmatprep.subr.mxu0 %v2623
    %3648 = vmatpush1.msra.mxu0 %v2622
    %3649 = vmatprep.subr.mxu0 %v2627
    %3650 = vmatpush1.msra.mxu0 %v2626
    %3651 = vmatprep.subr.mxu0 %v2631
    %3652 = vmatpush1.msra.mxu0 %v2630
    %3653 = vmatprep.subr.mxu0 %v2635
    %3654 = vmatpush1.msra.mxu0 %v2634
    %3655 = vmatprep.subr.mxu0 %v2639
    %3656 = vmatpush1.msra.mxu0 %v2638
    %3657 = vmatprep.subr.mxu0 %v2643
    %3658 = vmatpush1.msra.mxu0 %v2642
    %3659 = vmatprep.subr.mxu0 %v2647
    %3660 = vmatpush1.msra.mxu0 %v2646
    %3661 = vmatprep.subr.mxu0 %v2651
    %3662 = vmatpush1.msra.mxu0 %v2650
    %3663 = vmatprep.subr.mxu0 %v2655
    %3664 = vmatpush1.msra.mxu0 %v2654
    %3665 = vmatprep.subr.mxu0 %v2659
    %3666 = vmatpush1.msra.mxu0 %v2658
    %3667 = vmatprep.subr.mxu0 %v2663
    %3668 = vmatpush1.msra.mxu0 %v2662
    %3669 = vmatprep.subr.mxu0 %v2667
    %3670 = vmatpush1.msra.mxu0 %v2666
    %3671 = vmatprep.subr.mxu0 %v2671
    %3672 = vmatpush1.msra.mxu0 %v2670
    %3673 = vmatprep.subr.mxu0 %v2675
    %3674 = vmatpush1.msra.mxu0 %v2674
    %3675 = vmatprep.subr.mxu0 %v2679
    %3676 = vmatpush1.msra.mxu0 %v2678
    %3677 = vmatprep.subr.mxu0 %v2683
    %3678 = vmatpush1.msra.mxu0 %v2682
    %3679 = vmatprep.subr.mxu0 %v2687
    %3680 = vmatpush1.msra.mxu0 %v2686
    %3681 = vmatprep.subr.mxu0 %v2691
    %3682 = vmatpush1.msra.mxu0 %v2690
    %3683 = vmatprep.subr.mxu0 %v2695
    %3684 = vmatpush1.msra.mxu0 %v2694
    %3685 = vmatprep.subr.mxu0 %v2699
    %3686 = vmatpush1.msra.mxu0 %v2698
    %3687 = vmatprep.subr.mxu0 %v2703
    %3688 = vmatpush1.msra.mxu0 %v2702
    %3689 = vmatprep.subr.mxu0 %v2707
    %3690 = vmatpush1.msra.mxu0 %v2706
    %3691 = vmatprep.subr.mxu0 %v2711
    %3692 = vmatpush1.msra.mxu0 %v2710
    %3693 = vmatprep.mubr.f32.mxu0 %v3386
    %3694 = vmatmul.mubr.f32.gmra.mrb[0].mxu0 %v3385
    %v3695 = vpop.f32.mrb[0].mxu0
    %v3696 = vadd.f32 %v3535, %v3695
    %v3697 = vpop.f32.mrb[0].mxu0
    %v3698 = vadd.f32 %v3537, %v3697
    %3699 = vmatprep.mubr.f32.mxu0 %v3390
    %3700 = vmatmul.mubr.f32.gmra.mrb[0].mxu0 %v3389
    %v3701 = vpop.f32.mrb[0].mxu0
    %v3702 = vadd.f32 %v3541, %v3701
    %v3703 = vpop.f32.mrb[0].mxu0
    %v3704 = vadd.f32 %v3543, %v3703
    %3705 = vmatprep.mubr.f32.mxu0 %v3394
    %3706 = vmatmul.mubr.f32.gmra.mrb[0].mxu0 %v3393
    %v3707 = vpop.f32.mrb[0].mxu0
    %v3708 = vadd.f32 %v3547, %v3707
    %v3709 = vpop.f32.mrb[0].mxu0
    %v3710 = vadd.f32 %v3549, %v3709
    %3711 = vmatprep.mubr.f32.mxu0 %v3398
    %3712 = vmatmul.mubr.f32.gmra.mrb[0].mxu0 %v3397
    %v3713 = vpop.f32.mrb[0].mxu0
    %v3714 = vadd.f32 %v3553, %v3713
    %v3715 = vpop.f32.mrb[0].mxu0
    %v3716 = vadd.f32 %v3555, %v3715
    %3717 = vmatprep.mubr.f32.mxu0 %v3402
    %3718 = vmatmul.mubr.f32.gmra.mrb[0].mxu0 %v3401
    %v3719 = vpop.f32.mrb[0].mxu0
    %v3720 = vadd.f32 %v3559, %v3719
    %v3721 = vpop.f32.mrb[0].mxu0
    %v3722 = vadd.f32 %v3561, %v3721
    %3723 = vmatprep.mubr.f32.mxu0 %v3406
    %3724 = vmatmul.mubr.f32.gmra.mrb[0].mxu0 %v3405
    %v3725 = vpop.f32.mrb[0].mxu0
    %v3726 = vadd.f32 %v3565, %v3725
    %v3727 = vpop.f32.mrb[0].mxu0
    %v3728 = vadd.f32 %v3567, %v3727
    %3729 = vmatprep.mubr.f32.mxu0 %v3410
    %3730 = vmatmul.mubr.f32.gmra.mrb[0].mxu0 %v3409
    %v3731 = vpop.f32.mrb[0].mxu0
    %v3732 = vadd.f32 %v3571, %v3731
    %v3733 = vpop.f32.mrb[0].mxu0
    %v3734 = vadd.f32 %v3573, %v3733
    %3735 = vmatprep.mubr.f32.mxu0 %v3414
    %3736 = vmatmul.mubr.f32.gmra.mrb[0].mxu0 %v3413
    %v3737 = vpop.f32.mrb[0].mxu0
    %v3738 = vadd.f32 %v3577, %v3737
    %v3739 = vpop.f32.mrb[0].mxu0
    %v3740 = vadd.f32 %v3579, %v3739
    %3741 = vmatprep.mubr.f32.mxu0 %v3418
    %3742 = vmatmul.mubr.f32.gmra.mrb[0].mxu0 %v3417
    %v3743 = vpop.f32.mrb[0].mxu0
    %v3744 = vadd.f32 %v3583, %v3743
    %v3745 = vpop.f32.mrb[0].mxu0
    %v3746 = vadd.f32 %v3585, %v3745
    %3747 = vmatprep.mubr.f32.mxu0 %v3422
    %3748 = vmatmul.mubr.f32.gmra.mrb[0].mxu0 %v3421
    %v3749 = vpop.f32.mrb[0].mxu0
    %v3750 = vadd.f32 %v3589, %v3749
    %v3751 = vpop.f32.mrb[0].mxu0
    %v3752 = vadd.f32 %v3591, %v3751
    %3753 = vmatprep.mubr.f32.mxu0 %v3426
    %3754 = vmatmul.mubr.f32.gmra.mrb[0].mxu0 %v3425
    %v3755 = vpop.f32.mrb[0].mxu0
    %v3756 = vadd.f32 %v3595, %v3755
    %v3757 = vpop.f32.mrb[0].mxu0
    %v3758 = vadd.f32 %v3597, %v3757
    %3759 = vmatprep.mubr.f32.mxu0 %v3430
    %3760 = vmatmul.mubr.f32.gmra.mrb[0].mxu0 %v3429
    %v3761 = vpop.f32.mrb[0].mxu0
    %v3762 = vadd.f32 %v3601, %v3761
    %v3763 = vpop.f32.mrb[0].mxu0
    %v3764 = vadd.f32 %v3603, %v3763
    %3765 = vmatprep.mubr.f32.mxu0 %v3434
    %3766 = vmatmul.mubr.f32.gmra.mrb[0].mxu0 %v3433
    %v3767 = vpop.f32.mrb[0].mxu0
    %v3768 = vadd.f32 %v3607, %v3767
    %v3769 = vpop.f32.mrb[0].mxu0
    %v3770 = vadd.f32 %v3609, %v3769
    %3771 = vmatprep.mubr.f32.mxu0 %v3438
    %3772 = vmatmul.mubr.f32.gmra.mrb[0].mxu0 %v3437
    %v3773 = vpop.f32.mrb[0].mxu0
    %v3774 = vadd.f32 %v3613, %v3773
    %v3775 = vpop.f32.mrb[0].mxu0
    %v3776 = vadd.f32 %v3615, %v3775
    %3777 = vmatprep.mubr.f32.mxu0 %v3442
    %3778 = vmatmul.mubr.f32.gmra.mrb[0].mxu0 %v3441
    %v3779 = vpop.f32.mrb[0].mxu0
    %v3780 = vadd.f32 %v3619, %v3779
    %v3781 = vpop.f32.mrb[0].mxu0
    %v3782 = vadd.f32 %v3621, %v3781
    %3783 = vmatprep.mubr.f32.mxu0 %v3446
    %3784 = vmatmul.mubr.f32.gmra.mrb[0].mxu0 %v3445
    %v3785 = vpop.f32.mrb[0].mxu0
    %v3786 = vadd.f32 %v3625, %v3785
    %v3787 = vpop.f32.mrb[0].mxu0
    %v3788 = vadd.f32 %v3627, %v3787
    %3789 = vdwg.mxu0
    %3790 = vmatprep.subr.mxu0 %v2461
    %3791 = vmatpush1.msra.mxu0 %v2460
    %3792 = vmatprep.subr.mxu0 %v2465
    %3793 = vmatpush1.msra.mxu0 %v2464
    %3794 = vmatprep.subr.mxu0 %v2469
    %3795 = vmatpush1.msra.mxu0 %v2468
    %3796 = vmatprep.subr.mxu0 %v2473
    %3797 = vmatpush1.msra.mxu0 %v2472
    %3798 = vmatprep.subr.mxu0 %v2477
    %3799 = vmatpush1.msra.mxu0 %v2476
    %3800 = vmatprep.subr.mxu0 %v2481
    %3801 = vmatpush1.msra.mxu0 %v2480
    %3802 = vmatprep.subr.mxu0 %v2485
    %3803 = vmatpush1.msra.mxu0 %v2484
    %3804 = vmatprep.subr.mxu0 %v2489
    %3805 = vmatpush1.msra.mxu0 %v2488
    %3806 = vmatprep.subr.mxu0 %v2493
    %3807 = vmatpush1.msra.mxu0 %v2492
    %3808 = vmatprep.subr.mxu0 %v2497
    %3809 = vmatpush1.msra.mxu0 %v2496
    %3810 = vmatprep.subr.mxu0 %v2501
    %3811 = vmatpush1.msra.mxu0 %v2500
    %3812 = vmatprep.subr.mxu0 %v2505
    %3813 = vmatpush1.msra.mxu0 %v2504
    %3814 = vmatprep.subr.mxu0 %v2509
    %3815 = vmatpush1.msra.mxu0 %v2508
    %3816 = vmatprep.subr.mxu0 %v2513
    %3817 = vmatpush1.msra.mxu0 %v2512
    %3818 = vmatprep.subr.mxu0 %v2517
    %3819 = vmatpush1.msra.mxu0 %v2516
    %3820 = vmatprep.subr.mxu0 %v2521
    %3821 = vmatpush1.msra.mxu0 %v2520
    %3822 = vmatprep.subr.mxu0 %v2525
    %3823 = vmatpush1.msra.mxu0 %v2524
    %3824 = vmatprep.subr.mxu0 %v2529
    %3825 = vmatpush1.msra.mxu0 %v2528
    %3826 = vmatprep.subr.mxu0 %v2533
    %3827 = vmatpush1.msra.mxu0 %v2532
    %3828 = vmatprep.subr.mxu0 %v2537
    %3829 = vmatpush1.msra.mxu0 %v2536
    %3830 = vmatprep.subr.mxu0 %v2541
    %3831 = vmatpush1.msra.mxu0 %v2540
    %3832 = vmatprep.subr.mxu0 %v2545
    %3833 = vmatpush1.msra.mxu0 %v2544
    %3834 = vmatprep.subr.mxu0 %v2549
    %3835 = vmatpush1.msra.mxu0 %v2548
    %3836 = vmatprep.subr.mxu0 %v2553
    %3837 = vmatpush1.msra.mxu0 %v2552
    %3838 = vmatprep.subr.mxu0 %v2557
    %3839 = vmatpush1.msra.mxu0 %v2556
    %3840 = vmatprep.subr.mxu0 %v2561
    %3841 = vmatpush1.msra.mxu0 %v2560
    %3842 = vmatprep.subr.mxu0 %v2565
    %3843 = vmatpush1.msra.mxu0 %v2564
    %3844 = vmatprep.subr.mxu0 %v2569
    %3845 = vmatpush1.msra.mxu0 %v2568
    %3846 = vmatprep.subr.mxu0 %v2573
    %3847 = vmatpush1.msra.mxu0 %v2572
    %3848 = vmatprep.subr.mxu0 %v2577
    %3849 = vmatpush1.msra.mxu0 %v2576
    %3850 = vmatprep.subr.mxu0 %v2581
    %3851 = vmatpush1.msra.mxu0 %v2580
    %3852 = vmatprep.subr.mxu0 %v2585
    %3853 = vmatpush1.msra.mxu0 %v2584
    %3854 = vmatprep.mubr.f32.mxu0 %v3384
    %3855 = vmatmul.mubr.f32.gmra.mrb[0].mxu0 %v3383
    %v3856 = vpop.f32.mrb[0].mxu0
    %v3857 = vadd.f32 %v3459, %v3856
    %v3858 = vpop.f32.mrb[0].mxu0
    %v3859 = vadd.f32 %v3463, %v3858
    %3860 = vmatprep.mubr.f32.mxu0 %v3388
    %3861 = vmatmul.mubr.f32.gmra.mrb[0].mxu0 %v3387
    %v3862 = vpop.f32.mrb[0].mxu0
    %v3863 = vadd.f32 %v3459, %v3862
    %v3864 = vpop.f32.mrb[0].mxu0
    %v3865 = vadd.f32 %v3463, %v3864
    %3866 = vmatprep.mubr.f32.mxu0 %v3392
    %3867 = vmatmul.mubr.f32.gmra.mrb[0].mxu0 %v3391
    %v3868 = vpop.f32.mrb[0].mxu0
    %v3869 = vadd.f32 %v3459, %v3868
    %v3870 = vpop.f32.mrb[0].mxu0
    %v3871 = vadd.f32 %v3463, %v3870
    %3872 = vmatprep.mubr.f32.mxu0 %v3396
    %3873 = vmatmul.mubr.f32.gmra.mrb[0].mxu0 %v3395
    %v3874 = vpop.f32.mrb[0].mxu0
    %v3875 = vadd.f32 %v3459, %v3874
    %v3876 = vpop.f32.mrb[0].mxu0
    %v3877 = vadd.f32 %v3463, %v3876
    %3878 = vmatprep.mubr.f32.mxu0 %v3400
    %3879 = vmatmul.mubr.f32.gmra.mrb[0].mxu0 %v3399
    %v3880 = vpop.f32.mrb[0].mxu0
    %v3881 = vadd.f32 %v3459, %v3880
    %v3882 = vpop.f32.mrb[0].mxu0
    %v3883 = vadd.f32 %v3463, %v3882
    %3884 = vmatprep.mubr.f32.mxu0 %v3404
    %3885 = vmatmul.mubr.f32.gmra.mrb[0].mxu0 %v3403
    %v3886 = vpop.f32.mrb[0].mxu0
    %v3887 = vadd.f32 %v3459, %v3886
    %v3888 = vpop.f32.mrb[0].mxu0
    %v3889 = vadd.f32 %v3463, %v3888
    %3890 = vmatprep.mubr.f32.mxu0 %v3408
    %3891 = vmatmul.mubr.f32.gmra.mrb[0].mxu0 %v3407
    %v3892 = vpop.f32.mrb[0].mxu0
    %v3893 = vadd.f32 %v3459, %v3892
    %v3894 = vpop.f32.mrb[0].mxu0
    %v3895 = vadd.f32 %v3463, %v3894
    %3896 = vmatprep.mubr.f32.mxu0 %v3412
    %3897 = vmatmul.mubr.f32.gmra.mrb[0].mxu0 %v3411
    %v3898 = vpop.f32.mrb[0].mxu0
    %v3899 = vadd.f32 %v3459, %v3898
    %v3900 = vpop.f32.mrb[0].mxu0
    %v3901 = vadd.f32 %v3463, %v3900
    %3902 = vmatprep.mubr.f32.mxu0 %v3416
    %3903 = vmatmul.mubr.f32.gmra.mrb[0].mxu0 %v3415
    %v3904 = vpop.f32.mrb[0].mxu0
    %v3905 = vadd.f32 %v3459, %v3904
    %v3906 = vpop.f32.mrb[0].mxu0
    %v3907 = vadd.f32 %v3463, %v3906
    %3908 = vmatprep.mubr.f32.mxu0 %v3420
    %3909 = vmatmul.mubr.f32.gmra.mrb[0].mxu0 %v3419
    %v3910 = vpop.f32.mrb[0].mxu0
    %v3911 = vadd.f32 %v3459, %v3910
    %v3912 = vpop.f32.mrb[0].mxu0
    %v3913 = vadd.f32 %v3463, %v3912
    %3914 = vmatprep.mubr.f32.mxu0 %v3424
    %3915 = vmatmul.mubr.f32.gmra.mrb[0].mxu0 %v3423
    %v3916 = vpop.f32.mrb[0].mxu0
    %v3917 = vadd.f32 %v3459, %v3916
    %v3918 = vpop.f32.mrb[0].mxu0
    %v3919 = vadd.f32 %v3463, %v3918
    %3920 = vmatprep.mubr.f32.mxu0 %v3428
    %3921 = vmatmul.mubr.f32.gmra.mrb[0].mxu0 %v3427
    %v3922 = vpop.f32.mrb[0].mxu0
    %v3923 = vadd.f32 %v3459, %v3922
    %v3924 = vpop.f32.mrb[0].mxu0
    %v3925 = vadd.f32 %v3463, %v3924
    %3926 = vmatprep.mubr.f32.mxu0 %v3432
    %3927 = vmatmul.mubr.f32.gmra.mrb[0].mxu0 %v3431
    %v3928 = vpop.f32.mrb[0].mxu0
    %v3929 = vadd.f32 %v3459, %v3928
    %v3930 = vpop.f32.mrb[0].mxu0
    %v3931 = vadd.f32 %v3463, %v3930
    %3932 = vmatprep.mubr.f32.mxu0 %v3436
    %3933 = vmatmul.mubr.f32.gmra.mrb[0].mxu0 %v3435
    %v3934 = vpop.f32.mrb[0].mxu0
    %v3935 = vadd.f32 %v3459, %v3934
    %v3936 = vpop.f32.mrb[0].mxu0
    %v3937 = vadd.f32 %v3463, %v3936
    %3938 = vmatprep.mubr.f32.mxu0 %v3440
    %3939 = vmatmul.mubr.f32.gmra.mrb[0].mxu0 %v3439
    %v3940 = vpop.f32.mrb[0].mxu0
    %v3941 = vadd.f32 %v3459, %v3940
    %v3942 = vpop.f32.mrb[0].mxu0
    %v3943 = vadd.f32 %v3463, %v3942
    %3944 = vmatprep.mubr.f32.mxu0 %v3444
    %3945 = vmatmul.mubr.f32.gmra.mrb[0].mxu0 %v3443
    %v3946 = vpop.f32.mrb[0].mxu0
    %v3947 = vadd.f32 %v3459, %v3946
    %v3948 = vpop.f32.mrb[0].mxu0
    %v3949 = vadd.f32 %v3463, %v3948
    %3950 = vdwg.mxu0
    %3951 = vmatprep.subr.mxu0 %v2589
    %3952 = vmatpush1.msra.mxu0 %v2588
    %3953 = vmatprep.subr.mxu0 %v2593
    %3954 = vmatpush1.msra.mxu0 %v2592
    %3955 = vmatprep.subr.mxu0 %v2597
    %3956 = vmatpush1.msra.mxu0 %v2596
    %3957 = vmatprep.subr.mxu0 %v2601
    %3958 = vmatpush1.msra.mxu0 %v2600
    %3959 = vmatprep.subr.mxu0 %v2605
    %3960 = vmatpush1.msra.mxu0 %v2604
    %3961 = vmatprep.subr.mxu0 %v2609
    %3962 = vmatpush1.msra.mxu0 %v2608
    %3963 = vmatprep.subr.mxu0 %v2613
    %3964 = vmatpush1.msra.mxu0 %v2612
    %3965 = vmatprep.subr.mxu0 %v2617
    %3966 = vmatpush1.msra.mxu0 %v2616
    %3967 = vmatprep.subr.mxu0 %v2621
    %3968 = vmatpush1.msra.mxu0 %v2620
    %3969 = vmatprep.subr.mxu0 %v2625
    %3970 = vmatpush1.msra.mxu0 %v2624
    %3971 = vmatprep.subr.mxu0 %v2629
    %3972 = vmatpush1.msra.mxu0 %v2628
    %3973 = vmatprep.subr.mxu0 %v2633
    %3974 = vmatpush1.msra.mxu0 %v2632
    %3975 = vmatprep.subr.mxu0 %v2637
    %3976 = vmatpush1.msra.mxu0 %v2636
    %3977 = vmatprep.subr.mxu0 %v2641
    %3978 = vmatpush1.msra.mxu0 %v2640
    %3979 = vmatprep.subr.mxu0 %v2645
    %3980 = vmatpush1.msra.mxu0 %v2644
    %3981 = vmatprep.subr.mxu0 %v2649
    %3982 = vmatpush1.msra.mxu0 %v2648
    %3983 = vmatprep.subr.mxu0 %v2653
    %3984 = vmatpush1.msra.mxu0 %v2652
    %3985 = vmatprep.subr.mxu0 %v2657
    %3986 = vmatpush1.msra.mxu0 %v2656
    %3987 = vmatprep.subr.mxu0 %v2661
    %3988 = vmatpush1.msra.mxu0 %v2660
    %3989 = vmatprep.subr.mxu0 %v2665
    %3990 = vmatpush1.msra.mxu0 %v2664
    %3991 = vmatprep.subr.mxu0 %v2669
    %3992 = vmatpush1.msra.mxu0 %v2668
    %3993 = vmatprep.subr.mxu0 %v2673
    %3994 = vmatpush1.msra.mxu0 %v2672
    %3995 = vmatprep.subr.mxu0 %v2677
    %3996 = vmatpush1.msra.mxu0 %v2676
    %3997 = vmatprep.subr.mxu0 %v2681
    %3998 = vmatpush1.msra.mxu0 %v2680
    %3999 = vmatprep.subr.mxu0 %v2685
    %4000 = vmatpush1.msra.mxu0 %v2684
    %4001 = vmatprep.subr.mxu0 %v2689
    %4002 = vmatpush1.msra.mxu0 %v2688
    %4003 = vmatprep.subr.mxu0 %v2693
    %4004 = vmatpush1.msra.mxu0 %v2692
    %4005 = vmatprep.subr.mxu0 %v2697
    %4006 = vmatpush1.msra.mxu0 %v2696
    %4007 = vmatprep.subr.mxu0 %v2701
    %4008 = vmatpush1.msra.mxu0 %v2700
    %4009 = vmatprep.subr.mxu0 %v2705
    %4010 = vmatpush1.msra.mxu0 %v2704
    %4011 = vmatprep.subr.mxu0 %v2709
    %4012 = vmatpush1.msra.mxu0 %v2708
    %4013 = vmatprep.subr.mxu0 %v2713
    %4014 = vmatpush1.msra.mxu0 %v2712
    %4015 = vmatprep.mubr.f32.mxu0 %v3386
    %4016 = vmatmul.mubr.f32.gmra.mrb[0].mxu0 %v3385
    %v4017 = vpop.f32.mrb[0].mxu0
    %v4018 = vadd.f32 %v3857, %v4017
    %v4019 = vpop.f32.mrb[0].mxu0
    %v4020 = vadd.f32 %v3859, %v4019
    %4021 = vmatprep.mubr.f32.mxu0 %v3390
    %4022 = vmatmul.mubr.f32.gmra.mrb[0].mxu0 %v3389
    %v4023 = vpop.f32.mrb[0].mxu0
    %v4024 = vadd.f32 %v3863, %v4023
    %v4025 = vpop.f32.mrb[0].mxu0
    %v4026 = vadd.f32 %v3865, %v4025
    %4027 = vmatprep.mubr.f32.mxu0 %v3394
    %4028 = vmatmul.mubr.f32.gmra.mrb[0].mxu0 %v3393
    %v4029 = vpop.f32.mrb[0].mxu0
    %v4030 = vadd.f32 %v3869, %v4029
    %v4031 = vpop.f32.mrb[0].mxu0
    %v4032 = vadd.f32 %v3871, %v4031
    %4033 = vmatprep.mubr.f32.mxu0 %v3398
    %4034 = vmatmul.mubr.f32.gmra.mrb[0].mxu0 %v3397
    %v4035 = vpop.f32.mrb[0].mxu0
    %v4036 = vadd.f32 %v3875, %v4035
    %v4037 = vpop.f32.mrb[0].mxu0
    %v4038 = vadd.f32 %v3877, %v4037
    %4039 = vmatprep.mubr.f32.mxu0 %v3402
    %4040 = vmatmul.mubr.f32.gmra.mrb[0].mxu0 %v3401
    %v4041 = vpop.f32.mrb[0].mxu0
    %v4042 = vadd.f32 %v3881, %v4041
    %v4043 = vpop.f32.mrb[0].mxu0
    %v4044 = vadd.f32 %v3883, %v4043
    %4045 = vmatprep.mubr.f32.mxu0 %v3406
    %4046 = vmatmul.mubr.f32.gmra.mrb[0].mxu0 %v3405
    %v4047 = vpop.f32.mrb[0].mxu0
    %v4048 = vadd.f32 %v3887, %v4047
    %v4049 = vpop.f32.mrb[0].mxu0
    %v4050 = vadd.f32 %v3889, %v4049
    %4051 = vmatprep.mubr.f32.mxu0 %v3410
    %4052 = vmatmul.mubr.f32.gmra.mrb[0].mxu0 %v3409
    %v4053 = vpop.f32.mrb[0].mxu0
    %v4054 = vadd.f32 %v3893, %v4053
    %v4055 = vpop.f32.mrb[0].mxu0
    %v4056 = vadd.f32 %v3895, %v4055
    %4057 = vmatprep.mubr.f32.mxu0 %v3414
    %4058 = vmatmul.mubr.f32.gmra.mrb[0].mxu0 %v3413
    %v4059 = vpop.f32.mrb[0].mxu0
    %v4060 = vadd.f32 %v3899, %v4059
    %v4061 = vpop.f32.mrb[0].mxu0
    %v4062 = vadd.f32 %v3901, %v4061
    %4063 = vmatprep.mubr.f32.mxu0 %v3418
    %4064 = vmatmul.mubr.f32.gmra.mrb[0].mxu0 %v3417
    %v4065 = vpop.f32.mrb[0].mxu0
    %v4066 = vadd.f32 %v3905, %v4065
    %v4067 = vpop.f32.mrb[0].mxu0
    %v4068 = vadd.f32 %v3907, %v4067
    %4069 = vmatprep.mubr.f32.mxu0 %v3422
    %4070 = vmatmul.mubr.f32.gmra.mrb[0].mxu0 %v3421
    %v4071 = vpop.f32.mrb[0].mxu0
    %v4072 = vadd.f32 %v3911, %v4071
    %v4073 = vpop.f32.mrb[0].mxu0
    %v4074 = vadd.f32 %v3913, %v4073
    %4075 = vmatprep.mubr.f32.mxu0 %v3426
    %4076 = vmatmul.mubr.f32.gmra.mrb[0].mxu0 %v3425
    %v4077 = vpop.f32.mrb[0].mxu0
    %v4078 = vadd.f32 %v3917, %v4077
    %v4079 = vpop.f32.mrb[0].mxu0
    %v4080 = vadd.f32 %v3919, %v4079
    %4081 = vmatprep.mubr.f32.mxu0 %v3430
    %4082 = vmatmul.mubr.f32.gmra.mrb[0].mxu0 %v3429
    %v4083 = vpop.f32.mrb[0].mxu0
    %v4084 = vadd.f32 %v3923, %v4083
    %v4085 = vpop.f32.mrb[0].mxu0
    %v4086 = vadd.f32 %v3925, %v4085
    %4087 = vmatprep.mubr.f32.mxu0 %v3434
    %4088 = vmatmul.mubr.f32.gmra.mrb[0].mxu0 %v3433
    %v4089 = vpop.f32.mrb[0].mxu0
    %v4090 = vadd.f32 %v3929, %v4089
    %v4091 = vpop.f32.mrb[0].mxu0
    %v4092 = vadd.f32 %v3931, %v4091
    %4093 = vmatprep.mubr.f32.mxu0 %v3438
    %4094 = vmatmul.mubr.f32.gmra.mrb[0].mxu0 %v3437
    %v4095 = vpop.f32.mrb[0].mxu0
    %v4096 = vadd.f32 %v3935, %v4095
    %v4097 = vpop.f32.mrb[0].mxu0
    %v4098 = vadd.f32 %v3937, %v4097
    %4099 = vmatprep.mubr.f32.mxu0 %v3442
    %4100 = vmatmul.mubr.f32.gmra.mrb[0].mxu0 %v3441
    %v4101 = vpop.f32.mrb[0].mxu0
    %v4102 = vadd.f32 %v3941, %v4101
    %v4103 = vpop.f32.mrb[0].mxu0
    %v4104 = vadd.f32 %v3943, %v4103
    %4105 = vmatprep.mubr.f32.mxu0 %v3446
    %4106 = vmatmul.mubr.f32.gmra.mrb[0].mxu0 %v3445
    %v4107 = vpop.f32.mrb[0].mxu0
    %v4108 = vadd.f32 %v3947, %v4107
    %v4109 = vpop.f32.mrb[0].mxu0
    %v4110 = vadd.f32 %v3949, %v4109
    %4111 = vdwg.mxu0
    %v4112 = vadd.f32 %v3696, %v2138
    %v4113 = vadd.f32 %v3698, %v2139
    %v4114 = vadd.f32 %v4018, %v2140
    %v4115 = vadd.f32 %v4020, %v2141
    %v4116 = vadd.f32 %v3702, %v2142
    %v4117 = vadd.f32 %v3704, %v2143
    %v4118 = vadd.f32 %v4024, %v2144
    %v4119 = vadd.f32 %v4026, %v2145
    %v4120 = vadd.f32 %v3708, %v2146
    %v4121 = vadd.f32 %v3710, %v2147
    %v4122 = vadd.f32 %v4030, %v2148
    %v4123 = vadd.f32 %v4032, %v2149
    %v4124 = vadd.f32 %v3714, %v2150
    %v4125 = vadd.f32 %v3716, %v2151
    %v4126 = vadd.f32 %v4036, %v2152
    %v4127 = vadd.f32 %v4038, %v2153
    %v4128 = vadd.f32 %v3720, %v2154
    %v4129 = vadd.f32 %v3722, %v2155
    %v4130 = vadd.f32 %v4042, %v2156
    %v4131 = vadd.f32 %v4044, %v2157
    %v4132 = vadd.f32 %v3726, %v2158
    %v4133 = vadd.f32 %v3728, %v2159
    %v4134 = vadd.f32 %v4048, %v2160
    %v4135 = vadd.f32 %v4050, %v2161
    %v4136 = vadd.f32 %v3732, %v2162
    %v4137 = vadd.f32 %v3734, %v2163
    %v4138 = vadd.f32 %v4054, %v2164
    %v4139 = vadd.f32 %v4056, %v2165
    %v4140 = vadd.f32 %v3738, %v2166
    %v4141 = vadd.f32 %v3740, %v2167
    %v4142 = vadd.f32 %v4060, %v2168
    %v4143 = vadd.f32 %v4062, %v2169
    %v4144 = vadd.f32 %v3744, %v2170
    %v4145 = vadd.f32 %v3746, %v2171
    %v4146 = vadd.f32 %v4066, %v2172
    %v4147 = vadd.f32 %v4068, %v2173
    %v4148 = vadd.f32 %v3750, %v2174
    %v4149 = vadd.f32 %v3752, %v2175
    %v4150 = vadd.f32 %v4072, %v2176
    %v4151 = vadd.f32 %v4074, %v2177
    %v4152 = vadd.f32 %v3756, %v2178
    %v4153 = vadd.f32 %v3758, %v2179
    %v4154 = vadd.f32 %v4078, %v2180
    %v4155 = vadd.f32 %v4080, %v2181
    %v4156 = vadd.f32 %v3762, %v2182
    %v4157 = vadd.f32 %v3764, %v2183
    %v4158 = vadd.f32 %v4084, %v2184
    %v4159 = vadd.f32 %v4086, %v2185
    %v4160 = vadd.f32 %v3768, %v2186
    %v4161 = vadd.f32 %v3770, %v2187
    %v4162 = vadd.f32 %v4090, %v2188
    %v4163 = vadd.f32 %v4092, %v2189
    %v4164 = vadd.f32 %v3774, %v2190
    %v4165 = vadd.f32 %v3776, %v2191
    %v4166 = vadd.f32 %v4096, %v2192
    %v4167 = vadd.f32 %v4098, %v2193
    %v4168 = vadd.f32 %v3780, %v2194
    %v4169 = vadd.f32 %v3782, %v2195
    %v4170 = vadd.f32 %v4102, %v2196
    %v4171 = vadd.f32 %v4104, %v2197
    %v4172 = vadd.f32 %v3786, %v2198
    %v4173 = vadd.f32 %v3788, %v2199
    %v4174 = vadd.f32 %v4108, %v2200
    %v4175 = vadd.f32 %v4110, %v2201
    %v4176 = vmax.f32 %v4112, 0.0
    %v4177 = vmax.f32 %v4113, 0.0
    %v4178 = vmax.f32 %v4114, 0.0
    %v4179 = vmax.f32 %v4115, 0.0
    %v4180 = vmax.f32 %v4116, 0.0
    %v4181 = vmax.f32 %v4117, 0.0
    %v4182 = vmax.f32 %v4118, 0.0
    %v4183 = vmax.f32 %v4119, 0.0
    %v4184 = vmax.f32 %v4120, 0.0
    %v4185 = vmax.f32 %v4121, 0.0
    %v4186 = vmax.f32 %v4122, 0.0
    %v4187 = vmax.f32 %v4123, 0.0
    %v4188 = vmax.f32 %v4124, 0.0
    %v4189 = vmax.f32 %v4125, 0.0
    %v4190 = vmax.f32 %v4126, 0.0
    %v4191 = vmax.f32 %v4127, 0.0
    %v4192 = vmax.f32 %v4128, 0.0
    %v4193 = vmax.f32 %v4129, 0.0
    %v4194 = vmax.f32 %v4130, 0.0
    %v4195 = vmax.f32 %v4131, 0.0
    %v4196 = vmax.f32 %v4132, 0.0
    %v4197 = vmax.f32 %v4133, 0.0
    %v4198 = vmax.f32 %v4134, 0.0
    %v4199 = vmax.f32 %v4135, 0.0
    %v4200 = vmax.f32 %v4136, 0.0
    %v4201 = vmax.f32 %v4137, 0.0
    %v4202 = vmax.f32 %v4138, 0.0
    %v4203 = vmax.f32 %v4139, 0.0
    %v4204 = vmax.f32 %v4140, 0.0
    %v4205 = vmax.f32 %v4141, 0.0
    %v4206 = vmax.f32 %v4142, 0.0
    %v4207 = vmax.f32 %v4143, 0.0
    %v4208 = vmax.f32 %v4144, 0.0
    %v4209 = vmax.f32 %v4145, 0.0
    %v4210 = vmax.f32 %v4146, 0.0
    %v4211 = vmax.f32 %v4147, 0.0
    %v4212 = vmax.f32 %v4148, 0.0
    %v4213 = vmax.f32 %v4149, 0.0
    %v4214 = vmax.f32 %v4150, 0.0
    %v4215 = vmax.f32 %v4151, 0.0
    %v4216 = vmax.f32 %v4152, 0.0
    %v4217 = vmax.f32 %v4153, 0.0
    %v4218 = vmax.f32 %v4154, 0.0
    %v4219 = vmax.f32 %v4155, 0.0
    %v4220 = vmax.f32 %v4156, 0.0
    %v4221 = vmax.f32 %v4157, 0.0
    %v4222 = vmax.f32 %v4158, 0.0
    %v4223 = vmax.f32 %v4159, 0.0
    %v4224 = vmax.f32 %v4160, 0.0
    %v4225 = vmax.f32 %v4161, 0.0
    %v4226 = vmax.f32 %v4162, 0.0
    %v4227 = vmax.f32 %v4163, 0.0
    %v4228 = vmax.f32 %v4164, 0.0
    %v4229 = vmax.f32 %v4165, 0.0
    %v4230 = vmax.f32 %v4166, 0.0
    %v4231 = vmax.f32 %v4167, 0.0
    %v4232 = vmax.f32 %v4168, 0.0
    %v4233 = vmax.f32 %v4169, 0.0
    %v4234 = vmax.f32 %v4170, 0.0
    %v4235 = vmax.f32 %v4171, 0.0
    %v4236 = vmax.f32 %v4172, 0.0
    %v4237 = vmax.f32 %v4173, 0.0
    %v4238 = vmax.f32 %v4174, 0.0
    %v4239 = vmax.f32 %v4175, 0.0
    %v4240 = vld [vmem:[#allocation13] sm:$0xff]
    %v4241 = vld [vmem:[#allocation13 + $0x8] sm:$0xff]
    %v4242 = vld [vmem:[#allocation13 + $0x10] sm:$0xff]
    %v4243 = vld [vmem:[#allocation13 + $0x18] sm:$0xff]
    %v4244 = vld [vmem:[#allocation13 + $0x20] sm:$0xff]
    %v4245 = vld [vmem:[#allocation13 + $0x28] sm:$0xff]
    %v4246 = vld [vmem:[#allocation13 + $0x30] sm:$0xff]
    %v4247 = vld [vmem:[#allocation13 + $0x38] sm:$0xff]
    %v4248 = vld [vmem:[#allocation13 + $0x40] sm:$0xff]
    %v4249 = vld [vmem:[#allocation13 + $0x48] sm:$0xff]
    %v4250 = vld [vmem:[#allocation13 + $0x50] sm:$0xff]
    %v4251 = vld [vmem:[#allocation13 + $0x58] sm:$0xff]
    %v4252 = vld [vmem:[#allocation13 + $0x60] sm:$0xff]
    %v4253 = vld [vmem:[#allocation13 + $0x68] sm:$0xff]
    %v4254 = vld [vmem:[#allocation13 + $0x70] sm:$0xff]
    %v4255 = vld [vmem:[#allocation13 + $0x78] sm:$0xff]
    %v4256 = vld [vmem:[#allocation13 + $0x80] sm:$0xff]
    %v4257 = vld [vmem:[#allocation13 + $0x88] sm:$0xff]
    %v4258 = vld [vmem:[#allocation13 + $0x90] sm:$0xff]
    %v4259 = vld [vmem:[#allocation13 + $0x98] sm:$0xff]
    %v4260 = vld [vmem:[#allocation13 + $0xa0] sm:$0xff]
    %v4261 = vld [vmem:[#allocation13 + $0xa8] sm:$0xff]
    %v4262 = vld [vmem:[#allocation13 + $0xb0] sm:$0xff]
    %v4263 = vld [vmem:[#allocation13 + $0xb8] sm:$0xff]
    %v4264 = vld [vmem:[#allocation13 + $0xc0] sm:$0xff]
    %v4265 = vld [vmem:[#allocation13 + $0xc8] sm:$0xff]
    %v4266 = vld [vmem:[#allocation13 + $0xd0] sm:$0xff]
    %v4267 = vld [vmem:[#allocation13 + $0xd8] sm:$0xff]
    %v4268 = vld [vmem:[#allocation13 + $0xe0] sm:$0xff]
    %v4269 = vld [vmem:[#allocation13 + $0xe8] sm:$0xff]
    %v4270 = vld [vmem:[#allocation13 + $0xf0] sm:$0xff]
    %v4271 = vld [vmem:[#allocation13 + $0xf8] sm:$0xff]
    %v4272 = vld [vmem:[#allocation13 + $0x100] sm:$0xff]
    %v4273 = vld [vmem:[#allocation13 + $0x108] sm:$0xff]
    %v4274 = vld [vmem:[#allocation13 + $0x110] sm:$0xff]
    %v4275 = vld [vmem:[#allocation13 + $0x118] sm:$0xff]
    %v4276 = vld [vmem:[#allocation13 + $0x120] sm:$0xff]
    %v4277 = vld [vmem:[#allocation13 + $0x128] sm:$0xff]
    %v4278 = vld [vmem:[#allocation13 + $0x130] sm:$0xff]
    %v4279 = vld [vmem:[#allocation13 + $0x138] sm:$0xff]
    %v4280 = vld [vmem:[#allocation13 + $0x140] sm:$0xff]
    %v4281 = vld [vmem:[#allocation13 + $0x148] sm:$0xff]
    %v4282 = vld [vmem:[#allocation13 + $0x150] sm:$0xff]
    %v4283 = vld [vmem:[#allocation13 + $0x158] sm:$0xff]
    %v4284 = vld [vmem:[#allocation13 + $0x160] sm:$0xff]
    %v4285 = vld [vmem:[#allocation13 + $0x168] sm:$0xff]
    %v4286 = vld [vmem:[#allocation13 + $0x170] sm:$0xff]
    %v4287 = vld [vmem:[#allocation13 + $0x178] sm:$0xff]
    %v4288 = vld [vmem:[#allocation13 + $0x180] sm:$0xff]
    %v4289 = vld [vmem:[#allocation13 + $0x188] sm:$0xff]
    %v4290 = vld [vmem:[#allocation13 + $0x190] sm:$0xff]
    %v4291 = vld [vmem:[#allocation13 + $0x198] sm:$0xff]
    %v4292 = vld [vmem:[#allocation13 + $0x1a0] sm:$0xff]
    %v4293 = vld [vmem:[#allocation13 + $0x1a8] sm:$0xff]
    %v4294 = vld [vmem:[#allocation13 + $0x1b0] sm:$0xff]
    %v4295 = vld [vmem:[#allocation13 + $0x1b8] sm:$0xff]
    %v4296 = vld [vmem:[#allocation13 + $0x1c0] sm:$0xff]
    %v4297 = vld [vmem:[#allocation13 + $0x1c8] sm:$0xff]
    %v4298 = vld [vmem:[#allocation13 + $0x1d0] sm:$0xff]
    %v4299 = vld [vmem:[#allocation13 + $0x1d8] sm:$0xff]
    %v4300 = vld [vmem:[#allocation13 + $0x1e0] sm:$0xff]
    %v4301 = vld [vmem:[#allocation13 + $0x1e8] sm:$0xff]
    %v4302 = vld [vmem:[#allocation13 + $0x1f0] sm:$0xff]
    %v4303 = vld [vmem:[#allocation13 + $0x1f8] sm:$0xff]
    %v4304 = vld [vmem:[#allocation13 + $0x200] sm:$0xff]
    %v4305 = vld [vmem:[#allocation13 + $0x208] sm:$0xff]
    %v4306 = vld [vmem:[#allocation13 + $0x210] sm:$0xff]
    %v4307 = vld [vmem:[#allocation13 + $0x218] sm:$0xff]
    %v4308 = vld [vmem:[#allocation13 + $0x220] sm:$0xff]
    %v4309 = vld [vmem:[#allocation13 + $0x228] sm:$0xff]
    %v4310 = vld [vmem:[#allocation13 + $0x230] sm:$0xff]
    %v4311 = vld [vmem:[#allocation13 + $0x238] sm:$0xff]
    %v4312 = vld [vmem:[#allocation13 + $0x240] sm:$0xff]
    %v4313 = vld [vmem:[#allocation13 + $0x248] sm:$0xff]
    %v4314 = vld [vmem:[#allocation13 + $0x250] sm:$0xff]
    %v4315 = vld [vmem:[#allocation13 + $0x258] sm:$0xff]
    %v4316 = vld [vmem:[#allocation13 + $0x260] sm:$0xff]
    %v4317 = vld [vmem:[#allocation13 + $0x268] sm:$0xff]
    %v4318 = vld [vmem:[#allocation13 + $0x270] sm:$0xff]
    %v4319 = vld [vmem:[#allocation13 + $0x278] sm:$0xff]
    %v4320 = vld [vmem:[#allocation13 + $0x280] sm:$0xff]
    %v4321 = vld [vmem:[#allocation13 + $0x288] sm:$0xff]
    %v4322 = vld [vmem:[#allocation13 + $0x290] sm:$0xff]
    %v4323 = vld [vmem:[#allocation13 + $0x298] sm:$0xff]
    %v4324 = vld [vmem:[#allocation13 + $0x2a0] sm:$0xff]
    %v4325 = vld [vmem:[#allocation13 + $0x2a8] sm:$0xff]
    %v4326 = vld [vmem:[#allocation13 + $0x2b0] sm:$0xff]
    %v4327 = vld [vmem:[#allocation13 + $0x2b8] sm:$0xff]
    %v4328 = vld [vmem:[#allocation13 + $0x2c0] sm:$0xff]
    %v4329 = vld [vmem:[#allocation13 + $0x2c8] sm:$0xff]
    %v4330 = vld [vmem:[#allocation13 + $0x2d0] sm:$0xff]
    %v4331 = vld [vmem:[#allocation13 + $0x2d8] sm:$0xff]
    %v4332 = vld [vmem:[#allocation13 + $0x2e0] sm:$0xff]
    %v4333 = vld [vmem:[#allocation13 + $0x2e8] sm:$0xff]
    %v4334 = vld [vmem:[#allocation13 + $0x2f0] sm:$0xff]
    %v4335 = vld [vmem:[#allocation13 + $0x2f8] sm:$0xff]
    %v4336 = vld [vmem:[#allocation13 + $0x300] sm:$0xff]
    %v4337 = vld [vmem:[#allocation13 + $0x308] sm:$0xff]
    %v4338 = vld [vmem:[#allocation13 + $0x310] sm:$0xff]
    %v4339 = vld [vmem:[#allocation13 + $0x318] sm:$0xff]
    %v4340 = vld [vmem:[#allocation13 + $0x320] sm:$0xff]
    %v4341 = vld [vmem:[#allocation13 + $0x328] sm:$0xff]
    %v4342 = vld [vmem:[#allocation13 + $0x330] sm:$0xff]
    %v4343 = vld [vmem:[#allocation13 + $0x338] sm:$0xff]
    %v4344 = vld [vmem:[#allocation13 + $0x340] sm:$0xff]
    %v4345 = vld [vmem:[#allocation13 + $0x348] sm:$0xff]
    %v4346 = vld [vmem:[#allocation13 + $0x350] sm:$0xff]
    %v4347 = vld [vmem:[#allocation13 + $0x358] sm:$0xff]
    %v4348 = vld [vmem:[#allocation13 + $0x360] sm:$0xff]
    %v4349 = vld [vmem:[#allocation13 + $0x368] sm:$0xff]
    %v4350 = vld [vmem:[#allocation13 + $0x370] sm:$0xff]
    %v4351 = vld [vmem:[#allocation13 + $0x378] sm:$0xff]
    %v4352 = vld [vmem:[#allocation13 + $0x380] sm:$0xff]
    %v4353 = vld [vmem:[#allocation13 + $0x388] sm:$0xff]
    %v4354 = vld [vmem:[#allocation13 + $0x390] sm:$0xff]
    %v4355 = vld [vmem:[#allocation13 + $0x398] sm:$0xff]
    %v4356 = vld [vmem:[#allocation13 + $0x3a0] sm:$0xff]
    %v4357 = vld [vmem:[#allocation13 + $0x3a8] sm:$0xff]
    %v4358 = vld [vmem:[#allocation13 + $0x3b0] sm:$0xff]
    %v4359 = vld [vmem:[#allocation13 + $0x3b8] sm:$0xff]
    %v4360 = vld [vmem:[#allocation13 + $0x3c0] sm:$0xff]
    %v4361 = vld [vmem:[#allocation13 + $0x3c8] sm:$0xff]
    %v4362 = vld [vmem:[#allocation13 + $0x3d0] sm:$0xff]
    %v4363 = vld [vmem:[#allocation13 + $0x3d8] sm:$0xff]
    %v4364 = vld [vmem:[#allocation13 + $0x3e0] sm:$0xff]
    %v4365 = vld [vmem:[#allocation13 + $0x3e8] sm:$0xff]
    %v4366 = vld [vmem:[#allocation13 + $0x3f0] sm:$0xff]
    %v4367 = vld [vmem:[#allocation13 + $0x3f8] sm:$0xff]
    %v4368 = vld [vmem:[#allocation14] sm:$0xff]
    %v4369 = vld [vmem:[#allocation14 + $0x8] sm:$0xff]
    %v4370 = vld [vmem:[#allocation14 + $0x10] sm:$0xff]
    %v4371 = vld [vmem:[#allocation14 + $0x18] sm:$0xff]
    %v4372 = vld [vmem:[#allocation14 + $0x20] sm:$0xff]
    %v4373 = vld [vmem:[#allocation14 + $0x28] sm:$0xff]
    %v4374 = vld [vmem:[#allocation14 + $0x30] sm:$0xff]
    %v4375 = vld [vmem:[#allocation14 + $0x38] sm:$0xff]
    %v4376 = vld [vmem:[#allocation14 + $0x40] sm:$0xff]
    %v4377 = vld [vmem:[#allocation14 + $0x48] sm:$0xff]
    %v4378 = vld [vmem:[#allocation14 + $0x50] sm:$0xff]
    %v4379 = vld [vmem:[#allocation14 + $0x58] sm:$0xff]
    %v4380 = vld [vmem:[#allocation14 + $0x60] sm:$0xff]
    %v4381 = vld [vmem:[#allocation14 + $0x68] sm:$0xff]
    %v4382 = vld [vmem:[#allocation14 + $0x70] sm:$0xff]
    %v4383 = vld [vmem:[#allocation14 + $0x78] sm:$0xff]
    %v4384 = vld [vmem:[#allocation14 + $0x80] sm:$0xff]
    %v4385 = vld [vmem:[#allocation14 + $0x88] sm:$0xff]
    %v4386 = vld [vmem:[#allocation14 + $0x90] sm:$0xff]
    %v4387 = vld [vmem:[#allocation14 + $0x98] sm:$0xff]
    %v4388 = vld [vmem:[#allocation14 + $0xa0] sm:$0xff]
    %v4389 = vld [vmem:[#allocation14 + $0xa8] sm:$0xff]
    %v4390 = vld [vmem:[#allocation14 + $0xb0] sm:$0xff]
    %v4391 = vld [vmem:[#allocation14 + $0xb8] sm:$0xff]
    %v4392 = vld [vmem:[#allocation14 + $0xc0] sm:$0xff]
    %v4393 = vld [vmem:[#allocation14 + $0xc8] sm:$0xff]
    %v4394 = vld [vmem:[#allocation14 + $0xd0] sm:$0xff]
    %v4395 = vld [vmem:[#allocation14 + $0xd8] sm:$0xff]
    %v4396 = vld [vmem:[#allocation14 + $0xe0] sm:$0xff]
    %v4397 = vld [vmem:[#allocation14 + $0xe8] sm:$0xff]
    %v4398 = vld [vmem:[#allocation14 + $0xf0] sm:$0xff]
    %v4399 = vld [vmem:[#allocation14 + $0xf8] sm:$0xff]
    %v4400 = vld [vmem:[#allocation14 + $0x100] sm:$0xff]
    %v4401 = vld [vmem:[#allocation14 + $0x108] sm:$0xff]
    %v4402 = vld [vmem:[#allocation14 + $0x110] sm:$0xff]
    %v4403 = vld [vmem:[#allocation14 + $0x118] sm:$0xff]
    %v4404 = vld [vmem:[#allocation14 + $0x120] sm:$0xff]
    %v4405 = vld [vmem:[#allocation14 + $0x128] sm:$0xff]
    %v4406 = vld [vmem:[#allocation14 + $0x130] sm:$0xff]
    %v4407 = vld [vmem:[#allocation14 + $0x138] sm:$0xff]
    %v4408 = vld [vmem:[#allocation14 + $0x140] sm:$0xff]
    %v4409 = vld [vmem:[#allocation14 + $0x148] sm:$0xff]
    %v4410 = vld [vmem:[#allocation14 + $0x150] sm:$0xff]
    %v4411 = vld [vmem:[#allocation14 + $0x158] sm:$0xff]
    %v4412 = vld [vmem:[#allocation14 + $0x160] sm:$0xff]
    %v4413 = vld [vmem:[#allocation14 + $0x168] sm:$0xff]
    %v4414 = vld [vmem:[#allocation14 + $0x170] sm:$0xff]
    %v4415 = vld [vmem:[#allocation14 + $0x178] sm:$0xff]
    %v4416 = vld [vmem:[#allocation14 + $0x180] sm:$0xff]
    %v4417 = vld [vmem:[#allocation14 + $0x188] sm:$0xff]
    %v4418 = vld [vmem:[#allocation14 + $0x190] sm:$0xff]
    %v4419 = vld [vmem:[#allocation14 + $0x198] sm:$0xff]
    %v4420 = vld [vmem:[#allocation14 + $0x1a0] sm:$0xff]
    %v4421 = vld [vmem:[#allocation14 + $0x1a8] sm:$0xff]
    %v4422 = vld [vmem:[#allocation14 + $0x1b0] sm:$0xff]
    %v4423 = vld [vmem:[#allocation14 + $0x1b8] sm:$0xff]
    %v4424 = vld [vmem:[#allocation14 + $0x1c0] sm:$0xff]
    %v4425 = vld [vmem:[#allocation14 + $0x1c8] sm:$0xff]
    %v4426 = vld [vmem:[#allocation14 + $0x1d0] sm:$0xff]
    %v4427 = vld [vmem:[#allocation14 + $0x1d8] sm:$0xff]
    %v4428 = vld [vmem:[#allocation14 + $0x1e0] sm:$0xff]
    %v4429 = vld [vmem:[#allocation14 + $0x1e8] sm:$0xff]
    %v4430 = vld [vmem:[#allocation14 + $0x1f0] sm:$0xff]
    %v4431 = vld [vmem:[#allocation14 + $0x1f8] sm:$0xff]
    %s4432 = scalar_lea.vmem [#allocation25], 5
    %v4433 = vld [vmem:[%s4432] ss:$8 sm:$0x3]
    %s4434 = scalar_lea.vmem [#allocation25], 6
    %v4435 = vld [vmem:[%s4434] ss:$8 sm:$0x3]
    %v4436 = vld [vmem:[#allocation16] sm:$0xff]
    %v4437 = vld [vmem:[#allocation16 + $0x8] sm:$0xff]
    %v4438 = vld [vmem:[#allocation16 + $0x10] sm:$0xff]
    %v4439 = vld [vmem:[#allocation16 + $0x18] sm:$0xff]
    %v4440 = vld [vmem:[#allocation16 + $0x20] sm:$0xff]
    %v4441 = vld [vmem:[#allocation16 + $0x28] sm:$0xff]
    %v4442 = vld [vmem:[#allocation16 + $0x30] sm:$0xff]
    %v4443 = vld [vmem:[#allocation16 + $0x38] sm:$0xff]
    %v4444 = vld [vmem:[#allocation16 + $0x40] sm:$0xff]
    %v4445 = vld [vmem:[#allocation16 + $0x48] sm:$0xff]
    %v4446 = vld [vmem:[#allocation16 + $0x50] sm:$0xff]
    %v4447 = vld [vmem:[#allocation16 + $0x58] sm:$0xff]
    %v4448 = vld [vmem:[#allocation16 + $0x60] sm:$0xff]
    %v4449 = vld [vmem:[#allocation16 + $0x68] sm:$0xff]
    %v4450 = vld [vmem:[#allocation16 + $0x70] sm:$0xff]
    %v4451 = vld [vmem:[#allocation16 + $0x78] sm:$0xff]
    %v4452 = vld [vmem:[#allocation16 + $0x80] sm:$0xff]
    %v4453 = vld [vmem:[#allocation16 + $0x88] sm:$0xff]
    %v4454 = vld [vmem:[#allocation16 + $0x90] sm:$0xff]
    %v4455 = vld [vmem:[#allocation16 + $0x98] sm:$0xff]
    %v4456 = vld [vmem:[#allocation16 + $0xa0] sm:$0xff]
    %v4457 = vld [vmem:[#allocation16 + $0xa8] sm:$0xff]
    %v4458 = vld [vmem:[#allocation16 + $0xb0] sm:$0xff]
    %v4459 = vld [vmem:[#allocation16 + $0xb8] sm:$0xff]
    %v4460 = vld [vmem:[#allocation16 + $0xc0] sm:$0xff]
    %v4461 = vld [vmem:[#allocation16 + $0xc8] sm:$0xff]
    %v4462 = vld [vmem:[#allocation16 + $0xd0] sm:$0xff]
    %v4463 = vld [vmem:[#allocation16 + $0xd8] sm:$0xff]
    %v4464 = vld [vmem:[#allocation16 + $0xe0] sm:$0xff]
    %v4465 = vld [vmem:[#allocation16 + $0xe8] sm:$0xff]
    %v4466 = vld [vmem:[#allocation16 + $0xf0] sm:$0xff]
    %v4467 = vld [vmem:[#allocation16 + $0xf8] sm:$0xff]
    %v4468 = vld [vmem:[#allocation16 + $0x100] sm:$0xff]
    %v4469 = vld [vmem:[#allocation16 + $0x108] sm:$0xff]
    %v4470 = vld [vmem:[#allocation16 + $0x110] sm:$0xff]
    %v4471 = vld [vmem:[#allocation16 + $0x118] sm:$0xff]
    %v4472 = vld [vmem:[#allocation16 + $0x120] sm:$0xff]
    %v4473 = vld [vmem:[#allocation16 + $0x128] sm:$0xff]
    %v4474 = vld [vmem:[#allocation16 + $0x130] sm:$0xff]
    %v4475 = vld [vmem:[#allocation16 + $0x138] sm:$0xff]
    %v4476 = vld [vmem:[#allocation16 + $0x140] sm:$0xff]
    %v4477 = vld [vmem:[#allocation16 + $0x148] sm:$0xff]
    %v4478 = vld [vmem:[#allocation16 + $0x150] sm:$0xff]
    %v4479 = vld [vmem:[#allocation16 + $0x158] sm:$0xff]
    %v4480 = vld [vmem:[#allocation16 + $0x160] sm:$0xff]
    %v4481 = vld [vmem:[#allocation16 + $0x168] sm:$0xff]
    %v4482 = vld [vmem:[#allocation16 + $0x170] sm:$0xff]
    %v4483 = vld [vmem:[#allocation16 + $0x178] sm:$0xff]
    %v4484 = vld [vmem:[#allocation16 + $0x180] sm:$0xff]
    %v4485 = vld [vmem:[#allocation16 + $0x188] sm:$0xff]
    %v4486 = vld [vmem:[#allocation16 + $0x190] sm:$0xff]
    %v4487 = vld [vmem:[#allocation16 + $0x198] sm:$0xff]
    %v4488 = vld [vmem:[#allocation16 + $0x1a0] sm:$0xff]
    %v4489 = vld [vmem:[#allocation16 + $0x1a8] sm:$0xff]
    %v4490 = vld [vmem:[#allocation16 + $0x1b0] sm:$0xff]
    %v4491 = vld [vmem:[#allocation16 + $0x1b8] sm:$0xff]
    %v4492 = vld [vmem:[#allocation16 + $0x1c0] sm:$0xff]
    %v4493 = vld [vmem:[#allocation16 + $0x1c8] sm:$0xff]
    %v4494 = vld [vmem:[#allocation16 + $0x1d0] sm:$0xff]
    %v4495 = vld [vmem:[#allocation16 + $0x1d8] sm:$0xff]
    %v4496 = vld [vmem:[#allocation16 + $0x1e0] sm:$0xff]
    %v4497 = vld [vmem:[#allocation16 + $0x1e8] sm:$0xff]
    %v4498 = vld [vmem:[#allocation16 + $0x1f0] sm:$0xff]
    %v4499 = vld [vmem:[#allocation16 + $0x1f8] sm:$0xff]
    %v4500 = vld [vmem:[#allocation16 + $0x200] sm:$0xff]
    %v4501 = vld [vmem:[#allocation16 + $0x208] sm:$0xff]
    %v4502 = vld [vmem:[#allocation16 + $0x210] sm:$0xff]
    %v4503 = vld [vmem:[#allocation16 + $0x218] sm:$0xff]
    %v4504 = vld [vmem:[#allocation16 + $0x220] sm:$0xff]
    %v4505 = vld [vmem:[#allocation16 + $0x228] sm:$0xff]
    %v4506 = vld [vmem:[#allocation16 + $0x230] sm:$0xff]
    %v4507 = vld [vmem:[#allocation16 + $0x238] sm:$0xff]
    %v4508 = vld [vmem:[#allocation16 + $0x240] sm:$0xff]
    %v4509 = vld [vmem:[#allocation16 + $0x248] sm:$0xff]
    %v4510 = vld [vmem:[#allocation16 + $0x250] sm:$0xff]
    %v4511 = vld [vmem:[#allocation16 + $0x258] sm:$0xff]
    %v4512 = vld [vmem:[#allocation16 + $0x260] sm:$0xff]
    %v4513 = vld [vmem:[#allocation16 + $0x268] sm:$0xff]
    %v4514 = vld [vmem:[#allocation16 + $0x270] sm:$0xff]
    %v4515 = vld [vmem:[#allocation16 + $0x278] sm:$0xff]
    %v4516 = vld [vmem:[#allocation16 + $0x280] sm:$0xff]
    %v4517 = vld [vmem:[#allocation16 + $0x288] sm:$0xff]
    %v4518 = vld [vmem:[#allocation16 + $0x290] sm:$0xff]
    %v4519 = vld [vmem:[#allocation16 + $0x298] sm:$0xff]
    %v4520 = vld [vmem:[#allocation16 + $0x2a0] sm:$0xff]
    %v4521 = vld [vmem:[#allocation16 + $0x2a8] sm:$0xff]
    %v4522 = vld [vmem:[#allocation16 + $0x2b0] sm:$0xff]
    %v4523 = vld [vmem:[#allocation16 + $0x2b8] sm:$0xff]
    %v4524 = vld [vmem:[#allocation16 + $0x2c0] sm:$0xff]
    %v4525 = vld [vmem:[#allocation16 + $0x2c8] sm:$0xff]
    %v4526 = vld [vmem:[#allocation16 + $0x2d0] sm:$0xff]
    %v4527 = vld [vmem:[#allocation16 + $0x2d8] sm:$0xff]
    %v4528 = vld [vmem:[#allocation16 + $0x2e0] sm:$0xff]
    %v4529 = vld [vmem:[#allocation16 + $0x2e8] sm:$0xff]
    %v4530 = vld [vmem:[#allocation16 + $0x2f0] sm:$0xff]
    %v4531 = vld [vmem:[#allocation16 + $0x2f8] sm:$0xff]
    %v4532 = vld [vmem:[#allocation16 + $0x300] sm:$0xff]
    %v4533 = vld [vmem:[#allocation16 + $0x308] sm:$0xff]
    %v4534 = vld [vmem:[#allocation16 + $0x310] sm:$0xff]
    %v4535 = vld [vmem:[#allocation16 + $0x318] sm:$0xff]
    %v4536 = vld [vmem:[#allocation16 + $0x320] sm:$0xff]
    %v4537 = vld [vmem:[#allocation16 + $0x328] sm:$0xff]
    %v4538 = vld [vmem:[#allocation16 + $0x330] sm:$0xff]
    %v4539 = vld [vmem:[#allocation16 + $0x338] sm:$0xff]
    %v4540 = vld [vmem:[#allocation16 + $0x340] sm:$0xff]
    %v4541 = vld [vmem:[#allocation16 + $0x348] sm:$0xff]
    %v4542 = vld [vmem:[#allocation16 + $0x350] sm:$0xff]
    %v4543 = vld [vmem:[#allocation16 + $0x358] sm:$0xff]
    %v4544 = vld [vmem:[#allocation16 + $0x360] sm:$0xff]
    %v4545 = vld [vmem:[#allocation16 + $0x368] sm:$0xff]
    %v4546 = vld [vmem:[#allocation16 + $0x370] sm:$0xff]
    %v4547 = vld [vmem:[#allocation16 + $0x378] sm:$0xff]
    %v4548 = vld [vmem:[#allocation16 + $0x380] sm:$0xff]
    %v4549 = vld [vmem:[#allocation16 + $0x388] sm:$0xff]
    %v4550 = vld [vmem:[#allocation16 + $0x390] sm:$0xff]
    %v4551 = vld [vmem:[#allocation16 + $0x398] sm:$0xff]
    %v4552 = vld [vmem:[#allocation16 + $0x3a0] sm:$0xff]
    %v4553 = vld [vmem:[#allocation16 + $0x3a8] sm:$0xff]
    %v4554 = vld [vmem:[#allocation16 + $0x3b0] sm:$0xff]
    %v4555 = vld [vmem:[#allocation16 + $0x3b8] sm:$0xff]
    %v4556 = vld [vmem:[#allocation16 + $0x3c0] sm:$0xff]
    %v4557 = vld [vmem:[#allocation16 + $0x3c8] sm:$0xff]
    %v4558 = vld [vmem:[#allocation16 + $0x3d0] sm:$0xff]
    %v4559 = vld [vmem:[#allocation16 + $0x3d8] sm:$0xff]
    %v4560 = vld [vmem:[#allocation16 + $0x3e0] sm:$0xff]
    %v4561 = vld [vmem:[#allocation16 + $0x3e8] sm:$0xff]
    %v4562 = vld [vmem:[#allocation16 + $0x3f0] sm:$0xff]
    %v4563 = vld [vmem:[#allocation16 + $0x3f8] sm:$0xff]
    %s4564 = scalar_lea.vmem [#allocation25], 7
    %v4565 = vld [vmem:[%s4564] ss:$8 sm:$0x3]
    %v4567 = vlaneseq
    %v4568 = vshrl.u32 %v4567, 7
    %v4569 = vsub.s32 0, %v4568
    %v4570 = vrot.slane %v4433, %v4569
    %v4571 = vlaneseq
    %v4572 = vshrl.u32 %v4571, 7
    %v4573 = vsub.s32 1, %v4572
    %v4574 = vrot.slane %v4433, %v4573
    %4577 = vmatprep.subr.mxu0 %v4241
    %4578 = vmatpush1.msra.mxu0 %v4240
    %4579 = vmatprep.subr.mxu0 %v4243
    %4580 = vmatpush1.msra.mxu0 %v4242
    %4581 = vmatprep.subr.mxu0 %v4245
    %4582 = vmatpush1.msra.mxu0 %v4244
    %4583 = vmatprep.subr.mxu0 %v4247
    %4584 = vmatpush1.msra.mxu0 %v4246
    %4585 = vmatprep.subr.mxu0 %v4249
    %4586 = vmatpush1.msra.mxu0 %v4248
    %4587 = vmatprep.subr.mxu0 %v4251
    %4588 = vmatpush1.msra.mxu0 %v4250
    %4589 = vmatprep.subr.mxu0 %v4253
    %4590 = vmatpush1.msra.mxu0 %v4252
    %4591 = vmatprep.subr.mxu0 %v4255
    %4592 = vmatpush1.msra.mxu0 %v4254
    %4593 = vmatprep.subr.mxu0 %v4257
    %4594 = vmatpush1.msra.mxu0 %v4256
    %4595 = vmatprep.subr.mxu0 %v4259
    %4596 = vmatpush1.msra.mxu0 %v4258
    %4597 = vmatprep.subr.mxu0 %v4261
    %4598 = vmatpush1.msra.mxu0 %v4260
    %4599 = vmatprep.subr.mxu0 %v4263
    %4600 = vmatpush1.msra.mxu0 %v4262
    %4601 = vmatprep.subr.mxu0 %v4265
    %4602 = vmatpush1.msra.mxu0 %v4264
    %4603 = vmatprep.subr.mxu0 %v4267
    %4604 = vmatpush1.msra.mxu0 %v4266
    %4605 = vmatprep.subr.mxu0 %v4269
    %4606 = vmatpush1.msra.mxu0 %v4268
    %4607 = vmatprep.subr.mxu0 %v4271
    %4608 = vmatpush1.msra.mxu0 %v4270
    %4609 = vmatprep.subr.mxu0 %v4273
    %4610 = vmatpush1.msra.mxu0 %v4272
    %4611 = vmatprep.subr.mxu0 %v4275
    %4612 = vmatpush1.msra.mxu0 %v4274
    %4613 = vmatprep.subr.mxu0 %v4277
    %4614 = vmatpush1.msra.mxu0 %v4276
    %4615 = vmatprep.subr.mxu0 %v4279
    %4616 = vmatpush1.msra.mxu0 %v4278
    %4617 = vmatprep.subr.mxu0 %v4281
    %4618 = vmatpush1.msra.mxu0 %v4280
    %4619 = vmatprep.subr.mxu0 %v4283
    %4620 = vmatpush1.msra.mxu0 %v4282
    %4621 = vmatprep.subr.mxu0 %v4285
    %4622 = vmatpush1.msra.mxu0 %v4284
    %4623 = vmatprep.subr.mxu0 %v4287
    %4624 = vmatpush1.msra.mxu0 %v4286
    %4625 = vmatprep.subr.mxu0 %v4289
    %4626 = vmatpush1.msra.mxu0 %v4288
    %4627 = vmatprep.subr.mxu0 %v4291
    %4628 = vmatpush1.msra.mxu0 %v4290
    %4629 = vmatprep.subr.mxu0 %v4293
    %4630 = vmatpush1.msra.mxu0 %v4292
    %4631 = vmatprep.subr.mxu0 %v4295
    %4632 = vmatpush1.msra.mxu0 %v4294
    %4633 = vmatprep.subr.mxu0 %v4297
    %4634 = vmatpush1.msra.mxu0 %v4296
    %4635 = vmatprep.subr.mxu0 %v4299
    %4636 = vmatpush1.msra.mxu0 %v4298
    %4637 = vmatprep.subr.mxu0 %v4301
    %4638 = vmatpush1.msra.mxu0 %v4300
    %4639 = vmatprep.subr.mxu0 %v4303
    %4640 = vmatpush1.msra.mxu0 %v4302
    %4641 = vmatprep.mubr.f32.mxu0 %v4177
    %4642 = vmatmul.mubr.f32.gmra.mrb[0].mxu0 %v4176
    %v4643 = vpop.f32.mrb[0].mxu0
    %v4644 = vadd.f32 %v4570, %v4643
    %v4645 = vpop.f32.mrb[0].mxu0
    %v4646 = vadd.f32 %v4574, %v4645
    %4647 = vmatprep.mubr.f32.mxu0 %v4181
    %4648 = vmatmul.mubr.f32.gmra.mrb[0].mxu0 %v4180
    %v4649 = vpop.f32.mrb[0].mxu0
    %v4650 = vadd.f32 %v4570, %v4649
    %v4651 = vpop.f32.mrb[0].mxu0
    %v4652 = vadd.f32 %v4574, %v4651
    %4653 = vmatprep.mubr.f32.mxu0 %v4185
    %4654 = vmatmul.mubr.f32.gmra.mrb[0].mxu0 %v4184
    %v4655 = vpop.f32.mrb[0].mxu0
    %v4656 = vadd.f32 %v4570, %v4655
    %v4657 = vpop.f32.mrb[0].mxu0
    %v4658 = vadd.f32 %v4574, %v4657
    %4659 = vmatprep.mubr.f32.mxu0 %v4189
    %4660 = vmatmul.mubr.f32.gmra.mrb[0].mxu0 %v4188
    %v4661 = vpop.f32.mrb[0].mxu0
    %v4662 = vadd.f32 %v4570, %v4661
    %v4663 = vpop.f32.mrb[0].mxu0
    %v4664 = vadd.f32 %v4574, %v4663
    %4665 = vmatprep.mubr.f32.mxu0 %v4193
    %4666 = vmatmul.mubr.f32.gmra.mrb[0].mxu0 %v4192
    %v4667 = vpop.f32.mrb[0].mxu0
    %v4668 = vadd.f32 %v4570, %v4667
    %v4669 = vpop.f32.mrb[0].mxu0
    %v4670 = vadd.f32 %v4574, %v4669
    %4671 = vmatprep.mubr.f32.mxu0 %v4197
    %4672 = vmatmul.mubr.f32.gmra.mrb[0].mxu0 %v4196
    %v4673 = vpop.f32.mrb[0].mxu0
    %v4674 = vadd.f32 %v4570, %v4673
    %v4675 = vpop.f32.mrb[0].mxu0
    %v4676 = vadd.f32 %v4574, %v4675
    %4677 = vmatprep.mubr.f32.mxu0 %v4201
    %4678 = vmatmul.mubr.f32.gmra.mrb[0].mxu0 %v4200
    %v4679 = vpop.f32.mrb[0].mxu0
    %v4680 = vadd.f32 %v4570, %v4679
    %v4681 = vpop.f32.mrb[0].mxu0
    %v4682 = vadd.f32 %v4574, %v4681
    %4683 = vmatprep.mubr.f32.mxu0 %v4205
    %4684 = vmatmul.mubr.f32.gmra.mrb[0].mxu0 %v4204
    %v4685 = vpop.f32.mrb[0].mxu0
    %v4686 = vadd.f32 %v4570, %v4685
    %v4687 = vpop.f32.mrb[0].mxu0
    %v4688 = vadd.f32 %v4574, %v4687
    %4689 = vmatprep.mubr.f32.mxu0 %v4209
    %4690 = vmatmul.mubr.f32.gmra.mrb[0].mxu0 %v4208
    %v4691 = vpop.f32.mrb[0].mxu0
    %v4692 = vadd.f32 %v4570, %v4691
    %v4693 = vpop.f32.mrb[0].mxu0
    %v4694 = vadd.f32 %v4574, %v4693
    %4695 = vmatprep.mubr.f32.mxu0 %v4213
    %4696 = vmatmul.mubr.f32.gmra.mrb[0].mxu0 %v4212
    %v4697 = vpop.f32.mrb[0].mxu0
    %v4698 = vadd.f32 %v4570, %v4697
    %v4699 = vpop.f32.mrb[0].mxu0
    %v4700 = vadd.f32 %v4574, %v4699
    %4701 = vmatprep.mubr.f32.mxu0 %v4217
    %4702 = vmatmul.mubr.f32.gmra.mrb[0].mxu0 %v4216
    %v4703 = vpop.f32.mrb[0].mxu0
    %v4704 = vadd.f32 %v4570, %v4703
    %v4705 = vpop.f32.mrb[0].mxu0
    %v4706 = vadd.f32 %v4574, %v4705
    %4707 = vmatprep.mubr.f32.mxu0 %v4221
    %4708 = vmatmul.mubr.f32.gmra.mrb[0].mxu0 %v4220
    %v4709 = vpop.f32.mrb[0].mxu0
    %v4710 = vadd.f32 %v4570, %v4709
    %v4711 = vpop.f32.mrb[0].mxu0
    %v4712 = vadd.f32 %v4574, %v4711
    %4713 = vmatprep.mubr.f32.mxu0 %v4225
    %4714 = vmatmul.mubr.f32.gmra.mrb[0].mxu0 %v4224
    %v4715 = vpop.f32.mrb[0].mxu0
    %v4716 = vadd.f32 %v4570, %v4715
    %v4717 = vpop.f32.mrb[0].mxu0
    %v4718 = vadd.f32 %v4574, %v4717
    %4719 = vmatprep.mubr.f32.mxu0 %v4229
    %4720 = vmatmul.mubr.f32.gmra.mrb[0].mxu0 %v4228
    %v4721 = vpop.f32.mrb[0].mxu0
    %v4722 = vadd.f32 %v4570, %v4721
    %v4723 = vpop.f32.mrb[0].mxu0
    %v4724 = vadd.f32 %v4574, %v4723
    %4725 = vmatprep.mubr.f32.mxu0 %v4233
    %4726 = vmatmul.mubr.f32.gmra.mrb[0].mxu0 %v4232
    %v4727 = vpop.f32.mrb[0].mxu0
    %v4728 = vadd.f32 %v4570, %v4727
    %v4729 = vpop.f32.mrb[0].mxu0
    %v4730 = vadd.f32 %v4574, %v4729
    %4731 = vmatprep.mubr.f32.mxu0 %v4237
    %4732 = vmatmul.mubr.f32.gmra.mrb[0].mxu0 %v4236
    %v4733 = vpop.f32.mrb[0].mxu0
    %v4734 = vadd.f32 %v4570, %v4733
    %v4735 = vpop.f32.mrb[0].mxu0
    %v4736 = vadd.f32 %v4574, %v4735
    %4737 = vdwg.mxu0
    %4738 = vmatprep.subr.mxu0 %v4305
    %4739 = vmatpush1.msra.mxu0 %v4304
    %4740 = vmatprep.subr.mxu0 %v4307
    %4741 = vmatpush1.msra.mxu0 %v4306
    %4742 = vmatprep.subr.mxu0 %v4309
    %4743 = vmatpush1.msra.mxu0 %v4308
    %4744 = vmatprep.subr.mxu0 %v4311
    %4745 = vmatpush1.msra.mxu0 %v4310
    %4746 = vmatprep.subr.mxu0 %v4313
    %4747 = vmatpush1.msra.mxu0 %v4312
    %4748 = vmatprep.subr.mxu0 %v4315
    %4749 = vmatpush1.msra.mxu0 %v4314
    %4750 = vmatprep.subr.mxu0 %v4317
    %4751 = vmatpush1.msra.mxu0 %v4316
    %4752 = vmatprep.subr.mxu0 %v4319
    %4753 = vmatpush1.msra.mxu0 %v4318
    %4754 = vmatprep.subr.mxu0 %v4321
    %4755 = vmatpush1.msra.mxu0 %v4320
    %4756 = vmatprep.subr.mxu0 %v4323
    %4757 = vmatpush1.msra.mxu0 %v4322
    %4758 = vmatprep.subr.mxu0 %v4325
    %4759 = vmatpush1.msra.mxu0 %v4324
    %4760 = vmatprep.subr.mxu0 %v4327
    %4761 = vmatpush1.msra.mxu0 %v4326
    %4762 = vmatprep.subr.mxu0 %v4329
    %4763 = vmatpush1.msra.mxu0 %v4328
    %4764 = vmatprep.subr.mxu0 %v4331
    %4765 = vmatpush1.msra.mxu0 %v4330
    %4766 = vmatprep.subr.mxu0 %v4333
    %4767 = vmatpush1.msra.mxu0 %v4332
    %4768 = vmatprep.subr.mxu0 %v4335
    %4769 = vmatpush1.msra.mxu0 %v4334
    %4770 = vmatprep.subr.mxu0 %v4337
    %4771 = vmatpush1.msra.mxu0 %v4336
    %4772 = vmatprep.subr.mxu0 %v4339
    %4773 = vmatpush1.msra.mxu0 %v4338
    %4774 = vmatprep.subr.mxu0 %v4341
    %4775 = vmatpush1.msra.mxu0 %v4340
    %4776 = vmatprep.subr.mxu0 %v4343
    %4777 = vmatpush1.msra.mxu0 %v4342
    %4778 = vmatprep.subr.mxu0 %v4345
    %4779 = vmatpush1.msra.mxu0 %v4344
    %4780 = vmatprep.subr.mxu0 %v4347
    %4781 = vmatpush1.msra.mxu0 %v4346
    %4782 = vmatprep.subr.mxu0 %v4349
    %4783 = vmatpush1.msra.mxu0 %v4348
    %4784 = vmatprep.subr.mxu0 %v4351
    %4785 = vmatpush1.msra.mxu0 %v4350
    %4786 = vmatprep.subr.mxu0 %v4353
    %4787 = vmatpush1.msra.mxu0 %v4352
    %4788 = vmatprep.subr.mxu0 %v4355
    %4789 = vmatpush1.msra.mxu0 %v4354
    %4790 = vmatprep.subr.mxu0 %v4357
    %4791 = vmatpush1.msra.mxu0 %v4356
    %4792 = vmatprep.subr.mxu0 %v4359
    %4793 = vmatpush1.msra.mxu0 %v4358
    %4794 = vmatprep.subr.mxu0 %v4361
    %4795 = vmatpush1.msra.mxu0 %v4360
    %4796 = vmatprep.subr.mxu0 %v4363
    %4797 = vmatpush1.msra.mxu0 %v4362
    %4798 = vmatprep.subr.mxu0 %v4365
    %4799 = vmatpush1.msra.mxu0 %v4364
    %4800 = vmatprep.subr.mxu0 %v4367
    %4801 = vmatpush1.msra.mxu0 %v4366
    %4802 = vmatprep.mubr.f32.mxu0 %v4179
    %4803 = vmatmul.mubr.f32.gmra.mrb[0].mxu0 %v4178
    %v4804 = vpop.f32.mrb[0].mxu0
    %v4805 = vadd.f32 %v4644, %v4804
    %v4806 = vpop.f32.mrb[0].mxu0
    %v4807 = vadd.f32 %v4646, %v4806
    %4808 = vmatprep.mubr.f32.mxu0 %v4183
    %4809 = vmatmul.mubr.f32.gmra.mrb[0].mxu0 %v4182
    %v4810 = vpop.f32.mrb[0].mxu0
    %v4811 = vadd.f32 %v4650, %v4810
    %v4812 = vpop.f32.mrb[0].mxu0
    %v4813 = vadd.f32 %v4652, %v4812
    %4814 = vmatprep.mubr.f32.mxu0 %v4187
    %4815 = vmatmul.mubr.f32.gmra.mrb[0].mxu0 %v4186
    %v4816 = vpop.f32.mrb[0].mxu0
    %v4817 = vadd.f32 %v4656, %v4816
    %v4818 = vpop.f32.mrb[0].mxu0
    %v4819 = vadd.f32 %v4658, %v4818
    %4820 = vmatprep.mubr.f32.mxu0 %v4191
    %4821 = vmatmul.mubr.f32.gmra.mrb[0].mxu0 %v4190
    %v4822 = vpop.f32.mrb[0].mxu0
    %v4823 = vadd.f32 %v4662, %v4822
    %v4824 = vpop.f32.mrb[0].mxu0
    %v4825 = vadd.f32 %v4664, %v4824
    %4826 = vmatprep.mubr.f32.mxu0 %v4195
    %4827 = vmatmul.mubr.f32.gmra.mrb[0].mxu0 %v4194
    %v4828 = vpop.f32.mrb[0].mxu0
    %v4829 = vadd.f32 %v4668, %v4828
    %v4830 = vpop.f32.mrb[0].mxu0
    %v4831 = vadd.f32 %v4670, %v4830
    %4832 = vmatprep.mubr.f32.mxu0 %v4199
    %4833 = vmatmul.mubr.f32.gmra.mrb[0].mxu0 %v4198
    %v4834 = vpop.f32.mrb[0].mxu0
    %v4835 = vadd.f32 %v4674, %v4834
    %v4836 = vpop.f32.mrb[0].mxu0
    %v4837 = vadd.f32 %v4676, %v4836
    %4838 = vmatprep.mubr.f32.mxu0 %v4203
    %4839 = vmatmul.mubr.f32.gmra.mrb[0].mxu0 %v4202
    %v4840 = vpop.f32.mrb[0].mxu0
    %v4841 = vadd.f32 %v4680, %v4840
    %v4842 = vpop.f32.mrb[0].mxu0
    %v4843 = vadd.f32 %v4682, %v4842
    %4844 = vmatprep.mubr.f32.mxu0 %v4207
    %4845 = vmatmul.mubr.f32.gmra.mrb[0].mxu0 %v4206
    %v4846 = vpop.f32.mrb[0].mxu0
    %v4847 = vadd.f32 %v4686, %v4846
    %v4848 = vpop.f32.mrb[0].mxu0
    %v4849 = vadd.f32 %v4688, %v4848
    %4850 = vmatprep.mubr.f32.mxu0 %v4211
    %4851 = vmatmul.mubr.f32.gmra.mrb[0].mxu0 %v4210
    %v4852 = vpop.f32.mrb[0].mxu0
    %v4853 = vadd.f32 %v4692, %v4852
    %v4854 = vpop.f32.mrb[0].mxu0
    %v4855 = vadd.f32 %v4694, %v4854
    %4856 = vmatprep.mubr.f32.mxu0 %v4215
    %4857 = vmatmul.mubr.f32.gmra.mrb[0].mxu0 %v4214
    %v4858 = vpop.f32.mrb[0].mxu0
    %v4859 = vadd.f32 %v4698, %v4858
    %v4860 = vpop.f32.mrb[0].mxu0
    %v4861 = vadd.f32 %v4700, %v4860
    %4862 = vmatprep.mubr.f32.mxu0 %v4219
    %4863 = vmatmul.mubr.f32.gmra.mrb[0].mxu0 %v4218
    %v4864 = vpop.f32.mrb[0].mxu0
    %v4865 = vadd.f32 %v4704, %v4864
    %v4866 = vpop.f32.mrb[0].mxu0
    %v4867 = vadd.f32 %v4706, %v4866
    %4868 = vmatprep.mubr.f32.mxu0 %v4223
    %4869 = vmatmul.mubr.f32.gmra.mrb[0].mxu0 %v4222
    %v4870 = vpop.f32.mrb[0].mxu0
    %v4871 = vadd.f32 %v4710, %v4870
    %v4872 = vpop.f32.mrb[0].mxu0
    %v4873 = vadd.f32 %v4712, %v4872
    %4874 = vmatprep.mubr.f32.mxu0 %v4227
    %4875 = vmatmul.mubr.f32.gmra.mrb[0].mxu0 %v4226
    %v4876 = vpop.f32.mrb[0].mxu0
    %v4877 = vadd.f32 %v4716, %v4876
    %v4878 = vpop.f32.mrb[0].mxu0
    %v4879 = vadd.f32 %v4718, %v4878
    %4880 = vmatprep.mubr.f32.mxu0 %v4231
    %4881 = vmatmul.mubr.f32.gmra.mrb[0].mxu0 %v4230
    %v4882 = vpop.f32.mrb[0].mxu0
    %v4883 = vadd.f32 %v4722, %v4882
    %v4884 = vpop.f32.mrb[0].mxu0
    %v4885 = vadd.f32 %v4724, %v4884
    %4886 = vmatprep.mubr.f32.mxu0 %v4235
    %4887 = vmatmul.mubr.f32.gmra.mrb[0].mxu0 %v4234
    %v4888 = vpop.f32.mrb[0].mxu0
    %v4889 = vadd.f32 %v4728, %v4888
    %v4890 = vpop.f32.mrb[0].mxu0
    %v4891 = vadd.f32 %v4730, %v4890
    %4892 = vmatprep.mubr.f32.mxu0 %v4239
    %4893 = vmatmul.mubr.f32.gmra.mrb[0].mxu0 %v4238
    %v4894 = vpop.f32.mrb[0].mxu0
    %v4895 = vadd.f32 %v4734, %v4894
    %v4896 = vpop.f32.mrb[0].mxu0
    %v4897 = vadd.f32 %v4736, %v4896
    %4898 = vdwg.mxu0
    %v4899 = vmax.f32 %v4805, 0.0
    %v4900 = vmax.f32 %v4807, 0.0
    %v4901 = vmax.f32 %v4811, 0.0
    %v4902 = vmax.f32 %v4813, 0.0
    %v4903 = vmax.f32 %v4817, 0.0
    %v4904 = vmax.f32 %v4819, 0.0
    %v4905 = vmax.f32 %v4823, 0.0
    %v4906 = vmax.f32 %v4825, 0.0
    %v4907 = vmax.f32 %v4829, 0.0
    %v4908 = vmax.f32 %v4831, 0.0
    %v4909 = vmax.f32 %v4835, 0.0
    %v4910 = vmax.f32 %v4837, 0.0
    %v4911 = vmax.f32 %v4841, 0.0
    %v4912 = vmax.f32 %v4843, 0.0
    %v4913 = vmax.f32 %v4847, 0.0
    %v4914 = vmax.f32 %v4849, 0.0
    %v4915 = vmax.f32 %v4853, 0.0
    %v4916 = vmax.f32 %v4855, 0.0
    %v4917 = vmax.f32 %v4859, 0.0
    %v4918 = vmax.f32 %v4861, 0.0
    %v4919 = vmax.f32 %v4865, 0.0
    %v4920 = vmax.f32 %v4867, 0.0
    %v4921 = vmax.f32 %v4871, 0.0
    %v4922 = vmax.f32 %v4873, 0.0
    %v4923 = vmax.f32 %v4877, 0.0
    %v4924 = vmax.f32 %v4879, 0.0
    %v4925 = vmax.f32 %v4883, 0.0
    %v4926 = vmax.f32 %v4885, 0.0
    %v4927 = vmax.f32 %v4889, 0.0
    %v4928 = vmax.f32 %v4891, 0.0
    %v4929 = vmax.f32 %v4895, 0.0
    %v4930 = vmax.f32 %v4897, 0.0
    %v4932 = vlaneseq
    %v4933 = vshrl.u32 %v4932, 7
    %v4934 = vsub.s32 0, %v4933
    %v4935 = vrot.slane %v4435, %v4934
    %v4936 = vlaneseq
    %v4937 = vshrl.u32 %v4936, 7
    %v4938 = vsub.s32 1, %v4937
    %v4939 = vrot.slane %v4435, %v4938
    %4942 = vmatprep.subr.mxu0 %v4369
    %4943 = vmatpush1.msra.mxu0 %v4368
    %4944 = vmatprep.subr.mxu0 %v4371
    %4945 = vmatpush1.msra.mxu0 %v4370
    %4946 = vmatprep.subr.mxu0 %v4373
    %4947 = vmatpush1.msra.mxu0 %v4372
    %4948 = vmatprep.subr.mxu0 %v4375
    %4949 = vmatpush1.msra.mxu0 %v4374
    %4950 = vmatprep.subr.mxu0 %v4377
    %4951 = vmatpush1.msra.mxu0 %v4376
    %4952 = vmatprep.subr.mxu0 %v4379
    %4953 = vmatpush1.msra.mxu0 %v4378
    %4954 = vmatprep.subr.mxu0 %v4381
    %4955 = vmatpush1.msra.mxu0 %v4380
    %4956 = vmatprep.subr.mxu0 %v4383
    %4957 = vmatpush1.msra.mxu0 %v4382
    %4958 = vmatprep.subr.mxu0 %v4385
    %4959 = vmatpush1.msra.mxu0 %v4384
    %4960 = vmatprep.subr.mxu0 %v4387
    %4961 = vmatpush1.msra.mxu0 %v4386
    %4962 = vmatprep.subr.mxu0 %v4389
    %4963 = vmatpush1.msra.mxu0 %v4388
    %4964 = vmatprep.subr.mxu0 %v4391
    %4965 = vmatpush1.msra.mxu0 %v4390
    %4966 = vmatprep.subr.mxu0 %v4393
    %4967 = vmatpush1.msra.mxu0 %v4392
    %4968 = vmatprep.subr.mxu0 %v4395
    %4969 = vmatpush1.msra.mxu0 %v4394
    %4970 = vmatprep.subr.mxu0 %v4397
    %4971 = vmatpush1.msra.mxu0 %v4396
    %4972 = vmatprep.subr.mxu0 %v4399
    %4973 = vmatpush1.msra.mxu0 %v4398
    %4974 = vmatprep.subr.mxu0 %v4401
    %4975 = vmatpush1.msra.mxu0 %v4400
    %4976 = vmatprep.subr.mxu0 %v4403
    %4977 = vmatpush1.msra.mxu0 %v4402
    %4978 = vmatprep.subr.mxu0 %v4405
    %4979 = vmatpush1.msra.mxu0 %v4404
    %4980 = vmatprep.subr.mxu0 %v4407
    %4981 = vmatpush1.msra.mxu0 %v4406
    %4982 = vmatprep.subr.mxu0 %v4409
    %4983 = vmatpush1.msra.mxu0 %v4408
    %4984 = vmatprep.subr.mxu0 %v4411
    %4985 = vmatpush1.msra.mxu0 %v4410
    %4986 = vmatprep.subr.mxu0 %v4413
    %4987 = vmatpush1.msra.mxu0 %v4412
    %4988 = vmatprep.subr.mxu0 %v4415
    %4989 = vmatpush1.msra.mxu0 %v4414
    %4990 = vmatprep.subr.mxu0 %v4417
    %4991 = vmatpush1.msra.mxu0 %v4416
    %4992 = vmatprep.subr.mxu0 %v4419
    %4993 = vmatpush1.msra.mxu0 %v4418
    %4994 = vmatprep.subr.mxu0 %v4421
    %4995 = vmatpush1.msra.mxu0 %v4420
    %4996 = vmatprep.subr.mxu0 %v4423
    %4997 = vmatpush1.msra.mxu0 %v4422
    %4998 = vmatprep.subr.mxu0 %v4425
    %4999 = vmatpush1.msra.mxu0 %v4424
    %5000 = vmatprep.subr.mxu0 %v4427
    %5001 = vmatpush1.msra.mxu0 %v4426
    %5002 = vmatprep.subr.mxu0 %v4429
    %5003 = vmatpush1.msra.mxu0 %v4428
    %5004 = vmatprep.subr.mxu0 %v4431
    %5005 = vmatpush1.msra.mxu0 %v4430
    %5006 = vmatprep.mubr.f32.mxu0 %v4900
    %5007 = vmatmul.mubr.f32.gmra.mrb[0].mxu0 %v4899
    %v5008 = vpop.f32.mrb[0].mxu0
    %v5009 = vadd.f32 %v4935, %v5008
    %v5010 = vpop.f32.mrb[0].mxu0
    %v5011 = vadd.f32 %v4939, %v5010
    %5012 = vmatprep.mubr.f32.mxu0 %v4902
    %5013 = vmatmul.mubr.f32.gmra.mrb[0].mxu0 %v4901
    %v5014 = vpop.f32.mrb[0].mxu0
    %v5015 = vadd.f32 %v4935, %v5014
    %v5016 = vpop.f32.mrb[0].mxu0
    %v5017 = vadd.f32 %v4939, %v5016
    %5018 = vmatprep.mubr.f32.mxu0 %v4904
    %5019 = vmatmul.mubr.f32.gmra.mrb[0].mxu0 %v4903
    %v5020 = vpop.f32.mrb[0].mxu0
    %v5021 = vadd.f32 %v4935, %v5020
    %v5022 = vpop.f32.mrb[0].mxu0
    %v5023 = vadd.f32 %v4939, %v5022
    %5024 = vmatprep.mubr.f32.mxu0 %v4906
    %5025 = vmatmul.mubr.f32.gmra.mrb[0].mxu0 %v4905
    %v5026 = vpop.f32.mrb[0].mxu0
    %v5027 = vadd.f32 %v4935, %v5026
    %v5028 = vpop.f32.mrb[0].mxu0
    %v5029 = vadd.f32 %v4939, %v5028
    %5030 = vmatprep.mubr.f32.mxu0 %v4908
    %5031 = vmatmul.mubr.f32.gmra.mrb[0].mxu0 %v4907
    %v5032 = vpop.f32.mrb[0].mxu0
    %v5033 = vadd.f32 %v4935, %v5032
    %v5034 = vpop.f32.mrb[0].mxu0
    %v5035 = vadd.f32 %v4939, %v5034
    %5036 = vmatprep.mubr.f32.mxu0 %v4910
    %5037 = vmatmul.mubr.f32.gmra.mrb[0].mxu0 %v4909
    %v5038 = vpop.f32.mrb[0].mxu0
    %v5039 = vadd.f32 %v4935, %v5038
    %v5040 = vpop.f32.mrb[0].mxu0
    %v5041 = vadd.f32 %v4939, %v5040
    %5042 = vmatprep.mubr.f32.mxu0 %v4912
    %5043 = vmatmul.mubr.f32.gmra.mrb[0].mxu0 %v4911
    %v5044 = vpop.f32.mrb[0].mxu0
    %v5045 = vadd.f32 %v4935, %v5044
    %v5046 = vpop.f32.mrb[0].mxu0
    %v5047 = vadd.f32 %v4939, %v5046
    %5048 = vmatprep.mubr.f32.mxu0 %v4914
    %5049 = vmatmul.mubr.f32.gmra.mrb[0].mxu0 %v4913
    %v5050 = vpop.f32.mrb[0].mxu0
    %v5051 = vadd.f32 %v4935, %v5050
    %v5052 = vpop.f32.mrb[0].mxu0
    %v5053 = vadd.f32 %v4939, %v5052
    %5054 = vmatprep.mubr.f32.mxu0 %v4916
    %5055 = vmatmul.mubr.f32.gmra.mrb[0].mxu0 %v4915
    %v5056 = vpop.f32.mrb[0].mxu0
    %v5057 = vadd.f32 %v4935, %v5056
    %v5058 = vpop.f32.mrb[0].mxu0
    %v5059 = vadd.f32 %v4939, %v5058
    %5060 = vmatprep.mubr.f32.mxu0 %v4918
    %5061 = vmatmul.mubr.f32.gmra.mrb[0].mxu0 %v4917
    %v5062 = vpop.f32.mrb[0].mxu0
    %v5063 = vadd.f32 %v4935, %v5062
    %v5064 = vpop.f32.mrb[0].mxu0
    %v5065 = vadd.f32 %v4939, %v5064
    %5066 = vmatprep.mubr.f32.mxu0 %v4920
    %5067 = vmatmul.mubr.f32.gmra.mrb[0].mxu0 %v4919
    %v5068 = vpop.f32.mrb[0].mxu0
    %v5069 = vadd.f32 %v4935, %v5068
    %v5070 = vpop.f32.mrb[0].mxu0
    %v5071 = vadd.f32 %v4939, %v5070
    %5072 = vmatprep.mubr.f32.mxu0 %v4922
    %5073 = vmatmul.mubr.f32.gmra.mrb[0].mxu0 %v4921
    %v5074 = vpop.f32.mrb[0].mxu0
    %v5075 = vadd.f32 %v4935, %v5074
    %v5076 = vpop.f32.mrb[0].mxu0
    %v5077 = vadd.f32 %v4939, %v5076
    %5078 = vmatprep.mubr.f32.mxu0 %v4924
    %5079 = vmatmul.mubr.f32.gmra.mrb[0].mxu0 %v4923
    %v5080 = vpop.f32.mrb[0].mxu0
    %v5081 = vadd.f32 %v4935, %v5080
    %v5082 = vpop.f32.mrb[0].mxu0
    %v5083 = vadd.f32 %v4939, %v5082
    %5084 = vmatprep.mubr.f32.mxu0 %v4926
    %5085 = vmatmul.mubr.f32.gmra.mrb[0].mxu0 %v4925
    %v5086 = vpop.f32.mrb[0].mxu0
    %v5087 = vadd.f32 %v4935, %v5086
    %v5088 = vpop.f32.mrb[0].mxu0
    %v5089 = vadd.f32 %v4939, %v5088
    %5090 = vmatprep.mubr.f32.mxu0 %v4928
    %5091 = vmatmul.mubr.f32.gmra.mrb[0].mxu0 %v4927
    %v5092 = vpop.f32.mrb[0].mxu0
    %v5093 = vadd.f32 %v4935, %v5092
    %v5094 = vpop.f32.mrb[0].mxu0
    %v5095 = vadd.f32 %v4939, %v5094
    %5096 = vmatprep.mubr.f32.mxu0 %v4930
    %5097 = vmatmul.mubr.f32.gmra.mrb[0].mxu0 %v4929
    %v5098 = vpop.f32.mrb[0].mxu0
    %v5099 = vadd.f32 %v4935, %v5098
    %v5100 = vpop.f32.mrb[0].mxu0
    %v5101 = vadd.f32 %v4939, %v5100
    %5102 = vdwg.mxu0
    %v5104 = vlaneseq
    %v5105 = vshrl.u32 %v5104, 7
    %v5106 = vsub.s32 0, %v5105
    %v5107 = vrot.slane %v4565, %v5106
    %v5108 = vlaneseq
    %v5109 = vshrl.u32 %v5108, 7
    %v5110 = vsub.s32 1, %v5109
    %v5111 = vrot.slane %v4565, %v5110
    %5114 = vmatprep.subr.mxu0 %v4437
    %5115 = vmatpush1.msra.mxu0 %v4436
    %5116 = vmatprep.subr.mxu0 %v4439
    %5117 = vmatpush1.msra.mxu0 %v4438
    %5118 = vmatprep.subr.mxu0 %v4441
    %5119 = vmatpush1.msra.mxu0 %v4440
    %5120 = vmatprep.subr.mxu0 %v4443
    %5121 = vmatpush1.msra.mxu0 %v4442
    %5122 = vmatprep.subr.mxu0 %v4445
    %5123 = vmatpush1.msra.mxu0 %v4444
    %5124 = vmatprep.subr.mxu0 %v4447
    %5125 = vmatpush1.msra.mxu0 %v4446
    %5126 = vmatprep.subr.mxu0 %v4449
    %5127 = vmatpush1.msra.mxu0 %v4448
    %5128 = vmatprep.subr.mxu0 %v4451
    %5129 = vmatpush1.msra.mxu0 %v4450
    %5130 = vmatprep.subr.mxu0 %v4453
    %5131 = vmatpush1.msra.mxu0 %v4452
    %5132 = vmatprep.subr.mxu0 %v4455
    %5133 = vmatpush1.msra.mxu0 %v4454
    %5134 = vmatprep.subr.mxu0 %v4457
    %5135 = vmatpush1.msra.mxu0 %v4456
    %5136 = vmatprep.subr.mxu0 %v4459
    %5137 = vmatpush1.msra.mxu0 %v4458
    %5138 = vmatprep.subr.mxu0 %v4461
    %5139 = vmatpush1.msra.mxu0 %v4460
    %5140 = vmatprep.subr.mxu0 %v4463
    %5141 = vmatpush1.msra.mxu0 %v4462
    %5142 = vmatprep.subr.mxu0 %v4465
    %5143 = vmatpush1.msra.mxu0 %v4464
    %5144 = vmatprep.subr.mxu0 %v4467
    %5145 = vmatpush1.msra.mxu0 %v4466
    %5146 = vmatprep.subr.mxu0 %v4469
    %5147 = vmatpush1.msra.mxu0 %v4468
    %5148 = vmatprep.subr.mxu0 %v4471
    %5149 = vmatpush1.msra.mxu0 %v4470
    %5150 = vmatprep.subr.mxu0 %v4473
    %5151 = vmatpush1.msra.mxu0 %v4472
    %5152 = vmatprep.subr.mxu0 %v4475
    %5153 = vmatpush1.msra.mxu0 %v4474
    %5154 = vmatprep.subr.mxu0 %v4477
    %5155 = vmatpush1.msra.mxu0 %v4476
    %5156 = vmatprep.subr.mxu0 %v4479
    %5157 = vmatpush1.msra.mxu0 %v4478
    %5158 = vmatprep.subr.mxu0 %v4481
    %5159 = vmatpush1.msra.mxu0 %v4480
    %5160 = vmatprep.subr.mxu0 %v4483
    %5161 = vmatpush1.msra.mxu0 %v4482
    %5162 = vmatprep.subr.mxu0 %v4485
    %5163 = vmatpush1.msra.mxu0 %v4484
    %5164 = vmatprep.subr.mxu0 %v4487
    %5165 = vmatpush1.msra.mxu0 %v4486
    %5166 = vmatprep.subr.mxu0 %v4489
    %5167 = vmatpush1.msra.mxu0 %v4488
    %5168 = vmatprep.subr.mxu0 %v4491
    %5169 = vmatpush1.msra.mxu0 %v4490
    %5170 = vmatprep.subr.mxu0 %v4493
    %5171 = vmatpush1.msra.mxu0 %v4492
    %5172 = vmatprep.subr.mxu0 %v4495
    %5173 = vmatpush1.msra.mxu0 %v4494
    %5174 = vmatprep.subr.mxu0 %v4497
    %5175 = vmatpush1.msra.mxu0 %v4496
    %5176 = vmatprep.subr.mxu0 %v4499
    %5177 = vmatpush1.msra.mxu0 %v4498
    %5178 = vmatprep.mubr.f32.mxu0 %v4177
    %5179 = vmatmul.mubr.f32.gmra.mrb[0].mxu0 %v4176
    %v5180 = vpop.f32.mrb[0].mxu0
    %v5181 = vadd.f32 %v5107, %v5180
    %v5182 = vpop.f32.mrb[0].mxu0
    %v5183 = vadd.f32 %v5111, %v5182
    %5184 = vmatprep.mubr.f32.mxu0 %v4181
    %5185 = vmatmul.mubr.f32.gmra.mrb[0].mxu0 %v4180
    %v5186 = vpop.f32.mrb[0].mxu0
    %v5187 = vadd.f32 %v5107, %v5186
    %v5188 = vpop.f32.mrb[0].mxu0
    %v5189 = vadd.f32 %v5111, %v5188
    %5190 = vmatprep.mubr.f32.mxu0 %v4185
    %5191 = vmatmul.mubr.f32.gmra.mrb[0].mxu0 %v4184
    %v5192 = vpop.f32.mrb[0].mxu0
    %v5193 = vadd.f32 %v5107, %v5192
    %v5194 = vpop.f32.mrb[0].mxu0
    %v5195 = vadd.f32 %v5111, %v5194
    %5196 = vmatprep.mubr.f32.mxu0 %v4189
    %5197 = vmatmul.mubr.f32.gmra.mrb[0].mxu0 %v4188
    %v5198 = vpop.f32.mrb[0].mxu0
    %v5199 = vadd.f32 %v5107, %v5198
    %v5200 = vpop.f32.mrb[0].mxu0
    %v5201 = vadd.f32 %v5111, %v5200
    %5202 = vmatprep.mubr.f32.mxu0 %v4193
    %5203 = vmatmul.mubr.f32.gmra.mrb[0].mxu0 %v4192
    %v5204 = vpop.f32.mrb[0].mxu0
    %v5205 = vadd.f32 %v5107, %v5204
    %v5206 = vpop.f32.mrb[0].mxu0
    %v5207 = vadd.f32 %v5111, %v5206
    %5208 = vmatprep.mubr.f32.mxu0 %v4197
    %5209 = vmatmul.mubr.f32.gmra.mrb[0].mxu0 %v4196
    %v5210 = vpop.f32.mrb[0].mxu0
    %v5211 = vadd.f32 %v5107, %v5210
    %v5212 = vpop.f32.mrb[0].mxu0
    %v5213 = vadd.f32 %v5111, %v5212
    %5214 = vmatprep.mubr.f32.mxu0 %v4201
    %5215 = vmatmul.mubr.f32.gmra.mrb[0].mxu0 %v4200
    %v5216 = vpop.f32.mrb[0].mxu0
    %v5217 = vadd.f32 %v5107, %v5216
    %v5218 = vpop.f32.mrb[0].mxu0
    %v5219 = vadd.f32 %v5111, %v5218
    %5220 = vmatprep.mubr.f32.mxu0 %v4205
    %5221 = vmatmul.mubr.f32.gmra.mrb[0].mxu0 %v4204
    %v5222 = vpop.f32.mrb[0].mxu0
    %v5223 = vadd.f32 %v5107, %v5222
    %v5224 = vpop.f32.mrb[0].mxu0
    %v5225 = vadd.f32 %v5111, %v5224
    %5226 = vmatprep.mubr.f32.mxu0 %v4209
    %5227 = vmatmul.mubr.f32.gmra.mrb[0].mxu0 %v4208
    %v5228 = vpop.f32.mrb[0].mxu0
    %v5229 = vadd.f32 %v5107, %v5228
    %v5230 = vpop.f32.mrb[0].mxu0
    %v5231 = vadd.f32 %v5111, %v5230
    %5232 = vmatprep.mubr.f32.mxu0 %v4213
    %5233 = vmatmul.mubr.f32.gmra.mrb[0].mxu0 %v4212
    %v5234 = vpop.f32.mrb[0].mxu0
    %v5235 = vadd.f32 %v5107, %v5234
    %v5236 = vpop.f32.mrb[0].mxu0
    %v5237 = vadd.f32 %v5111, %v5236
    %5238 = vmatprep.mubr.f32.mxu0 %v4217
    %5239 = vmatmul.mubr.f32.gmra.mrb[0].mxu0 %v4216
    %v5240 = vpop.f32.mrb[0].mxu0
    %v5241 = vadd.f32 %v5107, %v5240
    %v5242 = vpop.f32.mrb[0].mxu0
    %v5243 = vadd.f32 %v5111, %v5242
    %5244 = vmatprep.mubr.f32.mxu0 %v4221
    %5245 = vmatmul.mubr.f32.gmra.mrb[0].mxu0 %v4220
    %v5246 = vpop.f32.mrb[0].mxu0
    %v5247 = vadd.f32 %v5107, %v5246
    %v5248 = vpop.f32.mrb[0].mxu0
    %v5249 = vadd.f32 %v5111, %v5248
    %5250 = vmatprep.mubr.f32.mxu0 %v4225
    %5251 = vmatmul.mubr.f32.gmra.mrb[0].mxu0 %v4224
    %v5252 = vpop.f32.mrb[0].mxu0
    %v5253 = vadd.f32 %v5107, %v5252
    %v5254 = vpop.f32.mrb[0].mxu0
    %v5255 = vadd.f32 %v5111, %v5254
    %5256 = vmatprep.mubr.f32.mxu0 %v4229
    %5257 = vmatmul.mubr.f32.gmra.mrb[0].mxu0 %v4228
    %v5258 = vpop.f32.mrb[0].mxu0
    %v5259 = vadd.f32 %v5107, %v5258
    %v5260 = vpop.f32.mrb[0].mxu0
    %v5261 = vadd.f32 %v5111, %v5260
    %5262 = vmatprep.mubr.f32.mxu0 %v4233
    %5263 = vmatmul.mubr.f32.gmra.mrb[0].mxu0 %v4232
    %v5264 = vpop.f32.mrb[0].mxu0
    %v5265 = vadd.f32 %v5107, %v5264
    %v5266 = vpop.f32.mrb[0].mxu0
    %v5267 = vadd.f32 %v5111, %v5266
    %5268 = vmatprep.mubr.f32.mxu0 %v4237
    %5269 = vmatmul.mubr.f32.gmra.mrb[0].mxu0 %v4236
    %v5270 = vpop.f32.mrb[0].mxu0
    %v5271 = vadd.f32 %v5107, %v5270
    %v5272 = vpop.f32.mrb[0].mxu0
    %v5273 = vadd.f32 %v5111, %v5272
    %5274 = vdwg.mxu0
    %5275 = vmatprep.subr.mxu0 %v4501
    %5276 = vmatpush1.msra.mxu0 %v4500
    %5277 = vmatprep.subr.mxu0 %v4503
    %5278 = vmatpush1.msra.mxu0 %v4502
    %5279 = vmatprep.subr.mxu0 %v4505
    %5280 = vmatpush1.msra.mxu0 %v4504
    %5281 = vmatprep.subr.mxu0 %v4507
    %5282 = vmatpush1.msra.mxu0 %v4506
    %5283 = vmatprep.subr.mxu0 %v4509
    %5284 = vmatpush1.msra.mxu0 %v4508
    %5285 = vmatprep.subr.mxu0 %v4511
    %5286 = vmatpush1.msra.mxu0 %v4510
    %5287 = vmatprep.subr.mxu0 %v4513
    %5288 = vmatpush1.msra.mxu0 %v4512
    %5289 = vmatprep.subr.mxu0 %v4515
    %5290 = vmatpush1.msra.mxu0 %v4514
    %5291 = vmatprep.subr.mxu0 %v4517
    %5292 = vmatpush1.msra.mxu0 %v4516
    %5293 = vmatprep.subr.mxu0 %v4519
    %5294 = vmatpush1.msra.mxu0 %v4518
    %5295 = vmatprep.subr.mxu0 %v4521
    %5296 = vmatpush1.msra.mxu0 %v4520
    %5297 = vmatprep.subr.mxu0 %v4523
    %5298 = vmatpush1.msra.mxu0 %v4522
    %5299 = vmatprep.subr.mxu0 %v4525
    %5300 = vmatpush1.msra.mxu0 %v4524
    %5301 = vmatprep.subr.mxu0 %v4527
    %5302 = vmatpush1.msra.mxu0 %v4526
    %5303 = vmatprep.subr.mxu0 %v4529
    %5304 = vmatpush1.msra.mxu0 %v4528
    %5305 = vmatprep.subr.mxu0 %v4531
    %5306 = vmatpush1.msra.mxu0 %v4530
    %5307 = vmatprep.subr.mxu0 %v4533
    %5308 = vmatpush1.msra.mxu0 %v4532
    %5309 = vmatprep.subr.mxu0 %v4535
    %5310 = vmatpush1.msra.mxu0 %v4534
    %5311 = vmatprep.subr.mxu0 %v4537
    %5312 = vmatpush1.msra.mxu0 %v4536
    %5313 = vmatprep.subr.mxu0 %v4539
    %5314 = vmatpush1.msra.mxu0 %v4538
    %5315 = vmatprep.subr.mxu0 %v4541
    %5316 = vmatpush1.msra.mxu0 %v4540
    %5317 = vmatprep.subr.mxu0 %v4543
    %5318 = vmatpush1.msra.mxu0 %v4542
    %5319 = vmatprep.subr.mxu0 %v4545
    %5320 = vmatpush1.msra.mxu0 %v4544
    %5321 = vmatprep.subr.mxu0 %v4547
    %5322 = vmatpush1.msra.mxu0 %v4546
    %5323 = vmatprep.subr.mxu0 %v4549
    %5324 = vmatpush1.msra.mxu0 %v4548
    %5325 = vmatprep.subr.mxu0 %v4551
    %5326 = vmatpush1.msra.mxu0 %v4550
    %5327 = vmatprep.subr.mxu0 %v4553
    %5328 = vmatpush1.msra.mxu0 %v4552
    %5329 = vmatprep.subr.mxu0 %v4555
    %5330 = vmatpush1.msra.mxu0 %v4554
    %5331 = vmatprep.subr.mxu0 %v4557
    %5332 = vmatpush1.msra.mxu0 %v4556
    %5333 = vmatprep.subr.mxu0 %v4559
    %5334 = vmatpush1.msra.mxu0 %v4558
    %5335 = vmatprep.subr.mxu0 %v4561
    %5336 = vmatpush1.msra.mxu0 %v4560
    %5337 = vmatprep.subr.mxu0 %v4563
    %5338 = vmatpush1.msra.mxu0 %v4562
    %5339 = vmatprep.mubr.f32.mxu0 %v4179
    %5340 = vmatmul.mubr.f32.gmra.mrb[0].mxu0 %v4178
    %v5341 = vpop.f32.mrb[0].mxu0
    %v5342 = vadd.f32 %v5181, %v5341
    %v5343 = vpop.f32.mrb[0].mxu0
    %v5344 = vadd.f32 %v5183, %v5343
    %5345 = vmatprep.mubr.f32.mxu0 %v4183
    %5346 = vmatmul.mubr.f32.gmra.mrb[0].mxu0 %v4182
    %v5347 = vpop.f32.mrb[0].mxu0
    %v5348 = vadd.f32 %v5187, %v5347
    %v5349 = vpop.f32.mrb[0].mxu0
    %v5350 = vadd.f32 %v5189, %v5349
    %5351 = vmatprep.mubr.f32.mxu0 %v4187
    %5352 = vmatmul.mubr.f32.gmra.mrb[0].mxu0 %v4186
    %v5353 = vpop.f32.mrb[0].mxu0
    %v5354 = vadd.f32 %v5193, %v5353
    %v5355 = vpop.f32.mrb[0].mxu0
    %v5356 = vadd.f32 %v5195, %v5355
    %5357 = vmatprep.mubr.f32.mxu0 %v4191
    %5358 = vmatmul.mubr.f32.gmra.mrb[0].mxu0 %v4190
    %v5359 = vpop.f32.mrb[0].mxu0
    %v5360 = vadd.f32 %v5199, %v5359
    %v5361 = vpop.f32.mrb[0].mxu0
    %v5362 = vadd.f32 %v5201, %v5361
    %5363 = vmatprep.mubr.f32.mxu0 %v4195
    %5364 = vmatmul.mubr.f32.gmra.mrb[0].mxu0 %v4194
    %v5365 = vpop.f32.mrb[0].mxu0
    %v5366 = vadd.f32 %v5205, %v5365
    %v5367 = vpop.f32.mrb[0].mxu0
    %v5368 = vadd.f32 %v5207, %v5367
    %5369 = vmatprep.mubr.f32.mxu0 %v4199
    %5370 = vmatmul.mubr.f32.gmra.mrb[0].mxu0 %v4198
    %v5371 = vpop.f32.mrb[0].mxu0
    %v5372 = vadd.f32 %v5211, %v5371
    %v5373 = vpop.f32.mrb[0].mxu0
    %v5374 = vadd.f32 %v5213, %v5373
    %5375 = vmatprep.mubr.f32.mxu0 %v4203
    %5376 = vmatmul.mubr.f32.gmra.mrb[0].mxu0 %v4202
    %v5377 = vpop.f32.mrb[0].mxu0
    %v5378 = vadd.f32 %v5217, %v5377
    %v5379 = vpop.f32.mrb[0].mxu0
    %v5380 = vadd.f32 %v5219, %v5379
    %5381 = vmatprep.mubr.f32.mxu0 %v4207
    %5382 = vmatmul.mubr.f32.gmra.mrb[0].mxu0 %v4206
    %v5383 = vpop.f32.mrb[0].mxu0
    %v5384 = vadd.f32 %v5223, %v5383
    %v5385 = vpop.f32.mrb[0].mxu0
    %v5386 = vadd.f32 %v5225, %v5385
    %5387 = vmatprep.mubr.f32.mxu0 %v4211
    %5388 = vmatmul.mubr.f32.gmra.mrb[0].mxu0 %v4210
    %v5389 = vpop.f32.mrb[0].mxu0
    %v5390 = vadd.f32 %v5229, %v5389
    %v5391 = vpop.f32.mrb[0].mxu0
    %v5392 = vadd.f32 %v5231, %v5391
    %5393 = vmatprep.mubr.f32.mxu0 %v4215
    %5394 = vmatmul.mubr.f32.gmra.mrb[0].mxu0 %v4214
    %v5395 = vpop.f32.mrb[0].mxu0
    %v5396 = vadd.f32 %v5235, %v5395
    %v5397 = vpop.f32.mrb[0].mxu0
    %v5398 = vadd.f32 %v5237, %v5397
    %5399 = vmatprep.mubr.f32.mxu0 %v4219
    %5400 = vmatmul.mubr.f32.gmra.mrb[0].mxu0 %v4218
    %v5401 = vpop.f32.mrb[0].mxu0
    %v5402 = vadd.f32 %v5241, %v5401
    %v5403 = vpop.f32.mrb[0].mxu0
    %v5404 = vadd.f32 %v5243, %v5403
    %5405 = vmatprep.mubr.f32.mxu0 %v4223
    %5406 = vmatmul.mubr.f32.gmra.mrb[0].mxu0 %v4222
    %v5407 = vpop.f32.mrb[0].mxu0
    %v5408 = vadd.f32 %v5247, %v5407
    %v5409 = vpop.f32.mrb[0].mxu0
    %v5410 = vadd.f32 %v5249, %v5409
    %5411 = vmatprep.mubr.f32.mxu0 %v4227
    %5412 = vmatmul.mubr.f32.gmra.mrb[0].mxu0 %v4226
    %v5413 = vpop.f32.mrb[0].mxu0
    %v5414 = vadd.f32 %v5253, %v5413
    %v5415 = vpop.f32.mrb[0].mxu0
    %v5416 = vadd.f32 %v5255, %v5415
    %5417 = vmatprep.mubr.f32.mxu0 %v4231
    %5418 = vmatmul.mubr.f32.gmra.mrb[0].mxu0 %v4230
    %v5419 = vpop.f32.mrb[0].mxu0
    %v5420 = vadd.f32 %v5259, %v5419
    %v5421 = vpop.f32.mrb[0].mxu0
    %v5422 = vadd.f32 %v5261, %v5421
    %5423 = vmatprep.mubr.f32.mxu0 %v4235
    %5424 = vmatmul.mubr.f32.gmra.mrb[0].mxu0 %v4234
    %v5425 = vpop.f32.mrb[0].mxu0
    %v5426 = vadd.f32 %v5265, %v5425
    %v5427 = vpop.f32.mrb[0].mxu0
    %v5428 = vadd.f32 %v5267, %v5427
    %5429 = vmatprep.mubr.f32.mxu0 %v4239
    %5430 = vmatmul.mubr.f32.gmra.mrb[0].mxu0 %v4238
    %v5431 = vpop.f32.mrb[0].mxu0
    %v5432 = vadd.f32 %v5271, %v5431
    %v5433 = vpop.f32.mrb[0].mxu0
    %v5434 = vadd.f32 %v5273, %v5433
    %5435 = vdwg.mxu0
    %v5436 = vadd.f32 %v5009, %v5342
    %v5437 = vadd.f32 %v5011, %v5344
    %v5438 = vadd.f32 %v5015, %v5348
    %v5439 = vadd.f32 %v5017, %v5350
    %v5440 = vadd.f32 %v5021, %v5354
    %v5441 = vadd.f32 %v5023, %v5356
    %v5442 = vadd.f32 %v5027, %v5360
    %v5443 = vadd.f32 %v5029, %v5362
    %v5444 = vadd.f32 %v5033, %v5366
    %v5445 = vadd.f32 %v5035, %v5368
    %v5446 = vadd.f32 %v5039, %v5372
    %v5447 = vadd.f32 %v5041, %v5374
    %v5448 = vadd.f32 %v5045, %v5378
    %v5449 = vadd.f32 %v5047, %v5380
    %v5450 = vadd.f32 %v5051, %v5384
    %v5451 = vadd.f32 %v5053, %v5386
    %v5452 = vadd.f32 %v5057, %v5390
    %v5453 = vadd.f32 %v5059, %v5392
    %v5454 = vadd.f32 %v5063, %v5396
    %v5455 = vadd.f32 %v5065, %v5398
    %v5456 = vadd.f32 %v5069, %v5402
    %v5457 = vadd.f32 %v5071, %v5404
    %v5458 = vadd.f32 %v5075, %v5408
    %v5459 = vadd.f32 %v5077, %v5410
    %v5460 = vadd.f32 %v5081, %v5414
    %v5461 = vadd.f32 %v5083, %v5416
    %v5462 = vadd.f32 %v5087, %v5420
    %v5463 = vadd.f32 %v5089, %v5422
    %v5464 = vadd.f32 %v5093, %v5426
    %v5465 = vadd.f32 %v5095, %v5428
    %v5466 = vadd.f32 %v5099, %v5432
    %v5467 = vadd.f32 %v5101, %v5434
    %v5468 = vmax.f32 %v5436, 0.0
    %v5469 = vmax.f32 %v5437, 0.0
    %v5470 = vmax.f32 %v5438, 0.0
    %v5471 = vmax.f32 %v5439, 0.0
    %v5472 = vmax.f32 %v5440, 0.0
    %v5473 = vmax.f32 %v5441, 0.0
    %v5474 = vmax.f32 %v5442, 0.0
    %v5475 = vmax.f32 %v5443, 0.0
    %v5476 = vmax.f32 %v5444, 0.0
    %v5477 = vmax.f32 %v5445, 0.0
    %v5478 = vmax.f32 %v5446, 0.0
    %v5479 = vmax.f32 %v5447, 0.0
    %v5480 = vmax.f32 %v5448, 0.0
    %v5481 = vmax.f32 %v5449, 0.0
    %v5482 = vmax.f32 %v5450, 0.0
    %v5483 = vmax.f32 %v5451, 0.0
    %v5484 = vmax.f32 %v5452, 0.0
    %v5485 = vmax.f32 %v5453, 0.0
    %v5486 = vmax.f32 %v5454, 0.0
    %v5487 = vmax.f32 %v5455, 0.0
    %v5488 = vmax.f32 %v5456, 0.0
    %v5489 = vmax.f32 %v5457, 0.0
    %v5490 = vmax.f32 %v5458, 0.0
    %v5491 = vmax.f32 %v5459, 0.0
    %v5492 = vmax.f32 %v5460, 0.0
    %v5493 = vmax.f32 %v5461, 0.0
    %v5494 = vmax.f32 %v5462, 0.0
    %v5495 = vmax.f32 %v5463, 0.0
    %v5496 = vmax.f32 %v5464, 0.0
    %v5497 = vmax.f32 %v5465, 0.0
    %v5498 = vmax.f32 %v5466, 0.0
    %v5499 = vmax.f32 %v5467, 0.0
    %v5500 = vld [vmem:[#allocation17] sm:$0xff]
    %v5501 = vld [vmem:[#allocation17 + $0x8] sm:$0xff]
    %v5502 = vld [vmem:[#allocation17 + $0x10] sm:$0xff]
    %v5503 = vld [vmem:[#allocation17 + $0x18] sm:$0xff]
    %v5504 = vld [vmem:[#allocation17 + $0x20] sm:$0xff]
    %v5505 = vld [vmem:[#allocation17 + $0x28] sm:$0xff]
    %v5506 = vld [vmem:[#allocation17 + $0x30] sm:$0xff]
    %v5507 = vld [vmem:[#allocation17 + $0x38] sm:$0xff]
    %v5508 = vld [vmem:[#allocation17 + $0x40] sm:$0xff]
    %v5509 = vld [vmem:[#allocation17 + $0x48] sm:$0xff]
    %v5510 = vld [vmem:[#allocation17 + $0x50] sm:$0xff]
    %v5511 = vld [vmem:[#allocation17 + $0x58] sm:$0xff]
    %v5512 = vld [vmem:[#allocation17 + $0x60] sm:$0xff]
    %v5513 = vld [vmem:[#allocation17 + $0x68] sm:$0xff]
    %v5514 = vld [vmem:[#allocation17 + $0x70] sm:$0xff]
    %v5515 = vld [vmem:[#allocation17 + $0x78] sm:$0xff]
    %v5516 = vld [vmem:[#allocation17 + $0x80] sm:$0xff]
    %v5517 = vld [vmem:[#allocation17 + $0x88] sm:$0xff]
    %v5518 = vld [vmem:[#allocation17 + $0x90] sm:$0xff]
    %v5519 = vld [vmem:[#allocation17 + $0x98] sm:$0xff]
    %v5520 = vld [vmem:[#allocation17 + $0xa0] sm:$0xff]
    %v5521 = vld [vmem:[#allocation17 + $0xa8] sm:$0xff]
    %v5522 = vld [vmem:[#allocation17 + $0xb0] sm:$0xff]
    %v5523 = vld [vmem:[#allocation17 + $0xb8] sm:$0xff]
    %v5524 = vld [vmem:[#allocation17 + $0xc0] sm:$0xff]
    %v5525 = vld [vmem:[#allocation17 + $0xc8] sm:$0xff]
    %v5526 = vld [vmem:[#allocation17 + $0xd0] sm:$0xff]
    %v5527 = vld [vmem:[#allocation17 + $0xd8] sm:$0xff]
    %v5528 = vld [vmem:[#allocation17 + $0xe0] sm:$0xff]
    %v5529 = vld [vmem:[#allocation17 + $0xe8] sm:$0xff]
    %v5530 = vld [vmem:[#allocation17 + $0xf0] sm:$0xff]
    %v5531 = vld [vmem:[#allocation17 + $0xf8] sm:$0xff]
    %v5532 = vld [vmem:[#allocation19] sm:$0xff]
    %v5533 = vld [vmem:[#allocation19 + $0x8] sm:$0xff]
    %v5534 = vld [vmem:[#allocation19 + $0x10] sm:$0xff]
    %v5535 = vld [vmem:[#allocation19 + $0x18] sm:$0xff]
    %v5536 = vld [vmem:[#allocation19 + $0x20] sm:$0xff]
    %v5537 = vld [vmem:[#allocation19 + $0x28] sm:$0xff]
    %v5538 = vld [vmem:[#allocation19 + $0x30] sm:$0xff]
    %v5539 = vld [vmem:[#allocation19 + $0x38] sm:$0xff]
    %v5540 = vld [vmem:[#allocation19 + $0x40] sm:$0xff]
    %v5541 = vld [vmem:[#allocation19 + $0x48] sm:$0xff]
    %v5542 = vld [vmem:[#allocation19 + $0x50] sm:$0xff]
    %v5543 = vld [vmem:[#allocation19 + $0x58] sm:$0xff]
    %v5544 = vld [vmem:[#allocation19 + $0x60] sm:$0xff]
    %v5545 = vld [vmem:[#allocation19 + $0x68] sm:$0xff]
    %v5546 = vld [vmem:[#allocation19 + $0x70] sm:$0xff]
    %v5547 = vld [vmem:[#allocation19 + $0x78] sm:$0xff]
    %v5548 = vld [vmem:[#allocation25 + $0x20] ss:$0 sm:$0xff]
    %v5549 = vld [vmem:[#allocation25 + $0x21] ss:$0 sm:$0xff]
    %v5550 = vld [vmem:[#allocation20] sm:$0xff]
    %v5551 = vld [vmem:[#allocation20 + $0x8] sm:$0xff]
    %v5552 = vld [vmem:[#allocation20 + $0x10] sm:$0xff]
    %v5553 = vld [vmem:[#allocation20 + $0x18] sm:$0xff]
    %v5554 = vld [vmem:[#allocation20 + $0x20] sm:$0xff]
    %v5555 = vld [vmem:[#allocation20 + $0x28] sm:$0xff]
    %v5556 = vld [vmem:[#allocation20 + $0x30] sm:$0xff]
    %v5557 = vld [vmem:[#allocation20 + $0x38] sm:$0xff]
    %v5558 = vld [vmem:[#allocation20 + $0x40] sm:$0xff]
    %v5559 = vld [vmem:[#allocation20 + $0x48] sm:$0xff]
    %v5560 = vld [vmem:[#allocation20 + $0x50] sm:$0xff]
    %v5561 = vld [vmem:[#allocation20 + $0x58] sm:$0xff]
    %v5562 = vld [vmem:[#allocation20 + $0x60] sm:$0xff]
    %v5563 = vld [vmem:[#allocation20 + $0x68] sm:$0xff]
    %v5564 = vld [vmem:[#allocation20 + $0x70] sm:$0xff]
    %v5565 = vld [vmem:[#allocation20 + $0x78] sm:$0xff]
    %v5566 = vld [vmem:[#allocation20 + $0x80] sm:$0xff]
    %v5567 = vld [vmem:[#allocation20 + $0x88] sm:$0xff]
    %v5568 = vld [vmem:[#allocation20 + $0x90] sm:$0xff]
    %v5569 = vld [vmem:[#allocation20 + $0x98] sm:$0xff]
    %v5570 = vld [vmem:[#allocation20 + $0xa0] sm:$0xff]
    %v5571 = vld [vmem:[#allocation20 + $0xa8] sm:$0xff]
    %v5572 = vld [vmem:[#allocation20 + $0xb0] sm:$0xff]
    %v5573 = vld [vmem:[#allocation20 + $0xb8] sm:$0xff]
    %v5574 = vld [vmem:[#allocation20 + $0xc0] sm:$0xff]
    %v5575 = vld [vmem:[#allocation20 + $0xc8] sm:$0xff]
    %v5576 = vld [vmem:[#allocation20 + $0xd0] sm:$0xff]
    %v5577 = vld [vmem:[#allocation20 + $0xd8] sm:$0xff]
    %v5578 = vld [vmem:[#allocation20 + $0xe0] sm:$0xff]
    %v5579 = vld [vmem:[#allocation20 + $0xe8] sm:$0xff]
    %v5580 = vld [vmem:[#allocation20 + $0xf0] sm:$0xff]
    %v5581 = vld [vmem:[#allocation20 + $0xf8] sm:$0xff]
    %v5582 = vld [vmem:[#allocation25 + $0x22] ss:$0 sm:$0xff]
    %5583 = vmatprep.subr.mxu0 0.0
    %5584 = vmatpush1.msra.mxu0 %v5500
    %5585 = vmatprep.subr.mxu0 0.0
    %5586 = vmatpush1.msra.mxu0 %v5501
    %5587 = vmatprep.subr.mxu0 0.0
    %5588 = vmatpush1.msra.mxu0 %v5502
    %5589 = vmatprep.subr.mxu0 0.0
    %5590 = vmatpush1.msra.mxu0 %v5503
    %5591 = vmatprep.subr.mxu0 0.0
    %5592 = vmatpush1.msra.mxu0 %v5504
    %5593 = vmatprep.subr.mxu0 0.0
    %5594 = vmatpush1.msra.mxu0 %v5505
    %5595 = vmatprep.subr.mxu0 0.0
    %5596 = vmatpush1.msra.mxu0 %v5506
    %5597 = vmatprep.subr.mxu0 0.0
    %5598 = vmatpush1.msra.mxu0 %v5507
    %5599 = vmatprep.subr.mxu0 0.0
    %5600 = vmatpush1.msra.mxu0 %v5508
    %5601 = vmatprep.subr.mxu0 0.0
    %5602 = vmatpush1.msra.mxu0 %v5509
    %5603 = vmatprep.subr.mxu0 0.0
    %5604 = vmatpush1.msra.mxu0 %v5510
    %5605 = vmatprep.subr.mxu0 0.0
    %5606 = vmatpush1.msra.mxu0 %v5511
    %5607 = vmatprep.subr.mxu0 0.0
    %5608 = vmatpush1.msra.mxu0 %v5512
    %5609 = vmatprep.subr.mxu0 0.0
    %5610 = vmatpush1.msra.mxu0 %v5513
    %5611 = vmatprep.subr.mxu0 0.0
    %5612 = vmatpush1.msra.mxu0 %v5514
    %5613 = vmatprep.subr.mxu0 0.0
    %5614 = vmatpush1.msra.mxu0 %v5515
    %5615 = vmatprep.subr.mxu0 0.0
    %5616 = vmatpush1.msra.mxu0 %v5516
    %5617 = vmatprep.subr.mxu0 0.0
    %5618 = vmatpush1.msra.mxu0 %v5517
    %5619 = vmatprep.subr.mxu0 0.0
    %5620 = vmatpush1.msra.mxu0 %v5518
    %5621 = vmatprep.subr.mxu0 0.0
    %5622 = vmatpush1.msra.mxu0 %v5519
    %5623 = vmatprep.subr.mxu0 0.0
    %5624 = vmatpush1.msra.mxu0 %v5520
    %5625 = vmatprep.subr.mxu0 0.0
    %5626 = vmatpush1.msra.mxu0 %v5521
    %5627 = vmatprep.subr.mxu0 0.0
    %5628 = vmatpush1.msra.mxu0 %v5522
    %5629 = vmatprep.subr.mxu0 0.0
    %5630 = vmatpush1.msra.mxu0 %v5523
    %5631 = vmatprep.subr.mxu0 0.0
    %5632 = vmatpush1.msra.mxu0 %v5524
    %5633 = vmatprep.subr.mxu0 0.0
    %5634 = vmatpush1.msra.mxu0 %v5525
    %5635 = vmatprep.subr.mxu0 0.0
    %5636 = vmatpush1.msra.mxu0 %v5526
    %5637 = vmatprep.subr.mxu0 0.0
    %5638 = vmatpush1.msra.mxu0 %v5527
    %5639 = vmatprep.subr.mxu0 0.0
    %5640 = vmatpush1.msra.mxu0 %v5528
    %5641 = vmatprep.subr.mxu0 0.0
    %5642 = vmatpush1.msra.mxu0 %v5529
    %5643 = vmatprep.subr.mxu0 0.0
    %5644 = vmatpush1.msra.mxu0 %v5530
    %5645 = vmatprep.subr.mxu0 0.0
    %5646 = vmatpush1.msra.mxu0 %v5531
    %5647 = vmatprep.mubr.f32.mxu0 %v5469
    %5648 = vmatmul.mubr.f32.gmra.mrb[0].mxu0 %v5468
    %v5649 = vpop.f32.mrb[0].mxu0
    %v5650 = vadd.f32 %v5548, %v5649
    %v5651 = vpop.f32.mrb[0].mxu0
    %5652 = vmatprep.mubr.f32.mxu0 %v5471
    %5653 = vmatmul.mubr.f32.gmra.mrb[0].mxu0 %v5470
    %v5654 = vpop.f32.mrb[0].mxu0
    %v5655 = vadd.f32 %v5548, %v5654
    %v5656 = vpop.f32.mrb[0].mxu0
    %5657 = vmatprep.mubr.f32.mxu0 %v5473
    %5658 = vmatmul.mubr.f32.gmra.mrb[0].mxu0 %v5472
    %v5659 = vpop.f32.mrb[0].mxu0
    %v5660 = vadd.f32 %v5548, %v5659
    %v5661 = vpop.f32.mrb[0].mxu0
    %5662 = vmatprep.mubr.f32.mxu0 %v5475
    %5663 = vmatmul.mubr.f32.gmra.mrb[0].mxu0 %v5474
    %v5664 = vpop.f32.mrb[0].mxu0
    %v5665 = vadd.f32 %v5548, %v5664
    %v5666 = vpop.f32.mrb[0].mxu0
    %5667 = vmatprep.mubr.f32.mxu0 %v5477
    %5668 = vmatmul.mubr.f32.gmra.mrb[0].mxu0 %v5476
    %v5669 = vpop.f32.mrb[0].mxu0
    %v5670 = vadd.f32 %v5548, %v5669
    %v5671 = vpop.f32.mrb[0].mxu0
    %5672 = vmatprep.mubr.f32.mxu0 %v5479
    %5673 = vmatmul.mubr.f32.gmra.mrb[0].mxu0 %v5478
    %v5674 = vpop.f32.mrb[0].mxu0
    %v5675 = vadd.f32 %v5548, %v5674
    %v5676 = vpop.f32.mrb[0].mxu0
    %5677 = vmatprep.mubr.f32.mxu0 %v5481
    %5678 = vmatmul.mubr.f32.gmra.mrb[0].mxu0 %v5480
    %v5679 = vpop.f32.mrb[0].mxu0
    %v5680 = vadd.f32 %v5548, %v5679
    %v5681 = vpop.f32.mrb[0].mxu0
    %5682 = vmatprep.mubr.f32.mxu0 %v5483
    %5683 = vmatmul.mubr.f32.gmra.mrb[0].mxu0 %v5482
    %v5684 = vpop.f32.mrb[0].mxu0
    %v5685 = vadd.f32 %v5548, %v5684
    %v5686 = vpop.f32.mrb[0].mxu0
    %5687 = vmatprep.mubr.f32.mxu0 %v5485
    %5688 = vmatmul.mubr.f32.gmra.mrb[0].mxu0 %v5484
    %v5689 = vpop.f32.mrb[0].mxu0
    %v5690 = vadd.f32 %v5548, %v5689
    %v5691 = vpop.f32.mrb[0].mxu0
    %5692 = vmatprep.mubr.f32.mxu0 %v5487
    %5693 = vmatmul.mubr.f32.gmra.mrb[0].mxu0 %v5486
    %v5694 = vpop.f32.mrb[0].mxu0
    %v5695 = vadd.f32 %v5548, %v5694
    %v5696 = vpop.f32.mrb[0].mxu0
    %5697 = vmatprep.mubr.f32.mxu0 %v5489
    %5698 = vmatmul.mubr.f32.gmra.mrb[0].mxu0 %v5488
    %v5699 = vpop.f32.mrb[0].mxu0
    %v5700 = vadd.f32 %v5548, %v5699
    %v5701 = vpop.f32.mrb[0].mxu0
    %5702 = vmatprep.mubr.f32.mxu0 %v5491
    %5703 = vmatmul.mubr.f32.gmra.mrb[0].mxu0 %v5490
    %v5704 = vpop.f32.mrb[0].mxu0
    %v5705 = vadd.f32 %v5548, %v5704
    %v5706 = vpop.f32.mrb[0].mxu0
    %5707 = vmatprep.mubr.f32.mxu0 %v5493
    %5708 = vmatmul.mubr.f32.gmra.mrb[0].mxu0 %v5492
    %v5709 = vpop.f32.mrb[0].mxu0
    %v5710 = vadd.f32 %v5548, %v5709
    %v5711 = vpop.f32.mrb[0].mxu0
    %5712 = vmatprep.mubr.f32.mxu0 %v5495
    %5713 = vmatmul.mubr.f32.gmra.mrb[0].mxu0 %v5494
    %v5714 = vpop.f32.mrb[0].mxu0
    %v5715 = vadd.f32 %v5548, %v5714
    %v5716 = vpop.f32.mrb[0].mxu0
    %5717 = vmatprep.mubr.f32.mxu0 %v5497
    %5718 = vmatmul.mubr.f32.gmra.mrb[0].mxu0 %v5496
    %v5719 = vpop.f32.mrb[0].mxu0
    %v5720 = vadd.f32 %v5548, %v5719
    %v5721 = vpop.f32.mrb[0].mxu0
    %5722 = vmatprep.mubr.f32.mxu0 %v5499
    %5723 = vmatmul.mubr.f32.gmra.mrb[0].mxu0 %v5498
    %v5724 = vpop.f32.mrb[0].mxu0
    %v5725 = vadd.f32 %v5548, %v5724
    %v5726 = vpop.f32.mrb[0].mxu0
    %5727 = vdwg.mxu0
    %v5728 = vmax.f32 %v5650, 0.0
    %v5729 = vmax.f32 %v5655, 0.0
    %v5730 = vmax.f32 %v5660, 0.0
    %v5731 = vmax.f32 %v5665, 0.0
    %v5732 = vmax.f32 %v5670, 0.0
    %v5733 = vmax.f32 %v5675, 0.0
    %v5734 = vmax.f32 %v5680, 0.0
    %v5735 = vmax.f32 %v5685, 0.0
    %v5736 = vmax.f32 %v5690, 0.0
    %v5737 = vmax.f32 %v5695, 0.0
    %v5738 = vmax.f32 %v5700, 0.0
    %v5739 = vmax.f32 %v5705, 0.0
    %v5740 = vmax.f32 %v5710, 0.0
    %v5741 = vmax.f32 %v5715, 0.0
    %v5742 = vmax.f32 %v5720, 0.0
    %v5743 = vmax.f32 %v5725, 0.0
    %5744 = vmatprep.subr.mxu0 0.0
    %5745 = vmatpush1.msra.mxu0 %v5532
    %5746 = vmatprep.subr.mxu0 0.0
    %5747 = vmatpush1.msra.mxu0 %v5533
    %5748 = vmatprep.subr.mxu0 0.0
    %5749 = vmatpush1.msra.mxu0 %v5534
    %5750 = vmatprep.subr.mxu0 0.0
    %5751 = vmatpush1.msra.mxu0 %v5535
    %5752 = vmatprep.subr.mxu0 0.0
    %5753 = vmatpush1.msra.mxu0 %v5536
    %5754 = vmatprep.subr.mxu0 0.0
    %5755 = vmatpush1.msra.mxu0 %v5537
    %5756 = vmatprep.subr.mxu0 0.0
    %5757 = vmatpush1.msra.mxu0 %v5538
    %5758 = vmatprep.subr.mxu0 0.0
    %5759 = vmatpush1.msra.mxu0 %v5539
    %5760 = vmatprep.subr.mxu0 0.0
    %5761 = vmatpush1.msra.mxu0 %v5540
    %5762 = vmatprep.subr.mxu0 0.0
    %5763 = vmatpush1.msra.mxu0 %v5541
    %5764 = vmatprep.subr.mxu0 0.0
    %5765 = vmatpush1.msra.mxu0 %v5542
    %5766 = vmatprep.subr.mxu0 0.0
    %5767 = vmatpush1.msra.mxu0 %v5543
    %5768 = vmatprep.subr.mxu0 0.0
    %5769 = vmatpush1.msra.mxu0 %v5544
    %5770 = vmatprep.subr.mxu0 0.0
    %5771 = vmatpush1.msra.mxu0 %v5545
    %5772 = vmatprep.subr.mxu0 0.0
    %5773 = vmatpush1.msra.mxu0 %v5546
    %5774 = vmatprep.subr.mxu0 0.0
    %5775 = vmatpush1.msra.mxu0 %v5547
    %5776 = vmatprep.subr.mxu0 0.0
    %5777 = vmatpush1.msra.mxu0 0.0
    %5778 = vmatprep.subr.mxu0 0.0
    %5779 = vmatpush1.msra.mxu0 0.0
    %5780 = vmatprep.subr.mxu0 0.0
    %5781 = vmatpush1.msra.mxu0 0.0
    %5782 = vmatprep.subr.mxu0 0.0
    %5783 = vmatpush1.msra.mxu0 0.0
    %5784 = vmatprep.subr.mxu0 0.0
    %5785 = vmatpush1.msra.mxu0 0.0
    %5786 = vmatprep.subr.mxu0 0.0
    %5787 = vmatpush1.msra.mxu0 0.0
    %5788 = vmatprep.subr.mxu0 0.0
    %5789 = vmatpush1.msra.mxu0 0.0
    %5790 = vmatprep.subr.mxu0 0.0
    %5791 = vmatpush1.msra.mxu0 0.0
    %5792 = vmatprep.subr.mxu0 0.0
    %5793 = vmatpush1.msra.mxu0 0.0
    %5794 = vmatprep.subr.mxu0 0.0
    %5795 = vmatpush1.msra.mxu0 0.0
    %5796 = vmatprep.subr.mxu0 0.0
    %5797 = vmatpush1.msra.mxu0 0.0
    %5798 = vmatprep.subr.mxu0 0.0
    %5799 = vmatpush1.msra.mxu0 0.0
    %5800 = vmatprep.subr.mxu0 0.0
    %5801 = vmatpush1.msra.mxu0 0.0
    %5802 = vmatprep.subr.mxu0 0.0
    %5803 = vmatpush1.msra.mxu0 0.0
    %5804 = vmatprep.subr.mxu0 0.0
    %5805 = vmatpush1.msra.mxu0 0.0
    %5806 = vmatprep.subr.mxu0 0.0
    %5807 = vmatpush1.msra.mxu0 0.0
    %5808 = vmatprep.mubr.f32.mxu0 0.0
    %5809 = vmatmul.mubr.f32.gmra.mrb[0].mxu0 %v5728
    %v5810 = vpop.f32.mrb[0].mxu0
    %v5811 = vadd.f32 %v5549, %v5810
    %v5812 = vpop.f32.mrb[0].mxu0
    %5813 = vmatprep.mubr.f32.mxu0 0.0
    %5814 = vmatmul.mubr.f32.gmra.mrb[0].mxu0 %v5729
    %v5815 = vpop.f32.mrb[0].mxu0
    %v5816 = vadd.f32 %v5549, %v5815
    %v5817 = vpop.f32.mrb[0].mxu0
    %5818 = vmatprep.mubr.f32.mxu0 0.0
    %5819 = vmatmul.mubr.f32.gmra.mrb[0].mxu0 %v5730
    %v5820 = vpop.f32.mrb[0].mxu0
    %v5821 = vadd.f32 %v5549, %v5820
    %v5822 = vpop.f32.mrb[0].mxu0
    %5823 = vmatprep.mubr.f32.mxu0 0.0
    %5824 = vmatmul.mubr.f32.gmra.mrb[0].mxu0 %v5731
    %v5825 = vpop.f32.mrb[0].mxu0
    %v5826 = vadd.f32 %v5549, %v5825
    %v5827 = vpop.f32.mrb[0].mxu0
    %5828 = vmatprep.mubr.f32.mxu0 0.0
    %5829 = vmatmul.mubr.f32.gmra.mrb[0].mxu0 %v5732
    %v5830 = vpop.f32.mrb[0].mxu0
    %v5831 = vadd.f32 %v5549, %v5830
    %v5832 = vpop.f32.mrb[0].mxu0
    %5833 = vmatprep.mubr.f32.mxu0 0.0
    %5834 = vmatmul.mubr.f32.gmra.mrb[0].mxu0 %v5733
    %v5835 = vpop.f32.mrb[0].mxu0
    %v5836 = vadd.f32 %v5549, %v5835
    %v5837 = vpop.f32.mrb[0].mxu0
    %5838 = vmatprep.mubr.f32.mxu0 0.0
    %5839 = vmatmul.mubr.f32.gmra.mrb[0].mxu0 %v5734
    %v5840 = vpop.f32.mrb[0].mxu0
    %v5841 = vadd.f32 %v5549, %v5840
    %v5842 = vpop.f32.mrb[0].mxu0
    %5843 = vmatprep.mubr.f32.mxu0 0.0
    %5844 = vmatmul.mubr.f32.gmra.mrb[0].mxu0 %v5735
    %v5845 = vpop.f32.mrb[0].mxu0
    %v5846 = vadd.f32 %v5549, %v5845
    %v5847 = vpop.f32.mrb[0].mxu0
    %5848 = vmatprep.mubr.f32.mxu0 0.0
    %5849 = vmatmul.mubr.f32.gmra.mrb[0].mxu0 %v5736
    %v5850 = vpop.f32.mrb[0].mxu0
    %v5851 = vadd.f32 %v5549, %v5850
    %v5852 = vpop.f32.mrb[0].mxu0
    %5853 = vmatprep.mubr.f32.mxu0 0.0
    %5854 = vmatmul.mubr.f32.gmra.mrb[0].mxu0 %v5737
    %v5855 = vpop.f32.mrb[0].mxu0
    %v5856 = vadd.f32 %v5549, %v5855
    %v5857 = vpop.f32.mrb[0].mxu0
    %5858 = vmatprep.mubr.f32.mxu0 0.0
    %5859 = vmatmul.mubr.f32.gmra.mrb[0].mxu0 %v5738
    %v5860 = vpop.f32.mrb[0].mxu0
    %v5861 = vadd.f32 %v5549, %v5860
    %v5862 = vpop.f32.mrb[0].mxu0
    %5863 = vmatprep.mubr.f32.mxu0 0.0
    %5864 = vmatmul.mubr.f32.gmra.mrb[0].mxu0 %v5739
    %v5865 = vpop.f32.mrb[0].mxu0
    %v5866 = vadd.f32 %v5549, %v5865
    %v5867 = vpop.f32.mrb[0].mxu0
    %5868 = vmatprep.mubr.f32.mxu0 0.0
    %5869 = vmatmul.mubr.f32.gmra.mrb[0].mxu0 %v5740
    %v5870 = vpop.f32.mrb[0].mxu0
    %v5871 = vadd.f32 %v5549, %v5870
    %v5872 = vpop.f32.mrb[0].mxu0
    %5873 = vmatprep.mubr.f32.mxu0 0.0
    %5874 = vmatmul.mubr.f32.gmra.mrb[0].mxu0 %v5741
    %v5875 = vpop.f32.mrb[0].mxu0
    %v5876 = vadd.f32 %v5549, %v5875
    %v5877 = vpop.f32.mrb[0].mxu0
    %5878 = vmatprep.mubr.f32.mxu0 0.0
    %5879 = vmatmul.mubr.f32.gmra.mrb[0].mxu0 %v5742
    %v5880 = vpop.f32.mrb[0].mxu0
    %v5881 = vadd.f32 %v5549, %v5880
    %v5882 = vpop.f32.mrb[0].mxu0
    %5883 = vmatprep.mubr.f32.mxu0 0.0
    %5884 = vmatmul.mubr.f32.gmra.mrb[0].mxu0 %v5743
    %v5885 = vpop.f32.mrb[0].mxu0
    %v5886 = vadd.f32 %v5549, %v5885
    %v5887 = vpop.f32.mrb[0].mxu0
    %5888 = vdwg.mxu0
    %5889 = vmatprep.subr.mxu0 0.0
    %5890 = vmatpush1.msra.mxu0 %v5550
    %5891 = vmatprep.subr.mxu0 0.0
    %5892 = vmatpush1.msra.mxu0 %v5551
    %5893 = vmatprep.subr.mxu0 0.0
    %5894 = vmatpush1.msra.mxu0 %v5552
    %5895 = vmatprep.subr.mxu0 0.0
    %5896 = vmatpush1.msra.mxu0 %v5553
    %5897 = vmatprep.subr.mxu0 0.0
    %5898 = vmatpush1.msra.mxu0 %v5554
    %5899 = vmatprep.subr.mxu0 0.0
    %5900 = vmatpush1.msra.mxu0 %v5555
    %5901 = vmatprep.subr.mxu0 0.0
    %5902 = vmatpush1.msra.mxu0 %v5556
    %5903 = vmatprep.subr.mxu0 0.0
    %5904 = vmatpush1.msra.mxu0 %v5557
    %5905 = vmatprep.subr.mxu0 0.0
    %5906 = vmatpush1.msra.mxu0 %v5558
    %5907 = vmatprep.subr.mxu0 0.0
    %5908 = vmatpush1.msra.mxu0 %v5559
    %5909 = vmatprep.subr.mxu0 0.0
    %5910 = vmatpush1.msra.mxu0 %v5560
    %5911 = vmatprep.subr.mxu0 0.0
    %5912 = vmatpush1.msra.mxu0 %v5561
    %5913 = vmatprep.subr.mxu0 0.0
    %5914 = vmatpush1.msra.mxu0 %v5562
    %5915 = vmatprep.subr.mxu0 0.0
    %5916 = vmatpush1.msra.mxu0 %v5563
    %5917 = vmatprep.subr.mxu0 0.0
    %5918 = vmatpush1.msra.mxu0 %v5564
    %5919 = vmatprep.subr.mxu0 0.0
    %5920 = vmatpush1.msra.mxu0 %v5565
    %5921 = vmatprep.subr.mxu0 0.0
    %5922 = vmatpush1.msra.mxu0 %v5566
    %5923 = vmatprep.subr.mxu0 0.0
    %5924 = vmatpush1.msra.mxu0 %v5567
    %5925 = vmatprep.subr.mxu0 0.0
    %5926 = vmatpush1.msra.mxu0 %v5568
    %5927 = vmatprep.subr.mxu0 0.0
    %5928 = vmatpush1.msra.mxu0 %v5569
    %5929 = vmatprep.subr.mxu0 0.0
    %5930 = vmatpush1.msra.mxu0 %v5570
    %5931 = vmatprep.subr.mxu0 0.0
    %5932 = vmatpush1.msra.mxu0 %v5571
    %5933 = vmatprep.subr.mxu0 0.0
    %5934 = vmatpush1.msra.mxu0 %v5572
    %5935 = vmatprep.subr.mxu0 0.0
    %5936 = vmatpush1.msra.mxu0 %v5573
    %5937 = vmatprep.subr.mxu0 0.0
    %5938 = vmatpush1.msra.mxu0 %v5574
    %5939 = vmatprep.subr.mxu0 0.0
    %5940 = vmatpush1.msra.mxu0 %v5575
    %5941 = vmatprep.subr.mxu0 0.0
    %5942 = vmatpush1.msra.mxu0 %v5576
    %5943 = vmatprep.subr.mxu0 0.0
    %5944 = vmatpush1.msra.mxu0 %v5577
    %5945 = vmatprep.subr.mxu0 0.0
    %5946 = vmatpush1.msra.mxu0 %v5578
    %5947 = vmatprep.subr.mxu0 0.0
    %5948 = vmatpush1.msra.mxu0 %v5579
    %5949 = vmatprep.subr.mxu0 0.0
    %5950 = vmatpush1.msra.mxu0 %v5580
    %5951 = vmatprep.subr.mxu0 0.0
    %5952 = vmatpush1.msra.mxu0 %v5581
    %5953 = vmatprep.mubr.f32.mxu0 %v5469
    %5954 = vmatmul.mubr.f32.gmra.mrb[0].mxu0 %v5468
    %v5955 = vpop.f32.mrb[0].mxu0
    %v5956 = vadd.f32 %v5582, %v5955
    %v5957 = vpop.f32.mrb[0].mxu0
    %5958 = vmatprep.mubr.f32.mxu0 %v5471
    %5959 = vmatmul.mubr.f32.gmra.mrb[0].mxu0 %v5470
    %v5960 = vpop.f32.mrb[0].mxu0
    %v5961 = vadd.f32 %v5582, %v5960
    %v5962 = vpop.f32.mrb[0].mxu0
    %5963 = vmatprep.mubr.f32.mxu0 %v5473
    %5964 = vmatmul.mubr.f32.gmra.mrb[0].mxu0 %v5472
    %v5965 = vpop.f32.mrb[0].mxu0
    %v5966 = vadd.f32 %v5582, %v5965
    %v5967 = vpop.f32.mrb[0].mxu0
    %5968 = vmatprep.mubr.f32.mxu0 %v5475
    %5969 = vmatmul.mubr.f32.gmra.mrb[0].mxu0 %v5474
    %v5970 = vpop.f32.mrb[0].mxu0
    %v5971 = vadd.f32 %v5582, %v5970
    %v5972 = vpop.f32.mrb[0].mxu0
    %5973 = vmatprep.mubr.f32.mxu0 %v5477
    %5974 = vmatmul.mubr.f32.gmra.mrb[0].mxu0 %v5476
    %v5975 = vpop.f32.mrb[0].mxu0
    %v5976 = vadd.f32 %v5582, %v5975
    %v5977 = vpop.f32.mrb[0].mxu0
    %5978 = vmatprep.mubr.f32.mxu0 %v5479
    %5979 = vmatmul.mubr.f32.gmra.mrb[0].mxu0 %v5478
    %v5980 = vpop.f32.mrb[0].mxu0
    %v5981 = vadd.f32 %v5582, %v5980
    %v5982 = vpop.f32.mrb[0].mxu0
    %5983 = vmatprep.mubr.f32.mxu0 %v5481
    %5984 = vmatmul.mubr.f32.gmra.mrb[0].mxu0 %v5480
    %v5985 = vpop.f32.mrb[0].mxu0
    %v5986 = vadd.f32 %v5582, %v5985
    %v5987 = vpop.f32.mrb[0].mxu0
    %5988 = vmatprep.mubr.f32.mxu0 %v5483
    %5989 = vmatmul.mubr.f32.gmra.mrb[0].mxu0 %v5482
    %v5990 = vpop.f32.mrb[0].mxu0
    %v5991 = vadd.f32 %v5582, %v5990
    %v5992 = vpop.f32.mrb[0].mxu0
    %5993 = vmatprep.mubr.f32.mxu0 %v5485
    %5994 = vmatmul.mubr.f32.gmra.mrb[0].mxu0 %v5484
    %v5995 = vpop.f32.mrb[0].mxu0
    %v5996 = vadd.f32 %v5582, %v5995
    %v5997 = vpop.f32.mrb[0].mxu0
    %5998 = vmatprep.mubr.f32.mxu0 %v5487
    %5999 = vmatmul.mubr.f32.gmra.mrb[0].mxu0 %v5486
    %v6000 = vpop.f32.mrb[0].mxu0
    %v6001 = vadd.f32 %v5582, %v6000
    %v6002 = vpop.f32.mrb[0].mxu0
    %6003 = vmatprep.mubr.f32.mxu0 %v5489
    %6004 = vmatmul.mubr.f32.gmra.mrb[0].mxu0 %v5488
    %v6005 = vpop.f32.mrb[0].mxu0
    %v6006 = vadd.f32 %v5582, %v6005
    %v6007 = vpop.f32.mrb[0].mxu0
    %6008 = vmatprep.mubr.f32.mxu0 %v5491
    %6009 = vmatmul.mubr.f32.gmra.mrb[0].mxu0 %v5490
    %v6010 = vpop.f32.mrb[0].mxu0
    %v6011 = vadd.f32 %v5582, %v6010
    %v6012 = vpop.f32.mrb[0].mxu0
    %6013 = vmatprep.mubr.f32.mxu0 %v5493
    %6014 = vmatmul.mubr.f32.gmra.mrb[0].mxu0 %v5492
    %v6015 = vpop.f32.mrb[0].mxu0
    %v6016 = vadd.f32 %v5582, %v6015
    %v6017 = vpop.f32.mrb[0].mxu0
    %6018 = vmatprep.mubr.f32.mxu0 %v5495
    %6019 = vmatmul.mubr.f32.gmra.mrb[0].mxu0 %v5494
    %v6020 = vpop.f32.mrb[0].mxu0
    %v6021 = vadd.f32 %v5582, %v6020
    %v6022 = vpop.f32.mrb[0].mxu0
    %6023 = vmatprep.mubr.f32.mxu0 %v5497
    %6024 = vmatmul.mubr.f32.gmra.mrb[0].mxu0 %v5496
    %v6025 = vpop.f32.mrb[0].mxu0
    %v6026 = vadd.f32 %v5582, %v6025
    %v6027 = vpop.f32.mrb[0].mxu0
    %6028 = vmatprep.mubr.f32.mxu0 %v5499
    %6029 = vmatmul.mubr.f32.gmra.mrb[0].mxu0 %v5498
    %v6030 = vpop.f32.mrb[0].mxu0
    %v6031 = vadd.f32 %v5582, %v6030
    %v6032 = vpop.f32.mrb[0].mxu0
    %6033 = vdwg.mxu0
    %v6034 = vadd.f32 %v5811, %v5956
    %v6035 = vadd.f32 %v5816, %v5961
    %v6036 = vadd.f32 %v5821, %v5966
    %v6037 = vadd.f32 %v5826, %v5971
    %v6038 = vadd.f32 %v5831, %v5976
    %v6039 = vadd.f32 %v5836, %v5981
    %v6040 = vadd.f32 %v5841, %v5986
    %v6041 = vadd.f32 %v5846, %v5991
    %v6042 = vadd.f32 %v5851, %v5996
    %v6043 = vadd.f32 %v5856, %v6001
    %v6044 = vadd.f32 %v5861, %v6006
    %v6045 = vadd.f32 %v5866, %v6011
    %v6046 = vadd.f32 %v5871, %v6016
    %v6047 = vadd.f32 %v5876, %v6021
    %v6048 = vadd.f32 %v5881, %v6026
    %v6049 = vadd.f32 %v5886, %v6031
    %v6050 = vmax.f32 %v6034, 0.0
    %v6051 = vmax.f32 %v6035, 0.0
    %v6052 = vmax.f32 %v6036, 0.0
    %v6053 = vmax.f32 %v6037, 0.0
    %v6054 = vmax.f32 %v6038, 0.0
    %v6055 = vmax.f32 %v6039, 0.0
    %v6056 = vmax.f32 %v6040, 0.0
    %v6057 = vmax.f32 %v6041, 0.0
    %v6058 = vmax.f32 %v6042, 0.0
    %v6059 = vmax.f32 %v6043, 0.0
    %v6060 = vmax.f32 %v6044, 0.0
    %v6061 = vmax.f32 %v6045, 0.0
    %v6062 = vmax.f32 %v6046, 0.0
    %v6063 = vmax.f32 %v6047, 0.0
    %v6064 = vmax.f32 %v6048, 0.0
    %v6065 = vmax.f32 %v6049, 0.0
    %v6066 = vld [vmem:[#allocation22] sm:$0xff]
    %v6067 = vld [vmem:[#allocation22 + $0x8] sm:$0xff]
    %v6068 = vld [vmem:[#allocation22 + $0x10] sm:$0xff]
    %v6069 = vld [vmem:[#allocation22 + $0x18] sm:$0xff]
    %v6070 = vld [vmem:[#allocation22 + $0x20] sm:$0xff]
    %v6071 = vld [vmem:[#allocation22 + $0x28] sm:$0xff]
    %v6072 = vld [vmem:[#allocation22 + $0x30] sm:$0xff]
    %v6073 = vld [vmem:[#allocation22 + $0x38] sm:$0xff]
    %v6074 = vld [vmem:[#allocation22 + $0x40] sm:$0xff]
    %v6075 = vld [vmem:[#allocation22 + $0x48] sm:$0xff]
    %v6076 = vld [vmem:[#allocation22 + $0x50] sm:$0xff]
    %v6077 = vld [vmem:[#allocation22 + $0x58] sm:$0xff]
    %v6078 = vld [vmem:[#allocation22 + $0x60] sm:$0xff]
    %v6079 = vld [vmem:[#allocation22 + $0x68] sm:$0xff]
    %v6080 = vld [vmem:[#allocation22 + $0x70] sm:$0xff]
    %v6081 = vld [vmem:[#allocation22 + $0x78] sm:$0xff]
    %v6082 = vld [vmem:[#allocation25 + $0x23] ss:$0 sm:$0xff]
    %v6083 = vld [vmem:[#allocation23] sm:$0xff]
    %v6084 = vld [vmem:[#allocation23 + $0x8] sm:$0xff]
    %v6085 = vld [vmem:[#allocation23 + $0x10] sm:$0xff]
    %v6086 = vld [vmem:[#allocation23 + $0x18] sm:$0xff]
    %v6087 = vld [vmem:[#allocation23 + $0x20] sm:$0xff]
    %v6088 = vld [vmem:[#allocation23 + $0x28] sm:$0xff]
    %v6089 = vld [vmem:[#allocation23 + $0x30] sm:$0xff]
    %v6090 = vld [vmem:[#allocation23 + $0x38] sm:$0xff]
    %v6091 = vld [vmem:[#allocation23 + $0x40] sm:$0xff]
    %v6092 = vld [vmem:[#allocation23 + $0x48] sm:$0xff]
    %v6093 = vld [vmem:[#allocation23 + $0x50] sm:$0xff]
    %v6094 = vld [vmem:[#allocation23 + $0x58] sm:$0xff]
    %v6095 = vld [vmem:[#allocation23 + $0x60] sm:$0xff]
    %v6096 = vld [vmem:[#allocation23 + $0x68] sm:$0xff]
    %v6097 = vld [vmem:[#allocation23 + $0x70] sm:$0xff]
    %v6098 = vld [vmem:[#allocation23 + $0x78] sm:$0xff]
    %v6099 = vld [vmem:[#allocation25 + $0x24] ss:$0 sm:$0xff]
    %6100 = vmatprep.subr.mxu0 0.0
    %6101 = vmatpush1.msra.mxu0 %v6066
    %6102 = vmatprep.subr.mxu0 0.0
    %6103 = vmatpush1.msra.mxu0 %v6067
    %6104 = vmatprep.subr.mxu0 0.0
    %6105 = vmatpush1.msra.mxu0 %v6068
    %6106 = vmatprep.subr.mxu0 0.0
    %6107 = vmatpush1.msra.mxu0 %v6069
    %6108 = vmatprep.subr.mxu0 0.0
    %6109 = vmatpush1.msra.mxu0 %v6070
    %6110 = vmatprep.subr.mxu0 0.0
    %6111 = vmatpush1.msra.mxu0 %v6071
    %6112 = vmatprep.subr.mxu0 0.0
    %6113 = vmatpush1.msra.mxu0 %v6072
    %6114 = vmatprep.subr.mxu0 0.0
    %6115 = vmatpush1.msra.mxu0 %v6073
    %6116 = vmatprep.subr.mxu0 0.0
    %6117 = vmatpush1.msra.mxu0 %v6074
    %6118 = vmatprep.subr.mxu0 0.0
    %6119 = vmatpush1.msra.mxu0 %v6075
    %6120 = vmatprep.subr.mxu0 0.0
    %6121 = vmatpush1.msra.mxu0 %v6076
    %6122 = vmatprep.subr.mxu0 0.0
    %6123 = vmatpush1.msra.mxu0 %v6077
    %6124 = vmatprep.subr.mxu0 0.0
    %6125 = vmatpush1.msra.mxu0 %v6078
    %6126 = vmatprep.subr.mxu0 0.0
    %6127 = vmatpush1.msra.mxu0 %v6079
    %6128 = vmatprep.subr.mxu0 0.0
    %6129 = vmatpush1.msra.mxu0 %v6080
    %6130 = vmatprep.subr.mxu0 0.0
    %6131 = vmatpush1.msra.mxu0 %v6081
    %6132 = vmatprep.subr.mxu0 0.0
    %6133 = vmatpush1.msra.mxu0 0.0
    %6134 = vmatprep.subr.mxu0 0.0
    %6135 = vmatpush1.msra.mxu0 0.0
    %6136 = vmatprep.subr.mxu0 0.0
    %6137 = vmatpush1.msra.mxu0 0.0
    %6138 = vmatprep.subr.mxu0 0.0
    %6139 = vmatpush1.msra.mxu0 0.0
    %6140 = vmatprep.subr.mxu0 0.0
    %6141 = vmatpush1.msra.mxu0 0.0
    %6142 = vmatprep.subr.mxu0 0.0
    %6143 = vmatpush1.msra.mxu0 0.0
    %6144 = vmatprep.subr.mxu0 0.0
    %6145 = vmatpush1.msra.mxu0 0.0
    %6146 = vmatprep.subr.mxu0 0.0
    %6147 = vmatpush1.msra.mxu0 0.0
    %6148 = vmatprep.subr.mxu0 0.0
    %6149 = vmatpush1.msra.mxu0 0.0
    %6150 = vmatprep.subr.mxu0 0.0
    %6151 = vmatpush1.msra.mxu0 0.0
    %6152 = vmatprep.subr.mxu0 0.0
    %6153 = vmatpush1.msra.mxu0 0.0
    %6154 = vmatprep.subr.mxu0 0.0
    %6155 = vmatpush1.msra.mxu0 0.0
    %6156 = vmatprep.subr.mxu0 0.0
    %6157 = vmatpush1.msra.mxu0 0.0
    %6158 = vmatprep.subr.mxu0 0.0
    %6159 = vmatpush1.msra.mxu0 0.0
    %6160 = vmatprep.subr.mxu0 0.0
    %6161 = vmatpush1.msra.mxu0 0.0
    %6162 = vmatprep.subr.mxu0 0.0
    %6163 = vmatpush1.msra.mxu0 0.0
    %6164 = vmatprep.mubr.f32.mxu0 0.0
    %6165 = vmatmul.mubr.f32.gmra.mrb[0].mxu0 %v6050
    %v6166 = vpop.f32.mrb[0].mxu0
    %v6167 = vadd.f32 %v6082, %v6166
    %v6168 = vpop.f32.mrb[0].mxu0
    %6169 = vmatprep.mubr.f32.mxu0 0.0
    %6170 = vmatmul.mubr.f32.gmra.mrb[0].mxu0 %v6051
    %v6171 = vpop.f32.mrb[0].mxu0
    %v6172 = vadd.f32 %v6082, %v6171
    %v6173 = vpop.f32.mrb[0].mxu0
    %6174 = vmatprep.mubr.f32.mxu0 0.0
    %6175 = vmatmul.mubr.f32.gmra.mrb[0].mxu0 %v6052
    %v6176 = vpop.f32.mrb[0].mxu0
    %v6177 = vadd.f32 %v6082, %v6176
    %v6178 = vpop.f32.mrb[0].mxu0
    %6179 = vmatprep.mubr.f32.mxu0 0.0
    %6180 = vmatmul.mubr.f32.gmra.mrb[0].mxu0 %v6053
    %v6181 = vpop.f32.mrb[0].mxu0
    %v6182 = vadd.f32 %v6082, %v6181
    %v6183 = vpop.f32.mrb[0].mxu0
    %6184 = vmatprep.mubr.f32.mxu0 0.0
    %6185 = vmatmul.mubr.f32.gmra.mrb[0].mxu0 %v6054
    %v6186 = vpop.f32.mrb[0].mxu0
    %v6187 = vadd.f32 %v6082, %v6186
    %v6188 = vpop.f32.mrb[0].mxu0
    %6189 = vmatprep.mubr.f32.mxu0 0.0
    %6190 = vmatmul.mubr.f32.gmra.mrb[0].mxu0 %v6055
    %v6191 = vpop.f32.mrb[0].mxu0
    %v6192 = vadd.f32 %v6082, %v6191
    %v6193 = vpop.f32.mrb[0].mxu0
    %6194 = vmatprep.mubr.f32.mxu0 0.0
    %6195 = vmatmul.mubr.f32.gmra.mrb[0].mxu0 %v6056
    %v6196 = vpop.f32.mrb[0].mxu0
    %v6197 = vadd.f32 %v6082, %v6196
    %v6198 = vpop.f32.mrb[0].mxu0
    %6199 = vmatprep.mubr.f32.mxu0 0.0
    %6200 = vmatmul.mubr.f32.gmra.mrb[0].mxu0 %v6057
    %v6201 = vpop.f32.mrb[0].mxu0
    %v6202 = vadd.f32 %v6082, %v6201
    %v6203 = vpop.f32.mrb[0].mxu0
    %6204 = vmatprep.mubr.f32.mxu0 0.0
    %6205 = vmatmul.mubr.f32.gmra.mrb[0].mxu0 %v6058
    %v6206 = vpop.f32.mrb[0].mxu0
    %v6207 = vadd.f32 %v6082, %v6206
    %v6208 = vpop.f32.mrb[0].mxu0
    %6209 = vmatprep.mubr.f32.mxu0 0.0
    %6210 = vmatmul.mubr.f32.gmra.mrb[0].mxu0 %v6059
    %v6211 = vpop.f32.mrb[0].mxu0
    %v6212 = vadd.f32 %v6082, %v6211
    %v6213 = vpop.f32.mrb[0].mxu0
    %6214 = vmatprep.mubr.f32.mxu0 0.0
    %6215 = vmatmul.mubr.f32.gmra.mrb[0].mxu0 %v6060
    %v6216 = vpop.f32.mrb[0].mxu0
    %v6217 = vadd.f32 %v6082, %v6216
    %v6218 = vpop.f32.mrb[0].mxu0
    %6219 = vmatprep.mubr.f32.mxu0 0.0
    %6220 = vmatmul.mubr.f32.gmra.mrb[0].mxu0 %v6061
    %v6221 = vpop.f32.mrb[0].mxu0
    %v6222 = vadd.f32 %v6082, %v6221
    %v6223 = vpop.f32.mrb[0].mxu0
    %6224 = vmatprep.mubr.f32.mxu0 0.0
    %6225 = vmatmul.mubr.f32.gmra.mrb[0].mxu0 %v6062
    %v6226 = vpop.f32.mrb[0].mxu0
    %v6227 = vadd.f32 %v6082, %v6226
    %v6228 = vpop.f32.mrb[0].mxu0
    %6229 = vmatprep.mubr.f32.mxu0 0.0
    %6230 = vmatmul.mubr.f32.gmra.mrb[0].mxu0 %v6063
    %v6231 = vpop.f32.mrb[0].mxu0
    %v6232 = vadd.f32 %v6082, %v6231
    %v6233 = vpop.f32.mrb[0].mxu0
    %6234 = vmatprep.mubr.f32.mxu0 0.0
    %6235 = vmatmul.mubr.f32.gmra.mrb[0].mxu0 %v6064
    %v6236 = vpop.f32.mrb[0].mxu0
    %v6237 = vadd.f32 %v6082, %v6236
    %v6238 = vpop.f32.mrb[0].mxu0
    %6239 = vmatprep.mubr.f32.mxu0 0.0
    %6240 = vmatmul.mubr.f32.gmra.mrb[0].mxu0 %v6065
    %v6241 = vpop.f32.mrb[0].mxu0
    %v6242 = vadd.f32 %v6082, %v6241
    %v6243 = vpop.f32.mrb[0].mxu0
    %6244 = vdwg.mxu0
    %v6245 = vmax.f32 %v6167, 0.0
    %v6246 = vmax.f32 %v6172, 0.0
    %v6247 = vmax.f32 %v6177, 0.0
    %v6248 = vmax.f32 %v6182, 0.0
    %v6249 = vmax.f32 %v6187, 0.0
    %v6250 = vmax.f32 %v6192, 0.0
    %v6251 = vmax.f32 %v6197, 0.0
    %v6252 = vmax.f32 %v6202, 0.0
    %v6253 = vmax.f32 %v6207, 0.0
    %v6254 = vmax.f32 %v6212, 0.0
    %v6255 = vmax.f32 %v6217, 0.0
    %v6256 = vmax.f32 %v6222, 0.0
    %v6257 = vmax.f32 %v6227, 0.0
    %v6258 = vmax.f32 %v6232, 0.0
    %v6259 = vmax.f32 %v6237, 0.0
    %v6260 = vmax.f32 %v6242, 0.0
    %6261 = vmatprep.subr.mxu0 0.0
    %6262 = vmatpush1.msra.mxu0 %v6083
    %6263 = vmatprep.subr.mxu0 0.0
    %6264 = vmatpush1.msra.mxu0 %v6084
    %6265 = vmatprep.subr.mxu0 0.0
    %6266 = vmatpush1.msra.mxu0 %v6085
    %6267 = vmatprep.subr.mxu0 0.0
    %6268 = vmatpush1.msra.mxu0 %v6086
    %6269 = vmatprep.subr.mxu0 0.0
    %6270 = vmatpush1.msra.mxu0 %v6087
    %6271 = vmatprep.subr.mxu0 0.0
    %6272 = vmatpush1.msra.mxu0 %v6088
    %6273 = vmatprep.subr.mxu0 0.0
    %6274 = vmatpush1.msra.mxu0 %v6089
    %6275 = vmatprep.subr.mxu0 0.0
    %6276 = vmatpush1.msra.mxu0 %v6090
    %6277 = vmatprep.subr.mxu0 0.0
    %6278 = vmatpush1.msra.mxu0 %v6091
    %6279 = vmatprep.subr.mxu0 0.0
    %6280 = vmatpush1.msra.mxu0 %v6092
    %6281 = vmatprep.subr.mxu0 0.0
    %6282 = vmatpush1.msra.mxu0 %v6093
    %6283 = vmatprep.subr.mxu0 0.0
    %6284 = vmatpush1.msra.mxu0 %v6094
    %6285 = vmatprep.subr.mxu0 0.0
    %6286 = vmatpush1.msra.mxu0 %v6095
    %6287 = vmatprep.subr.mxu0 0.0
    %6288 = vmatpush1.msra.mxu0 %v6096
    %6289 = vmatprep.subr.mxu0 0.0
    %6290 = vmatpush1.msra.mxu0 %v6097
    %6291 = vmatprep.subr.mxu0 0.0
    %6292 = vmatpush1.msra.mxu0 %v6098
    %6293 = vmatprep.subr.mxu0 0.0
    %6294 = vmatpush1.msra.mxu0 0.0
    %6295 = vmatprep.subr.mxu0 0.0
    %6296 = vmatpush1.msra.mxu0 0.0
    %6297 = vmatprep.subr.mxu0 0.0
    %6298 = vmatpush1.msra.mxu0 0.0
    %6299 = vmatprep.subr.mxu0 0.0
    %6300 = vmatpush1.msra.mxu0 0.0
    %6301 = vmatprep.subr.mxu0 0.0
    %6302 = vmatpush1.msra.mxu0 0.0
    %6303 = vmatprep.subr.mxu0 0.0
    %6304 = vmatpush1.msra.mxu0 0.0
    %6305 = vmatprep.subr.mxu0 0.0
    %6306 = vmatpush1.msra.mxu0 0.0
    %6307 = vmatprep.subr.mxu0 0.0
    %6308 = vmatpush1.msra.mxu0 0.0
    %6309 = vmatprep.subr.mxu0 0.0
    %6310 = vmatpush1.msra.mxu0 0.0
    %6311 = vmatprep.subr.mxu0 0.0
    %6312 = vmatpush1.msra.mxu0 0.0
    %6313 = vmatprep.subr.mxu0 0.0
    %6314 = vmatpush1.msra.mxu0 0.0
    %6315 = vmatprep.subr.mxu0 0.0
    %6316 = vmatpush1.msra.mxu0 0.0
    %6317 = vmatprep.subr.mxu0 0.0
    %6318 = vmatpush1.msra.mxu0 0.0
    %6319 = vmatprep.subr.mxu0 0.0
    %6320 = vmatpush1.msra.mxu0 0.0
    %6321 = vmatprep.subr.mxu0 0.0
    %6322 = vmatpush1.msra.mxu0 0.0
    %6323 = vmatprep.subr.mxu0 0.0
    %6324 = vmatpush1.msra.mxu0 0.0
    %6325 = vmatprep.mubr.f32.mxu0 0.0
    %6326 = vmatmul.mubr.f32.gmra.mrb[0].mxu0 %v6245
    %v6327 = vpop.f32.mrb[0].mxu0
    %v6328 = vadd.f32 %v6099, %v6327
    %v6329 = vpop.f32.mrb[0].mxu0
    %6330 = vmatprep.mubr.f32.mxu0 0.0
    %6331 = vmatmul.mubr.f32.gmra.mrb[0].mxu0 %v6246
    %v6332 = vpop.f32.mrb[0].mxu0
    %v6333 = vadd.f32 %v6099, %v6332
    %v6334 = vpop.f32.mrb[0].mxu0
    %6335 = vmatprep.mubr.f32.mxu0 0.0
    %6336 = vmatmul.mubr.f32.gmra.mrb[0].mxu0 %v6247
    %v6337 = vpop.f32.mrb[0].mxu0
    %v6338 = vadd.f32 %v6099, %v6337
    %v6339 = vpop.f32.mrb[0].mxu0
    %6340 = vmatprep.mubr.f32.mxu0 0.0
    %6341 = vmatmul.mubr.f32.gmra.mrb[0].mxu0 %v6248
    %v6342 = vpop.f32.mrb[0].mxu0
    %v6343 = vadd.f32 %v6099, %v6342
    %v6344 = vpop.f32.mrb[0].mxu0
    %6345 = vmatprep.mubr.f32.mxu0 0.0
    %6346 = vmatmul.mubr.f32.gmra.mrb[0].mxu0 %v6249
    %v6347 = vpop.f32.mrb[0].mxu0
    %v6348 = vadd.f32 %v6099, %v6347
    %v6349 = vpop.f32.mrb[0].mxu0
    %6350 = vmatprep.mubr.f32.mxu0 0.0
    %6351 = vmatmul.mubr.f32.gmra.mrb[0].mxu0 %v6250
    %v6352 = vpop.f32.mrb[0].mxu0
    %v6353 = vadd.f32 %v6099, %v6352
    %v6354 = vpop.f32.mrb[0].mxu0
    %6355 = vmatprep.mubr.f32.mxu0 0.0
    %6356 = vmatmul.mubr.f32.gmra.mrb[0].mxu0 %v6251
    %v6357 = vpop.f32.mrb[0].mxu0
    %v6358 = vadd.f32 %v6099, %v6357
    %v6359 = vpop.f32.mrb[0].mxu0
    %6360 = vmatprep.mubr.f32.mxu0 0.0
    %6361 = vmatmul.mubr.f32.gmra.mrb[0].mxu0 %v6252
    %v6362 = vpop.f32.mrb[0].mxu0
    %v6363 = vadd.f32 %v6099, %v6362
    %v6364 = vpop.f32.mrb[0].mxu0
    %6365 = vmatprep.mubr.f32.mxu0 0.0
    %6366 = vmatmul.mubr.f32.gmra.mrb[0].mxu0 %v6253
    %v6367 = vpop.f32.mrb[0].mxu0
    %v6368 = vadd.f32 %v6099, %v6367
    %v6369 = vpop.f32.mrb[0].mxu0
    %6370 = vmatprep.mubr.f32.mxu0 0.0
    %6371 = vmatmul.mubr.f32.gmra.mrb[0].mxu0 %v6254
    %v6372 = vpop.f32.mrb[0].mxu0
    %v6373 = vadd.f32 %v6099, %v6372
    %v6374 = vpop.f32.mrb[0].mxu0
    %6375 = vmatprep.mubr.f32.mxu0 0.0
    %6376 = vmatmul.mubr.f32.gmra.mrb[0].mxu0 %v6255
    %v6377 = vpop.f32.mrb[0].mxu0
    %v6378 = vadd.f32 %v6099, %v6377
    %v6379 = vpop.f32.mrb[0].mxu0
    %6380 = vmatprep.mubr.f32.mxu0 0.0
    %6381 = vmatmul.mubr.f32.gmra.mrb[0].mxu0 %v6256
    %v6382 = vpop.f32.mrb[0].mxu0
    %v6383 = vadd.f32 %v6099, %v6382
    %v6384 = vpop.f32.mrb[0].mxu0
    %6385 = vmatprep.mubr.f32.mxu0 0.0
    %6386 = vmatmul.mubr.f32.gmra.mrb[0].mxu0 %v6257
    %v6387 = vpop.f32.mrb[0].mxu0
    %v6388 = vadd.f32 %v6099, %v6387
    %v6389 = vpop.f32.mrb[0].mxu0
    %6390 = vmatprep.mubr.f32.mxu0 0.0
    %6391 = vmatmul.mubr.f32.gmra.mrb[0].mxu0 %v6258
    %v6392 = vpop.f32.mrb[0].mxu0
    %v6393 = vadd.f32 %v6099, %v6392
    %v6394 = vpop.f32.mrb[0].mxu0
    %6395 = vmatprep.mubr.f32.mxu0 0.0
    %6396 = vmatmul.mubr.f32.gmra.mrb[0].mxu0 %v6259
    %v6397 = vpop.f32.mrb[0].mxu0
    %v6398 = vadd.f32 %v6099, %v6397
    %v6399 = vpop.f32.mrb[0].mxu0
    %6400 = vmatprep.mubr.f32.mxu0 0.0
    %6401 = vmatmul.mubr.f32.gmra.mrb[0].mxu0 %v6260
    %v6402 = vpop.f32.mrb[0].mxu0
    %v6403 = vadd.f32 %v6099, %v6402
    %v6404 = vpop.f32.mrb[0].mxu0
    %6405 = vdwg.mxu0
    %6406 = vst [vmem:[#allocation26] sm:$0xff] %v6328
    %6407 = vst [vmem:[#allocation26 + $0x8] sm:$0xff] %v6333
    %6408 = vst [vmem:[#allocation26 + $0x10] sm:$0xff] %v6338
    %6409 = vst [vmem:[#allocation26 + $0x18] sm:$0xff] %v6343
    %6410 = vst [vmem:[#allocation26 + $0x20] sm:$0xff] %v6348
    %6411 = vst [vmem:[#allocation26 + $0x28] sm:$0xff] %v6353
    %6412 = vst [vmem:[#allocation26 + $0x30] sm:$0xff] %v6358
    %6413 = vst [vmem:[#allocation26 + $0x38] sm:$0xff] %v6363
    %6414 = vst [vmem:[#allocation26 + $0x40] sm:$0xff] %v6368
    %6415 = vst [vmem:[#allocation26 + $0x48] sm:$0xff] %v6373
    %6416 = vst [vmem:[#allocation26 + $0x50] sm:$0xff] %v6378
    %6417 = vst [vmem:[#allocation26 + $0x58] sm:$0xff] %v6383
    %6418 = vst [vmem:[#allocation26 + $0x60] sm:$0xff] %v6388
    %6419 = vst [vmem:[#allocation26 + $0x68] sm:$0xff] %v6393
    %6420 = vst [vmem:[#allocation26 + $0x70] sm:$0xff] %v6398
    %6421 = vst [vmem:[#allocation26 + $0x78] sm:$0xff] %v6403
    // Predicated region
    $region122: #{tpu_custom_call.1} parent=1 // pred_check
      _
    $region123: #{tpu_custom_call.1} parent=1 // pred_check_branch
      %6423 = sbr.rel (0) target = $region125
    $region124: #{tpu_custom_call.1} parent=1 // pred_region
      %s6425 = ssub.s32 2048, 2048
      %6426 = vsyncadd [#allocation4], %s6425
      %s6427 = sshll.u32 [#allocation26], 4
      %s6428 = int_to_ptr.vmem [resolvable:$true] %s6427
      %6433 = dma.vmem_to_hbm [thread:$0]  %s6428, 2048, %s15, [#allocation4], 128, 128, 8
    $region125: #{tpu_custom_call.1} parent=1 // pred_fallthru
      _
    // Predicated region
    $region126: #{tpu_custom_call.1} parent=1 // pred_check
      _
    $region127: #{tpu_custom_call.1} parent=1 // pred_check_branch
      %6435 = sbr.rel (0) target = $region129
    $region128: #{tpu_custom_call.1} parent=1 // pred_region
      %6436 = dma.done [#allocation4], 2048
    $region129: #{tpu_custom_call.1} parent=1 // pred_fallthru
      _
    %6437 = vsyncpa [#allocation3], 1
    %6438 = vsyncpa [#allocation6], 1
    %6439 = vsyncpa [#allocation9], 1
    %6440 = vsyncpa [#allocation12], 1
    %6441 = vsyncpa [#allocation15], 1
    %6442 = vsyncpa [#allocation18], 1
    %6443 = vsyncpa [#allocation21], 1
    %6444 = vsyncpa [#allocation24], 1
    %6445 = vsyncpa [#allocation4], 1

</llo_original>
